<compile_context>
chip_gen: v7x
topology: tpu7x:2x2x1
jax: 0.10.0
libtpu: 0.0.40
codegen_flags: <defaults>
</compile_context>

<pallas_src>
import functools

import jax
import jax.numpy as jnp
from jax import lax
from jax.experimental import pallas as pl
from jax.experimental.pallas import tpu as pltpu


_ROW_CHUNK = 128          # prediction rows transposed/reduced per step in kernel 1
_NMS_TILE = 32            # candidates resolved per tile in the greedy NMS loop


def _round_up(x, m):
    return ((x + m - 1) // m) * m


def _lane_tile(n, max_tile=2048):
    """Largest tile <= max_tile that is a multiple of 128 and divides n."""
    for t in range(min(max_tile, n), 127, -128):
        if n % t == 0 and t % 128 == 0:
            return t
    return n          # n < 128 or no aligned divisor: full extent (valid BlockSpec)


# ---------------------------------------------------------------------------
# Kernel 1: per-prediction class max (scores.max(dim=1).values in torch).
# Consumes (B, N, C) directly; classes are put on sublanes in-kernel so the
# reduce is a sublane reduce (VPU + 3-step fold) instead of a lane-reduce tree.
# ---------------------------------------------------------------------------
def _class_max_kernel(s_ref, max_ref):
    # s_ref block: (1, TN, C); max_ref block: (1, 1, TN)
    tn = s_ref.shape[1]
    for off in range(0, tn, _ROW_CHUNK):                       # static chunk loop
        s = s_ref[0, pl.ds(off, _ROW_CHUNK), :]                # (128, C)
        st = jnp.transpose(s)                                  # (C, 128): classes -> sublanes
        max_ref[0, 0, pl.ds(off, _ROW_CHUNK)] = jnp.max(st, axis=0)


def class_max(scores):
    """scores: (B, N, C) f32 with N % 128 == 0 -> class-max scores (B, N) f32."""
    B, N, C = scores.shape
    TN = _lane_tile(N)
    ce = pl.CostEstimate(
        flops=B * N * C,
        transcendentals=0,
        bytes_accessed=B * N * C * 4 + B * N * 4,
    )
    max_s = pl.pallas_call(
        _class_max_kernel,
        out_shape=jax.ShapeDtypeStruct((B, 1, N), jnp.float32),
        grid=(B, N // TN),
        in_specs=[pl.BlockSpec((1, TN, C), lambda b, n: (b, n, 0))],
        out_specs=pl.BlockSpec((1, 1, TN), lambda b, n: (b, 0, n)),
        compiler_params=pltpu.CompilerParams(
            dimension_semantics=("parallel", "parallel"),
            vmem_limit_bytes=32 * 1024 * 1024),
        cost_estimate=ce,
    )(scores)
    return max_s[:, 0, :]


# ---------------------------------------------------------------------------
# Kernel 2: pairwise suppression precompute + tiled greedy NMS over
# score-sorted, class-offset boxes.  Boxes arrive as (B, 4, K_pad); scores as
# (B, 1, K_pad) sorted descending with -inf padding.
# ---------------------------------------------------------------------------
def _nms_kernel(bck_ref, score_ref, keep_ref, sup_ref, *,
                min_score, nms_iou, n_tiles, tile):
    b_ck = bck_ref[0]                                     # (4, Kp)
    kp = b_ck.shape[1]
    b_kc = jnp.transpose(b_ck)                            # (Kp, 4) tiny XLU relayout

    x1c, y1c = b_kc[:, 0:1], b_kc[:, 1:2]                 # (Kp, 1)
    x2c, y2c = b_kc[:, 2:3], b_kc[:, 3:4]
    x1r, y1r = b_ck[0:1, :], b_ck[1:2, :]                 # (1, Kp)
    x2r, y2r = b_ck[2:3, :], b_ck[3:4, :]

    iw = jnp.maximum(jnp.minimum(x2c, x2r) - jnp.maximum(x1c, x1r), 0.0)
    ih = jnp.maximum(jnp.minimum(y2c, y2r) - jnp.maximum(y1c, y1r), 0.0)
    inter = iw * ih                                       # (Kp, Kp)
    area_c = (x2c - x1c) * (y2c - y1c)                    # (Kp, 1)
    area_r = (x2r - x1r) * (y2r - y1r)                    # (1, Kp)
    union = area_c + area_r - inter

    # Divide-free suppression mask:  inter > thr * union  <=>  iou > thr
    # (and 0 > 0 is False when union == 0, matching the guarded-divide version).
    rowm = lax.broadcasted_iota(jnp.int32, (kp, kp), 0)
    colm = lax.broadcasted_iota(jnp.int32, (kp, kp), 1)
    sup_ref[...] = jnp.where((inter > nms_iou * union) & (colm > rowm), 1.0, 0.0)

    scores = score_ref[0]                                 # (1, Kp) sorted desc, -inf pad
    # strict '>' like the torch module; filtered / padded boxes start dead so
    # they never suppress nor get kept.
    keep = jnp.where(scores > min_score, 1.0, 0.0)

    # Tiled greedy NMS (exactly equivalent to the sequential recurrence):
    #   * within a tile: short static serial pass on a (1, tile) slice,
    #   * across tiles: the tile's final kept rows are applied to the whole
    #     keep vector with one small MXU matmul (suppressor count).
    for t in range(n_tiles):                              # static tile loop
        base = t * tile
        keep_t = keep[:, base:base + tile]                             # (1, T)
        sup_tt = sup_ref[pl.ds(base, tile), pl.ds(base, tile)]         # (T, T)
        for i in range(tile):                                          # static unroll
            ki = keep_t[:, i:i + 1]                                    # (1, 1) static lane slice
            keep_t = jnp.where(ki * sup_tt[i:i + 1, :] > 0.0, 0.0, keep_t)
        # lhs broadcast to 8 rows keeps the MXU operand sublane-aligned.
        lhs = jnp.broadcast_to(keep_t, (8, tile))                      # (8, T)
        sup_rows = sup_ref[pl.ds(base, tile), :]                       # (T, Kp)
        cnt = jnp.dot(lhs, sup_rows, preferred_element_type=jnp.float32)[0:1, :]
        keep = jnp.where(cnt > 0.0, 0.0, keep)

    keep_ref[0] = keep.astype(jnp.int32)


def nms_keep(boxes_ck, scores_row, *, min_score, nms_iou, k_real, tile=_NMS_TILE):
    """boxes_ck (B,4,Kp) class-offset boxes; scores_row (B,1,Kp) -> keep (B,Kp) int32."""
    B, _, Kp = boxes_ck.shape
    n_tiles = -(-int(k_real) // tile)                 # candidates beyond k_real are -inf padded
    kern = functools.partial(_nms_kernel, min_score=float(min_score),
                             nms_iou=float(nms_iou), n_tiles=n_tiles, tile=tile)
    ce = pl.CostEstimate(
        flops=12 * B * Kp * Kp + 2 * B * n_tiles * 8 * tile * Kp,
        transcendentals=0,
        bytes_accessed=B * (4 * Kp + Kp + Kp) * 4,
    )
    keep = pl.pallas_call(
        kern,
        out_shape=jax.ShapeDtypeStruct((B, 1, Kp), jnp.int32),
        grid=(B,),
        in_specs=[
            pl.BlockSpec((1, 4, Kp), lambda b: (b, 0, 0)),
            pl.BlockSpec((1, 1, Kp), lambda b: (b, 0, 0)),
        ],
        out_specs=pl.BlockSpec((1, 1, Kp), lambda b: (b, 0, 0)),
        scratch_shapes=[pltpu.VMEM((Kp, Kp), jnp.float32)],
        compiler_params=pltpu.CompilerParams(
            dimension_semantics=("parallel",),
            vmem_limit_bytes=32 * 1024 * 1024),
        cost_estimate=ce,
    )(boxes_ck, scores_row)
    return keep[:, 0, :]


# ---------------------------------------------------------------------------
# Full forward (glue in JAX: top-k select, gathers, padding, output compaction)
# ---------------------------------------------------------------------------
@functools.partial(jax.jit, static_argnames=("min_score", "select_top", "nms_iou"))
def single_label_nms(batched_bboxes, batched_scores, *,
                     min_score=0.01, select_top=200, nms_iou=0.45):
    """
    batched_bboxes: (B, N, 4) f32
    batched_scores: (B, N, C) f32
    Returns (bboxes (B,K,4), scores (B,K), class_ids (B,K), counts (B,)):
      for each batch b only the first counts[b] rows are valid, in descending
      score order — equivalent to the variable-length lists of the torch module.
    """
    B, N, C = batched_scores.shape
    K = min(select_top, N)                      # guard K > N
    K_pad = _round_up(K, 128)                   # lane-dense candidate padding (200 -> 256)

    # Pad N to a multiple of 128 (-inf rows never win top_k) so kernel 1 always
    # tiles lane-dense (no full-N block on v7x), and pad C to a multiple of 8
    # for a sublane-aligned in-kernel transpose.
    N_pad = _round_up(N, 128)
    C_pad = _round_up(C, 8)
    scores_p = batched_scores
    if (N_pad, C_pad) != (N, C):
        scores_p = jnp.pad(batched_scores, ((0, 0), (0, N_pad - N), (0, C_pad - C)),
                           constant_values=-jnp.inf)

    # 1) per-prediction class-max score (Pallas kernel). The full-N argmax of
    #    the torch code is redundant — class ids are recovered below for the K
    #    survivors only.
    max_s = class_max(scores_p)                               # (B, N_pad)

    # 2) top-K by class-max score (sorted descending) + class ids of survivors
    top_scores, top_ids = lax.top_k(max_s, K)                 # (B, K)
    safe_ids = jnp.minimum(top_ids, N - 1)
    top_boxes = jnp.take_along_axis(batched_bboxes, safe_ids[..., None], axis=1)   # (B, K, 4)
    top_rows = jnp.take_along_axis(scores_p, top_ids[..., None], axis=1)           # (B, K, C_pad)
    top_cls = jnp.argmax(top_rows[..., :C], axis=-1).astype(jnp.int32) + 1          # class ids >= 1

    # 3) class-aware NMS via torchvision's coordinate-offset trick (batched_nms):
    #    boxes of different classes are shifted apart so they never overlap.
    max_coord = jnp.max(top_boxes)
    offs = top_cls.astype(jnp.float32) * (max_coord + 1.0)
    nms_boxes = top_boxes + offs[..., None]                   # (B, K, 4)

    pad = K_pad - K
    nms_boxes = jnp.pad(nms_boxes, ((0, 0), (0, pad), (0, 0)))
    pad_scores = jnp.pad(top_scores, ((0, 0), (0, pad)), constant_values=-jnp.inf)
    boxes_ck = jnp.transpose(nms_boxes, (0, 2, 1))            # (B, 4, K_pad) tiny

    keep = nms_keep(boxes_ck, pad_scores[:, None, :],
                    min_score=min_score, nms_iou=nms_iou,
                    k_real=K)[:, :K]                          # (B, K) int32

    # 4) compact kept entries to the front, preserving descending-score order
    order = jnp.argsort(1 - keep, axis=-1, stable=True)
    out_boxes = jnp.take_along_axis(top_boxes, order[..., None], axis=1)
    out_scores = jnp.take_along_axis(top_scores, order, axis=1)
    out_cls = jnp.take_along_axis(top_cls, order, axis=1)
    counts = jnp.sum(keep, axis=-1)
    return out_boxes, out_scores, out_cls, counts


if __name__ == "__main__":
    key = jax.random.PRNGKey(0)
    k1, k2, k3 = jax.random.split(key, 3)

    B, N, C = 2, 256, 8          # small shapes; N >= select_top
    # synthetic valid boxes (x1 < x2, y1 < y2)
    cxcy = jax.random.uniform(k1, (B, N, 2), dtype=jnp.float32)
    wh = jax.random.uniform(k2, (B, N, 2), dtype=jnp.float32,
                            minval=0.02, maxval=0.30)
    bboxes = jnp.concatenate([cxcy - wh / 2.0, cxcy + wh / 2.0], axis=-1)  # (B,N,4)
    scores = jax.nn.softmax(jax.random.normal(k3, (B, N, C), dtype=jnp.float32),
                            axis=-1)

    out_boxes, out_scores, out_cls, counts = single_label_nms(
        bboxes, scores, min_score=0.01, select_top=200, nms_iou=0.45)
    jax.block_until_ready((out_boxes, out_scores, out_cls, counts))
    print("KERNEL_OK")
</pallas_src>

<mosaic_0001>
module attributes {stable_mosaic.version = 11 : i64} {
  func.func @_class_max_kernel(%arg0: i32, %arg1: i32, %arg2: memref<1x256x8xf32, #tpu.memory_space<vmem>>, %arg3: memref<1x1x256xf32, #tpu.memory_space<vmem>>) attributes {dimension_semantics = [#tpu.dimension_semantics<parallel>, #tpu.dimension_semantics<parallel>], iteration_bounds = array<i64: 2, 1>, scalar_prefetch = 0 : i64, scratch_operands = 0 : i64, tpu.core_type = #tpu.core_type<tc>, window_params = [{transform_indices = @transform_0, window_bounds = array<i64: 1, 256, 8>}, {transform_indices = @transform_1, window_bounds = array<i64: 1, 1, 256>}]} {
    %c0 = arith.constant 0 : index
    %c0_0 = arith.constant 0 : index
    %c0_1 = arith.constant 0 : index
    %0 = vector.load %arg2[%c0, %c0_0, %c0_1] : memref<1x256x8xf32, #tpu.memory_space<vmem>>, vector<1x128x8xf32>
    %1 = vector.shape_cast %0 : vector<1x128x8xf32> to vector<128x8xf32>
    %2 = tpu.transpose %1, [1, 0] : vector<128x8xf32> -> vector<8x128xf32>
    %cst = arith.constant dense<0xFF800000> : vector<128xf32>
    %3 = vector.multi_reduction <maximumf>, %2, %cst [0] : vector<8x128xf32> to vector<128xf32>
    %c0_2 = arith.constant 0 : index
    %c0_3 = arith.constant 0 : index
    %c0_4 = arith.constant 0 : index
    %4 = vector.load %arg3[%c0_2, %c0_3, %c0_4] : memref<1x1x256xf32, #tpu.memory_space<vmem>>, vector<1x1x128xf32>
    %5 = vector.shape_cast %4 : vector<1x1x128xf32> to vector<128xf32>
    %6 = vector.shape_cast %3 : vector<128xf32> to vector<1x1x128xf32>
    tpu.vector_store %arg3[%c0_2, %c0_3, %c0_4], %6 {strides = array<i32>} : memref<1x1x256xf32, #tpu.memory_space<vmem>>, vector<1x1x128xf32>,
    %c0_5 = arith.constant 0 : index
    %c128 = arith.constant 128 : index
    %c0_6 = arith.constant 0 : index
    %7 = vector.load %arg2[%c0_5, %c128, %c0_6] : memref<1x256x8xf32, #tpu.memory_space<vmem>>, vector<1x128x8xf32>
    %8 = vector.shape_cast %7 : vector<1x128x8xf32> to vector<128x8xf32>
    %9 = tpu.transpose %8, [1, 0] : vector<128x8xf32> -> vector<8x128xf32>
    %cst_7 = arith.constant dense<0xFF800000> : vector<128xf32>
    %10 = vector.multi_reduction <maximumf>, %9, %cst_7 [0] : vector<8x128xf32> to vector<128xf32>
    %c0_8 = arith.constant 0 : index
    %c0_9 = arith.constant 0 : index
    %c128_10 = arith.constant 128 : index
    %11 = vector.load %arg3[%c0_8, %c0_9, %c128_10] : memref<1x1x256xf32, #tpu.memory_space<vmem>>, vector<1x1x128xf32>
    %12 = vector.shape_cast %11 : vector<1x1x128xf32> to vector<128xf32>
    %13 = vector.shape_cast %10 : vector<128xf32> to vector<1x1x128xf32>
    tpu.vector_store %arg3[%c0_8, %c0_9, %c128_10], %13 {strides = array<i32>} : memref<1x1x256xf32, #tpu.memory_space<vmem>>, vector<1x1x128xf32>,
    return
  }
  func.func @transform_0(%arg0: i32, %arg1: i32) -> (i32, i32, i32) {
    %c0_i32 = arith.constant 0 : i32
    %c0_i32_0 = arith.constant 0 : i32
    return %arg0, %arg1, %c0_i32 : i32, i32, i32
  }
  func.func @transform_1(%arg0: i32, %arg1: i32) -> (i32, i32, i32) {
    %c0_i32 = arith.constant 0 : i32
    %c0_i32_0 = arith.constant 0 : i32
    return %arg0, %c0_i32, %arg1 : i32, i32, i32
  }
}

module attributes {stable_mosaic.version = 11 : i64} {
  func.func @_nms_kernel(%arg0: i32, %arg1: memref<1x4x256xf32, #tpu.memory_space<vmem>>, %arg2: memref<1x1x256xf32, #tpu.memory_space<vmem>>, %arg3: memref<1x1x256xi32, #tpu.memory_space<vmem>>, %arg4: memref<256x256xf32, #tpu.memory_space<vmem>>) attributes {dimension_semantics = [#tpu.dimension_semantics<parallel>], iteration_bounds = array<i64: 2>, scalar_prefetch = 0 : i64, scratch_operands = 1 : i64, tpu.core_type = #tpu.core_type<tc>, window_params = [{transform_indices = @transform_0, window_bounds = array<i64: 1, 4, 256>}, {transform_indices = @transform_1, window_bounds = array<i64: 1, 1, 256>}, {transform_indices = @transform_2, window_bounds = array<i64: 1, 1, 256>}]} {
    %c0 = arith.constant 0 : index
    %c0_0 = arith.constant 0 : index
    %c0_1 = arith.constant 0 : index
    %0 = vector.load %arg1[%c0, %c0_0, %c0_1] : memref<1x4x256xf32, #tpu.memory_space<vmem>>, vector<1x4x256xf32>
    %1 = vector.shape_cast %0 : vector<1x4x256xf32> to vector<4x256xf32>
    %2 = tpu.transpose %1, [1, 0] : vector<4x256xf32> -> vector<256x4xf32>
    %3 = vector.extract_strided_slice %2 {offsets = [0, 0], sizes = [256, 1], strides = [1, 1]} : vector<256x4xf32> to vector<256x1xf32>
    %4 = vector.extract_strided_slice %2 {offsets = [0, 1], sizes = [256, 1], strides = [1, 1]} : vector<256x4xf32> to vector<256x1xf32>
    %5 = vector.extract_strided_slice %2 {offsets = [0, 2], sizes = [256, 1], strides = [1, 1]} : vector<256x4xf32> to vector<256x1xf32>
    %6 = vector.extract_strided_slice %2 {offsets = [0, 3], sizes = [256, 1], strides = [1, 1]} : vector<256x4xf32> to vector<256x1xf32>
    %7 = vector.extract_strided_slice %1 {offsets = [0, 0], sizes = [1, 256], strides = [1, 1]} : vector<4x256xf32> to vector<1x256xf32>
    %8 = vector.extract_strided_slice %1 {offsets = [1, 0], sizes = [1, 256], strides = [1, 1]} : vector<4x256xf32> to vector<1x256xf32>
    %9 = vector.extract_strided_slice %1 {offsets = [2, 0], sizes = [1, 256], strides = [1, 1]} : vector<4x256xf32> to vector<1x256xf32>
    %10 = vector.extract_strided_slice %1 {offsets = [3, 0], sizes = [1, 256], strides = [1, 1]} : vector<4x256xf32> to vector<1x256xf32>
    %11 = vector.broadcast %5 : vector<256x1xf32> to vector<256x256xf32>
    %12 = vector.broadcast %9 : vector<1x256xf32> to vector<256x256xf32>
    %13 = arith.minimumf %11, %12 : vector<256x256xf32>
    %14 = vector.broadcast %3 : vector<256x1xf32> to vector<256x256xf32>
    %15 = vector.broadcast %7 : vector<1x256xf32> to vector<256x256xf32>
    %16 = arith.maximumf %14, %15 : vector<256x256xf32>
    %17 = arith.subf %13, %16 : vector<256x256xf32>
    %cst = arith.constant 0.000000e+00 : f32
    %18 = vector.broadcast %cst : f32 to vector<256x256xf32>
    %19 = arith.maximumf %17, %18 : vector<256x256xf32>
    %20 = vector.broadcast %6 : vector<256x1xf32> to vector<256x256xf32>
    %21 = vector.broadcast %10 : vector<1x256xf32> to vector<256x256xf32>
    %22 = arith.minimumf %20, %21 : vector<256x256xf32>
    %23 = vector.broadcast %4 : vector<256x1xf32> to vector<256x256xf32>
    %24 = vector.broadcast %8 : vector<1x256xf32> to vector<256x256xf32>
    %25 = arith.maximumf %23, %24 : vector<256x256xf32>
    %26 = arith.subf %22, %25 : vector<256x256xf32>
    %cst_2 = arith.constant 0.000000e+00 : f32
    %27 = vector.broadcast %cst_2 : f32 to vector<256x256xf32>
    %28 = arith.maximumf %26, %27 : vector<256x256xf32>
    %29 = arith.mulf %19, %28 : vector<256x256xf32>
    %30 = arith.subf %5, %3 : vector<256x1xf32>
    %31 = arith.subf %6, %4 : vector<256x1xf32>
    %32 = arith.mulf %30, %31 : vector<256x1xf32>
    %33 = arith.subf %9, %7 : vector<1x256xf32>
    %34 = arith.subf %10, %8 : vector<1x256xf32>
    %35 = arith.mulf %33, %34 : vector<1x256xf32>
    %36 = vector.broadcast %32 : vector<256x1xf32> to vector<256x256xf32>
    %37 = vector.broadcast %35 : vector<1x256xf32> to vector<256x256xf32>
    %38 = arith.addf %36, %37 : vector<256x256xf32>
    %39 = arith.subf %38, %29 : vector<256x256xf32>
    %40 = tpu.iota {dimensions = array<i32: 0>} : vector<256x256xi32>
    %41 = tpu.iota {dimensions = array<i32: 1>} : vector<256x256xi32>
    %cst_3 = arith.constant 4.500000e-01 : f32
    %42 = vector.broadcast %cst_3 : f32 to vector<256x256xf32>
    %43 = arith.mulf %42, %39 : vector<256x256xf32>
    %44 = arith.cmpf ogt, %29, %43 : vector<256x256xf32>
    %45 = arith.cmpi sgt, %41, %40 : vector<256x256xi32>
    %46 = arith.andi %44, %45 : vector<256x256xi1>
    %cst_4 = arith.constant 1.000000e+00 : f32
    %cst_5 = arith.constant 0.000000e+00 : f32
    %47 = vector.broadcast %cst_4 : f32 to vector<256x256xf32>
    %48 = vector.broadcast %cst_5 : f32 to vector<256x256xf32>
    %49 = arith.select %46, %47, %48 : vector<256x256xi1>, vector<256x256xf32>
    %c0_6 = arith.constant 0 : index
    %c0_7 = arith.constant 0 : index
    %50 = vector.load %arg4[%c0_6, %c0_7] : memref<256x256xf32, #tpu.memory_space<vmem>>, vector<256x256xf32>
    tpu.vector_store %arg4[%c0_6, %c0_7], %49 {strides = array<i32>} : memref<256x256xf32, #tpu.memory_space<vmem>>, vector<256x256xf32>,
    %c0_8 = arith.constant 0 : index
    %c0_9 = arith.constant 0 : index
    %c0_10 = arith.constant 0 : index
    %51 = vector.load %arg2[%c0_8, %c0_9, %c0_10] : memref<1x1x256xf32, #tpu.memory_space<vmem>>, vector<1x1x256xf32>
    %52 = vector.shape_cast %51 : vector<1x1x256xf32> to vector<1x256xf32>
    %cst_11 = arith.constant 0.00999999977 : f32
    %53 = vector.broadcast %cst_11 : f32 to vector<1x256xf32>
    %54 = arith.cmpf ogt, %52, %53 : vector<1x256xf32>
    %cst_12 = arith.constant 1.000000e+00 : f32
    %cst_13 = arith.constant 0.000000e+00 : f32
    %55 = vector.broadcast %cst_12 : f32 to vector<1x256xf32>
    %56 = vector.broadcast %cst_13 : f32 to vector<1x256xf32>
    %57 = arith.select %54, %55, %56 : vector<1x256xi1>, vector<1x256xf32>
    %58 = vector.extract_strided_slice %57 {offsets = [0, 0], sizes = [1, 32], strides = [1, 1]} : vector<1x256xf32> to vector<1x32xf32>
    %c0_14 = arith.constant 0 : index
    %c0_15 = arith.constant 0 : index
    %59 = vector.load %arg4[%c0_14, %c0_15] : memref<256x256xf32, #tpu.memory_space<vmem>>, vector<32x32xf32>
    %60 = vector.extract_strided_slice %58 {offsets = [0, 0], sizes = [1, 1], strides = [1, 1]} : vector<1x32xf32> to vector<1x1xf32>
    %61 = vector.extract_strided_slice %59 {offsets = [0, 0], sizes = [1, 32], strides = [1, 1]} : vector<32x32xf32> to vector<1x32xf32>
    %62 = vector.broadcast %60 : vector<1x1xf32> to vector<1x32xf32>
    %63 = arith.mulf %62, %61 : vector<1x32xf32>
    %cst_16 = arith.constant 0.000000e+00 : f32
    %64 = vector.broadcast %cst_16 : f32 to vector<1x32xf32>
    %65 = arith.cmpf ogt, %63, %64 : vector<1x32xf32>
    %cst_17 = arith.constant 0.000000e+00 : f32
    %66 = vector.broadcast %cst_17 : f32 to vector<1x32xf32>
    %67 = arith.select %65, %66, %58 : vector<1x32xi1>, vector<1x32xf32>
    %68 = vector.extract_strided_slice %67 {offsets = [0, 1], sizes = [1, 1], strides = [1, 1]} : vector<1x32xf32> to vector<1x1xf32>
    %69 = vector.extract_strided_slice %59 {offsets = [1, 0], sizes = [1, 32], strides = [1, 1]} : vector<32x32xf32> to vector<1x32xf32>
    %70 = vector.broadcast %68 : vector<1x1xf32> to vector<1x32xf32>
    %71 = arith.mulf %70, %69 : vector<1x32xf32>
    %cst_18 = arith.constant 0.000000e+00 : f32
    %72 = vector.broadcast %cst_18 : f32 to vector<1x32xf32>
    %73 = arith.cmpf ogt, %71, %72 : vector<1x32xf32>
    %cst_19 = arith.constant 0.000000e+00 : f32
    %74 = vector.broadcast %cst_19 : f32 to vector<1x32xf32>
    %75 = arith.select %73, %74, %67 : vector<1x32xi1>, vector<1x32xf32>
    %76 = vector.extract_strided_slice %75 {offsets = [0, 2], sizes = [1, 1], strides = [1, 1]} : vector<1x32xf32> to vector<1x1xf32>
    %77 = vector.extract_strided_slice %59 {offsets = [2, 0], sizes = [1, 32], strides = [1, 1]} : vector<32x32xf32> to vector<1x32xf32>
    %78 = vector.broadcast %76 : vector<1x1xf32> to vector<1x32xf32>
    %79 = arith.mulf %78, %77 : vector<1x32xf32>
    %cst_20 = arith.constant 0.000000e+00 : f32
    %80 = vector.broadcast %cst_20 : f32 to vector<1x32xf32>
    %81 = arith.cmpf ogt, %79, %80 : vector<1x32xf32>
    %cst_21 = arith.constant 0.000000e+00 : f32
    %82 = vector.broadcast %cst_21 : f32 to vector<1x32xf32>
    %83 = arith.select %81, %82, %75 : vector<1x32xi1>, vector<1x32xf32>
    %84 = vector.extract_strided_slice %83 {offsets = [0, 3], sizes = [1, 1], strides = [1, 1]} : vector<1x32xf32> to vector<1x1xf32>
    %85 = vector.extract_strided_slice %59 {offsets = [3, 0], sizes = [1, 32], strides = [1, 1]} : vector<32x32xf32> to vector<1x32xf32>
    %86 = vector.broadcast %84 : vector<1x1xf32> to vector<1x32xf32>
    %87 = arith.mulf %86, %85 : vector<1x32xf32>
    %cst_22 = arith.constant 0.000000e+00 : f32
    %88 = vector.broadcast %cst_22 : f32 to vector<1x32xf32>
    %89 = arith.cmpf ogt, %87, %88 : vector<1x32xf32>
    %cst_23 = arith.constant 0.000000e+00 : f32
    %90 = vector.broadcast %cst_23 : f32 to vector<1x32xf32>
    %91 = arith.select %89, %90, %83 : vector<1x32xi1>, vector<1x32xf32>
    %92 = vector.extract_strided_slice %91 {offsets = [0, 4], sizes = [1, 1], strides = [1, 1]} : vector<1x32xf32> to vector<1x1xf32>
    %93 = vector.extract_strided_slice %59 {offsets = [4, 0], sizes = [1, 32], strides = [1, 1]} : vector<32x32xf32> to vector<1x32xf32>
    %94 = vector.broadcast %92 : vector<1x1xf32> to vector<1x32xf32>
    %95 = arith.mulf %94, %93 : vector<1x32xf32>
    %cst_24 = arith.constant 0.000000e+00 : f32
    %96 = vector.broadcast %cst_24 : f32 to vector<1x32xf32>
    %97 = arith.cmpf ogt, %95, %96 : vector<1x32xf32>
    %cst_25 = arith.constant 0.000000e+00 : f32
    %98 = vector.broadcast %cst_25 : f32 to vector<1x32xf32>
    %99 = arith.select %97, %98, %91 : vector<1x32xi1>, vector<1x32xf32>
    %100 = vector.extract_strided_slice %99 {offsets = [0, 5], sizes = [1, 1], strides = [1, 1]} : vector<1x32xf32> to vector<1x1xf32>
    %101 = vector.extract_strided_slice %59 {offsets = [5, 0], sizes = [1, 32], strides = [1, 1]} : vector<32x32xf32> to vector<1x32xf32>
    %102 = vector.broadcast %100 : vector<1x1xf32> to vector<1x32xf32>
    %103 = arith.mulf %102, %101 : vector<1x32xf32>
    %cst_26 = arith.constant 0.000000e+00 : f32
    %104 = vector.broadcast %cst_26 : f32 to vector<1x32xf32>
    %105 = arith.cmpf ogt, %103, %104 : vector<1x32xf32>
    %cst_27 = arith.constant 0.000000e+00 : f32
    %106 = vector.broadcast %cst_27 : f32 to vector<1x32xf32>
    %107 = arith.select %105, %106, %99 : vector<1x32xi1>, vector<1x32xf32>
    %108 = vector.extract_strided_slice %107 {offsets = [0, 6], sizes = [1, 1], strides = [1, 1]} : vector<1x32xf32> to vector<1x1xf32>
    %109 = vector.extract_strided_slice %59 {offsets = [6, 0], sizes = [1, 32], strides = [1, 1]} : vector<32x32xf32> to vector<1x32xf32>
    %110 = vector.broadcast %108 : vector<1x1xf32> to vector<1x32xf32>
    %111 = arith.mulf %110, %109 : vector<1x32xf32>
    %cst_28 = arith.constant 0.000000e+00 : f32
    %112 = vector.broadcast %cst_28 : f32 to vector<1x32xf32>
    %113 = arith.cmpf ogt, %111, %112 : vector<1x32xf32>
    %cst_29 = arith.constant 0.000000e+00 : f32
    %114 = vector.broadcast %cst_29 : f32 to vector<1x32xf32>
    %115 = arith.select %113, %114, %107 : vector<1x32xi1>, vector<1x32xf32>
    %116 = vector.extract_strided_slice %115 {offsets = [0, 7], sizes = [1, 1], strides = [1, 1]} : vector<1x32xf32> to vector<1x1xf32>
    %117 = vector.extract_strided_slice %59 {offsets = [7, 0], sizes = [1, 32], strides = [1, 1]} : vector<32x32xf32> to vector<1x32xf32>
    %118 = vector.broadcast %116 : vector<1x1xf32> to vector<1x32xf32>
    %119 = arith.mulf %118, %117 : vector<1x32xf32>
    %cst_30 = arith.constant 0.000000e+00 : f32
    %120 = vector.broadcast %cst_30 : f32 to vector<1x32xf32>
    %121 = arith.cmpf ogt, %119, %120 : vector<1x32xf32>
    %cst_31 = arith.constant 0.000000e+00 : f32
    %122 = vector.broadcast %cst_31 : f32 to vector<1x32xf32>
    %123 = arith.select %121, %122, %115 : vector<1x32xi1>, vector<1x32xf32>
    %124 = vector.extract_strided_slice %123 {offsets = [0, 8], sizes = [1, 1], strides = [1, 1]} : vector<1x32xf32> to vector<1x1xf32>
    %125 = vector.extract_strided_slice %59 {offsets = [8, 0], sizes = [1, 32], strides = [1, 1]} : vector<32x32xf32> to vector<1x32xf32>
    %126 = vector.broadcast %124 : vector<1x1xf32> to vector<1x32xf32>
    %127 = arith.mulf %126, %125 : vector<1x32xf32>
    %cst_32 = arith.constant 0.000000e+00 : f32
    %128 = vector.broadcast %cst_32 : f32 to vector<1x32xf32>
    %129 = arith.cmpf ogt, %127, %128 : vector<1x32xf32>
    %cst_33 = arith.constant 0.000000e+00 : f32
    %130 = vector.broadcast %cst_33 : f32 to vector<1x32xf32>
    %131 = arith.select %129, %130, %123 : vector<1x32xi1>, vector<1x32xf32>
    %132 = vector.extract_strided_slice %131 {offsets = [0, 9], sizes = [1, 1], strides = [1, 1]} : vector<1x32xf32> to vector<1x1xf32>
    %133 = vector.extract_strided_slice %59 {offsets = [9, 0], sizes = [1, 32], strides = [1, 1]} : vector<32x32xf32> to vector<1x32xf32>
    %134 = vector.broadcast %132 : vector<1x1xf32> to vector<1x32xf32>
    %135 = arith.mulf %134, %133 : vector<1x32xf32>
    %cst_34 = arith.constant 0.000000e+00 : f32
    %136 = vector.broadcast %cst_34 : f32 to vector<1x32xf32>
    %137 = arith.cmpf ogt, %135, %136 : vector<1x32xf32>
    %cst_35 = arith.constant 0.000000e+00 : f32
    %138 = vector.broadcast %cst_35 : f32 to vector<1x32xf32>
    %139 = arith.select %137, %138, %131 : vector<1x32xi1>, vector<1x32xf32>
    %140 = vector.extract_strided_slice %139 {offsets = [0, 10], sizes = [1, 1], strides = [1, 1]} : vector<1x32xf32> to vector<1x1xf32>
    %141 = vector.extract_strided_slice %59 {offsets = [10, 0], sizes = [1, 32], strides = [1, 1]} : vector<32x32xf32> to vector<1x32xf32>
    %142 = vector.broadcast %140 : vector<1x1xf32> to vector<1x32xf32>
    %143 = arith.mulf %142, %141 : vector<1x32xf32>
    %cst_36 = arith.constant 0.000000e+00 : f32
    %144 = vector.broadcast %cst_36 : f32 to vector<1x32xf32>
    %145 = arith.cmpf ogt, %143, %144 : vector<1x32xf32>
    %cst_37 = arith.constant 0.000000e+00 : f32
    %146 = vector.broadcast %cst_37 : f32 to vector<1x32xf32>
    %147 = arith.select %145, %146, %139 : vector<1x32xi1>, vector<1x32xf32>
    %148 = vector.extract_strided_slice %147 {offsets = [0, 11], sizes = [1, 1], strides = [1, 1]} : vector<1x32xf32> to vector<1x1xf32>
    %149 = vector.extract_strided_slice %59 {offsets = [11, 0], sizes = [1, 32], strides = [1, 1]} : vector<32x32xf32> to vector<1x32xf32>
    %150 = vector.broadcast %148 : vector<1x1xf32> to vector<1x32xf32>
    %151 = arith.mulf %150, %149 : vector<1x32xf32>
    %cst_38 = arith.constant 0.000000e+00 : f32
    %152 = vector.broadcast %cst_38 : f32 to vector<1x32xf32>
    %153 = arith.cmpf ogt, %151, %152 : vector<1x32xf32>
    %cst_39 = arith.constant 0.000000e+00 : f32
    %154 = vector.broadcast %cst_39 : f32 to vector<1x32xf32>
    %155 = arith.select %153, %154, %147 : vector<1x32xi1>, vector<1x32xf32>
    %156 = vector.extract_strided_slice %155 {offsets = [0, 12], sizes = [1, 1], strides = [1, 1]} : vector<1x32xf32> to vector<1x1xf32>
    %157 = vector.extract_strided_slice %59 {offsets = [12, 0], sizes = [1, 32], strides = [1, 1]} : vector<32x32xf32> to vector<1x32xf32>
    %158 = vector.broadcast %156 : vector<1x1xf32> to vector<1x32xf32>
    %159 = arith.mulf %158, %157 : vector<1x32xf32>
    %cst_40 = arith.constant 0.000000e+00 : f32
    %160 = vector.broadcast %cst_40 : f32 to vector<1x32xf32>
    %161 = arith.cmpf ogt, %159, %160 : vector<1x32xf32>
    %cst_41 = arith.constant 0.000000e+00 : f32
    %162 = vector.broadcast %cst_41 : f32 to vector<1x32xf32>
    %163 = arith.select %161, %162, %155 : vector<1x32xi1>, vector<1x32xf32>
    %164 = vector.extract_strided_slice %163 {offsets = [0, 13], sizes = [1, 1], strides = [1, 1]} : vector<1x32xf32> to vector<1x1xf32>
    %165 = vector.extract_strided_slice %59 {offsets = [13, 0], sizes = [1, 32], strides = [1, 1]} : vector<32x32xf32> to vector<1x32xf32>
    %166 = vector.broadcast %164 : vector<1x1xf32> to vector<1x32xf32>
    %167 = arith.mulf %166, %165 : vector<1x32xf32>
    %cst_42 = arith.constant 0.000000e+00 : f32
    %168 = vector.broadcast %cst_42 : f32 to vector<1x32xf32>
    %169 = arith.cmpf ogt, %167, %168 : vector<1x32xf32>
    %cst_43 = arith.constant 0.000000e+00 : f32
    %170 = vector.broadcast %cst_43 : f32 to vector<1x32xf32>
    %171 = arith.select %169, %170, %163 : vector<1x32xi1>, vector<1x32xf32>
    %172 = vector.extract_strided_slice %171 {offsets = [0, 14], sizes = [1, 1], strides = [1, 1]} : vector<1x32xf32> to vector<1x1xf32>
    %173 = vector.extract_strided_slice %59 {offsets = [14, 0], sizes = [1, 32], strides = [1, 1]} : vector<32x32xf32> to vector<1x32xf32>
    %174 = vector.broadcast %172 : vector<1x1xf32> to vector<1x32xf32>
    %175 = arith.mulf %174, %173 : vector<1x32xf32>
    %cst_44 = arith.constant 0.000000e+00 : f32
    %176 = vector.broadcast %cst_44 : f32 to vector<1x32xf32>
    %177 = arith.cmpf ogt, %175, %176 : vector<1x32xf32>
    %cst_45 = arith.constant 0.000000e+00 : f32
    %178 = vector.broadcast %cst_45 : f32 to vector<1x32xf32>
    %179 = arith.select %177, %178, %171 : vector<1x32xi1>, vector<1x32xf32>
    %180 = vector.extract_strided_slice %179 {offsets = [0, 15], sizes = [1, 1], strides = [1, 1]} : vector<1x32xf32> to vector<1x1xf32>
    %181 = vector.extract_strided_slice %59 {offsets = [15, 0], sizes = [1, 32], strides = [1, 1]} : vector<32x32xf32> to vector<1x32xf32>
    %182 = vector.broadcast %180 : vector<1x1xf32> to vector<1x32xf32>
    %183 = arith.mulf %182, %181 : vector<1x32xf32>
    %cst_46 = arith.constant 0.000000e+00 : f32
    %184 = vector.broadcast %cst_46 : f32 to vector<1x32xf32>
    %185 = arith.cmpf ogt, %183, %184 : vector<1x32xf32>
    %cst_47 = arith.constant 0.000000e+00 : f32
    %186 = vector.broadcast %cst_47 : f32 to vector<1x32xf32>
    %187 = arith.select %185, %186, %179 : vector<1x32xi1>, vector<1x32xf32>
    %188 = vector.extract_strided_slice %187 {offsets = [0, 16], sizes = [1, 1], strides = [1, 1]} : vector<1x32xf32> to vector<1x1xf32>
    %189 = vector.extract_strided_slice %59 {offsets = [16, 0], sizes = [1, 32], strides = [1, 1]} : vector<32x32xf32> to vector<1x32xf32>
    %190 = vector.broadcast %188 : vector<1x1xf32> to vector<1x32xf32>
    %191 = arith.mulf %190, %189 : vector<1x32xf32>
    %cst_48 = arith.constant 0.000000e+00 : f32
    %192 = vector.broadcast %cst_48 : f32 to vector<1x32xf32>
    %193 = arith.cmpf ogt, %191, %192 : vector<1x32xf32>
    %cst_49 = arith.constant 0.000000e+00 : f32
    %194 = vector.broadcast %cst_49 : f32 to vector<1x32xf32>
    %195 = arith.select %193, %194, %187 : vector<1x32xi1>, vector<1x32xf32>
    %196 = vector.extract_strided_slice %195 {offsets = [0, 17], sizes = [1, 1], strides = [1, 1]} : vector<1x32xf32> to vector<1x1xf32>
    %197 = vector.extract_strided_slice %59 {offsets = [17, 0], sizes = [1, 32], strides = [1, 1]} : vector<32x32xf32> to vector<1x32xf32>
    %198 = vector.broadcast %196 : vector<1x1xf32> to vector<1x32xf32>
    %199 = arith.mulf %198, %197 : vector<1x32xf32>
    %cst_50 = arith.constant 0.000000e+00 : f32
    %200 = vector.broadcast %cst_50 : f32 to vector<1x32xf32>
    %201 = arith.cmpf ogt, %199, %200 : vector<1x32xf32>
    %cst_51 = arith.constant 0.000000e+00 : f32
    %202 = vector.broadcast %cst_51 : f32 to vector<1x32xf32>
    %203 = arith.select %201, %202, %195 : vector<1x32xi1>, vector<1x32xf32>
    %204 = vector.extract_strided_slice %203 {offsets = [0, 18], sizes = [1, 1], strides = [1, 1]} : vector<1x32xf32> to vector<1x1xf32>
    %205 = vector.extract_strided_slice %59 {offsets = [18, 0], sizes = [1, 32], strides = [1, 1]} : vector<32x32xf32> to vector<1x32xf32>
    %206 = vector.broadcast %204 : vector<1x1xf32> to vector<1x32xf32>
    %207 = arith.mulf %206, %205 : vector<1x32xf32>
    %cst_52 = arith.constant 0.000000e+00 : f32
    %208 = vector.broadcast %cst_52 : f32 to vector<1x32xf32>
    %209 = arith.cmpf ogt, %207, %208 : vector<1x32xf32>
    %cst_53 = arith.constant 0.000000e+00 : f32
    %210 = vector.broadcast %cst_53 : f32 to vector<1x32xf32>
    %211 = arith.select %209, %210, %203 : vector<1x32xi1>, vector<1x32xf32>
    %212 = vector.extract_strided_slice %211 {offsets = [0, 19], sizes = [1, 1], strides = [1, 1]} : vector<1x32xf32> to vector<1x1xf32>
    %213 = vector.extract_strided_slice %59 {offsets = [19, 0], sizes = [1, 32], strides = [1, 1]} : vector<32x32xf32> to vector<1x32xf32>
    %214 = vector.broadcast %212 : vector<1x1xf32> to vector<1x32xf32>
    %215 = arith.mulf %214, %213 : vector<1x32xf32>
    %cst_54 = arith.constant 0.000000e+00 : f32
    %216 = vector.broadcast %cst_54 : f32 to vector<1x32xf32>
    %217 = arith.cmpf ogt, %215, %216 : vector<1x32xf32>
    %cst_55 = arith.constant 0.000000e+00 : f32
    %218 = vector.broadcast %cst_55 : f32 to vector<1x32xf32>
    %219 = arith.select %217, %218, %211 : vector<1x32xi1>, vector<1x32xf32>
    %220 = vector.extract_strided_slice %219 {offsets = [0, 20], sizes = [1, 1], strides = [1, 1]} : vector<1x32xf32> to vector<1x1xf32>
    %221 = vector.extract_strided_slice %59 {offsets = [20, 0], sizes = [1, 32], strides = [1, 1]} : vector<32x32xf32> to vector<1x32xf32>
    %222 = vector.broadcast %220 : vector<1x1xf32> to vector<1x32xf32>
    %223 = arith.mulf %222, %221 : vector<1x32xf32>
    %cst_56 = arith.constant 0.000000e+00 : f32
    %224 = vector.broadcast %cst_56 : f32 to vector<1x32xf32>
    %225 = arith.cmpf ogt, %223, %224 : vector<1x32xf32>
    %cst_57 = arith.constant 0.000000e+00 : f32
    %226 = vector.broadcast %cst_57 : f32 to vector<1x32xf32>
    %227 = arith.select %225, %226, %219 : vector<1x32xi1>, vector<1x32xf32>
    %228 = vector.extract_strided_slice %227 {offsets = [0, 21], sizes = [1, 1], strides = [1, 1]} : vector<1x32xf32> to vector<1x1xf32>
    %229 = vector.extract_strided_slice %59 {offsets = [21, 0], sizes = [1, 32], strides = [1, 1]} : vector<32x32xf32> to vector<1x32xf32>
    %230 = vector.broadcast %228 : vector<1x1xf32> to vector<1x32xf32>
    %231 = arith.mulf %230, %229 : vector<1x32xf32>
    %cst_58 = arith.constant 0.000000e+00 : f32
    %232 = vector.broadcast %cst_58 : f32 to vector<1x32xf32>
    %233 = arith.cmpf ogt, %231, %232 : vector<1x32xf32>
    %cst_59 = arith.constant 0.000000e+00 : f32
    %234 = vector.broadcast %cst_59 : f32 to vector<1x32xf32>
    %235 = arith.select %233, %234, %227 : vector<1x32xi1>, vector<1x32xf32>
    %236 = vector.extract_strided_slice %235 {offsets = [0, 22], sizes = [1, 1], strides = [1, 1]} : vector<1x32xf32> to vector<1x1xf32>
    %237 = vector.extract_strided_slice %59 {offsets = [22, 0], sizes = [1, 32], strides = [1, 1]} : vector<32x32xf32> to vector<1x32xf32>
    %238 = vector.broadcast %236 : vector<1x1xf32> to vector<1x32xf32>
    %239 = arith.mulf %238, %237 : vector<1x32xf32>
    %cst_60 = arith.constant 0.000000e+00 : f32
    %240 = vector.broadcast %cst_60 : f32 to vector<1x32xf32>
    %241 = arith.cmpf ogt, %239, %240 : vector<1x32xf32>
    %cst_61 = arith.constant 0.000000e+00 : f32
    %242 = vector.broadcast %cst_61 : f32 to vector<1x32xf32>
    %243 = arith.select %241, %242, %235 : vector<1x32xi1>, vector<1x32xf32>
    %244 = vector.extract_strided_slice %243 {offsets = [0, 23], sizes = [1, 1], strides = [1, 1]} : vector<1x32xf32> to vector<1x1xf32>
    %245 = vector.extract_strided_slice %59 {offsets = [23, 0], sizes = [1, 32], strides = [1, 1]} : vector<32x32xf32> to vector<1x32xf32>
    %246 = vector.broadcast %244 : vector<1x1xf32> to vector<1x32xf32>
    %247 = arith.mulf %246, %245 : vector<1x32xf32>
    %cst_62 = arith.constant 0.000000e+00 : f32
    %248 = vector.broadcast %cst_62 : f32 to vector<1x32xf32>
    %249 = arith.cmpf ogt, %247, %248 : vector<1x32xf32>
    %cst_63 = arith.constant 0.000000e+00 : f32
    %250 = vector.broadcast %cst_63 : f32 to vector<1x32xf32>
    %251 = arith.select %249, %250, %243 : vector<1x32xi1>, vector<1x32xf32>
    %252 = vector.extract_strided_slice %251 {offsets = [0, 24], sizes = [1, 1], strides = [1, 1]} : vector<1x32xf32> to vector<1x1xf32>
    %253 = vector.extract_strided_slice %59 {offsets = [24, 0], sizes = [1, 32], strides = [1, 1]} : vector<32x32xf32> to vector<1x32xf32>
    %254 = vector.broadcast %252 : vector<1x1xf32> to vector<1x32xf32>
    %255 = arith.mulf %254, %253 : vector<1x32xf32>
    %cst_64 = arith.constant 0.000000e+00 : f32
    %256 = vector.broadcast %cst_64 : f32 to vector<1x32xf32>
    %257 = arith.cmpf ogt, %255, %256 : vector<1x32xf32>
    %cst_65 = arith.constant 0.000000e+00 : f32
    %258 = vector.broadcast %cst_65 : f32 to vector<1x32xf32>
    %259 = arith.select %257, %258, %251 : vector<1x32xi1>, vector<1x32xf32>
    %260 = vector.extract_strided_slice %259 {offsets = [0, 25], sizes = [1, 1], strides = [1, 1]} : vector<1x32xf32> to vector<1x1xf32>
    %261 = vector.extract_strided_slice %59 {offsets = [25, 0], sizes = [1, 32], strides = [1, 1]} : vector<32x32xf32> to vector<1x32xf32>
    %262 = vector.broadcast %260 : vector<1x1xf32> to vector<1x32xf32>
    %263 = arith.mulf %262, %261 : vector<1x32xf32>
    %cst_66 = arith.constant 0.000000e+00 : f32
    %264 = vector.broadcast %cst_66 : f32 to vector<1x32xf32>
    %265 = arith.cmpf ogt, %263, %264 : vector<1x32xf32>
    %cst_67 = arith.constant 0.000000e+00 : f32
    %266 = vector.broadcast %cst_67 : f32 to vector<1x32xf32>
    %267 = arith.select %265, %266, %259 : vector<1x32xi1>, vector<1x32xf32>
    %268 = vector.extract_strided_slice %267 {offsets = [0, 26], sizes = [1, 1], strides = [1, 1]} : vector<1x32xf32> to vector<1x1xf32>
    %269 = vector.extract_strided_slice %59 {offsets = [26, 0], sizes = [1, 32], strides = [1, 1]} : vector<32x32xf32> to vector<1x32xf32>
    %270 = vector.broadcast %268 : vector<1x1xf32> to vector<1x32xf32>
    %271 = arith.mulf %270, %269 : vector<1x32xf32>
    %cst_68 = arith.constant 0.000000e+00 : f32
    %272 = vector.broadcast %cst_68 : f32 to vector<1x32xf32>
    %273 = arith.cmpf ogt, %271, %272 : vector<1x32xf32>
    %cst_69 = arith.constant 0.000000e+00 : f32
    %274 = vector.broadcast %cst_69 : f32 to vector<1x32xf32>
    %275 = arith.select %273, %274, %267 : vector<1x32xi1>, vector<1x32xf32>
    %276 = vector.extract_strided_slice %275 {offsets = [0, 27], sizes = [1, 1], strides = [1, 1]} : vector<1x32xf32> to vector<1x1xf32>
    %277 = vector.extract_strided_slice %59 {offsets = [27, 0], sizes = [1, 32], strides = [1, 1]} : vector<32x32xf32> to vector<1x32xf32>
    %278 = vector.broadcast %276 : vector<1x1xf32> to vector<1x32xf32>
    %279 = arith.mulf %278, %277 : vector<1x32xf32>
    %cst_70 = arith.constant 0.000000e+00 : f32
    %280 = vector.broadcast %cst_70 : f32 to vector<1x32xf32>
    %281 = arith.cmpf ogt, %279, %280 : vector<1x32xf32>
    %cst_71 = arith.constant 0.000000e+00 : f32
    %282 = vector.broadcast %cst_71 : f32 to vector<1x32xf32>
    %283 = arith.select %281, %282, %275 : vector<1x32xi1>, vector<1x32xf32>
    %284 = vector.extract_strided_slice %283 {offsets = [0, 28], sizes = [1, 1], strides = [1, 1]} : vector<1x32xf32> to vector<1x1xf32>
    %285 = vector.extract_strided_slice %59 {offsets = [28, 0], sizes = [1, 32], strides = [1, 1]} : vector<32x32xf32> to vector<1x32xf32>
    %286 = vector.broadcast %284 : vector<1x1xf32> to vector<1x32xf32>
    %287 = arith.mulf %286, %285 : vector<1x32xf32>
    %cst_72 = arith.constant 0.000000e+00 : f32
    %288 = vector.broadcast %cst_72 : f32 to vector<1x32xf32>
    %289 = arith.cmpf ogt, %287, %288 : vector<1x32xf32>
    %cst_73 = arith.constant 0.000000e+00 : f32
    %290 = vector.broadcast %cst_73 : f32 to vector<1x32xf32>
    %291 = arith.select %289, %290, %283 : vector<1x32xi1>, vector<1x32xf32>
    %292 = vector.extract_strided_slice %291 {offsets = [0, 29], sizes = [1, 1], strides = [1, 1]} : vector<1x32xf32> to vector<1x1xf32>
    %293 = vector.extract_strided_slice %59 {offsets = [29, 0], sizes = [1, 32], strides = [1, 1]} : vector<32x32xf32> to vector<1x32xf32>
    %294 = vector.broadcast %292 : vector<1x1xf32> to vector<1x32xf32>
    %295 = arith.mulf %294, %293 : vector<1x32xf32>
    %cst_74 = arith.constant 0.000000e+00 : f32
    %296 = vector.broadcast %cst_74 : f32 to vector<1x32xf32>
    %297 = arith.cmpf ogt, %295, %296 : vector<1x32xf32>
    %cst_75 = arith.constant 0.000000e+00 : f32
    %298 = vector.broadcast %cst_75 : f32 to vector<1x32xf32>
    %299 = arith.select %297, %298, %291 : vector<1x32xi1>, vector<1x32xf32>
    %300 = vector.extract_strided_slice %299 {offsets = [0, 30], sizes = [1, 1], strides = [1, 1]} : vector<1x32xf32> to vector<1x1xf32>
    %301 = vector.extract_strided_slice %59 {offsets = [30, 0], sizes = [1, 32], strides = [1, 1]} : vector<32x32xf32> to vector<1x32xf32>
    %302 = vector.broadcast %300 : vector<1x1xf32> to vector<1x32xf32>
    %303 = arith.mulf %302, %301 : vector<1x32xf32>
    %cst_76 = arith.constant 0.000000e+00 : f32
    %304 = vector.broadcast %cst_76 : f32 to vector<1x32xf32>
    %305 = arith.cmpf ogt, %303, %304 : vector<1x32xf32>
    %cst_77 = arith.constant 0.000000e+00 : f32
    %306 = vector.broadcast %cst_77 : f32 to vector<1x32xf32>
    %307 = arith.select %305, %306, %299 : vector<1x32xi1>, vector<1x32xf32>
    %308 = vector.extract_strided_slice %307 {offsets = [0, 31], sizes = [1, 1], strides = [1, 1]} : vector<1x32xf32> to vector<1x1xf32>
    %309 = vector.extract_strided_slice %59 {offsets = [31, 0], sizes = [1, 32], strides = [1, 1]} : vector<32x32xf32> to vector<1x32xf32>
    %310 = vector.broadcast %308 : vector<1x1xf32> to vector<1x32xf32>
    %311 = arith.mulf %310, %309 : vector<1x32xf32>
    %cst_78 = arith.constant 0.000000e+00 : f32
    %312 = vector.broadcast %cst_78 : f32 to vector<1x32xf32>
    %313 = arith.cmpf ogt, %311, %312 : vector<1x32xf32>
    %cst_79 = arith.constant 0.000000e+00 : f32
    %314 = vector.broadcast %cst_79 : f32 to vector<1x32xf32>
    %315 = arith.select %313, %314, %307 : vector<1x32xi1>, vector<1x32xf32>
    %316 = vector.shape_cast %315 : vector<1x32xf32> to vector<1x32xf32>
    %317 = vector.broadcast %316 : vector<1x32xf32> to vector<8x32xf32>
    %c0_80 = arith.constant 0 : index
    %c0_81 = arith.constant 0 : index
    %318 = vector.load %arg4[%c0_80, %c0_81] : memref<256x256xf32, #tpu.memory_space<vmem>>, vector<32x256xf32>
    %cst_82 = arith.constant dense<0.000000e+00> : vector<8x256xf32>
    %319 = tpu.matmul %317, %318, %cst_82 {dimension_numbers = #tpu.dot_dimension_numbers<[1], [0], [0], [1], [0, 0, 1, 1], [], []>} : vector<8x32xf32>, vector<32x256xf32>, vector<8x256xf32> -> vector<8x256xf32>
    %320 = vector.extract_strided_slice %319 {offsets = [0, 0], sizes = [1, 256], strides = [1, 1]} : vector<8x256xf32> to vector<1x256xf32>
    %cst_83 = arith.constant 0.000000e+00 : f32
    %321 = vector.broadcast %cst_83 : f32 to vector<1x256xf32>
    %322 = arith.cmpf ogt, %320, %321 : vector<1x256xf32>
    %cst_84 = arith.constant 0.000000e+00 : f32
    %323 = vector.broadcast %cst_84 : f32 to vector<1x256xf32>
    %324 = arith.select %322, %323, %57 : vector<1x256xi1>, vector<1x256xf32>
    %325 = vector.extract_strided_slice %324 {offsets = [0, 32], sizes = [1, 32], strides = [1, 1]} : vector<1x256xf32> to vector<1x32xf32>
    %c32 = arith.constant 32 : index
    %c32_85 = arith.constant 32 : index
    %326 = vector.load %arg4[%c32, %c32_85] : memref<256x256xf32, #tpu.memory_space<vmem>>, vector<32x32xf32>
    %327 = vector.extract_strided_slice %325 {offsets = [0, 0], sizes = [1, 1], strides = [1, 1]} : vector<1x32xf32> to vector<1x1xf32>
    %328 = vector.extract_strided_slice %326 {offsets = [0, 0], sizes = [1, 32], strides = [1, 1]} : vector<32x32xf32> to vector<1x32xf32>
    %329 = vector.broadcast %327 : vector<1x1xf32> to vector<1x32xf32>
    %330 = arith.mulf %329, %328 : vector<1x32xf32>
    %cst_86 = arith.constant 0.000000e+00 : f32
    %331 = vector.broadcast %cst_86 : f32 to vector<1x32xf32>
    %332 = arith.cmpf ogt, %330, %331 : vector<1x32xf32>
    %cst_87 = arith.constant 0.000000e+00 : f32
    %333 = vector.broadcast %cst_87 : f32 to vector<1x32xf32>
    %334 = arith.select %332, %333, %325 : vector<1x32xi1>, vector<1x32xf32>
    %335 = vector.extract_strided_slice %334 {offsets = [0, 1], sizes = [1, 1], strides = [1, 1]} : vector<1x32xf32> to vector<1x1xf32>
    %336 = vector.extract_strided_slice %326 {offsets = [1, 0], sizes = [1, 32], strides = [1, 1]} : vector<32x32xf32> to vector<1x32xf32>
    %337 = vector.broadcast %335 : vector<1x1xf32> to vector<1x32xf32>
    %338 = arith.mulf %337, %336 : vector<1x32xf32>
    %cst_88 = arith.constant 0.000000e+00 : f32
    %339 = vector.broadcast %cst_88 : f32 to vector<1x32xf32>
    %340 = arith.cmpf ogt, %338, %339 : vector<1x32xf32>
    %cst_89 = arith.constant 0.000000e+00 : f32
    %341 = vector.broadcast %cst_89 : f32 to vector<1x32xf32>
    %342 = arith.select %340, %341, %334 : vector<1x32xi1>, vector<1x32xf32>
    %343 = vector.extract_strided_slice %342 {offsets = [0, 2], sizes = [1, 1], strides = [1, 1]} : vector<1x32xf32> to vector<1x1xf32>
    %344 = vector.extract_strided_slice %326 {offsets = [2, 0], sizes = [1, 32], strides = [1, 1]} : vector<32x32xf32> to vector<1x32xf32>
    %345 = vector.broadcast %343 : vector<1x1xf32> to vector<1x32xf32>
    %346 = arith.mulf %345, %344 : vector<1x32xf32>
    %cst_90 = arith.constant 0.000000e+00 : f32
    %347 = vector.broadcast %cst_90 : f32 to vector<1x32xf32>
    %348 = arith.cmpf ogt, %346, %347 : vector<1x32xf32>
    %cst_91 = arith.constant 0.000000e+00 : f32
    %349 = vector.broadcast %cst_91 : f32 to vector<1x32xf32>
    %350 = arith.select %348, %349, %342 : vector<1x32xi1>, vector<1x32xf32>
    %351 = vector.extract_strided_slice %350 {offsets = [0, 3], sizes = [1, 1], strides = [1, 1]} : vector<1x32xf32> to vector<1x1xf32>
    %352 = vector.extract_strided_slice %326 {offsets = [3, 0], sizes = [1, 32], strides = [1, 1]} : vector<32x32xf32> to vector<1x32xf32>
    %353 = vector.broadcast %351 : vector<1x1xf32> to vector<1x32xf32>
    %354 = arith.mulf %353, %352 : vector<1x32xf32>
    %cst_92 = arith.constant 0.000000e+00 : f32
    %355 = vector.broadcast %cst_92 : f32 to vector<1x32xf32>
    %356 = arith.cmpf ogt, %354, %355 : vector<1x32xf32>
    %cst_93 = arith.constant 0.000000e+00 : f32
    %357 = vector.broadcast %cst_93 : f32 to vector<1x32xf32>
    %358 = arith.select %356, %357, %350 : vector<1x32xi1>, vector<1x32xf32>
    %359 = vector.extract_strided_slice %358 {offsets = [0, 4], sizes = [1, 1], strides = [1, 1]} : vector<1x32xf32> to vector<1x1xf32>
    %360 = vector.extract_strided_slice %326 {offsets = [4, 0], sizes = [1, 32], strides = [1, 1]} : vector<32x32xf32> to vector<1x32xf32>
    %361 = vector.broadcast %359 : vector<1x1xf32> to vector<1x32xf32>
    %362 = arith.mulf %361, %360 : vector<1x32xf32>
    %cst_94 = arith.constant 0.000000e+00 : f32
    %363 = vector.broadcast %cst_94 : f32 to vector<1x32xf32>
    %364 = arith.cmpf ogt, %362, %363 : vector<1x32xf32>
    %cst_95 = arith.constant 0.000000e+00 : f32
    %365 = vector.broadcast %cst_95 : f32 to vector<1x32xf32>
    %366 = arith.select %364, %365, %358 : vector<1x32xi1>, vector<1x32xf32>
    %367 = vector.extract_strided_slice %366 {offsets = [0, 5], sizes = [1, 1], strides = [1, 1]} : vector<1x32xf32> to vector<1x1xf32>
    %368 = vector.extract_strided_slice %326 {offsets = [5, 0], sizes = [1, 32], strides = [1, 1]} : vector<32x32xf32> to vector<1x32xf32>
    %369 = vector.broadcast %367 : vector<1x1xf32> to vector<1x32xf32>
    %370 = arith.mulf %369, %368 : vector<1x32xf32>
    %cst_96 = arith.constant 0.000000e+00 : f32
    %371 = vector.broadcast %cst_96 : f32 to vector<1x32xf32>
    %372 = arith.cmpf ogt, %370, %371 : vector<1x32xf32>
    %cst_97 = arith.constant 0.000000e+00 : f32
    %373 = vector.broadcast %cst_97 : f32 to vector<1x32xf32>
    %374 = arith.select %372, %373, %366 : vector<1x32xi1>, vector<1x32xf32>
    %375 = vector.extract_strided_slice %374 {offsets = [0, 6], sizes = [1, 1], strides = [1, 1]} : vector<1x32xf32> to vector<1x1xf32>
    %376 = vector.extract_strided_slice %326 {offsets = [6, 0], sizes = [1, 32], strides = [1, 1]} : vector<32x32xf32> to vector<1x32xf32>
    %377 = vector.broadcast %375 : vector<1x1xf32> to vector<1x32xf32>
    %378 = arith.mulf %377, %376 : vector<1x32xf32>
    %cst_98 = arith.constant 0.000000e+00 : f32
    %379 = vector.broadcast %cst_98 : f32 to vector<1x32xf32>
    %380 = arith.cmpf ogt, %378, %379 : vector<1x32xf32>
    %cst_99 = arith.constant 0.000000e+00 : f32
    %381 = vector.broadcast %cst_99 : f32 to vector<1x32xf32>
    %382 = arith.select %380, %381, %374 : vector<1x32xi1>, vector<1x32xf32>
    %383 = vector.extract_strided_slice %382 {offsets = [0, 7], sizes = [1, 1], strides = [1, 1]} : vector<1x32xf32> to vector<1x1xf32>
    %384 = vector.extract_strided_slice %326 {offsets = [7, 0], sizes = [1, 32], strides = [1, 1]} : vector<32x32xf32> to vector<1x32xf32>
    %385 = vector.broadcast %383 : vector<1x1xf32> to vector<1x32xf32>
    %386 = arith.mulf %385, %384 : vector<1x32xf32>
    %cst_100 = arith.constant 0.000000e+00 : f32
    %387 = vector.broadcast %cst_100 : f32 to vector<1x32xf32>
    %388 = arith.cmpf ogt, %386, %387 : vector<1x32xf32>
    %cst_101 = arith.constant 0.000000e+00 : f32
    %389 = vector.broadcast %cst_101 : f32 to vector<1x32xf32>
    %390 = arith.select %388, %389, %382 : vector<1x32xi1>, vector<1x32xf32>
    %391 = vector.extract_strided_slice %390 {offsets = [0, 8], sizes = [1, 1], strides = [1, 1]} : vector<1x32xf32> to vector<1x1xf32>
    %392 = vector.extract_strided_slice %326 {offsets = [8, 0], sizes = [1, 32], strides = [1, 1]} : vector<32x32xf32> to vector<1x32xf32>
    %393 = vector.broadcast %391 : vector<1x1xf32> to vector<1x32xf32>
    %394 = arith.mulf %393, %392 : vector<1x32xf32>
    %cst_102 = arith.constant 0.000000e+00 : f32
    %395 = vector.broadcast %cst_102 : f32 to vector<1x32xf32>
    %396 = arith.cmpf ogt, %394, %395 : vector<1x32xf32>
    %cst_103 = arith.constant 0.000000e+00 : f32
    %397 = vector.broadcast %cst_103 : f32 to vector<1x32xf32>
    %398 = arith.select %396, %397, %390 : vector<1x32xi1>, vector<1x32xf32>
    %399 = vector.extract_strided_slice %398 {offsets = [0, 9], sizes = [1, 1], strides = [1, 1]} : vector<1x32xf32> to vector<1x1xf32>
    %400 = vector.extract_strided_slice %326 {offsets = [9, 0], sizes = [1, 32], strides = [1, 1]} : vector<32x32xf32> to vector<1x32xf32>
    %401 = vector.broadcast %399 : vector<1x1xf32> to vector<1x32xf32>
    %402 = arith.mulf %401, %400 : vector<1x32xf32>
    %cst_104 = arith.constant 0.000000e+00 : f32
    %403 = vector.broadcast %cst_104 : f32 to vector<1x32xf32>
    %404 = arith.cmpf ogt, %402, %403 : vector<1x32xf32>
    %cst_105 = arith.constant 0.000000e+00 : f32
    %405 = vector.broadcast %cst_105 : f32 to vector<1x32xf32>
    %406 = arith.select %404, %405, %398 : vector<1x32xi1>, vector<1x32xf32>
    %407 = vector.extract_strided_slice %406 {offsets = [0, 10], sizes = [1, 1], strides = [1, 1]} : vector<1x32xf32> to vector<1x1xf32>
    %408 = vector.extract_strided_slice %326 {offsets = [10, 0], sizes = [1, 32], strides = [1, 1]} : vector<32x32xf32> to vector<1x32xf32>
    %409 = vector.broadcast %407 : vector<1x1xf32> to vector<1x32xf32>
    %410 = arith.mulf %409, %408 : vector<1x32xf32>
    %cst_106 = arith.constant 0.000000e+00 : f32
    %411 = vector.broadcast %cst_106 : f32 to vector<1x32xf32>
    %412 = arith.cmpf ogt, %410, %411 : vector<1x32xf32>
    %cst_107 = arith.constant 0.000000e+00 : f32
    %413 = vector.broadcast %cst_107 : f32 to vector<1x32xf32>
    %414 = arith.select %412, %413, %406 : vector<1x32xi1>, vector<1x32xf32>
    %415 = vector.extract_strided_slice %414 {offsets = [0, 11], sizes = [1, 1], strides = [1, 1]} : vector<1x32xf32> to vector<1x1xf32>
    %416 = vector.extract_strided_slice %326 {offsets = [11, 0], sizes = [1, 32], strides = [1, 1]} : vector<32x32xf32> to vector<1x32xf32>
    %417 = vector.broadcast %415 : vector<1x1xf32> to vector<1x32xf32>
    %418 = arith.mulf %417, %416 : vector<1x32xf32>
    %cst_108 = arith.constant 0.000000e+00 : f32
    %419 = vector.broadcast %cst_108 : f32 to vector<1x32xf32>
    %420 = arith.cmpf ogt, %418, %419 : vector<1x32xf32>
    %cst_109 = arith.constant 0.000000e+00 : f32
    %421 = vector.broadcast %cst_109 : f32 to vector<1x32xf32>
    %422 = arith.select %420, %421, %414 : vector<1x32xi1>, vector<1x32xf32>
    %423 = vector.extract_strided_slice %422 {offsets = [0, 12], sizes = [1, 1], strides = [1, 1]} : vector<1x32xf32> to vector<1x1xf32>
    %424 = vector.extract_strided_slice %326 {offsets = [12, 0], sizes = [1, 32], strides = [1, 1]} : vector<32x32xf32> to vector<1x32xf32>
    %425 = vector.broadcast %423 : vector<1x1xf32> to vector<1x32xf32>
    %426 = arith.mulf %425, %424 : vector<1x32xf32>
    %cst_110 = arith.constant 0.000000e+00 : f32
    %427 = vector.broadcast %cst_110 : f32 to vector<1x32xf32>
    %428 = arith.cmpf ogt, %426, %427 : vector<1x32xf32>
    %cst_111 = arith.constant 0.000000e+00 : f32
    %429 = vector.broadcast %cst_111 : f32 to vector<1x32xf32>
    %430 = arith.select %428, %429, %422 : vector<1x32xi1>, vector<1x32xf32>
    %431 = vector.extract_strided_slice %430 {offsets = [0, 13], sizes = [1, 1], strides = [1, 1]} : vector<1x32xf32> to vector<1x1xf32>
    %432 = vector.extract_strided_slice %326 {offsets = [13, 0], sizes = [1, 32], strides = [1, 1]} : vector<32x32xf32> to vector<1x32xf32>
    %433 = vector.broadcast %431 : vector<1x1xf32> to vector<1x32xf32>
    %434 = arith.mulf %433, %432 : vector<1x32xf32>
    %cst_112 = arith.constant 0.000000e+00 : f32
    %435 = vector.broadcast %cst_112 : f32 to vector<1x32xf32>
    %436 = arith.cmpf ogt, %434, %435 : vector<1x32xf32>
    %cst_113 = arith.constant 0.000000e+00 : f32
    %437 = vector.broadcast %cst_113 : f32 to vector<1x32xf32>
    %438 = arith.select %436, %437, %430 : vector<1x32xi1>, vector<1x32xf32>
    %439 = vector.extract_strided_slice %438 {offsets = [0, 14], sizes = [1, 1], strides = [1, 1]} : vector<1x32xf32> to vector<1x1xf32>
    %440 = vector.extract_strided_slice %326 {offsets = [14, 0], sizes = [1, 32], strides = [1, 1]} : vector<32x32xf32> to vector<1x32xf32>
    %441 = vector.broadcast %439 : vector<1x1xf32> to vector<1x32xf32>
    %442 = arith.mulf %441, %440 : vector<1x32xf32>
    %cst_114 = arith.constant 0.000000e+00 : f32
    %443 = vector.broadcast %cst_114 : f32 to vector<1x32xf32>
    %444 = arith.cmpf ogt, %442, %443 : vector<1x32xf32>
    %cst_115 = arith.constant 0.000000e+00 : f32
    %445 = vector.broadcast %cst_115 : f32 to vector<1x32xf32>
    %446 = arith.select %444, %445, %438 : vector<1x32xi1>, vector<1x32xf32>
    %447 = vector.extract_strided_slice %446 {offsets = [0, 15], sizes = [1, 1], strides = [1, 1]} : vector<1x32xf32> to vector<1x1xf32>
    %448 = vector.extract_strided_slice %326 {offsets = [15, 0], sizes = [1, 32], strides = [1, 1]} : vector<32x32xf32> to vector<1x32xf32>
    %449 = vector.broadcast %447 : vector<1x1xf32> to vector<1x32xf32>
    %450 = arith.mulf %449, %448 : vector<1x32xf32>
    %cst_116 = arith.constant 0.000000e+00 : f32
    %451 = vector.broadcast %cst_116 : f32 to vector<1x32xf32>
    %452 = arith.cmpf ogt, %450, %451 : vector<1x32xf32>
    %cst_117 = arith.constant 0.000000e+00 : f32
    %453 = vector.broadcast %cst_117 : f32 to vector<1x32xf32>
    %454 = arith.select %452, %453, %446 : vector<1x32xi1>, vector<1x32xf32>
    %455 = vector.extract_strided_slice %454 {offsets = [0, 16], sizes = [1, 1], strides = [1, 1]} : vector<1x32xf32> to vector<1x1xf32>
    %456 = vector.extract_strided_slice %326 {offsets = [16, 0], sizes = [1, 32], strides = [1, 1]} : vector<32x32xf32> to vector<1x32xf32>
    %457 = vector.broadcast %455 : vector<1x1xf32> to vector<1x32xf32>
    %458 = arith.mulf %457, %456 : vector<1x32xf32>
    %cst_118 = arith.constant 0.000000e+00 : f32
    %459 = vector.broadcast %cst_118 : f32 to vector<1x32xf32>
    %460 = arith.cmpf ogt, %458, %459 : vector<1x32xf32>
    %cst_119 = arith.constant 0.000000e+00 : f32
    %461 = vector.broadcast %cst_119 : f32 to vector<1x32xf32>
    %462 = arith.select %460, %461, %454 : vector<1x32xi1>, vector<1x32xf32>
    %463 = vector.extract_strided_slice %462 {offsets = [0, 17], sizes = [1, 1], strides = [1, 1]} : vector<1x32xf32> to vector<1x1xf32>
    %464 = vector.extract_strided_slice %326 {offsets = [17, 0], sizes = [1, 32], strides = [1, 1]} : vector<32x32xf32> to vector<1x32xf32>
    %465 = vector.broadcast %463 : vector<1x1xf32> to vector<1x32xf32>
    %466 = arith.mulf %465, %464 : vector<1x32xf32>
    %cst_120 = arith.constant 0.000000e+00 : f32
    %467 = vector.broadcast %cst_120 : f32 to vector<1x32xf32>
    %468 = arith.cmpf ogt, %466, %467 : vector<1x32xf32>
    %cst_121 = arith.constant 0.000000e+00 : f32
    %469 = vector.broadcast %cst_121 : f32 to vector<1x32xf32>
    %470 = arith.select %468, %469, %462 : vector<1x32xi1>, vector<1x32xf32>
    %471 = vector.extract_strided_slice %470 {offsets = [0, 18], sizes = [1, 1], strides = [1, 1]} : vector<1x32xf32> to vector<1x1xf32>
    %472 = vector.extract_strided_slice %326 {offsets = [18, 0], sizes = [1, 32], strides = [1, 1]} : vector<32x32xf32> to vector<1x32xf32>
    %473 = vector.broadcast %471 : vector<1x1xf32> to vector<1x32xf32>
    %474 = arith.mulf %473, %472 : vector<1x32xf32>
    %cst_122 = arith.constant 0.000000e+00 : f32
    %475 = vector.broadcast %cst_122 : f32 to vector<1x32xf32>
    %476 = arith.cmpf ogt, %474, %475 : vector<1x32xf32>
    %cst_123 = arith.constant 0.000000e+00 : f32
    %477 = vector.broadcast %cst_123 : f32 to vector<1x32xf32>
    %478 = arith.select %476, %477, %470 : vector<1x32xi1>, vector<1x32xf32>
    %479 = vector.extract_strided_slice %478 {offsets = [0, 19], sizes = [1, 1], strides = [1, 1]} : vector<1x32xf32> to vector<1x1xf32>
    %480 = vector.extract_strided_slice %326 {offsets = [19, 0], sizes = [1, 32], strides = [1, 1]} : vector<32x32xf32> to vector<1x32xf32>
    %481 = vector.broadcast %479 : vector<1x1xf32> to vector<1x32xf32>
    %482 = arith.mulf %481, %480 : vector<1x32xf32>
    %cst_124 = arith.constant 0.000000e+00 : f32
    %483 = vector.broadcast %cst_124 : f32 to vector<1x32xf32>
    %484 = arith.cmpf ogt, %482, %483 : vector<1x32xf32>
    %cst_125 = arith.constant 0.000000e+00 : f32
    %485 = vector.broadcast %cst_125 : f32 to vector<1x32xf32>
    %486 = arith.select %484, %485, %478 : vector<1x32xi1>, vector<1x32xf32>
    %487 = vector.extract_strided_slice %486 {offsets = [0, 20], sizes = [1, 1], strides = [1, 1]} : vector<1x32xf32> to vector<1x1xf32>
    %488 = vector.extract_strided_slice %326 {offsets = [20, 0], sizes = [1, 32], strides = [1, 1]} : vector<32x32xf32> to vector<1x32xf32>
    %489 = vector.broadcast %487 : vector<1x1xf32> to vector<1x32xf32>
    %490 = arith.mulf %489, %488 : vector<1x32xf32>
    %cst_126 = arith.constant 0.000000e+00 : f32
    %491 = vector.broadcast %cst_126 : f32 to vector<1x32xf32>
    %492 = arith.cmpf ogt, %490, %491 : vector<1x32xf32>
    %cst_127 = arith.constant 0.000000e+00 : f32
    %493 = vector.broadcast %cst_127 : f32 to vector<1x32xf32>
    %494 = arith.select %492, %493, %486 : vector<1x32xi1>, vector<1x32xf32>
    %495 = vector.extract_strided_slice %494 {offsets = [0, 21], sizes = [1, 1], strides = [1, 1]} : vector<1x32xf32> to vector<1x1xf32>
    %496 = vector.extract_strided_slice %326 {offsets = [21, 0], sizes = [1, 32], strides = [1, 1]} : vector<32x32xf32> to vector<1x32xf32>
    %497 = vector.broadcast %495 : vector<1x1xf32> to vector<1x32xf32>
    %498 = arith.mulf %497, %496 : vector<1x32xf32>
    %cst_128 = arith.constant 0.000000e+00 : f32
    %499 = vector.broadcast %cst_128 : f32 to vector<1x32xf32>
    %500 = arith.cmpf ogt, %498, %499 : vector<1x32xf32>
    %cst_129 = arith.constant 0.000000e+00 : f32
    %501 = vector.broadcast %cst_129 : f32 to vector<1x32xf32>
    %502 = arith.select %500, %501, %494 : vector<1x32xi1>, vector<1x32xf32>
    %503 = vector.extract_strided_slice %502 {offsets = [0, 22], sizes = [1, 1], strides = [1, 1]} : vector<1x32xf32> to vector<1x1xf32>
    %504 = vector.extract_strided_slice %326 {offsets = [22, 0], sizes = [1, 32], strides = [1, 1]} : vector<32x32xf32> to vector<1x32xf32>
    %505 = vector.broadcast %503 : vector<1x1xf32> to vector<1x32xf32>
    %506 = arith.mulf %505, %504 : vector<1x32xf32>
    %cst_130 = arith.constant 0.000000e+00 : f32
    %507 = vector.broadcast %cst_130 : f32 to vector<1x32xf32>
    %508 = arith.cmpf ogt, %506, %507 : vector<1x32xf32>
    %cst_131 = arith.constant 0.000000e+00 : f32
    %509 = vector.broadcast %cst_131 : f32 to vector<1x32xf32>
    %510 = arith.select %508, %509, %502 : vector<1x32xi1>, vector<1x32xf32>
    %511 = vector.extract_strided_slice %510 {offsets = [0, 23], sizes = [1, 1], strides = [1, 1]} : vector<1x32xf32> to vector<1x1xf32>
    %512 = vector.extract_strided_slice %326 {offsets = [23, 0], sizes = [1, 32], strides = [1, 1]} : vector<32x32xf32> to vector<1x32xf32>
    %513 = vector.broadcast %511 : vector<1x1xf32> to vector<1x32xf32>
    %514 = arith.mulf %513, %512 : vector<1x32xf32>
    %cst_132 = arith.constant 0.000000e+00 : f32
    %515 = vector.broadcast %cst_132 : f32 to vector<1x32xf32>
    %516 = arith.cmpf ogt, %514, %515 : vector<1x32xf32>
    %cst_133 = arith.constant 0.000000e+00 : f32
    %517 = vector.broadcast %cst_133 : f32 to vector<1x32xf32>
    %518 = arith.select %516, %517, %510 : vector<1x32xi1>, vector<1x32xf32>
    %519 = vector.extract_strided_slice %518 {offsets = [0, 24], sizes = [1, 1], strides = [1, 1]} : vector<1x32xf32> to vector<1x1xf32>
    %520 = vector.extract_strided_slice %326 {offsets = [24, 0], sizes = [1, 32], strides = [1, 1]} : vector<32x32xf32> to vector<1x32xf32>
    %521 = vector.broadcast %519 : vector<1x1xf32> to vector<1x32xf32>
    %522 = arith.mulf %521, %520 : vector<1x32xf32>
    %cst_134 = arith.constant 0.000000e+00 : f32
    %523 = vector.broadcast %cst_134 : f32 to vector<1x32xf32>
    %524 = arith.cmpf ogt, %522, %523 : vector<1x32xf32>
    %cst_135 = arith.constant 0.000000e+00 : f32
    %525 = vector.broadcast %cst_135 : f32 to vector<1x32xf32>
    %526 = arith.select %524, %525, %518 : vector<1x32xi1>, vector<1x32xf32>
    %527 = vector.extract_strided_slice %526 {offsets = [0, 25], sizes = [1, 1], strides = [1, 1]} : vector<1x32xf32> to vector<1x1xf32>
    %528 = vector.extract_strided_slice %326 {offsets = [25, 0], sizes = [1, 32], strides = [1, 1]} : vector<32x32xf32> to vector<1x32xf32>
    %529 = vector.broadcast %527 : vector<1x1xf32> to vector<1x32xf32>
    %530 = arith.mulf %529, %528 : vector<1x32xf32>
    %cst_136 = arith.constant 0.000000e+00 : f32
    %531 = vector.broadcast %cst_136 : f32 to vector<1x32xf32>
    %532 = arith.cmpf ogt, %530, %531 : vector<1x32xf32>
    %cst_137 = arith.constant 0.000000e+00 : f32
    %533 = vector.broadcast %cst_137 : f32 to vector<1x32xf32>
    %534 = arith.select %532, %533, %526 : vector<1x32xi1>, vector<1x32xf32>
    %535 = vector.extract_strided_slice %534 {offsets = [0, 26], sizes = [1, 1], strides = [1, 1]} : vector<1x32xf32> to vector<1x1xf32>
    %536 = vector.extract_strided_slice %326 {offsets = [26, 0], sizes = [1, 32], strides = [1, 1]} : vector<32x32xf32> to vector<1x32xf32>
    %537 = vector.broadcast %535 : vector<1x1xf32> to vector<1x32xf32>
    %538 = arith.mulf %537, %536 : vector<1x32xf32>
    %cst_138 = arith.constant 0.000000e+00 : f32
    %539 = vector.broadcast %cst_138 : f32 to vector<1x32xf32>
    %540 = arith.cmpf ogt, %538, %539 : vector<1x32xf32>
    %cst_139 = arith.constant 0.000000e+00 : f32
    %541 = vector.broadcast %cst_139 : f32 to vector<1x32xf32>
    %542 = arith.select %540, %541, %534 : vector<1x32xi1>, vector<1x32xf32>
    %543 = vector.extract_strided_slice %542 {offsets = [0, 27], sizes = [1, 1], strides = [1, 1]} : vector<1x32xf32> to vector<1x1xf32>
    %544 = vector.extract_strided_slice %326 {offsets = [27, 0], sizes = [1, 32], strides = [1, 1]} : vector<32x32xf32> to vector<1x32xf32>
    %545 = vector.broadcast %543 : vector<1x1xf32> to vector<1x32xf32>
    %546 = arith.mulf %545, %544 : vector<1x32xf32>
    %cst_140 = arith.constant 0.000000e+00 : f32
    %547 = vector.broadcast %cst_140 : f32 to vector<1x32xf32>
    %548 = arith.cmpf ogt, %546, %547 : vector<1x32xf32>
    %cst_141 = arith.constant 0.000000e+00 : f32
    %549 = vector.broadcast %cst_141 : f32 to vector<1x32xf32>
    %550 = arith.select %548, %549, %542 : vector<1x32xi1>, vector<1x32xf32>
    %551 = vector.extract_strided_slice %550 {offsets = [0, 28], sizes = [1, 1], strides = [1, 1]} : vector<1x32xf32> to vector<1x1xf32>
    %552 = vector.extract_strided_slice %326 {offsets = [28, 0], sizes = [1, 32], strides = [1, 1]} : vector<32x32xf32> to vector<1x32xf32>
    %553 = vector.broadcast %551 : vector<1x1xf32> to vector<1x32xf32>
    %554 = arith.mulf %553, %552 : vector<1x32xf32>
    %cst_142 = arith.constant 0.000000e+00 : f32
    %555 = vector.broadcast %cst_142 : f32 to vector<1x32xf32>
    %556 = arith.cmpf ogt, %554, %555 : vector<1x32xf32>
    %cst_143 = arith.constant 0.000000e+00 : f32
    %557 = vector.broadcast %cst_143 : f32 to vector<1x32xf32>
    %558 = arith.select %556, %557, %550 : vector<1x32xi1>, vector<1x32xf32>
    %559 = vector.extract_strided_slice %558 {offsets = [0, 29], sizes = [1, 1], strides = [1, 1]} : vector<1x32xf32> to vector<1x1xf32>
    %560 = vector.extract_strided_slice %326 {offsets = [29, 0], sizes = [1, 32], strides = [1, 1]} : vector<32x32xf32> to vector<1x32xf32>
    %561 = vector.broadcast %559 : vector<1x1xf32> to vector<1x32xf32>
    %562 = arith.mulf %561, %560 : vector<1x32xf32>
    %cst_144 = arith.constant 0.000000e+00 : f32
    %563 = vector.broadcast %cst_144 : f32 to vector<1x32xf32>
    %564 = arith.cmpf ogt, %562, %563 : vector<1x32xf32>
    %cst_145 = arith.constant 0.000000e+00 : f32
    %565 = vector.broadcast %cst_145 : f32 to vector<1x32xf32>
    %566 = arith.select %564, %565, %558 : vector<1x32xi1>, vector<1x32xf32>
    %567 = vector.extract_strided_slice %566 {offsets = [0, 30], sizes = [1, 1], strides = [1, 1]} : vector<1x32xf32> to vector<1x1xf32>
    %568 = vector.extract_strided_slice %326 {offsets = [30, 0], sizes = [1, 32], strides = [1, 1]} : vector<32x32xf32> to vector<1x32xf32>
    %569 = vector.broadcast %567 : vector<1x1xf32> to vector<1x32xf32>
    %570 = arith.mulf %569, %568 : vector<1x32xf32>
    %cst_146 = arith.constant 0.000000e+00 : f32
    %571 = vector.broadcast %cst_146 : f32 to vector<1x32xf32>
    %572 = arith.cmpf ogt, %570, %571 : vector<1x32xf32>
    %cst_147 = arith.constant 0.000000e+00 : f32
    %573 = vector.broadcast %cst_147 : f32 to vector<1x32xf32>
    %574 = arith.select %572, %573, %566 : vector<1x32xi1>, vector<1x32xf32>
    %575 = vector.extract_strided_slice %574 {offsets = [0, 31], sizes = [1, 1], strides = [1, 1]} : vector<1x32xf32> to vector<1x1xf32>
    %576 = vector.extract_strided_slice %326 {offsets = [31, 0], sizes = [1, 32], strides = [1, 1]} : vector<32x32xf32> to vector<1x32xf32>
    %577 = vector.broadcast %575 : vector<1x1xf32> to vector<1x32xf32>
    %578 = arith.mulf %577, %576 : vector<1x32xf32>
    %cst_148 = arith.constant 0.000000e+00 : f32
    %579 = vector.broadcast %cst_148 : f32 to vector<1x32xf32>
    %580 = arith.cmpf ogt, %578, %579 : vector<1x32xf32>
    %cst_149 = arith.constant 0.000000e+00 : f32
    %581 = vector.broadcast %cst_149 : f32 to vector<1x32xf32>
    %582 = arith.select %580, %581, %574 : vector<1x32xi1>, vector<1x32xf32>
    %583 = vector.shape_cast %582 : vector<1x32xf32> to vector<1x32xf32>
    %584 = vector.broadcast %583 : vector<1x32xf32> to vector<8x32xf32>
    %c32_150 = arith.constant 32 : index
    %c0_151 = arith.constant 0 : index
    %585 = vector.load %arg4[%c32_150, %c0_151] : memref<256x256xf32, #tpu.memory_space<vmem>>, vector<32x256xf32>
    %cst_152 = arith.constant dense<0.000000e+00> : vector<8x256xf32>
    %586 = tpu.matmul %584, %585, %cst_152 {dimension_numbers = #tpu.dot_dimension_numbers<[1], [0], [0], [1], [0, 0, 1, 1], [], []>} : vector<8x32xf32>, vector<32x256xf32>, vector<8x256xf32> -> vector<8x256xf32>
    %587 = vector.extract_strided_slice %586 {offsets = [0, 0], sizes = [1, 256], strides = [1, 1]} : vector<8x256xf32> to vector<1x256xf32>
    %cst_153 = arith.constant 0.000000e+00 : f32
    %588 = vector.broadcast %cst_153 : f32 to vector<1x256xf32>
    %589 = arith.cmpf ogt, %587, %588 : vector<1x256xf32>
    %cst_154 = arith.constant 0.000000e+00 : f32
    %590 = vector.broadcast %cst_154 : f32 to vector<1x256xf32>
    %591 = arith.select %589, %590, %324 : vector<1x256xi1>, vector<1x256xf32>
    %592 = vector.extract_strided_slice %591 {offsets = [0, 64], sizes = [1, 32], strides = [1, 1]} : vector<1x256xf32> to vector<1x32xf32>
    %c64 = arith.constant 64 : index
    %c64_155 = arith.constant 64 : index
    %593 = vector.load %arg4[%c64, %c64_155] : memref<256x256xf32, #tpu.memory_space<vmem>>, vector<32x32xf32>
    %594 = vector.extract_strided_slice %592 {offsets = [0, 0], sizes = [1, 1], strides = [1, 1]} : vector<1x32xf32> to vector<1x1xf32>
    %595 = vector.extract_strided_slice %593 {offsets = [0, 0], sizes = [1, 32], strides = [1, 1]} : vector<32x32xf32> to vector<1x32xf32>
    %596 = vector.broadcast %594 : vector<1x1xf32> to vector<1x32xf32>
    %597 = arith.mulf %596, %595 : vector<1x32xf32>
    %cst_156 = arith.constant 0.000000e+00 : f32
    %598 = vector.broadcast %cst_156 : f32 to vector<1x32xf32>
    %599 = arith.cmpf ogt, %597, %598 : vector<1x32xf32>
    %cst_157 = arith.constant 0.000000e+00 : f32
    %600 = vector.broadcast %cst_157 : f32 to vector<1x32xf32>
    %601 = arith.select %599, %600, %592 : vector<1x32xi1>, vector<1x32xf32>
    %602 = vector.extract_strided_slice %601 {offsets = [0, 1], sizes = [1, 1], strides = [1, 1]} : vector<1x32xf32> to vector<1x1xf32>
    %603 = vector.extract_strided_slice %593 {offsets = [1, 0], sizes = [1, 32], strides = [1, 1]} : vector<32x32xf32> to vector<1x32xf32>
    %604 = vector.broadcast %602 : vector<1x1xf32> to vector<1x32xf32>
    %605 = arith.mulf %604, %603 : vector<1x32xf32>
    %cst_158 = arith.constant 0.000000e+00 : f32
    %606 = vector.broadcast %cst_158 : f32 to vector<1x32xf32>
    %607 = arith.cmpf ogt, %605, %606 : vector<1x32xf32>
    %cst_159 = arith.constant 0.000000e+00 : f32
    %608 = vector.broadcast %cst_159 : f32 to vector<1x32xf32>
    %609 = arith.select %607, %608, %601 : vector<1x32xi1>, vector<1x32xf32>
    %610 = vector.extract_strided_slice %609 {offsets = [0, 2], sizes = [1, 1], strides = [1, 1]} : vector<1x32xf32> to vector<1x1xf32>
    %611 = vector.extract_strided_slice %593 {offsets = [2, 0], sizes = [1, 32], strides = [1, 1]} : vector<32x32xf32> to vector<1x32xf32>
    %612 = vector.broadcast %610 : vector<1x1xf32> to vector<1x32xf32>
    %613 = arith.mulf %612, %611 : vector<1x32xf32>
    %cst_160 = arith.constant 0.000000e+00 : f32
    %614 = vector.broadcast %cst_160 : f32 to vector<1x32xf32>
    %615 = arith.cmpf ogt, %613, %614 : vector<1x32xf32>
    %cst_161 = arith.constant 0.000000e+00 : f32
    %616 = vector.broadcast %cst_161 : f32 to vector<1x32xf32>
    %617 = arith.select %615, %616, %609 : vector<1x32xi1>, vector<1x32xf32>
    %618 = vector.extract_strided_slice %617 {offsets = [0, 3], sizes = [1, 1], strides = [1, 1]} : vector<1x32xf32> to vector<1x1xf32>
    %619 = vector.extract_strided_slice %593 {offsets = [3, 0], sizes = [1, 32], strides = [1, 1]} : vector<32x32xf32> to vector<1x32xf32>
    %620 = vector.broadcast %618 : vector<1x1xf32> to vector<1x32xf32>
    %621 = arith.mulf %620, %619 : vector<1x32xf32>
    %cst_162 = arith.constant 0.000000e+00 : f32
    %622 = vector.broadcast %cst_162 : f32 to vector<1x32xf32>
    %623 = arith.cmpf ogt, %621, %622 : vector<1x32xf32>
    %cst_163 = arith.constant 0.000000e+00 : f32
    %624 = vector.broadcast %cst_163 : f32 to vector<1x32xf32>
    %625 = arith.select %623, %624, %617 : vector<1x32xi1>, vector<1x32xf32>
    %626 = vector.extract_strided_slice %625 {offsets = [0, 4], sizes = [1, 1], strides = [1, 1]} : vector<1x32xf32> to vector<1x1xf32>
    %627 = vector.extract_strided_slice %593 {offsets = [4, 0], sizes = [1, 32], strides = [1, 1]} : vector<32x32xf32> to vector<1x32xf32>
    %628 = vector.broadcast %626 : vector<1x1xf32> to vector<1x32xf32>
    %629 = arith.mulf %628, %627 : vector<1x32xf32>
    %cst_164 = arith.constant 0.000000e+00 : f32
    %630 = vector.broadcast %cst_164 : f32 to vector<1x32xf32>
    %631 = arith.cmpf ogt, %629, %630 : vector<1x32xf32>
    %cst_165 = arith.constant 0.000000e+00 : f32
    %632 = vector.broadcast %cst_165 : f32 to vector<1x32xf32>
    %633 = arith.select %631, %632, %625 : vector<1x32xi1>, vector<1x32xf32>
    %634 = vector.extract_strided_slice %633 {offsets = [0, 5], sizes = [1, 1], strides = [1, 1]} : vector<1x32xf32> to vector<1x1xf32>
    %635 = vector.extract_strided_slice %593 {offsets = [5, 0], sizes = [1, 32], strides = [1, 1]} : vector<32x32xf32> to vector<1x32xf32>
    %636 = vector.broadcast %634 : vector<1x1xf32> to vector<1x32xf32>
    %637 = arith.mulf %636, %635 : vector<1x32xf32>
    %cst_166 = arith.constant 0.000000e+00 : f32
    %638 = vector.broadcast %cst_166 : f32 to vector<1x32xf32>
    %639 = arith.cmpf ogt, %637, %638 : vector<1x32xf32>
    %cst_167 = arith.constant 0.000000e+00 : f32
    %640 = vector.broadcast %cst_167 : f32 to vector<1x32xf32>
    %641 = arith.select %639, %640, %633 : vector<1x32xi1>, vector<1x32xf32>
    %642 = vector.extract_strided_slice %641 {offsets = [0, 6], sizes = [1, 1], strides = [1, 1]} : vector<1x32xf32> to vector<1x1xf32>
    %643 = vector.extract_strided_slice %593 {offsets = [6, 0], sizes = [1, 32], strides = [1, 1]} : vector<32x32xf32> to vector<1x32xf32>
    %644 = vector.broadcast %642 : vector<1x1xf32> to vector<1x32xf32>
    %645 = arith.mulf %644, %643 : vector<1x32xf32>
    %cst_168 = arith.constant 0.000000e+00 : f32
    %646 = vector.broadcast %cst_168 : f32 to vector<1x32xf32>
    %647 = arith.cmpf ogt, %645, %646 : vector<1x32xf32>
    %cst_169 = arith.constant 0.000000e+00 : f32
    %648 = vector.broadcast %cst_169 : f32 to vector<1x32xf32>
    %649 = arith.select %647, %648, %641 : vector<1x32xi1>, vector<1x32xf32>
    %650 = vector.extract_strided_slice %649 {offsets = [0, 7], sizes = [1, 1], strides = [1, 1]} : vector<1x32xf32> to vector<1x1xf32>
    %651 = vector.extract_strided_slice %593 {offsets = [7, 0], sizes = [1, 32], strides = [1, 1]} : vector<32x32xf32> to vector<1x32xf32>
    %652 = vector.broadcast %650 : vector<1x1xf32> to vector<1x32xf32>
    %653 = arith.mulf %652, %651 : vector<1x32xf32>
    %cst_170 = arith.constant 0.000000e+00 : f32
    %654 = vector.broadcast %cst_170 : f32 to vector<1x32xf32>
    %655 = arith.cmpf ogt, %653, %654 : vector<1x32xf32>
    %cst_171 = arith.constant 0.000000e+00 : f32
    %656 = vector.broadcast %cst_171 : f32 to vector<1x32xf32>
    %657 = arith.select %655, %656, %649 : vector<1x32xi1>, vector<1x32xf32>
    %658 = vector.extract_strided_slice %657 {offsets = [0, 8], sizes = [1, 1], strides = [1, 1]} : vector<1x32xf32> to vector<1x1xf32>
    %659 = vector.extract_strided_slice %593 {offsets = [8, 0], sizes = [1, 32], strides = [1, 1]} : vector<32x32xf32> to vector<1x32xf32>
    %660 = vector.broadcast %658 : vector<1x1xf32> to vector<1x32xf32>
    %661 = arith.mulf %660, %659 : vector<1x32xf32>
    %cst_172 = arith.constant 0.000000e+00 : f32
    %662 = vector.broadcast %cst_172 : f32 to vector<1x32xf32>
    %663 = arith.cmpf ogt, %661, %662 : vector<1x32xf32>
    %cst_173 = arith.constant 0.000000e+00 : f32
    %664 = vector.broadcast %cst_173 : f32 to vector<1x32xf32>
    %665 = arith.select %663, %664, %657 : vector<1x32xi1>, vector<1x32xf32>
    %666 = vector.extract_strided_slice %665 {offsets = [0, 9], sizes = [1, 1], strides = [1, 1]} : vector<1x32xf32> to vector<1x1xf32>
    %667 = vector.extract_strided_slice %593 {offsets = [9, 0], sizes = [1, 32], strides = [1, 1]} : vector<32x32xf32> to vector<1x32xf32>
    %668 = vector.broadcast %666 : vector<1x1xf32> to vector<1x32xf32>
    %669 = arith.mulf %668, %667 : vector<1x32xf32>
    %cst_174 = arith.constant 0.000000e+00 : f32
    %670 = vector.broadcast %cst_174 : f32 to vector<1x32xf32>
    %671 = arith.cmpf ogt, %669, %670 : vector<1x32xf32>
    %cst_175 = arith.constant 0.000000e+00 : f32
    %672 = vector.broadcast %cst_175 : f32 to vector<1x32xf32>
    %673 = arith.select %671, %672, %665 : vector<1x32xi1>, vector<1x32xf32>
    %674 = vector.extract_strided_slice %673 {offsets = [0, 10], sizes = [1, 1], strides = [1, 1]} : vector<1x32xf32> to vector<1x1xf32>
    %675 = vector.extract_strided_slice %593 {offsets = [10, 0], sizes = [1, 32], strides = [1, 1]} : vector<32x32xf32> to vector<1x32xf32>
    %676 = vector.broadcast %674 : vector<1x1xf32> to vector<1x32xf32>
    %677 = arith.mulf %676, %675 : vector<1x32xf32>
    %cst_176 = arith.constant 0.000000e+00 : f32
    %678 = vector.broadcast %cst_176 : f32 to vector<1x32xf32>
    %679 = arith.cmpf ogt, %677, %678 : vector<1x32xf32>
    %cst_177 = arith.constant 0.000000e+00 : f32
    %680 = vector.broadcast %cst_177 : f32 to vector<1x32xf32>
    %681 = arith.select %679, %680, %673 : vector<1x32xi1>, vector<1x32xf32>
    %682 = vector.extract_strided_slice %681 {offsets = [0, 11], sizes = [1, 1], strides = [1, 1]} : vector<1x32xf32> to vector<1x1xf32>
    %683 = vector.extract_strided_slice %593 {offsets = [11, 0], sizes = [1, 32], strides = [1, 1]} : vector<32x32xf32> to vector<1x32xf32>
    %684 = vector.broadcast %682 : vector<1x1xf32> to vector<1x32xf32>
    %685 = arith.mulf %684, %683 : vector<1x32xf32>
    %cst_178 = arith.constant 0.000000e+00 : f32
    %686 = vector.broadcast %cst_178 : f32 to vector<1x32xf32>
    %687 = arith.cmpf ogt, %685, %686 : vector<1x32xf32>
    %cst_179 = arith.constant 0.000000e+00 : f32
    %688 = vector.broadcast %cst_179 : f32 to vector<1x32xf32>
    %689 = arith.select %687, %688, %681 : vector<1x32xi1>, vector<1x32xf32>
    %690 = vector.extract_strided_slice %689 {offsets = [0, 12], sizes = [1, 1], strides = [1, 1]} : vector<1x32xf32> to vector<1x1xf32>
    %691 = vector.extract_strided_slice %593 {offsets = [12, 0], sizes = [1, 32], strides = [1, 1]} : vector<32x32xf32> to vector<1x32xf32>
    %692 = vector.broadcast %690 : vector<1x1xf32> to vector<1x32xf32>
    %693 = arith.mulf %692, %691 : vector<1x32xf32>
    %cst_180 = arith.constant 0.000000e+00 : f32
    %694 = vector.broadcast %cst_180 : f32 to vector<1x32xf32>
    %695 = arith.cmpf ogt, %693, %694 : vector<1x32xf32>
    %cst_181 = arith.constant 0.000000e+00 : f32
    %696 = vector.broadcast %cst_181 : f32 to vector<1x32xf32>
    %697 = arith.select %695, %696, %689 : vector<1x32xi1>, vector<1x32xf32>
    %698 = vector.extract_strided_slice %697 {offsets = [0, 13], sizes = [1, 1], strides = [1, 1]} : vector<1x32xf32> to vector<1x1xf32>
    %699 = vector.extract_strided_slice %593 {offsets = [13, 0], sizes = [1, 32], strides = [1, 1]} : vector<32x32xf32> to vector<1x32xf32>
    %700 = vector.broadcast %698 : vector<1x1xf32> to vector<1x32xf32>
    %701 = arith.mulf %700, %699 : vector<1x32xf32>
    %cst_182 = arith.constant 0.000000e+00 : f32
    %702 = vector.broadcast %cst_182 : f32 to vector<1x32xf32>
    %703 = arith.cmpf ogt, %701, %702 : vector<1x32xf32>
    %cst_183 = arith.constant 0.000000e+00 : f32
    %704 = vector.broadcast %cst_183 : f32 to vector<1x32xf32>
    %705 = arith.select %703, %704, %697 : vector<1x32xi1>, vector<1x32xf32>
    %706 = vector.extract_strided_slice %705 {offsets = [0, 14], sizes = [1, 1], strides = [1, 1]} : vector<1x32xf32> to vector<1x1xf32>
    %707 = vector.extract_strided_slice %593 {offsets = [14, 0], sizes = [1, 32], strides = [1, 1]} : vector<32x32xf32> to vector<1x32xf32>
    %708 = vector.broadcast %706 : vector<1x1xf32> to vector<1x32xf32>
    %709 = arith.mulf %708, %707 : vector<1x32xf32>
    %cst_184 = arith.constant 0.000000e+00 : f32
    %710 = vector.broadcast %cst_184 : f32 to vector<1x32xf32>
    %711 = arith.cmpf ogt, %709, %710 : vector<1x32xf32>
    %cst_185 = arith.constant 0.000000e+00 : f32
    %712 = vector.broadcast %cst_185 : f32 to vector<1x32xf32>
    %713 = arith.select %711, %712, %705 : vector<1x32xi1>, vector<1x32xf32>
    %714 = vector.extract_strided_slice %713 {offsets = [0, 15], sizes = [1, 1], strides = [1, 1]} : vector<1x32xf32> to vector<1x1xf32>
    %715 = vector.extract_strided_slice %593 {offsets = [15, 0], sizes = [1, 32], strides = [1, 1]} : vector<32x32xf32> to vector<1x32xf32>
    %716 = vector.broadcast %714 : vector<1x1xf32> to vector<1x32xf32>
    %717 = arith.mulf %716, %715 : vector<1x32xf32>
    %cst_186 = arith.constant 0.000000e+00 : f32
    %718 = vector.broadcast %cst_186 : f32 to vector<1x32xf32>
    %719 = arith.cmpf ogt, %717, %718 : vector<1x32xf32>
    %cst_187 = arith.constant 0.000000e+00 : f32
    %720 = vector.broadcast %cst_187 : f32 to vector<1x32xf32>
    %721 = arith.select %719, %720, %713 : vector<1x32xi1>, vector<1x32xf32>
    %722 = vector.extract_strided_slice %721 {offsets = [0, 16], sizes = [1, 1], strides = [1, 1]} : vector<1x32xf32> to vector<1x1xf32>
    %723 = vector.extract_strided_slice %593 {offsets = [16, 0], sizes = [1, 32], strides = [1, 1]} : vector<32x32xf32> to vector<1x32xf32>
    %724 = vector.broadcast %722 : vector<1x1xf32> to vector<1x32xf32>
    %725 = arith.mulf %724, %723 : vector<1x32xf32>
    %cst_188 = arith.constant 0.000000e+00 : f32
    %726 = vector.broadcast %cst_188 : f32 to vector<1x32xf32>
    %727 = arith.cmpf ogt, %725, %726 : vector<1x32xf32>
    %cst_189 = arith.constant 0.000000e+00 : f32
    %728 = vector.broadcast %cst_189 : f32 to vector<1x32xf32>
    %729 = arith.select %727, %728, %721 : vector<1x32xi1>, vector<1x32xf32>
    %730 = vector.extract_strided_slice %729 {offsets = [0, 17], sizes = [1, 1], strides = [1, 1]} : vector<1x32xf32> to vector<1x1xf32>
    %731 = vector.extract_strided_slice %593 {offsets = [17, 0], sizes = [1, 32], strides = [1, 1]} : vector<32x32xf32> to vector<1x32xf32>
    %732 = vector.broadcast %730 : vector<1x1xf32> to vector<1x32xf32>
    %733 = arith.mulf %732, %731 : vector<1x32xf32>
    %cst_190 = arith.constant 0.000000e+00 : f32
    %734 = vector.broadcast %cst_190 : f32 to vector<1x32xf32>
    %735 = arith.cmpf ogt, %733, %734 : vector<1x32xf32>
    %cst_191 = arith.constant 0.000000e+00 : f32
    %736 = vector.broadcast %cst_191 : f32 to vector<1x32xf32>
    %737 = arith.select %735, %736, %729 : vector<1x32xi1>, vector<1x32xf32>
    %738 = vector.extract_strided_slice %737 {offsets = [0, 18], sizes = [1, 1], strides = [1, 1]} : vector<1x32xf32> to vector<1x1xf32>
    %739 = vector.extract_strided_slice %593 {offsets = [18, 0], sizes = [1, 32], strides = [1, 1]} : vector<32x32xf32> to vector<1x32xf32>
    %740 = vector.broadcast %738 : vector<1x1xf32> to vector<1x32xf32>
    %741 = arith.mulf %740, %739 : vector<1x32xf32>
    %cst_192 = arith.constant 0.000000e+00 : f32
    %742 = vector.broadcast %cst_192 : f32 to vector<1x32xf32>
    %743 = arith.cmpf ogt, %741, %742 : vector<1x32xf32>
    %cst_193 = arith.constant 0.000000e+00 : f32
    %744 = vector.broadcast %cst_193 : f32 to vector<1x32xf32>
    %745 = arith.select %743, %744, %737 : vector<1x32xi1>, vector<1x32xf32>
    %746 = vector.extract_strided_slice %745 {offsets = [0, 19], sizes = [1, 1], strides = [1, 1]} : vector<1x32xf32> to vector<1x1xf32>
    %747 = vector.extract_strided_slice %593 {offsets = [19, 0], sizes = [1, 32], strides = [1, 1]} : vector<32x32xf32> to vector<1x32xf32>
    %748 = vector.broadcast %746 : vector<1x1xf32> to vector<1x32xf32>
    %749 = arith.mulf %748, %747 : vector<1x32xf32>
    %cst_194 = arith.constant 0.000000e+00 : f32
    %750 = vector.broadcast %cst_194 : f32 to vector<1x32xf32>
    %751 = arith.cmpf ogt, %749, %750 : vector<1x32xf32>
    %cst_195 = arith.constant 0.000000e+00 : f32
    %752 = vector.broadcast %cst_195 : f32 to vector<1x32xf32>
    %753 = arith.select %751, %752, %745 : vector<1x32xi1>, vector<1x32xf32>
    %754 = vector.extract_strided_slice %753 {offsets = [0, 20], sizes = [1, 1], strides = [1, 1]} : vector<1x32xf32> to vector<1x1xf32>
    %755 = vector.extract_strided_slice %593 {offsets = [20, 0], sizes = [1, 32], strides = [1, 1]} : vector<32x32xf32> to vector<1x32xf32>
    %756 = vector.broadcast %754 : vector<1x1xf32> to vector<1x32xf32>
    %757 = arith.mulf %756, %755 : vector<1x32xf32>
    %cst_196 = arith.constant 0.000000e+00 : f32
    %758 = vector.broadcast %cst_196 : f32 to vector<1x32xf32>
    %759 = arith.cmpf ogt, %757, %758 : vector<1x32xf32>
    %cst_197 = arith.constant 0.000000e+00 : f32
    %760 = vector.broadcast %cst_197 : f32 to vector<1x32xf32>
    %761 = arith.select %759, %760, %753 : vector<1x32xi1>, vector<1x32xf32>
    %762 = vector.extract_strided_slice %761 {offsets = [0, 21], sizes = [1, 1], strides = [1, 1]} : vector<1x32xf32> to vector<1x1xf32>
    %763 = vector.extract_strided_slice %593 {offsets = [21, 0], sizes = [1, 32], strides = [1, 1]} : vector<32x32xf32> to vector<1x32xf32>
    %764 = vector.broadcast %762 : vector<1x1xf32> to vector<1x32xf32>
    %765 = arith.mulf %764, %763 : vector<1x32xf32>
    %cst_198 = arith.constant 0.000000e+00 : f32
    %766 = vector.broadcast %cst_198 : f32 to vector<1x32xf32>
    %767 = arith.cmpf ogt, %765, %766 : vector<1x32xf32>
    %cst_199 = arith.constant 0.000000e+00 : f32
    %768 = vector.broadcast %cst_199 : f32 to vector<1x32xf32>
    %769 = arith.select %767, %768, %761 : vector<1x32xi1>, vector<1x32xf32>
    %770 = vector.extract_strided_slice %769 {offsets = [0, 22], sizes = [1, 1], strides = [1, 1]} : vector<1x32xf32> to vector<1x1xf32>
    %771 = vector.extract_strided_slice %593 {offsets = [22, 0], sizes = [1, 32], strides = [1, 1]} : vector<32x32xf32> to vector<1x32xf32>
    %772 = vector.broadcast %770 : vector<1x1xf32> to vector<1x32xf32>
    %773 = arith.mulf %772, %771 : vector<1x32xf32>
    %cst_200 = arith.constant 0.000000e+00 : f32
    %774 = vector.broadcast %cst_200 : f32 to vector<1x32xf32>
    %775 = arith.cmpf ogt, %773, %774 : vector<1x32xf32>
    %cst_201 = arith.constant 0.000000e+00 : f32
    %776 = vector.broadcast %cst_201 : f32 to vector<1x32xf32>
    %777 = arith.select %775, %776, %769 : vector<1x32xi1>, vector<1x32xf32>
    %778 = vector.extract_strided_slice %777 {offsets = [0, 23], sizes = [1, 1], strides = [1, 1]} : vector<1x32xf32> to vector<1x1xf32>
    %779 = vector.extract_strided_slice %593 {offsets = [23, 0], sizes = [1, 32], strides = [1, 1]} : vector<32x32xf32> to vector<1x32xf32>
    %780 = vector.broadcast %778 : vector<1x1xf32> to vector<1x32xf32>
    %781 = arith.mulf %780, %779 : vector<1x32xf32>
    %cst_202 = arith.constant 0.000000e+00 : f32
    %782 = vector.broadcast %cst_202 : f32 to vector<1x32xf32>
    %783 = arith.cmpf ogt, %781, %782 : vector<1x32xf32>
    %cst_203 = arith.constant 0.000000e+00 : f32
    %784 = vector.broadcast %cst_203 : f32 to vector<1x32xf32>
    %785 = arith.select %783, %784, %777 : vector<1x32xi1>, vector<1x32xf32>
    %786 = vector.extract_strided_slice %785 {offsets = [0, 24], sizes = [1, 1], strides = [1, 1]} : vector<1x32xf32> to vector<1x1xf32>
    %787 = vector.extract_strided_slice %593 {offsets = [24, 0], sizes = [1, 32], strides = [1, 1]} : vector<32x32xf32> to vector<1x32xf32>
    %788 = vector.broadcast %786 : vector<1x1xf32> to vector<1x32xf32>
    %789 = arith.mulf %788, %787 : vector<1x32xf32>
    %cst_204 = arith.constant 0.000000e+00 : f32
    %790 = vector.broadcast %cst_204 : f32 to vector<1x32xf32>
    %791 = arith.cmpf ogt, %789, %790 : vector<1x32xf32>
    %cst_205 = arith.constant 0.000000e+00 : f32
    %792 = vector.broadcast %cst_205 : f32 to vector<1x32xf32>
    %793 = arith.select %791, %792, %785 : vector<1x32xi1>, vector<1x32xf32>
    %794 = vector.extract_strided_slice %793 {offsets = [0, 25], sizes = [1, 1], strides = [1, 1]} : vector<1x32xf32> to vector<1x1xf32>
    %795 = vector.extract_strided_slice %593 {offsets = [25, 0], sizes = [1, 32], strides = [1, 1]} : vector<32x32xf32> to vector<1x32xf32>
    %796 = vector.broadcast %794 : vector<1x1xf32> to vector<1x32xf32>
    %797 = arith.mulf %796, %795 : vector<1x32xf32>
    %cst_206 = arith.constant 0.000000e+00 : f32
    %798 = vector.broadcast %cst_206 : f32 to vector<1x32xf32>
    %799 = arith.cmpf ogt, %797, %798 : vector<1x32xf32>
    %cst_207 = arith.constant 0.000000e+00 : f32
    %800 = vector.broadcast %cst_207 : f32 to vector<1x32xf32>
    %801 = arith.select %799, %800, %793 : vector<1x32xi1>, vector<1x32xf32>
    %802 = vector.extract_strided_slice %801 {offsets = [0, 26], sizes = [1, 1], strides = [1, 1]} : vector<1x32xf32> to vector<1x1xf32>
    %803 = vector.extract_strided_slice %593 {offsets = [26, 0], sizes = [1, 32], strides = [1, 1]} : vector<32x32xf32> to vector<1x32xf32>
    %804 = vector.broadcast %802 : vector<1x1xf32> to vector<1x32xf32>
    %805 = arith.mulf %804, %803 : vector<1x32xf32>
    %cst_208 = arith.constant 0.000000e+00 : f32
    %806 = vector.broadcast %cst_208 : f32 to vector<1x32xf32>
    %807 = arith.cmpf ogt, %805, %806 : vector<1x32xf32>
    %cst_209 = arith.constant 0.000000e+00 : f32
    %808 = vector.broadcast %cst_209 : f32 to vector<1x32xf32>
    %809 = arith.select %807, %808, %801 : vector<1x32xi1>, vector<1x32xf32>
    %810 = vector.extract_strided_slice %809 {offsets = [0, 27], sizes = [1, 1], strides = [1, 1]} : vector<1x32xf32> to vector<1x1xf32>
    %811 = vector.extract_strided_slice %593 {offsets = [27, 0], sizes = [1, 32], strides = [1, 1]} : vector<32x32xf32> to vector<1x32xf32>
    %812 = vector.broadcast %810 : vector<1x1xf32> to vector<1x32xf32>
    %813 = arith.mulf %812, %811 : vector<1x32xf32>
    %cst_210 = arith.constant 0.000000e+00 : f32
    %814 = vector.broadcast %cst_210 : f32 to vector<1x32xf32>
    %815 = arith.cmpf ogt, %813, %814 : vector<1x32xf32>
    %cst_211 = arith.constant 0.000000e+00 : f32
    %816 = vector.broadcast %cst_211 : f32 to vector<1x32xf32>
    %817 = arith.select %815, %816, %809 : vector<1x32xi1>, vector<1x32xf32>
    %818 = vector.extract_strided_slice %817 {offsets = [0, 28], sizes = [1, 1], strides = [1, 1]} : vector<1x32xf32> to vector<1x1xf32>
    %819 = vector.extract_strided_slice %593 {offsets = [28, 0], sizes = [1, 32], strides = [1, 1]} : vector<32x32xf32> to vector<1x32xf32>
    %820 = vector.broadcast %818 : vector<1x1xf32> to vector<1x32xf32>
    %821 = arith.mulf %820, %819 : vector<1x32xf32>
    %cst_212 = arith.constant 0.000000e+00 : f32
    %822 = vector.broadcast %cst_212 : f32 to vector<1x32xf32>
    %823 = arith.cmpf ogt, %821, %822 : vector<1x32xf32>
    %cst_213 = arith.constant 0.000000e+00 : f32
    %824 = vector.broadcast %cst_213 : f32 to vector<1x32xf32>
    %825 = arith.select %823, %824, %817 : vector<1x32xi1>, vector<1x32xf32>
    %826 = vector.extract_strided_slice %825 {offsets = [0, 29], sizes = [1, 1], strides = [1, 1]} : vector<1x32xf32> to vector<1x1xf32>
    %827 = vector.extract_strided_slice %593 {offsets = [29, 0], sizes = [1, 32], strides = [1, 1]} : vector<32x32xf32> to vector<1x32xf32>
    %828 = vector.broadcast %826 : vector<1x1xf32> to vector<1x32xf32>
    %829 = arith.mulf %828, %827 : vector<1x32xf32>
    %cst_214 = arith.constant 0.000000e+00 : f32
    %830 = vector.broadcast %cst_214 : f32 to vector<1x32xf32>
    %831 = arith.cmpf ogt, %829, %830 : vector<1x32xf32>
    %cst_215 = arith.constant 0.000000e+00 : f32
    %832 = vector.broadcast %cst_215 : f32 to vector<1x32xf32>
    %833 = arith.select %831, %832, %825 : vector<1x32xi1>, vector<1x32xf32>
    %834 = vector.extract_strided_slice %833 {offsets = [0, 30], sizes = [1, 1], strides = [1, 1]} : vector<1x32xf32> to vector<1x1xf32>
    %835 = vector.extract_strided_slice %593 {offsets = [30, 0], sizes = [1, 32], strides = [1, 1]} : vector<32x32xf32> to vector<1x32xf32>
    %836 = vector.broadcast %834 : vector<1x1xf32> to vector<1x32xf32>
    %837 = arith.mulf %836, %835 : vector<1x32xf32>
    %cst_216 = arith.constant 0.000000e+00 : f32
    %838 = vector.broadcast %cst_216 : f32 to vector<1x32xf32>
    %839 = arith.cmpf ogt, %837, %838 : vector<1x32xf32>
    %cst_217 = arith.constant 0.000000e+00 : f32
    %840 = vector.broadcast %cst_217 : f32 to vector<1x32xf32>
    %841 = arith.select %839, %840, %833 : vector<1x32xi1>, vector<1x32xf32>
    %842 = vector.extract_strided_slice %841 {offsets = [0, 31], sizes = [1, 1], strides = [1, 1]} : vector<1x32xf32> to vector<1x1xf32>
    %843 = vector.extract_strided_slice %593 {offsets = [31, 0], sizes = [1, 32], strides = [1, 1]} : vector<32x32xf32> to vector<1x32xf32>
    %844 = vector.broadcast %842 : vector<1x1xf32> to vector<1x32xf32>
    %845 = arith.mulf %844, %843 : vector<1x32xf32>
    %cst_218 = arith.constant 0.000000e+00 : f32
    %846 = vector.broadcast %cst_218 : f32 to vector<1x32xf32>
    %847 = arith.cmpf ogt, %845, %846 : vector<1x32xf32>
    %cst_219 = arith.constant 0.000000e+00 : f32
    %848 = vector.broadcast %cst_219 : f32 to vector<1x32xf32>
    %849 = arith.select %847, %848, %841 : vector<1x32xi1>, vector<1x32xf32>
    %850 = vector.shape_cast %849 : vector<1x32xf32> to vector<1x32xf32>
    %851 = vector.broadcast %850 : vector<1x32xf32> to vector<8x32xf32>
    %c64_220 = arith.constant 64 : index
    %c0_221 = arith.constant 0 : index
    %852 = vector.load %arg4[%c64_220, %c0_221] : memref<256x256xf32, #tpu.memory_space<vmem>>, vector<32x256xf32>
    %cst_222 = arith.constant dense<0.000000e+00> : vector<8x256xf32>
    %853 = tpu.matmul %851, %852, %cst_222 {dimension_numbers = #tpu.dot_dimension_numbers<[1], [0], [0], [1], [0, 0, 1, 1], [], []>} : vector<8x32xf32>, vector<32x256xf32>, vector<8x256xf32> -> vector<8x256xf32>
    %854 = vector.extract_strided_slice %853 {offsets = [0, 0], sizes = [1, 256], strides = [1, 1]} : vector<8x256xf32> to vector<1x256xf32>
    %cst_223 = arith.constant 0.000000e+00 : f32
    %855 = vector.broadcast %cst_223 : f32 to vector<1x256xf32>
    %856 = arith.cmpf ogt, %854, %855 : vector<1x256xf32>
    %cst_224 = arith.constant 0.000000e+00 : f32
    %857 = vector.broadcast %cst_224 : f32 to vector<1x256xf32>
    %858 = arith.select %856, %857, %591 : vector<1x256xi1>, vector<1x256xf32>
    %859 = vector.extract_strided_slice %858 {offsets = [0, 96], sizes = [1, 32], strides = [1, 1]} : vector<1x256xf32> to vector<1x32xf32>
    %c96 = arith.constant 96 : index
    %c96_225 = arith.constant 96 : index
    %860 = vector.load %arg4[%c96, %c96_225] : memref<256x256xf32, #tpu.memory_space<vmem>>, vector<32x32xf32>
    %861 = vector.extract_strided_slice %859 {offsets = [0, 0], sizes = [1, 1], strides = [1, 1]} : vector<1x32xf32> to vector<1x1xf32>
    %862 = vector.extract_strided_slice %860 {offsets = [0, 0], sizes = [1, 32], strides = [1, 1]} : vector<32x32xf32> to vector<1x32xf32>
    %863 = vector.broadcast %861 : vector<1x1xf32> to vector<1x32xf32>
    %864 = arith.mulf %863, %862 : vector<1x32xf32>
    %cst_226 = arith.constant 0.000000e+00 : f32
    %865 = vector.broadcast %cst_226 : f32 to vector<1x32xf32>
    %866 = arith.cmpf ogt, %864, %865 : vector<1x32xf32>
    %cst_227 = arith.constant 0.000000e+00 : f32
    %867 = vector.broadcast %cst_227 : f32 to vector<1x32xf32>
    %868 = arith.select %866, %867, %859 : vector<1x32xi1>, vector<1x32xf32>
    %869 = vector.extract_strided_slice %868 {offsets = [0, 1], sizes = [1, 1], strides = [1, 1]} : vector<1x32xf32> to vector<1x1xf32>
    %870 = vector.extract_strided_slice %860 {offsets = [1, 0], sizes = [1, 32], strides = [1, 1]} : vector<32x32xf32> to vector<1x32xf32>
    %871 = vector.broadcast %869 : vector<1x1xf32> to vector<1x32xf32>
    %872 = arith.mulf %871, %870 : vector<1x32xf32>
    %cst_228 = arith.constant 0.000000e+00 : f32
    %873 = vector.broadcast %cst_228 : f32 to vector<1x32xf32>
    %874 = arith.cmpf ogt, %872, %873 : vector<1x32xf32>
    %cst_229 = arith.constant 0.000000e+00 : f32
    %875 = vector.broadcast %cst_229 : f32 to vector<1x32xf32>
    %876 = arith.select %874, %875, %868 : vector<1x32xi1>, vector<1x32xf32>
    %877 = vector.extract_strided_slice %876 {offsets = [0, 2], sizes = [1, 1], strides = [1, 1]} : vector<1x32xf32> to vector<1x1xf32>
    %878 = vector.extract_strided_slice %860 {offsets = [2, 0], sizes = [1, 32], strides = [1, 1]} : vector<32x32xf32> to vector<1x32xf32>
    %879 = vector.broadcast %877 : vector<1x1xf32> to vector<1x32xf32>
    %880 = arith.mulf %879, %878 : vector<1x32xf32>
    %cst_230 = arith.constant 0.000000e+00 : f32
    %881 = vector.broadcast %cst_230 : f32 to vector<1x32xf32>
    %882 = arith.cmpf ogt, %880, %881 : vector<1x32xf32>
    %cst_231 = arith.constant 0.000000e+00 : f32
    %883 = vector.broadcast %cst_231 : f32 to vector<1x32xf32>
    %884 = arith.select %882, %883, %876 : vector<1x32xi1>, vector<1x32xf32>
    %885 = vector.extract_strided_slice %884 {offsets = [0, 3], sizes = [1, 1], strides = [1, 1]} : vector<1x32xf32> to vector<1x1xf32>
    %886 = vector.extract_strided_slice %860 {offsets = [3, 0], sizes = [1, 32], strides = [1, 1]} : vector<32x32xf32> to vector<1x32xf32>
    %887 = vector.broadcast %885 : vector<1x1xf32> to vector<1x32xf32>
    %888 = arith.mulf %887, %886 : vector<1x32xf32>
    %cst_232 = arith.constant 0.000000e+00 : f32
    %889 = vector.broadcast %cst_232 : f32 to vector<1x32xf32>
    %890 = arith.cmpf ogt, %888, %889 : vector<1x32xf32>
    %cst_233 = arith.constant 0.000000e+00 : f32
    %891 = vector.broadcast %cst_233 : f32 to vector<1x32xf32>
    %892 = arith.select %890, %891, %884 : vector<1x32xi1>, vector<1x32xf32>
    %893 = vector.extract_strided_slice %892 {offsets = [0, 4], sizes = [1, 1], strides = [1, 1]} : vector<1x32xf32> to vector<1x1xf32>
    %894 = vector.extract_strided_slice %860 {offsets = [4, 0], sizes = [1, 32], strides = [1, 1]} : vector<32x32xf32> to vector<1x32xf32>
    %895 = vector.broadcast %893 : vector<1x1xf32> to vector<1x32xf32>
    %896 = arith.mulf %895, %894 : vector<1x32xf32>
    %cst_234 = arith.constant 0.000000e+00 : f32
    %897 = vector.broadcast %cst_234 : f32 to vector<1x32xf32>
    %898 = arith.cmpf ogt, %896, %897 : vector<1x32xf32>
    %cst_235 = arith.constant 0.000000e+00 : f32
    %899 = vector.broadcast %cst_235 : f32 to vector<1x32xf32>
    %900 = arith.select %898, %899, %892 : vector<1x32xi1>, vector<1x32xf32>
    %901 = vector.extract_strided_slice %900 {offsets = [0, 5], sizes = [1, 1], strides = [1, 1]} : vector<1x32xf32> to vector<1x1xf32>
    %902 = vector.extract_strided_slice %860 {offsets = [5, 0], sizes = [1, 32], strides = [1, 1]} : vector<32x32xf32> to vector<1x32xf32>
    %903 = vector.broadcast %901 : vector<1x1xf32> to vector<1x32xf32>
    %904 = arith.mulf %903, %902 : vector<1x32xf32>
    %cst_236 = arith.constant 0.000000e+00 : f32
    %905 = vector.broadcast %cst_236 : f32 to vector<1x32xf32>
    %906 = arith.cmpf ogt, %904, %905 : vector<1x32xf32>
    %cst_237 = arith.constant 0.000000e+00 : f32
    %907 = vector.broadcast %cst_237 : f32 to vector<1x32xf32>
    %908 = arith.select %906, %907, %900 : vector<1x32xi1>, vector<1x32xf32>
    %909 = vector.extract_strided_slice %908 {offsets = [0, 6], sizes = [1, 1], strides = [1, 1]} : vector<1x32xf32> to vector<1x1xf32>
    %910 = vector.extract_strided_slice %860 {offsets = [6, 0], sizes = [1, 32], strides = [1, 1]} : vector<32x32xf32> to vector<1x32xf32>
    %911 = vector.broadcast %909 : vector<1x1xf32> to vector<1x32xf32>
    %912 = arith.mulf %911, %910 : vector<1x32xf32>
    %cst_238 = arith.constant 0.000000e+00 : f32
    %913 = vector.broadcast %cst_238 : f32 to vector<1x32xf32>
    %914 = arith.cmpf ogt, %912, %913 : vector<1x32xf32>
    %cst_239 = arith.constant 0.000000e+00 : f32
    %915 = vector.broadcast %cst_239 : f32 to vector<1x32xf32>
    %916 = arith.select %914, %915, %908 : vector<1x32xi1>, vector<1x32xf32>
    %917 = vector.extract_strided_slice %916 {offsets = [0, 7], sizes = [1, 1], strides = [1, 1]} : vector<1x32xf32> to vector<1x1xf32>
    %918 = vector.extract_strided_slice %860 {offsets = [7, 0], sizes = [1, 32], strides = [1, 1]} : vector<32x32xf32> to vector<1x32xf32>
    %919 = vector.broadcast %917 : vector<1x1xf32> to vector<1x32xf32>
    %920 = arith.mulf %919, %918 : vector<1x32xf32>
    %cst_240 = arith.constant 0.000000e+00 : f32
    %921 = vector.broadcast %cst_240 : f32 to vector<1x32xf32>
    %922 = arith.cmpf ogt, %920, %921 : vector<1x32xf32>
    %cst_241 = arith.constant 0.000000e+00 : f32
    %923 = vector.broadcast %cst_241 : f32 to vector<1x32xf32>
    %924 = arith.select %922, %923, %916 : vector<1x32xi1>, vector<1x32xf32>
    %925 = vector.extract_strided_slice %924 {offsets = [0, 8], sizes = [1, 1], strides = [1, 1]} : vector<1x32xf32> to vector<1x1xf32>
    %926 = vector.extract_strided_slice %860 {offsets = [8, 0], sizes = [1, 32], strides = [1, 1]} : vector<32x32xf32> to vector<1x32xf32>
    %927 = vector.broadcast %925 : vector<1x1xf32> to vector<1x32xf32>
    %928 = arith.mulf %927, %926 : vector<1x32xf32>
    %cst_242 = arith.constant 0.000000e+00 : f32
    %929 = vector.broadcast %cst_242 : f32 to vector<1x32xf32>
    %930 = arith.cmpf ogt, %928, %929 : vector<1x32xf32>
    %cst_243 = arith.constant 0.000000e+00 : f32
    %931 = vector.broadcast %cst_243 : f32 to vector<1x32xf32>
    %932 = arith.select %930, %931, %924 : vector<1x32xi1>, vector<1x32xf32>
    %933 = vector.extract_strided_slice %932 {offsets = [0, 9], sizes = [1, 1], strides = [1, 1]} : vector<1x32xf32> to vector<1x1xf32>
    %934 = vector.extract_strided_slice %860 {offsets = [9, 0], sizes = [1, 32], strides = [1, 1]} : vector<32x32xf32> to vector<1x32xf32>
    %935 = vector.broadcast %933 : vector<1x1xf32> to vector<1x32xf32>
    %936 = arith.mulf %935, %934 : vector<1x32xf32>
    %cst_244 = arith.constant 0.000000e+00 : f32
    %937 = vector.broadcast %cst_244 : f32 to vector<1x32xf32>
    %938 = arith.cmpf ogt, %936, %937 : vector<1x32xf32>
    %cst_245 = arith.constant 0.000000e+00 : f32
    %939 = vector.broadcast %cst_245 : f32 to vector<1x32xf32>
    %940 = arith.select %938, %939, %932 : vector<1x32xi1>, vector<1x32xf32>
    %941 = vector.extract_strided_slice %940 {offsets = [0, 10], sizes = [1, 1], strides = [1, 1]} : vector<1x32xf32> to vector<1x1xf32>
    %942 = vector.extract_strided_slice %860 {offsets = [10, 0], sizes = [1, 32], strides = [1, 1]} : vector<32x32xf32> to vector<1x32xf32>
    %943 = vector.broadcast %941 : vector<1x1xf32> to vector<1x32xf32>
    %944 = arith.mulf %943, %942 : vector<1x32xf32>
    %cst_246 = arith.constant 0.000000e+00 : f32
    %945 = vector.broadcast %cst_246 : f32 to vector<1x32xf32>
    %946 = arith.cmpf ogt, %944, %945 : vector<1x32xf32>
    %cst_247 = arith.constant 0.000000e+00 : f32
    %947 = vector.broadcast %cst_247 : f32 to vector<1x32xf32>
    %948 = arith.select %946, %947, %940 : vector<1x32xi1>, vector<1x32xf32>
    %949 = vector.extract_strided_slice %948 {offsets = [0, 11], sizes = [1, 1], strides = [1, 1]} : vector<1x32xf32> to vector<1x1xf32>
    %950 = vector.extract_strided_slice %860 {offsets = [11, 0], sizes = [1, 32], strides = [1, 1]} : vector<32x32xf32> to vector<1x32xf32>
    %951 = vector.broadcast %949 : vector<1x1xf32> to vector<1x32xf32>
    %952 = arith.mulf %951, %950 : vector<1x32xf32>
    %cst_248 = arith.constant 0.000000e+00 : f32
    %953 = vector.broadcast %cst_248 : f32 to vector<1x32xf32>
    %954 = arith.cmpf ogt, %952, %953 : vector<1x32xf32>
    %cst_249 = arith.constant 0.000000e+00 : f32
    %955 = vector.broadcast %cst_249 : f32 to vector<1x32xf32>
    %956 = arith.select %954, %955, %948 : vector<1x32xi1>, vector<1x32xf32>
    %957 = vector.extract_strided_slice %956 {offsets = [0, 12], sizes = [1, 1], strides = [1, 1]} : vector<1x32xf32> to vector<1x1xf32>
    %958 = vector.extract_strided_slice %860 {offsets = [12, 0], sizes = [1, 32], strides = [1, 1]} : vector<32x32xf32> to vector<1x32xf32>
    %959 = vector.broadcast %957 : vector<1x1xf32> to vector<1x32xf32>
    %960 = arith.mulf %959, %958 : vector<1x32xf32>
    %cst_250 = arith.constant 0.000000e+00 : f32
    %961 = vector.broadcast %cst_250 : f32 to vector<1x32xf32>
    %962 = arith.cmpf ogt, %960, %961 : vector<1x32xf32>
    %cst_251 = arith.constant 0.000000e+00 : f32
    %963 = vector.broadcast %cst_251 : f32 to vector<1x32xf32>
    %964 = arith.select %962, %963, %956 : vector<1x32xi1>, vector<1x32xf32>
    %965 = vector.extract_strided_slice %964 {offsets = [0, 13], sizes = [1, 1], strides = [1, 1]} : vector<1x32xf32> to vector<1x1xf32>
    %966 = vector.extract_strided_slice %860 {offsets = [13, 0], sizes = [1, 32], strides = [1, 1]} : vector<32x32xf32> to vector<1x32xf32>
    %967 = vector.broadcast %965 : vector<1x1xf32> to vector<1x32xf32>
    %968 = arith.mulf %967, %966 : vector<1x32xf32>
    %cst_252 = arith.constant 0.000000e+00 : f32
    %969 = vector.broadcast %cst_252 : f32 to vector<1x32xf32>
    %970 = arith.cmpf ogt, %968, %969 : vector<1x32xf32>
    %cst_253 = arith.constant 0.000000e+00 : f32
    %971 = vector.broadcast %cst_253 : f32 to vector<1x32xf32>
    %972 = arith.select %970, %971, %964 : vector<1x32xi1>, vector<1x32xf32>
    %973 = vector.extract_strided_slice %972 {offsets = [0, 14], sizes = [1, 1], strides = [1, 1]} : vector<1x32xf32> to vector<1x1xf32>
    %974 = vector.extract_strided_slice %860 {offsets = [14, 0], sizes = [1, 32], strides = [1, 1]} : vector<32x32xf32> to vector<1x32xf32>
    %975 = vector.broadcast %973 : vector<1x1xf32> to vector<1x32xf32>
    %976 = arith.mulf %975, %974 : vector<1x32xf32>
    %cst_254 = arith.constant 0.000000e+00 : f32
    %977 = vector.broadcast %cst_254 : f32 to vector<1x32xf32>
    %978 = arith.cmpf ogt, %976, %977 : vector<1x32xf32>
    %cst_255 = arith.constant 0.000000e+00 : f32
    %979 = vector.broadcast %cst_255 : f32 to vector<1x32xf32>
    %980 = arith.select %978, %979, %972 : vector<1x32xi1>, vector<1x32xf32>
    %981 = vector.extract_strided_slice %980 {offsets = [0, 15], sizes = [1, 1], strides = [1, 1]} : vector<1x32xf32> to vector<1x1xf32>
    %982 = vector.extract_strided_slice %860 {offsets = [15, 0], sizes = [1, 32], strides = [1, 1]} : vector<32x32xf32> to vector<1x32xf32>
    %983 = vector.broadcast %981 : vector<1x1xf32> to vector<1x32xf32>
    %984 = arith.mulf %983, %982 : vector<1x32xf32>
    %cst_256 = arith.constant 0.000000e+00 : f32
    %985 = vector.broadcast %cst_256 : f32 to vector<1x32xf32>
    %986 = arith.cmpf ogt, %984, %985 : vector<1x32xf32>
    %cst_257 = arith.constant 0.000000e+00 : f32
    %987 = vector.broadcast %cst_257 : f32 to vector<1x32xf32>
    %988 = arith.select %986, %987, %980 : vector<1x32xi1>, vector<1x32xf32>
    %989 = vector.extract_strided_slice %988 {offsets = [0, 16], sizes = [1, 1], strides = [1, 1]} : vector<1x32xf32> to vector<1x1xf32>
    %990 = vector.extract_strided_slice %860 {offsets = [16, 0], sizes = [1, 32], strides = [1, 1]} : vector<32x32xf32> to vector<1x32xf32>
    %991 = vector.broadcast %989 : vector<1x1xf32> to vector<1x32xf32>
    %992 = arith.mulf %991, %990 : vector<1x32xf32>
    %cst_258 = arith.constant 0.000000e+00 : f32
    %993 = vector.broadcast %cst_258 : f32 to vector<1x32xf32>
    %994 = arith.cmpf ogt, %992, %993 : vector<1x32xf32>
    %cst_259 = arith.constant 0.000000e+00 : f32
    %995 = vector.broadcast %cst_259 : f32 to vector<1x32xf32>
    %996 = arith.select %994, %995, %988 : vector<1x32xi1>, vector<1x32xf32>
    %997 = vector.extract_strided_slice %996 {offsets = [0, 17], sizes = [1, 1], strides = [1, 1]} : vector<1x32xf32> to vector<1x1xf32>
    %998 = vector.extract_strided_slice %860 {offsets = [17, 0], sizes = [1, 32], strides = [1, 1]} : vector<32x32xf32> to vector<1x32xf32>
    %999 = vector.broadcast %997 : vector<1x1xf32> to vector<1x32xf32>
    %1000 = arith.mulf %999, %998 : vector<1x32xf32>
    %cst_260 = arith.constant 0.000000e+00 : f32
    %1001 = vector.broadcast %cst_260 : f32 to vector<1x32xf32>
    %1002 = arith.cmpf ogt, %1000, %1001 : vector<1x32xf32>
    %cst_261 = arith.constant 0.000000e+00 : f32
    %1003 = vector.broadcast %cst_261 : f32 to vector<1x32xf32>
    %1004 = arith.select %1002, %1003, %996 : vector<1x32xi1>, vector<1x32xf32>
    %1005 = vector.extract_strided_slice %1004 {offsets = [0, 18], sizes = [1, 1], strides = [1, 1]} : vector<1x32xf32> to vector<1x1xf32>
    %1006 = vector.extract_strided_slice %860 {offsets = [18, 0], sizes = [1, 32], strides = [1, 1]} : vector<32x32xf32> to vector<1x32xf32>
    %1007 = vector.broadcast %1005 : vector<1x1xf32> to vector<1x32xf32>
    %1008 = arith.mulf %1007, %1006 : vector<1x32xf32>
    %cst_262 = arith.constant 0.000000e+00 : f32
    %1009 = vector.broadcast %cst_262 : f32 to vector<1x32xf32>
    %1010 = arith.cmpf ogt, %1008, %1009 : vector<1x32xf32>
    %cst_263 = arith.constant 0.000000e+00 : f32
    %1011 = vector.broadcast %cst_263 : f32 to vector<1x32xf32>
    %1012 = arith.select %1010, %1011, %1004 : vector<1x32xi1>, vector<1x32xf32>
    %1013 = vector.extract_strided_slice %1012 {offsets = [0, 19], sizes = [1, 1], strides = [1, 1]} : vector<1x32xf32> to vector<1x1xf32>
    %1014 = vector.extract_strided_slice %860 {offsets = [19, 0], sizes = [1, 32], strides = [1, 1]} : vector<32x32xf32> to vector<1x32xf32>
    %1015 = vector.broadcast %1013 : vector<1x1xf32> to vector<1x32xf32>
    %1016 = arith.mulf %1015, %1014 : vector<1x32xf32>
    %cst_264 = arith.constant 0.000000e+00 : f32
    %1017 = vector.broadcast %cst_264 : f32 to vector<1x32xf32>
    %1018 = arith.cmpf ogt, %1016, %1017 : vector<1x32xf32>
    %cst_265 = arith.constant 0.000000e+00 : f32
    %1019 = vector.broadcast %cst_265 : f32 to vector<1x32xf32>
    %1020 = arith.select %1018, %1019, %1012 : vector<1x32xi1>, vector<1x32xf32>
    %1021 = vector.extract_strided_slice %1020 {offsets = [0, 20], sizes = [1, 1], strides = [1, 1]} : vector<1x32xf32> to vector<1x1xf32>
    %1022 = vector.extract_strided_slice %860 {offsets = [20, 0], sizes = [1, 32], strides = [1, 1]} : vector<32x32xf32> to vector<1x32xf32>
    %1023 = vector.broadcast %1021 : vector<1x1xf32> to vector<1x32xf32>
    %1024 = arith.mulf %1023, %1022 : vector<1x32xf32>
    %cst_266 = arith.constant 0.000000e+00 : f32
    %1025 = vector.broadcast %cst_266 : f32 to vector<1x32xf32>
    %1026 = arith.cmpf ogt, %1024, %1025 : vector<1x32xf32>
    %cst_267 = arith.constant 0.000000e+00 : f32
    %1027 = vector.broadcast %cst_267 : f32 to vector<1x32xf32>
    %1028 = arith.select %1026, %1027, %1020 : vector<1x32xi1>, vector<1x32xf32>
    %1029 = vector.extract_strided_slice %1028 {offsets = [0, 21], sizes = [1, 1], strides = [1, 1]} : vector<1x32xf32> to vector<1x1xf32>
    %1030 = vector.extract_strided_slice %860 {offsets = [21, 0], sizes = [1, 32], strides = [1, 1]} : vector<32x32xf32> to vector<1x32xf32>
    %1031 = vector.broadcast %1029 : vector<1x1xf32> to vector<1x32xf32>
    %1032 = arith.mulf %1031, %1030 : vector<1x32xf32>
    %cst_268 = arith.constant 0.000000e+00 : f32
    %1033 = vector.broadcast %cst_268 : f32 to vector<1x32xf32>
    %1034 = arith.cmpf ogt, %1032, %1033 : vector<1x32xf32>
    %cst_269 = arith.constant 0.000000e+00 : f32
    %1035 = vector.broadcast %cst_269 : f32 to vector<1x32xf32>
    %1036 = arith.select %1034, %1035, %1028 : vector<1x32xi1>, vector<1x32xf32>
    %1037 = vector.extract_strided_slice %1036 {offsets = [0, 22], sizes = [1, 1], strides = [1, 1]} : vector<1x32xf32> to vector<1x1xf32>
    %1038 = vector.extract_strided_slice %860 {offsets = [22, 0], sizes = [1, 32], strides = [1, 1]} : vector<32x32xf32> to vector<1x32xf32>
    %1039 = vector.broadcast %1037 : vector<1x1xf32> to vector<1x32xf32>
    %1040 = arith.mulf %1039, %1038 : vector<1x32xf32>
    %cst_270 = arith.constant 0.000000e+00 : f32
    %1041 = vector.broadcast %cst_270 : f32 to vector<1x32xf32>
    %1042 = arith.cmpf ogt, %1040, %1041 : vector<1x32xf32>
    %cst_271 = arith.constant 0.000000e+00 : f32
    %1043 = vector.broadcast %cst_271 : f32 to vector<1x32xf32>
    %1044 = arith.select %1042, %1043, %1036 : vector<1x32xi1>, vector<1x32xf32>
    %1045 = vector.extract_strided_slice %1044 {offsets = [0, 23], sizes = [1, 1], strides = [1, 1]} : vector<1x32xf32> to vector<1x1xf32>
    %1046 = vector.extract_strided_slice %860 {offsets = [23, 0], sizes = [1, 32], strides = [1, 1]} : vector<32x32xf32> to vector<1x32xf32>
    %1047 = vector.broadcast %1045 : vector<1x1xf32> to vector<1x32xf32>
    %1048 = arith.mulf %1047, %1046 : vector<1x32xf32>
    %cst_272 = arith.constant 0.000000e+00 : f32
    %1049 = vector.broadcast %cst_272 : f32 to vector<1x32xf32>
    %1050 = arith.cmpf ogt, %1048, %1049 : vector<1x32xf32>
    %cst_273 = arith.constant 0.000000e+00 : f32
    %1051 = vector.broadcast %cst_273 : f32 to vector<1x32xf32>
    %1052 = arith.select %1050, %1051, %1044 : vector<1x32xi1>, vector<1x32xf32>
    %1053 = vector.extract_strided_slice %1052 {offsets = [0, 24], sizes = [1, 1], strides = [1, 1]} : vector<1x32xf32> to vector<1x1xf32>
    %1054 = vector.extract_strided_slice %860 {offsets = [24, 0], sizes = [1, 32], strides = [1, 1]} : vector<32x32xf32> to vector<1x32xf32>
    %1055 = vector.broadcast %1053 : vector<1x1xf32> to vector<1x32xf32>
    %1056 = arith.mulf %1055, %1054 : vector<1x32xf32>
    %cst_274 = arith.constant 0.000000e+00 : f32
    %1057 = vector.broadcast %cst_274 : f32 to vector<1x32xf32>
    %1058 = arith.cmpf ogt, %1056, %1057 : vector<1x32xf32>
    %cst_275 = arith.constant 0.000000e+00 : f32
    %1059 = vector.broadcast %cst_275 : f32 to vector<1x32xf32>
    %1060 = arith.select %1058, %1059, %1052 : vector<1x32xi1>, vector<1x32xf32>
    %1061 = vector.extract_strided_slice %1060 {offsets = [0, 25], sizes = [1, 1], strides = [1, 1]} : vector<1x32xf32> to vector<1x1xf32>
    %1062 = vector.extract_strided_slice %860 {offsets = [25, 0], sizes = [1, 32], strides = [1, 1]} : vector<32x32xf32> to vector<1x32xf32>
    %1063 = vector.broadcast %1061 : vector<1x1xf32> to vector<1x32xf32>
    %1064 = arith.mulf %1063, %1062 : vector<1x32xf32>
    %cst_276 = arith.constant 0.000000e+00 : f32
    %1065 = vector.broadcast %cst_276 : f32 to vector<1x32xf32>
    %1066 = arith.cmpf ogt, %1064, %1065 : vector<1x32xf32>
    %cst_277 = arith.constant 0.000000e+00 : f32
    %1067 = vector.broadcast %cst_277 : f32 to vector<1x32xf32>
    %1068 = arith.select %1066, %1067, %1060 : vector<1x32xi1>, vector<1x32xf32>
    %1069 = vector.extract_strided_slice %1068 {offsets = [0, 26], sizes = [1, 1], strides = [1, 1]} : vector<1x32xf32> to vector<1x1xf32>
    %1070 = vector.extract_strided_slice %860 {offsets = [26, 0], sizes = [1, 32], strides = [1, 1]} : vector<32x32xf32> to vector<1x32xf32>
    %1071 = vector.broadcast %1069 : vector<1x1xf32> to vector<1x32xf32>
    %1072 = arith.mulf %1071, %1070 : vector<1x32xf32>
    %cst_278 = arith.constant 0.000000e+00 : f32
    %1073 = vector.broadcast %cst_278 : f32 to vector<1x32xf32>
    %1074 = arith.cmpf ogt, %1072, %1073 : vector<1x32xf32>
    %cst_279 = arith.constant 0.000000e+00 : f32
    %1075 = vector.broadcast %cst_279 : f32 to vector<1x32xf32>
    %1076 = arith.select %1074, %1075, %1068 : vector<1x32xi1>, vector<1x32xf32>
    %1077 = vector.extract_strided_slice %1076 {offsets = [0, 27], sizes = [1, 1], strides = [1, 1]} : vector<1x32xf32> to vector<1x1xf32>
    %1078 = vector.extract_strided_slice %860 {offsets = [27, 0], sizes = [1, 32], strides = [1, 1]} : vector<32x32xf32> to vector<1x32xf32>
    %1079 = vector.broadcast %1077 : vector<1x1xf32> to vector<1x32xf32>
    %1080 = arith.mulf %1079, %1078 : vector<1x32xf32>
    %cst_280 = arith.constant 0.000000e+00 : f32
    %1081 = vector.broadcast %cst_280 : f32 to vector<1x32xf32>
    %1082 = arith.cmpf ogt, %1080, %1081 : vector<1x32xf32>
    %cst_281 = arith.constant 0.000000e+00 : f32
    %1083 = vector.broadcast %cst_281 : f32 to vector<1x32xf32>
    %1084 = arith.select %1082, %1083, %1076 : vector<1x32xi1>, vector<1x32xf32>
    %1085 = vector.extract_strided_slice %1084 {offsets = [0, 28], sizes = [1, 1], strides = [1, 1]} : vector<1x32xf32> to vector<1x1xf32>
    %1086 = vector.extract_strided_slice %860 {offsets = [28, 0], sizes = [1, 32], strides = [1, 1]} : vector<32x32xf32> to vector<1x32xf32>
    %1087 = vector.broadcast %1085 : vector<1x1xf32> to vector<1x32xf32>
    %1088 = arith.mulf %1087, %1086 : vector<1x32xf32>
    %cst_282 = arith.constant 0.000000e+00 : f32
    %1089 = vector.broadcast %cst_282 : f32 to vector<1x32xf32>
    %1090 = arith.cmpf ogt, %1088, %1089 : vector<1x32xf32>
    %cst_283 = arith.constant 0.000000e+00 : f32
    %1091 = vector.broadcast %cst_283 : f32 to vector<1x32xf32>
    %1092 = arith.select %1090, %1091, %1084 : vector<1x32xi1>, vector<1x32xf32>
    %1093 = vector.extract_strided_slice %1092 {offsets = [0, 29], sizes = [1, 1], strides = [1, 1]} : vector<1x32xf32> to vector<1x1xf32>
    %1094 = vector.extract_strided_slice %860 {offsets = [29, 0], sizes = [1, 32], strides = [1, 1]} : vector<32x32xf32> to vector<1x32xf32>
    %1095 = vector.broadcast %1093 : vector<1x1xf32> to vector<1x32xf32>
    %1096 = arith.mulf %1095, %1094 : vector<1x32xf32>
    %cst_284 = arith.constant 0.000000e+00 : f32
    %1097 = vector.broadcast %cst_284 : f32 to vector<1x32xf32>
    %1098 = arith.cmpf ogt, %1096, %1097 : vector<1x32xf32>
    %cst_285 = arith.constant 0.000000e+00 : f32
    %1099 = vector.broadcast %cst_285 : f32 to vector<1x32xf32>
    %1100 = arith.select %1098, %1099, %1092 : vector<1x32xi1>, vector<1x32xf32>
    %1101 = vector.extract_strided_slice %1100 {offsets = [0, 30], sizes = [1, 1], strides = [1, 1]} : vector<1x32xf32> to vector<1x1xf32>
    %1102 = vector.extract_strided_slice %860 {offsets = [30, 0], sizes = [1, 32], strides = [1, 1]} : vector<32x32xf32> to vector<1x32xf32>
    %1103 = vector.broadcast %1101 : vector<1x1xf32> to vector<1x32xf32>
    %1104 = arith.mulf %1103, %1102 : vector<1x32xf32>
    %cst_286 = arith.constant 0.000000e+00 : f32
    %1105 = vector.broadcast %cst_286 : f32 to vector<1x32xf32>
    %1106 = arith.cmpf ogt, %1104, %1105 : vector<1x32xf32>
    %cst_287 = arith.constant 0.000000e+00 : f32
    %1107 = vector.broadcast %cst_287 : f32 to vector<1x32xf32>
    %1108 = arith.select %1106, %1107, %1100 : vector<1x32xi1>, vector<1x32xf32>
    %1109 = vector.extract_strided_slice %1108 {offsets = [0, 31], sizes = [1, 1], strides = [1, 1]} : vector<1x32xf32> to vector<1x1xf32>
    %1110 = vector.extract_strided_slice %860 {offsets = [31, 0], sizes = [1, 32], strides = [1, 1]} : vector<32x32xf32> to vector<1x32xf32>
    %1111 = vector.broadcast %1109 : vector<1x1xf32> to vector<1x32xf32>
    %1112 = arith.mulf %1111, %1110 : vector<1x32xf32>
    %cst_288 = arith.constant 0.000000e+00 : f32
    %1113 = vector.broadcast %cst_288 : f32 to vector<1x32xf32>
    %1114 = arith.cmpf ogt, %1112, %1113 : vector<1x32xf32>
    %cst_289 = arith.constant 0.000000e+00 : f32
    %1115 = vector.broadcast %cst_289 : f32 to vector<1x32xf32>
    %1116 = arith.select %1114, %1115, %1108 : vector<1x32xi1>, vector<1x32xf32>
    %1117 = vector.shape_cast %1116 : vector<1x32xf32> to vector<1x32xf32>
    %1118 = vector.broadcast %1117 : vector<1x32xf32> to vector<8x32xf32>
    %c96_290 = arith.constant 96 : index
    %c0_291 = arith.constant 0 : index
    %1119 = vector.load %arg4[%c96_290, %c0_291] : memref<256x256xf32, #tpu.memory_space<vmem>>, vector<32x256xf32>
    %cst_292 = arith.constant dense<0.000000e+00> : vector<8x256xf32>
    %1120 = tpu.matmul %1118, %1119, %cst_292 {dimension_numbers = #tpu.dot_dimension_numbers<[1], [0], [0], [1], [0, 0, 1, 1], [], []>} : vector<8x32xf32>, vector<32x256xf32>, vector<8x256xf32> -> vector<8x256xf32>
    %1121 = vector.extract_strided_slice %1120 {offsets = [0, 0], sizes = [1, 256], strides = [1, 1]} : vector<8x256xf32> to vector<1x256xf32>
    %cst_293 = arith.constant 0.000000e+00 : f32
    %1122 = vector.broadcast %cst_293 : f32 to vector<1x256xf32>
    %1123 = arith.cmpf ogt, %1121, %1122 : vector<1x256xf32>
    %cst_294 = arith.constant 0.000000e+00 : f32
    %1124 = vector.broadcast %cst_294 : f32 to vector<1x256xf32>
    %1125 = arith.select %1123, %1124, %858 : vector<1x256xi1>, vector<1x256xf32>
    %1126 = vector.extract_strided_slice %1125 {offsets = [0, 128], sizes = [1, 32], strides = [1, 1]} : vector<1x256xf32> to vector<1x32xf32>
    %c128 = arith.constant 128 : index
    %c128_295 = arith.constant 128 : index
    %1127 = vector.load %arg4[%c128, %c128_295] : memref<256x256xf32, #tpu.memory_space<vmem>>, vector<32x32xf32>
    %1128 = vector.extract_strided_slice %1126 {offsets = [0, 0], sizes = [1, 1], strides = [1, 1]} : vector<1x32xf32> to vector<1x1xf32>
    %1129 = vector.extract_strided_slice %1127 {offsets = [0, 0], sizes = [1, 32], strides = [1, 1]} : vector<32x32xf32> to vector<1x32xf32>
    %1130 = vector.broadcast %1128 : vector<1x1xf32> to vector<1x32xf32>
    %1131 = arith.mulf %1130, %1129 : vector<1x32xf32>
    %cst_296 = arith.constant 0.000000e+00 : f32
    %1132 = vector.broadcast %cst_296 : f32 to vector<1x32xf32>
    %1133 = arith.cmpf ogt, %1131, %1132 : vector<1x32xf32>
    %cst_297 = arith.constant 0.000000e+00 : f32
    %1134 = vector.broadcast %cst_297 : f32 to vector<1x32xf32>
    %1135 = arith.select %1133, %1134, %1126 : vector<1x32xi1>, vector<1x32xf32>
    %1136 = vector.extract_strided_slice %1135 {offsets = [0, 1], sizes = [1, 1], strides = [1, 1]} : vector<1x32xf32> to vector<1x1xf32>
    %1137 = vector.extract_strided_slice %1127 {offsets = [1, 0], sizes = [1, 32], strides = [1, 1]} : vector<32x32xf32> to vector<1x32xf32>
    %1138 = vector.broadcast %1136 : vector<1x1xf32> to vector<1x32xf32>
    %1139 = arith.mulf %1138, %1137 : vector<1x32xf32>
    %cst_298 = arith.constant 0.000000e+00 : f32
    %1140 = vector.broadcast %cst_298 : f32 to vector<1x32xf32>
    %1141 = arith.cmpf ogt, %1139, %1140 : vector<1x32xf32>
    %cst_299 = arith.constant 0.000000e+00 : f32
    %1142 = vector.broadcast %cst_299 : f32 to vector<1x32xf32>
    %1143 = arith.select %1141, %1142, %1135 : vector<1x32xi1>, vector<1x32xf32>
    %1144 = vector.extract_strided_slice %1143 {offsets = [0, 2], sizes = [1, 1], strides = [1, 1]} : vector<1x32xf32> to vector<1x1xf32>
    %1145 = vector.extract_strided_slice %1127 {offsets = [2, 0], sizes = [1, 32], strides = [1, 1]} : vector<32x32xf32> to vector<1x32xf32>
    %1146 = vector.broadcast %1144 : vector<1x1xf32> to vector<1x32xf32>
    %1147 = arith.mulf %1146, %1145 : vector<1x32xf32>
    %cst_300 = arith.constant 0.000000e+00 : f32
    %1148 = vector.broadcast %cst_300 : f32 to vector<1x32xf32>
    %1149 = arith.cmpf ogt, %1147, %1148 : vector<1x32xf32>
    %cst_301 = arith.constant 0.000000e+00 : f32
    %1150 = vector.broadcast %cst_301 : f32 to vector<1x32xf32>
    %1151 = arith.select %1149, %1150, %1143 : vector<1x32xi1>, vector<1x32xf32>
    %1152 = vector.extract_strided_slice %1151 {offsets = [0, 3], sizes = [1, 1], strides = [1, 1]} : vector<1x32xf32> to vector<1x1xf32>
    %1153 = vector.extract_strided_slice %1127 {offsets = [3, 0], sizes = [1, 32], strides = [1, 1]} : vector<32x32xf32> to vector<1x32xf32>
    %1154 = vector.broadcast %1152 : vector<1x1xf32> to vector<1x32xf32>
    %1155 = arith.mulf %1154, %1153 : vector<1x32xf32>
    %cst_302 = arith.constant 0.000000e+00 : f32
    %1156 = vector.broadcast %cst_302 : f32 to vector<1x32xf32>
    %1157 = arith.cmpf ogt, %1155, %1156 : vector<1x32xf32>
    %cst_303 = arith.constant 0.000000e+00 : f32
    %1158 = vector.broadcast %cst_303 : f32 to vector<1x32xf32>
    %1159 = arith.select %1157, %1158, %1151 : vector<1x32xi1>, vector<1x32xf32>
    %1160 = vector.extract_strided_slice %1159 {offsets = [0, 4], sizes = [1, 1], strides = [1, 1]} : vector<1x32xf32> to vector<1x1xf32>
    %1161 = vector.extract_strided_slice %1127 {offsets = [4, 0], sizes = [1, 32], strides = [1, 1]} : vector<32x32xf32> to vector<1x32xf32>
    %1162 = vector.broadcast %1160 : vector<1x1xf32> to vector<1x32xf32>
    %1163 = arith.mulf %1162, %1161 : vector<1x32xf32>
    %cst_304 = arith.constant 0.000000e+00 : f32
    %1164 = vector.broadcast %cst_304 : f32 to vector<1x32xf32>
    %1165 = arith.cmpf ogt, %1163, %1164 : vector<1x32xf32>
    %cst_305 = arith.constant 0.000000e+00 : f32
    %1166 = vector.broadcast %cst_305 : f32 to vector<1x32xf32>
    %1167 = arith.select %1165, %1166, %1159 : vector<1x32xi1>, vector<1x32xf32>
    %1168 = vector.extract_strided_slice %1167 {offsets = [0, 5], sizes = [1, 1], strides = [1, 1]} : vector<1x32xf32> to vector<1x1xf32>
    %1169 = vector.extract_strided_slice %1127 {offsets = [5, 0], sizes = [1, 32], strides = [1, 1]} : vector<32x32xf32> to vector<1x32xf32>
    %1170 = vector.broadcast %1168 : vector<1x1xf32> to vector<1x32xf32>
    %1171 = arith.mulf %1170, %1169 : vector<1x32xf32>
    %cst_306 = arith.constant 0.000000e+00 : f32
    %1172 = vector.broadcast %cst_306 : f32 to vector<1x32xf32>
    %1173 = arith.cmpf ogt, %1171, %1172 : vector<1x32xf32>
    %cst_307 = arith.constant 0.000000e+00 : f32
    %1174 = vector.broadcast %cst_307 : f32 to vector<1x32xf32>
    %1175 = arith.select %1173, %1174, %1167 : vector<1x32xi1>, vector<1x32xf32>
    %1176 = vector.extract_strided_slice %1175 {offsets = [0, 6], sizes = [1, 1], strides = [1, 1]} : vector<1x32xf32> to vector<1x1xf32>
    %1177 = vector.extract_strided_slice %1127 {offsets = [6, 0], sizes = [1, 32], strides = [1, 1]} : vector<32x32xf32> to vector<1x32xf32>
    %1178 = vector.broadcast %1176 : vector<1x1xf32> to vector<1x32xf32>
    %1179 = arith.mulf %1178, %1177 : vector<1x32xf32>
    %cst_308 = arith.constant 0.000000e+00 : f32
    %1180 = vector.broadcast %cst_308 : f32 to vector<1x32xf32>
    %1181 = arith.cmpf ogt, %1179, %1180 : vector<1x32xf32>
    %cst_309 = arith.constant 0.000000e+00 : f32
    %1182 = vector.broadcast %cst_309 : f32 to vector<1x32xf32>
    %1183 = arith.select %1181, %1182, %1175 : vector<1x32xi1>, vector<1x32xf32>
    %1184 = vector.extract_strided_slice %1183 {offsets = [0, 7], sizes = [1, 1], strides = [1, 1]} : vector<1x32xf32> to vector<1x1xf32>
    %1185 = vector.extract_strided_slice %1127 {offsets = [7, 0], sizes = [1, 32], strides = [1, 1]} : vector<32x32xf32> to vector<1x32xf32>
    %1186 = vector.broadcast %1184 : vector<1x1xf32> to vector<1x32xf32>
    %1187 = arith.mulf %1186, %1185 : vector<1x32xf32>
    %cst_310 = arith.constant 0.000000e+00 : f32
    %1188 = vector.broadcast %cst_310 : f32 to vector<1x32xf32>
    %1189 = arith.cmpf ogt, %1187, %1188 : vector<1x32xf32>
    %cst_311 = arith.constant 0.000000e+00 : f32
    %1190 = vector.broadcast %cst_311 : f32 to vector<1x32xf32>
    %1191 = arith.select %1189, %1190, %1183 : vector<1x32xi1>, vector<1x32xf32>
    %1192 = vector.extract_strided_slice %1191 {offsets = [0, 8], sizes = [1, 1], strides = [1, 1]} : vector<1x32xf32> to vector<1x1xf32>
    %1193 = vector.extract_strided_slice %1127 {offsets = [8, 0], sizes = [1, 32], strides = [1, 1]} : vector<32x32xf32> to vector<1x32xf32>
    %1194 = vector.broadcast %1192 : vector<1x1xf32> to vector<1x32xf32>
    %1195 = arith.mulf %1194, %1193 : vector<1x32xf32>
    %cst_312 = arith.constant 0.000000e+00 : f32
    %1196 = vector.broadcast %cst_312 : f32 to vector<1x32xf32>
    %1197 = arith.cmpf ogt, %1195, %1196 : vector<1x32xf32>
    %cst_313 = arith.constant 0.000000e+00 : f32
    %1198 = vector.broadcast %cst_313 : f32 to vector<1x32xf32>
    %1199 = arith.select %1197, %1198, %1191 : vector<1x32xi1>, vector<1x32xf32>
    %1200 = vector.extract_strided_slice %1199 {offsets = [0, 9], sizes = [1, 1], strides = [1, 1]} : vector<1x32xf32> to vector<1x1xf32>
    %1201 = vector.extract_strided_slice %1127 {offsets = [9, 0], sizes = [1, 32], strides = [1, 1]} : vector<32x32xf32> to vector<1x32xf32>
    %1202 = vector.broadcast %1200 : vector<1x1xf32> to vector<1x32xf32>
    %1203 = arith.mulf %1202, %1201 : vector<1x32xf32>
    %cst_314 = arith.constant 0.000000e+00 : f32
    %1204 = vector.broadcast %cst_314 : f32 to vector<1x32xf32>
    %1205 = arith.cmpf ogt, %1203, %1204 : vector<1x32xf32>
    %cst_315 = arith.constant 0.000000e+00 : f32
    %1206 = vector.broadcast %cst_315 : f32 to vector<1x32xf32>
    %1207 = arith.select %1205, %1206, %1199 : vector<1x32xi1>, vector<1x32xf32>
    %1208 = vector.extract_strided_slice %1207 {offsets = [0, 10], sizes = [1, 1], strides = [1, 1]} : vector<1x32xf32> to vector<1x1xf32>
    %1209 = vector.extract_strided_slice %1127 {offsets = [10, 0], sizes = [1, 32], strides = [1, 1]} : vector<32x32xf32> to vector<1x32xf32>
    %1210 = vector.broadcast %1208 : vector<1x1xf32> to vector<1x32xf32>
    %1211 = arith.mulf %1210, %1209 : vector<1x32xf32>
    %cst_316 = arith.constant 0.000000e+00 : f32
    %1212 = vector.broadcast %cst_316 : f32 to vector<1x32xf32>
    %1213 = arith.cmpf ogt, %1211, %1212 : vector<1x32xf32>
    %cst_317 = arith.constant 0.000000e+00 : f32
    %1214 = vector.broadcast %cst_317 : f32 to vector<1x32xf32>
    %1215 = arith.select %1213, %1214, %1207 : vector<1x32xi1>, vector<1x32xf32>
    %1216 = vector.extract_strided_slice %1215 {offsets = [0, 11], sizes = [1, 1], strides = [1, 1]} : vector<1x32xf32> to vector<1x1xf32>
    %1217 = vector.extract_strided_slice %1127 {offsets = [11, 0], sizes = [1, 32], strides = [1, 1]} : vector<32x32xf32> to vector<1x32xf32>
    %1218 = vector.broadcast %1216 : vector<1x1xf32> to vector<1x32xf32>
    %1219 = arith.mulf %1218, %1217 : vector<1x32xf32>
    %cst_318 = arith.constant 0.000000e+00 : f32
    %1220 = vector.broadcast %cst_318 : f32 to vector<1x32xf32>
    %1221 = arith.cmpf ogt, %1219, %1220 : vector<1x32xf32>
    %cst_319 = arith.constant 0.000000e+00 : f32
    %1222 = vector.broadcast %cst_319 : f32 to vector<1x32xf32>
    %1223 = arith.select %1221, %1222, %1215 : vector<1x32xi1>, vector<1x32xf32>
    %1224 = vector.extract_strided_slice %1223 {offsets = [0, 12], sizes = [1, 1], strides = [1, 1]} : vector<1x32xf32> to vector<1x1xf32>
    %1225 = vector.extract_strided_slice %1127 {offsets = [12, 0], sizes = [1, 32], strides = [1, 1]} : vector<32x32xf32> to vector<1x32xf32>
    %1226 = vector.broadcast %1224 : vector<1x1xf32> to vector<1x32xf32>
    %1227 = arith.mulf %1226, %1225 : vector<1x32xf32>
    %cst_320 = arith.constant 0.000000e+00 : f32
    %1228 = vector.broadcast %cst_320 : f32 to vector<1x32xf32>
    %1229 = arith.cmpf ogt, %1227, %1228 : vector<1x32xf32>
    %cst_321 = arith.constant 0.000000e+00 : f32
    %1230 = vector.broadcast %cst_321 : f32 to vector<1x32xf32>
    %1231 = arith.select %1229, %1230, %1223 : vector<1x32xi1>, vector<1x32xf32>
    %1232 = vector.extract_strided_slice %1231 {offsets = [0, 13], sizes = [1, 1], strides = [1, 1]} : vector<1x32xf32> to vector<1x1xf32>
    %1233 = vector.extract_strided_slice %1127 {offsets = [13, 0], sizes = [1, 32], strides = [1, 1]} : vector<32x32xf32> to vector<1x32xf32>
    %1234 = vector.broadcast %1232 : vector<1x1xf32> to vector<1x32xf32>
    %1235 = arith.mulf %1234, %1233 : vector<1x32xf32>
    %cst_322 = arith.constant 0.000000e+00 : f32
    %1236 = vector.broadcast %cst_322 : f32 to vector<1x32xf32>
    %1237 = arith.cmpf ogt, %1235, %1236 : vector<1x32xf32>
    %cst_323 = arith.constant 0.000000e+00 : f32
    %1238 = vector.broadcast %cst_323 : f32 to vector<1x32xf32>
    %1239 = arith.select %1237, %1238, %1231 : vector<1x32xi1>, vector<1x32xf32>
    %1240 = vector.extract_strided_slice %1239 {offsets = [0, 14], sizes = [1, 1], strides = [1, 1]} : vector<1x32xf32> to vector<1x1xf32>
    %1241 = vector.extract_strided_slice %1127 {offsets = [14, 0], sizes = [1, 32], strides = [1, 1]} : vector<32x32xf32> to vector<1x32xf32>
    %1242 = vector.broadcast %1240 : vector<1x1xf32> to vector<1x32xf32>
    %1243 = arith.mulf %1242, %1241 : vector<1x32xf32>
    %cst_324 = arith.constant 0.000000e+00 : f32
    %1244 = vector.broadcast %cst_324 : f32 to vector<1x32xf32>
    %1245 = arith.cmpf ogt, %1243, %1244 : vector<1x32xf32>
    %cst_325 = arith.constant 0.000000e+00 : f32
    %1246 = vector.broadcast %cst_325 : f32 to vector<1x32xf32>
    %1247 = arith.select %1245, %1246, %1239 : vector<1x32xi1>, vector<1x32xf32>
    %1248 = vector.extract_strided_slice %1247 {offsets = [0, 15], sizes = [1, 1], strides = [1, 1]} : vector<1x32xf32> to vector<1x1xf32>
    %1249 = vector.extract_strided_slice %1127 {offsets = [15, 0], sizes = [1, 32], strides = [1, 1]} : vector<32x32xf32> to vector<1x32xf32>
    %1250 = vector.broadcast %1248 : vector<1x1xf32> to vector<1x32xf32>
    %1251 = arith.mulf %1250, %1249 : vector<1x32xf32>
    %cst_326 = arith.constant 0.000000e+00 : f32
    %1252 = vector.broadcast %cst_326 : f32 to vector<1x32xf32>
    %1253 = arith.cmpf ogt, %1251, %1252 : vector<1x32xf32>
    %cst_327 = arith.constant 0.000000e+00 : f32
    %1254 = vector.broadcast %cst_327 : f32 to vector<1x32xf32>
    %1255 = arith.select %1253, %1254, %1247 : vector<1x32xi1>, vector<1x32xf32>
    %1256 = vector.extract_strided_slice %1255 {offsets = [0, 16], sizes = [1, 1], strides = [1, 1]} : vector<1x32xf32> to vector<1x1xf32>
    %1257 = vector.extract_strided_slice %1127 {offsets = [16, 0], sizes = [1, 32], strides = [1, 1]} : vector<32x32xf32> to vector<1x32xf32>
    %1258 = vector.broadcast %1256 : vector<1x1xf32> to vector<1x32xf32>
    %1259 = arith.mulf %1258, %1257 : vector<1x32xf32>
    %cst_328 = arith.constant 0.000000e+00 : f32
    %1260 = vector.broadcast %cst_328 : f32 to vector<1x32xf32>
    %1261 = arith.cmpf ogt, %1259, %1260 : vector<1x32xf32>
    %cst_329 = arith.constant 0.000000e+00 : f32
    %1262 = vector.broadcast %cst_329 : f32 to vector<1x32xf32>
    %1263 = arith.select %1261, %1262, %1255 : vector<1x32xi1>, vector<1x32xf32>
    %1264 = vector.extract_strided_slice %1263 {offsets = [0, 17], sizes = [1, 1], strides = [1, 1]} : vector<1x32xf32> to vector<1x1xf32>
    %1265 = vector.extract_strided_slice %1127 {offsets = [17, 0], sizes = [1, 32], strides = [1, 1]} : vector<32x32xf32> to vector<1x32xf32>
    %1266 = vector.broadcast %1264 : vector<1x1xf32> to vector<1x32xf32>
    %1267 = arith.mulf %1266, %1265 : vector<1x32xf32>
    %cst_330 = arith.constant 0.000000e+00 : f32
    %1268 = vector.broadcast %cst_330 : f32 to vector<1x32xf32>
    %1269 = arith.cmpf ogt, %1267, %1268 : vector<1x32xf32>
    %cst_331 = arith.constant 0.000000e+00 : f32
    %1270 = vector.broadcast %cst_331 : f32 to vector<1x32xf32>
    %1271 = arith.select %1269, %1270, %1263 : vector<1x32xi1>, vector<1x32xf32>
    %1272 = vector.extract_strided_slice %1271 {offsets = [0, 18], sizes = [1, 1], strides = [1, 1]} : vector<1x32xf32> to vector<1x1xf32>
    %1273 = vector.extract_strided_slice %1127 {offsets = [18, 0], sizes = [1, 32], strides = [1, 1]} : vector<32x32xf32> to vector<1x32xf32>
    %1274 = vector.broadcast %1272 : vector<1x1xf32> to vector<1x32xf32>
    %1275 = arith.mulf %1274, %1273 : vector<1x32xf32>
    %cst_332 = arith.constant 0.000000e+00 : f32
    %1276 = vector.broadcast %cst_332 : f32 to vector<1x32xf32>
    %1277 = arith.cmpf ogt, %1275, %1276 : vector<1x32xf32>
    %cst_333 = arith.constant 0.000000e+00 : f32
    %1278 = vector.broadcast %cst_333 : f32 to vector<1x32xf32>
    %1279 = arith.select %1277, %1278, %1271 : vector<1x32xi1>, vector<1x32xf32>
    %1280 = vector.extract_strided_slice %1279 {offsets = [0, 19], sizes = [1, 1], strides = [1, 1]} : vector<1x32xf32> to vector<1x1xf32>
    %1281 = vector.extract_strided_slice %1127 {offsets = [19, 0], sizes = [1, 32], strides = [1, 1]} : vector<32x32xf32> to vector<1x32xf32>
    %1282 = vector.broadcast %1280 : vector<1x1xf32> to vector<1x32xf32>
    %1283 = arith.mulf %1282, %1281 : vector<1x32xf32>
    %cst_334 = arith.constant 0.000000e+00 : f32
    %1284 = vector.broadcast %cst_334 : f32 to vector<1x32xf32>
    %1285 = arith.cmpf ogt, %1283, %1284 : vector<1x32xf32>
    %cst_335 = arith.constant 0.000000e+00 : f32
    %1286 = vector.broadcast %cst_335 : f32 to vector<1x32xf32>
    %1287 = arith.select %1285, %1286, %1279 : vector<1x32xi1>, vector<1x32xf32>
    %1288 = vector.extract_strided_slice %1287 {offsets = [0, 20], sizes = [1, 1], strides = [1, 1]} : vector<1x32xf32> to vector<1x1xf32>
    %1289 = vector.extract_strided_slice %1127 {offsets = [20, 0], sizes = [1, 32], strides = [1, 1]} : vector<32x32xf32> to vector<1x32xf32>
    %1290 = vector.broadcast %1288 : vector<1x1xf32> to vector<1x32xf32>
    %1291 = arith.mulf %1290, %1289 : vector<1x32xf32>
    %cst_336 = arith.constant 0.000000e+00 : f32
    %1292 = vector.broadcast %cst_336 : f32 to vector<1x32xf32>
    %1293 = arith.cmpf ogt, %1291, %1292 : vector<1x32xf32>
    %cst_337 = arith.constant 0.000000e+00 : f32
    %1294 = vector.broadcast %cst_337 : f32 to vector<1x32xf32>
    %1295 = arith.select %1293, %1294, %1287 : vector<1x32xi1>, vector<1x32xf32>
    %1296 = vector.extract_strided_slice %1295 {offsets = [0, 21], sizes = [1, 1], strides = [1, 1]} : vector<1x32xf32> to vector<1x1xf32>
    %1297 = vector.extract_strided_slice %1127 {offsets = [21, 0], sizes = [1, 32], strides = [1, 1]} : vector<32x32xf32> to vector<1x32xf32>
    %1298 = vector.broadcast %1296 : vector<1x1xf32> to vector<1x32xf32>
    %1299 = arith.mulf %1298, %1297 : vector<1x32xf32>
    %cst_338 = arith.constant 0.000000e+00 : f32
    %1300 = vector.broadcast %cst_338 : f32 to vector<1x32xf32>
    %1301 = arith.cmpf ogt, %1299, %1300 : vector<1x32xf32>
    %cst_339 = arith.constant 0.000000e+00 : f32
    %1302 = vector.broadcast %cst_339 : f32 to vector<1x32xf32>
    %1303 = arith.select %1301, %1302, %1295 : vector<1x32xi1>, vector<1x32xf32>
    %1304 = vector.extract_strided_slice %1303 {offsets = [0, 22], sizes = [1, 1], strides = [1, 1]} : vector<1x32xf32> to vector<1x1xf32>
    %1305 = vector.extract_strided_slice %1127 {offsets = [22, 0], sizes = [1, 32], strides = [1, 1]} : vector<32x32xf32> to vector<1x32xf32>
    %1306 = vector.broadcast %1304 : vector<1x1xf32> to vector<1x32xf32>
    %1307 = arith.mulf %1306, %1305 : vector<1x32xf32>
    %cst_340 = arith.constant 0.000000e+00 : f32
    %1308 = vector.broadcast %cst_340 : f32 to vector<1x32xf32>
    %1309 = arith.cmpf ogt, %1307, %1308 : vector<1x32xf32>
    %cst_341 = arith.constant 0.000000e+00 : f32
    %1310 = vector.broadcast %cst_341 : f32 to vector<1x32xf32>
    %1311 = arith.select %1309, %1310, %1303 : vector<1x32xi1>, vector<1x32xf32>
    %1312 = vector.extract_strided_slice %1311 {offsets = [0, 23], sizes = [1, 1], strides = [1, 1]} : vector<1x32xf32> to vector<1x1xf32>
    %1313 = vector.extract_strided_slice %1127 {offsets = [23, 0], sizes = [1, 32], strides = [1, 1]} : vector<32x32xf32> to vector<1x32xf32>
    %1314 = vector.broadcast %1312 : vector<1x1xf32> to vector<1x32xf32>
    %1315 = arith.mulf %1314, %1313 : vector<1x32xf32>
    %cst_342 = arith.constant 0.000000e+00 : f32
    %1316 = vector.broadcast %cst_342 : f32 to vector<1x32xf32>
    %1317 = arith.cmpf ogt, %1315, %1316 : vector<1x32xf32>
    %cst_343 = arith.constant 0.000000e+00 : f32
    %1318 = vector.broadcast %cst_343 : f32 to vector<1x32xf32>
    %1319 = arith.select %1317, %1318, %1311 : vector<1x32xi1>, vector<1x32xf32>
    %1320 = vector.extract_strided_slice %1319 {offsets = [0, 24], sizes = [1, 1], strides = [1, 1]} : vector<1x32xf32> to vector<1x1xf32>
    %1321 = vector.extract_strided_slice %1127 {offsets = [24, 0], sizes = [1, 32], strides = [1, 1]} : vector<32x32xf32> to vector<1x32xf32>
    %1322 = vector.broadcast %1320 : vector<1x1xf32> to vector<1x32xf32>
    %1323 = arith.mulf %1322, %1321 : vector<1x32xf32>
    %cst_344 = arith.constant 0.000000e+00 : f32
    %1324 = vector.broadcast %cst_344 : f32 to vector<1x32xf32>
    %1325 = arith.cmpf ogt, %1323, %1324 : vector<1x32xf32>
    %cst_345 = arith.constant 0.000000e+00 : f32
    %1326 = vector.broadcast %cst_345 : f32 to vector<1x32xf32>
    %1327 = arith.select %1325, %1326, %1319 : vector<1x32xi1>, vector<1x32xf32>
    %1328 = vector.extract_strided_slice %1327 {offsets = [0, 25], sizes = [1, 1], strides = [1, 1]} : vector<1x32xf32> to vector<1x1xf32>
    %1329 = vector.extract_strided_slice %1127 {offsets = [25, 0], sizes = [1, 32], strides = [1, 1]} : vector<32x32xf32> to vector<1x32xf32>
    %1330 = vector.broadcast %1328 : vector<1x1xf32> to vector<1x32xf32>
    %1331 = arith.mulf %1330, %1329 : vector<1x32xf32>
    %cst_346 = arith.constant 0.000000e+00 : f32
    %1332 = vector.broadcast %cst_346 : f32 to vector<1x32xf32>
    %1333 = arith.cmpf ogt, %1331, %1332 : vector<1x32xf32>
    %cst_347 = arith.constant 0.000000e+00 : f32
    %1334 = vector.broadcast %cst_347 : f32 to vector<1x32xf32>
    %1335 = arith.select %1333, %1334, %1327 : vector<1x32xi1>, vector<1x32xf32>
    %1336 = vector.extract_strided_slice %1335 {offsets = [0, 26], sizes = [1, 1], strides = [1, 1]} : vector<1x32xf32> to vector<1x1xf32>
    %1337 = vector.extract_strided_slice %1127 {offsets = [26, 0], sizes = [1, 32], strides = [1, 1]} : vector<32x32xf32> to vector<1x32xf32>
    %1338 = vector.broadcast %1336 : vector<1x1xf32> to vector<1x32xf32>
    %1339 = arith.mulf %1338, %1337 : vector<1x32xf32>
    %cst_348 = arith.constant 0.000000e+00 : f32
    %1340 = vector.broadcast %cst_348 : f32 to vector<1x32xf32>
    %1341 = arith.cmpf ogt, %1339, %1340 : vector<1x32xf32>
    %cst_349 = arith.constant 0.000000e+00 : f32
    %1342 = vector.broadcast %cst_349 : f32 to vector<1x32xf32>
    %1343 = arith.select %1341, %1342, %1335 : vector<1x32xi1>, vector<1x32xf32>
    %1344 = vector.extract_strided_slice %1343 {offsets = [0, 27], sizes = [1, 1], strides = [1, 1]} : vector<1x32xf32> to vector<1x1xf32>
    %1345 = vector.extract_strided_slice %1127 {offsets = [27, 0], sizes = [1, 32], strides = [1, 1]} : vector<32x32xf32> to vector<1x32xf32>
    %1346 = vector.broadcast %1344 : vector<1x1xf32> to vector<1x32xf32>
    %1347 = arith.mulf %1346, %1345 : vector<1x32xf32>
    %cst_350 = arith.constant 0.000000e+00 : f32
    %1348 = vector.broadcast %cst_350 : f32 to vector<1x32xf32>
    %1349 = arith.cmpf ogt, %1347, %1348 : vector<1x32xf32>
    %cst_351 = arith.constant 0.000000e+00 : f32
    %1350 = vector.broadcast %cst_351 : f32 to vector<1x32xf32>
    %1351 = arith.select %1349, %1350, %1343 : vector<1x32xi1>, vector<1x32xf32>
    %1352 = vector.extract_strided_slice %1351 {offsets = [0, 28], sizes = [1, 1], strides = [1, 1]} : vector<1x32xf32> to vector<1x1xf32>
    %1353 = vector.extract_strided_slice %1127 {offsets = [28, 0], sizes = [1, 32], strides = [1, 1]} : vector<32x32xf32> to vector<1x32xf32>
    %1354 = vector.broadcast %1352 : vector<1x1xf32> to vector<1x32xf32>
    %1355 = arith.mulf %1354, %1353 : vector<1x32xf32>
    %cst_352 = arith.constant 0.000000e+00 : f32
    %1356 = vector.broadcast %cst_352 : f32 to vector<1x32xf32>
    %1357 = arith.cmpf ogt, %1355, %1356 : vector<1x32xf32>
    %cst_353 = arith.constant 0.000000e+00 : f32
    %1358 = vector.broadcast %cst_353 : f32 to vector<1x32xf32>
    %1359 = arith.select %1357, %1358, %1351 : vector<1x32xi1>, vector<1x32xf32>
    %1360 = vector.extract_strided_slice %1359 {offsets = [0, 29], sizes = [1, 1], strides = [1, 1]} : vector<1x32xf32> to vector<1x1xf32>
    %1361 = vector.extract_strided_slice %1127 {offsets = [29, 0], sizes = [1, 32], strides = [1, 1]} : vector<32x32xf32> to vector<1x32xf32>
    %1362 = vector.broadcast %1360 : vector<1x1xf32> to vector<1x32xf32>
    %1363 = arith.mulf %1362, %1361 : vector<1x32xf32>
    %cst_354 = arith.constant 0.000000e+00 : f32
    %1364 = vector.broadcast %cst_354 : f32 to vector<1x32xf32>
    %1365 = arith.cmpf ogt, %1363, %1364 : vector<1x32xf32>
    %cst_355 = arith.constant 0.000000e+00 : f32
    %1366 = vector.broadcast %cst_355 : f32 to vector<1x32xf32>
    %1367 = arith.select %1365, %1366, %1359 : vector<1x32xi1>, vector<1x32xf32>
    %1368 = vector.extract_strided_slice %1367 {offsets = [0, 30], sizes = [1, 1], strides = [1, 1]} : vector<1x32xf32> to vector<1x1xf32>
    %1369 = vector.extract_strided_slice %1127 {offsets = [30, 0], sizes = [1, 32], strides = [1, 1]} : vector<32x32xf32> to vector<1x32xf32>
    %1370 = vector.broadcast %1368 : vector<1x1xf32> to vector<1x32xf32>
    %1371 = arith.mulf %1370, %1369 : vector<1x32xf32>
    %cst_356 = arith.constant 0.000000e+00 : f32
    %1372 = vector.broadcast %cst_356 : f32 to vector<1x32xf32>
    %1373 = arith.cmpf ogt, %1371, %1372 : vector<1x32xf32>
    %cst_357 = arith.constant 0.000000e+00 : f32
    %1374 = vector.broadcast %cst_357 : f32 to vector<1x32xf32>
    %1375 = arith.select %1373, %1374, %1367 : vector<1x32xi1>, vector<1x32xf32>
    %1376 = vector.extract_strided_slice %1375 {offsets = [0, 31], sizes = [1, 1], strides = [1, 1]} : vector<1x32xf32> to vector<1x1xf32>
    %1377 = vector.extract_strided_slice %1127 {offsets = [31, 0], sizes = [1, 32], strides = [1, 1]} : vector<32x32xf32> to vector<1x32xf32>
    %1378 = vector.broadcast %1376 : vector<1x1xf32> to vector<1x32xf32>
    %1379 = arith.mulf %1378, %1377 : vector<1x32xf32>
    %cst_358 = arith.constant 0.000000e+00 : f32
    %1380 = vector.broadcast %cst_358 : f32 to vector<1x32xf32>
    %1381 = arith.cmpf ogt, %1379, %1380 : vector<1x32xf32>
    %cst_359 = arith.constant 0.000000e+00 : f32
    %1382 = vector.broadcast %cst_359 : f32 to vector<1x32xf32>
    %1383 = arith.select %1381, %1382, %1375 : vector<1x32xi1>, vector<1x32xf32>
    %1384 = vector.shape_cast %1383 : vector<1x32xf32> to vector<1x32xf32>
    %1385 = vector.broadcast %1384 : vector<1x32xf32> to vector<8x32xf32>
    %c128_360 = arith.constant 128 : index
    %c0_361 = arith.constant 0 : index
    %1386 = vector.load %arg4[%c128_360, %c0_361] : memref<256x256xf32, #tpu.memory_space<vmem>>, vector<32x256xf32>
    %cst_362 = arith.constant dense<0.000000e+00> : vector<8x256xf32>
    %1387 = tpu.matmul %1385, %1386, %cst_362 {dimension_numbers = #tpu.dot_dimension_numbers<[1], [0], [0], [1], [0, 0, 1, 1], [], []>} : vector<8x32xf32>, vector<32x256xf32>, vector<8x256xf32> -> vector<8x256xf32>
    %1388 = vector.extract_strided_slice %1387 {offsets = [0, 0], sizes = [1, 256], strides = [1, 1]} : vector<8x256xf32> to vector<1x256xf32>
    %cst_363 = arith.constant 0.000000e+00 : f32
    %1389 = vector.broadcast %cst_363 : f32 to vector<1x256xf32>
    %1390 = arith.cmpf ogt, %1388, %1389 : vector<1x256xf32>
    %cst_364 = arith.constant 0.000000e+00 : f32
    %1391 = vector.broadcast %cst_364 : f32 to vector<1x256xf32>
    %1392 = arith.select %1390, %1391, %1125 : vector<1x256xi1>, vector<1x256xf32>
    %1393 = vector.extract_strided_slice %1392 {offsets = [0, 160], sizes = [1, 32], strides = [1, 1]} : vector<1x256xf32> to vector<1x32xf32>
    %c160 = arith.constant 160 : index
    %c160_365 = arith.constant 160 : index
    %1394 = vector.load %arg4[%c160, %c160_365] : memref<256x256xf32, #tpu.memory_space<vmem>>, vector<32x32xf32>
    %1395 = vector.extract_strided_slice %1393 {offsets = [0, 0], sizes = [1, 1], strides = [1, 1]} : vector<1x32xf32> to vector<1x1xf32>
    %1396 = vector.extract_strided_slice %1394 {offsets = [0, 0], sizes = [1, 32], strides = [1, 1]} : vector<32x32xf32> to vector<1x32xf32>
    %1397 = vector.broadcast %1395 : vector<1x1xf32> to vector<1x32xf32>
    %1398 = arith.mulf %1397, %1396 : vector<1x32xf32>
    %cst_366 = arith.constant 0.000000e+00 : f32
    %1399 = vector.broadcast %cst_366 : f32 to vector<1x32xf32>
    %1400 = arith.cmpf ogt, %1398, %1399 : vector<1x32xf32>
    %cst_367 = arith.constant 0.000000e+00 : f32
    %1401 = vector.broadcast %cst_367 : f32 to vector<1x32xf32>
    %1402 = arith.select %1400, %1401, %1393 : vector<1x32xi1>, vector<1x32xf32>
    %1403 = vector.extract_strided_slice %1402 {offsets = [0, 1], sizes = [1, 1], strides = [1, 1]} : vector<1x32xf32> to vector<1x1xf32>
    %1404 = vector.extract_strided_slice %1394 {offsets = [1, 0], sizes = [1, 32], strides = [1, 1]} : vector<32x32xf32> to vector<1x32xf32>
    %1405 = vector.broadcast %1403 : vector<1x1xf32> to vector<1x32xf32>
    %1406 = arith.mulf %1405, %1404 : vector<1x32xf32>
    %cst_368 = arith.constant 0.000000e+00 : f32
    %1407 = vector.broadcast %cst_368 : f32 to vector<1x32xf32>
    %1408 = arith.cmpf ogt, %1406, %1407 : vector<1x32xf32>
    %cst_369 = arith.constant 0.000000e+00 : f32
    %1409 = vector.broadcast %cst_369 : f32 to vector<1x32xf32>
    %1410 = arith.select %1408, %1409, %1402 : vector<1x32xi1>, vector<1x32xf32>
    %1411 = vector.extract_strided_slice %1410 {offsets = [0, 2], sizes = [1, 1], strides = [1, 1]} : vector<1x32xf32> to vector<1x1xf32>
    %1412 = vector.extract_strided_slice %1394 {offsets = [2, 0], sizes = [1, 32], strides = [1, 1]} : vector<32x32xf32> to vector<1x32xf32>
    %1413 = vector.broadcast %1411 : vector<1x1xf32> to vector<1x32xf32>
    %1414 = arith.mulf %1413, %1412 : vector<1x32xf32>
    %cst_370 = arith.constant 0.000000e+00 : f32
    %1415 = vector.broadcast %cst_370 : f32 to vector<1x32xf32>
    %1416 = arith.cmpf ogt, %1414, %1415 : vector<1x32xf32>
    %cst_371 = arith.constant 0.000000e+00 : f32
    %1417 = vector.broadcast %cst_371 : f32 to vector<1x32xf32>
    %1418 = arith.select %1416, %1417, %1410 : vector<1x32xi1>, vector<1x32xf32>
    %1419 = vector.extract_strided_slice %1418 {offsets = [0, 3], sizes = [1, 1], strides = [1, 1]} : vector<1x32xf32> to vector<1x1xf32>
    %1420 = vector.extract_strided_slice %1394 {offsets = [3, 0], sizes = [1, 32], strides = [1, 1]} : vector<32x32xf32> to vector<1x32xf32>
    %1421 = vector.broadcast %1419 : vector<1x1xf32> to vector<1x32xf32>
    %1422 = arith.mulf %1421, %1420 : vector<1x32xf32>
    %cst_372 = arith.constant 0.000000e+00 : f32
    %1423 = vector.broadcast %cst_372 : f32 to vector<1x32xf32>
    %1424 = arith.cmpf ogt, %1422, %1423 : vector<1x32xf32>
    %cst_373 = arith.constant 0.000000e+00 : f32
    %1425 = vector.broadcast %cst_373 : f32 to vector<1x32xf32>
    %1426 = arith.select %1424, %1425, %1418 : vector<1x32xi1>, vector<1x32xf32>
    %1427 = vector.extract_strided_slice %1426 {offsets = [0, 4], sizes = [1, 1], strides = [1, 1]} : vector<1x32xf32> to vector<1x1xf32>
    %1428 = vector.extract_strided_slice %1394 {offsets = [4, 0], sizes = [1, 32], strides = [1, 1]} : vector<32x32xf32> to vector<1x32xf32>
    %1429 = vector.broadcast %1427 : vector<1x1xf32> to vector<1x32xf32>
    %1430 = arith.mulf %1429, %1428 : vector<1x32xf32>
    %cst_374 = arith.constant 0.000000e+00 : f32
    %1431 = vector.broadcast %cst_374 : f32 to vector<1x32xf32>
    %1432 = arith.cmpf ogt, %1430, %1431 : vector<1x32xf32>
    %cst_375 = arith.constant 0.000000e+00 : f32
    %1433 = vector.broadcast %cst_375 : f32 to vector<1x32xf32>
    %1434 = arith.select %1432, %1433, %1426 : vector<1x32xi1>, vector<1x32xf32>
    %1435 = vector.extract_strided_slice %1434 {offsets = [0, 5], sizes = [1, 1], strides = [1, 1]} : vector<1x32xf32> to vector<1x1xf32>
    %1436 = vector.extract_strided_slice %1394 {offsets = [5, 0], sizes = [1, 32], strides = [1, 1]} : vector<32x32xf32> to vector<1x32xf32>
    %1437 = vector.broadcast %1435 : vector<1x1xf32> to vector<1x32xf32>
    %1438 = arith.mulf %1437, %1436 : vector<1x32xf32>
    %cst_376 = arith.constant 0.000000e+00 : f32
    %1439 = vector.broadcast %cst_376 : f32 to vector<1x32xf32>
    %1440 = arith.cmpf ogt, %1438, %1439 : vector<1x32xf32>
    %cst_377 = arith.constant 0.000000e+00 : f32
    %1441 = vector.broadcast %cst_377 : f32 to vector<1x32xf32>
    %1442 = arith.select %1440, %1441, %1434 : vector<1x32xi1>, vector<1x32xf32>
    %1443 = vector.extract_strided_slice %1442 {offsets = [0, 6], sizes = [1, 1], strides = [1, 1]} : vector<1x32xf32> to vector<1x1xf32>
    %1444 = vector.extract_strided_slice %1394 {offsets = [6, 0], sizes = [1, 32], strides = [1, 1]} : vector<32x32xf32> to vector<1x32xf32>
    %1445 = vector.broadcast %1443 : vector<1x1xf32> to vector<1x32xf32>
    %1446 = arith.mulf %1445, %1444 : vector<1x32xf32>
    %cst_378 = arith.constant 0.000000e+00 : f32
    %1447 = vector.broadcast %cst_378 : f32 to vector<1x32xf32>
    %1448 = arith.cmpf ogt, %1446, %1447 : vector<1x32xf32>
    %cst_379 = arith.constant 0.000000e+00 : f32
    %1449 = vector.broadcast %cst_379 : f32 to vector<1x32xf32>
    %1450 = arith.select %1448, %1449, %1442 : vector<1x32xi1>, vector<1x32xf32>
    %1451 = vector.extract_strided_slice %1450 {offsets = [0, 7], sizes = [1, 1], strides = [1, 1]} : vector<1x32xf32> to vector<1x1xf32>
    %1452 = vector.extract_strided_slice %1394 {offsets = [7, 0], sizes = [1, 32], strides = [1, 1]} : vector<32x32xf32> to vector<1x32xf32>
    %1453 = vector.broadcast %1451 : vector<1x1xf32> to vector<1x32xf32>
    %1454 = arith.mulf %1453, %1452 : vector<1x32xf32>
    %cst_380 = arith.constant 0.000000e+00 : f32
    %1455 = vector.broadcast %cst_380 : f32 to vector<1x32xf32>
    %1456 = arith.cmpf ogt, %1454, %1455 : vector<1x32xf32>
    %cst_381 = arith.constant 0.000000e+00 : f32
    %1457 = vector.broadcast %cst_381 : f32 to vector<1x32xf32>
    %1458 = arith.select %1456, %1457, %1450 : vector<1x32xi1>, vector<1x32xf32>
    %1459 = vector.extract_strided_slice %1458 {offsets = [0, 8], sizes = [1, 1], strides = [1, 1]} : vector<1x32xf32> to vector<1x1xf32>
    %1460 = vector.extract_strided_slice %1394 {offsets = [8, 0], sizes = [1, 32], strides = [1, 1]} : vector<32x32xf32> to vector<1x32xf32>
    %1461 = vector.broadcast %1459 : vector<1x1xf32> to vector<1x32xf32>
    %1462 = arith.mulf %1461, %1460 : vector<1x32xf32>
    %cst_382 = arith.constant 0.000000e+00 : f32
    %1463 = vector.broadcast %cst_382 : f32 to vector<1x32xf32>
    %1464 = arith.cmpf ogt, %1462, %1463 : vector<1x32xf32>
    %cst_383 = arith.constant 0.000000e+00 : f32
    %1465 = vector.broadcast %cst_383 : f32 to vector<1x32xf32>
    %1466 = arith.select %1464, %1465, %1458 : vector<1x32xi1>, vector<1x32xf32>
    %1467 = vector.extract_strided_slice %1466 {offsets = [0, 9], sizes = [1, 1], strides = [1, 1]} : vector<1x32xf32> to vector<1x1xf32>
    %1468 = vector.extract_strided_slice %1394 {offsets = [9, 0], sizes = [1, 32], strides = [1, 1]} : vector<32x32xf32> to vector<1x32xf32>
    %1469 = vector.broadcast %1467 : vector<1x1xf32> to vector<1x32xf32>
    %1470 = arith.mulf %1469, %1468 : vector<1x32xf32>
    %cst_384 = arith.constant 0.000000e+00 : f32
    %1471 = vector.broadcast %cst_384 : f32 to vector<1x32xf32>
    %1472 = arith.cmpf ogt, %1470, %1471 : vector<1x32xf32>
    %cst_385 = arith.constant 0.000000e+00 : f32
    %1473 = vector.broadcast %cst_385 : f32 to vector<1x32xf32>
    %1474 = arith.select %1472, %1473, %1466 : vector<1x32xi1>, vector<1x32xf32>
    %1475 = vector.extract_strided_slice %1474 {offsets = [0, 10], sizes = [1, 1], strides = [1, 1]} : vector<1x32xf32> to vector<1x1xf32>
    %1476 = vector.extract_strided_slice %1394 {offsets = [10, 0], sizes = [1, 32], strides = [1, 1]} : vector<32x32xf32> to vector<1x32xf32>
    %1477 = vector.broadcast %1475 : vector<1x1xf32> to vector<1x32xf32>
    %1478 = arith.mulf %1477, %1476 : vector<1x32xf32>
    %cst_386 = arith.constant 0.000000e+00 : f32
    %1479 = vector.broadcast %cst_386 : f32 to vector<1x32xf32>
    %1480 = arith.cmpf ogt, %1478, %1479 : vector<1x32xf32>
    %cst_387 = arith.constant 0.000000e+00 : f32
    %1481 = vector.broadcast %cst_387 : f32 to vector<1x32xf32>
    %1482 = arith.select %1480, %1481, %1474 : vector<1x32xi1>, vector<1x32xf32>
    %1483 = vector.extract_strided_slice %1482 {offsets = [0, 11], sizes = [1, 1], strides = [1, 1]} : vector<1x32xf32> to vector<1x1xf32>
    %1484 = vector.extract_strided_slice %1394 {offsets = [11, 0], sizes = [1, 32], strides = [1, 1]} : vector<32x32xf32> to vector<1x32xf32>
    %1485 = vector.broadcast %1483 : vector<1x1xf32> to vector<1x32xf32>
    %1486 = arith.mulf %1485, %1484 : vector<1x32xf32>
    %cst_388 = arith.constant 0.000000e+00 : f32
    %1487 = vector.broadcast %cst_388 : f32 to vector<1x32xf32>
    %1488 = arith.cmpf ogt, %1486, %1487 : vector<1x32xf32>
    %cst_389 = arith.constant 0.000000e+00 : f32
    %1489 = vector.broadcast %cst_389 : f32 to vector<1x32xf32>
    %1490 = arith.select %1488, %1489, %1482 : vector<1x32xi1>, vector<1x32xf32>
    %1491 = vector.extract_strided_slice %1490 {offsets = [0, 12], sizes = [1, 1], strides = [1, 1]} : vector<1x32xf32> to vector<1x1xf32>
    %1492 = vector.extract_strided_slice %1394 {offsets = [12, 0], sizes = [1, 32], strides = [1, 1]} : vector<32x32xf32> to vector<1x32xf32>
    %1493 = vector.broadcast %1491 : vector<1x1xf32> to vector<1x32xf32>
    %1494 = arith.mulf %1493, %1492 : vector<1x32xf32>
    %cst_390 = arith.constant 0.000000e+00 : f32
    %1495 = vector.broadcast %cst_390 : f32 to vector<1x32xf32>
    %1496 = arith.cmpf ogt, %1494, %1495 : vector<1x32xf32>
    %cst_391 = arith.constant 0.000000e+00 : f32
    %1497 = vector.broadcast %cst_391 : f32 to vector<1x32xf32>
    %1498 = arith.select %1496, %1497, %1490 : vector<1x32xi1>, vector<1x32xf32>
    %1499 = vector.extract_strided_slice %1498 {offsets = [0, 13], sizes = [1, 1], strides = [1, 1]} : vector<1x32xf32> to vector<1x1xf32>
    %1500 = vector.extract_strided_slice %1394 {offsets = [13, 0], sizes = [1, 32], strides = [1, 1]} : vector<32x32xf32> to vector<1x32xf32>
    %1501 = vector.broadcast %1499 : vector<1x1xf32> to vector<1x32xf32>
    %1502 = arith.mulf %1501, %1500 : vector<1x32xf32>
    %cst_392 = arith.constant 0.000000e+00 : f32
    %1503 = vector.broadcast %cst_392 : f32 to vector<1x32xf32>
    %1504 = arith.cmpf ogt, %1502, %1503 : vector<1x32xf32>
    %cst_393 = arith.constant 0.000000e+00 : f32
    %1505 = vector.broadcast %cst_393 : f32 to vector<1x32xf32>
    %1506 = arith.select %1504, %1505, %1498 : vector<1x32xi1>, vector<1x32xf32>
    %1507 = vector.extract_strided_slice %1506 {offsets = [0, 14], sizes = [1, 1], strides = [1, 1]} : vector<1x32xf32> to vector<1x1xf32>
    %1508 = vector.extract_strided_slice %1394 {offsets = [14, 0], sizes = [1, 32], strides = [1, 1]} : vector<32x32xf32> to vector<1x32xf32>
    %1509 = vector.broadcast %1507 : vector<1x1xf32> to vector<1x32xf32>
    %1510 = arith.mulf %1509, %1508 : vector<1x32xf32>
    %cst_394 = arith.constant 0.000000e+00 : f32
    %1511 = vector.broadcast %cst_394 : f32 to vector<1x32xf32>
    %1512 = arith.cmpf ogt, %1510, %1511 : vector<1x32xf32>
    %cst_395 = arith.constant 0.000000e+00 : f32
    %1513 = vector.broadcast %cst_395 : f32 to vector<1x32xf32>
    %1514 = arith.select %1512, %1513, %1506 : vector<1x32xi1>, vector<1x32xf32>
    %1515 = vector.extract_strided_slice %1514 {offsets = [0, 15], sizes = [1, 1], strides = [1, 1]} : vector<1x32xf32> to vector<1x1xf32>
    %1516 = vector.extract_strided_slice %1394 {offsets = [15, 0], sizes = [1, 32], strides = [1, 1]} : vector<32x32xf32> to vector<1x32xf32>
    %1517 = vector.broadcast %1515 : vector<1x1xf32> to vector<1x32xf32>
    %1518 = arith.mulf %1517, %1516 : vector<1x32xf32>
    %cst_396 = arith.constant 0.000000e+00 : f32
    %1519 = vector.broadcast %cst_396 : f32 to vector<1x32xf32>
    %1520 = arith.cmpf ogt, %1518, %1519 : vector<1x32xf32>
    %cst_397 = arith.constant 0.000000e+00 : f32
    %1521 = vector.broadcast %cst_397 : f32 to vector<1x32xf32>
    %1522 = arith.select %1520, %1521, %1514 : vector<1x32xi1>, vector<1x32xf32>
    %1523 = vector.extract_strided_slice %1522 {offsets = [0, 16], sizes = [1, 1], strides = [1, 1]} : vector<1x32xf32> to vector<1x1xf32>
    %1524 = vector.extract_strided_slice %1394 {offsets = [16, 0], sizes = [1, 32], strides = [1, 1]} : vector<32x32xf32> to vector<1x32xf32>
    %1525 = vector.broadcast %1523 : vector<1x1xf32> to vector<1x32xf32>
    %1526 = arith.mulf %1525, %1524 : vector<1x32xf32>
    %cst_398 = arith.constant 0.000000e+00 : f32
    %1527 = vector.broadcast %cst_398 : f32 to vector<1x32xf32>
    %1528 = arith.cmpf ogt, %1526, %1527 : vector<1x32xf32>
    %cst_399 = arith.constant 0.000000e+00 : f32
    %1529 = vector.broadcast %cst_399 : f32 to vector<1x32xf32>
    %1530 = arith.select %1528, %1529, %1522 : vector<1x32xi1>, vector<1x32xf32>
    %1531 = vector.extract_strided_slice %1530 {offsets = [0, 17], sizes = [1, 1], strides = [1, 1]} : vector<1x32xf32> to vector<1x1xf32>
    %1532 = vector.extract_strided_slice %1394 {offsets = [17, 0], sizes = [1, 32], strides = [1, 1]} : vector<32x32xf32> to vector<1x32xf32>
    %1533 = vector.broadcast %1531 : vector<1x1xf32> to vector<1x32xf32>
    %1534 = arith.mulf %1533, %1532 : vector<1x32xf32>
    %cst_400 = arith.constant 0.000000e+00 : f32
    %1535 = vector.broadcast %cst_400 : f32 to vector<1x32xf32>
    %1536 = arith.cmpf ogt, %1534, %1535 : vector<1x32xf32>
    %cst_401 = arith.constant 0.000000e+00 : f32
    %1537 = vector.broadcast %cst_401 : f32 to vector<1x32xf32>
    %1538 = arith.select %1536, %1537, %1530 : vector<1x32xi1>, vector<1x32xf32>
    %1539 = vector.extract_strided_slice %1538 {offsets = [0, 18], sizes = [1, 1], strides = [1, 1]} : vector<1x32xf32> to vector<1x1xf32>
    %1540 = vector.extract_strided_slice %1394 {offsets = [18, 0], sizes = [1, 32], strides = [1, 1]} : vector<32x32xf32> to vector<1x32xf32>
    %1541 = vector.broadcast %1539 : vector<1x1xf32> to vector<1x32xf32>
    %1542 = arith.mulf %1541, %1540 : vector<1x32xf32>
    %cst_402 = arith.constant 0.000000e+00 : f32
    %1543 = vector.broadcast %cst_402 : f32 to vector<1x32xf32>
    %1544 = arith.cmpf ogt, %1542, %1543 : vector<1x32xf32>
    %cst_403 = arith.constant 0.000000e+00 : f32
    %1545 = vector.broadcast %cst_403 : f32 to vector<1x32xf32>
    %1546 = arith.select %1544, %1545, %1538 : vector<1x32xi1>, vector<1x32xf32>
    %1547 = vector.extract_strided_slice %1546 {offsets = [0, 19], sizes = [1, 1], strides = [1, 1]} : vector<1x32xf32> to vector<1x1xf32>
    %1548 = vector.extract_strided_slice %1394 {offsets = [19, 0], sizes = [1, 32], strides = [1, 1]} : vector<32x32xf32> to vector<1x32xf32>
    %1549 = vector.broadcast %1547 : vector<1x1xf32> to vector<1x32xf32>
    %1550 = arith.mulf %1549, %1548 : vector<1x32xf32>
    %cst_404 = arith.constant 0.000000e+00 : f32
    %1551 = vector.broadcast %cst_404 : f32 to vector<1x32xf32>
    %1552 = arith.cmpf ogt, %1550, %1551 : vector<1x32xf32>
    %cst_405 = arith.constant 0.000000e+00 : f32
    %1553 = vector.broadcast %cst_405 : f32 to vector<1x32xf32>
    %1554 = arith.select %1552, %1553, %1546 : vector<1x32xi1>, vector<1x32xf32>
    %1555 = vector.extract_strided_slice %1554 {offsets = [0, 20], sizes = [1, 1], strides = [1, 1]} : vector<1x32xf32> to vector<1x1xf32>
    %1556 = vector.extract_strided_slice %1394 {offsets = [20, 0], sizes = [1, 32], strides = [1, 1]} : vector<32x32xf32> to vector<1x32xf32>
    %1557 = vector.broadcast %1555 : vector<1x1xf32> to vector<1x32xf32>
    %1558 = arith.mulf %1557, %1556 : vector<1x32xf32>
    %cst_406 = arith.constant 0.000000e+00 : f32
    %1559 = vector.broadcast %cst_406 : f32 to vector<1x32xf32>
    %1560 = arith.cmpf ogt, %1558, %1559 : vector<1x32xf32>
    %cst_407 = arith.constant 0.000000e+00 : f32
    %1561 = vector.broadcast %cst_407 : f32 to vector<1x32xf32>
    %1562 = arith.select %1560, %1561, %1554 : vector<1x32xi1>, vector<1x32xf32>
    %1563 = vector.extract_strided_slice %1562 {offsets = [0, 21], sizes = [1, 1], strides = [1, 1]} : vector<1x32xf32> to vector<1x1xf32>
    %1564 = vector.extract_strided_slice %1394 {offsets = [21, 0], sizes = [1, 32], strides = [1, 1]} : vector<32x32xf32> to vector<1x32xf32>
    %1565 = vector.broadcast %1563 : vector<1x1xf32> to vector<1x32xf32>
    %1566 = arith.mulf %1565, %1564 : vector<1x32xf32>
    %cst_408 = arith.constant 0.000000e+00 : f32
    %1567 = vector.broadcast %cst_408 : f32 to vector<1x32xf32>
    %1568 = arith.cmpf ogt, %1566, %1567 : vector<1x32xf32>
    %cst_409 = arith.constant 0.000000e+00 : f32
    %1569 = vector.broadcast %cst_409 : f32 to vector<1x32xf32>
    %1570 = arith.select %1568, %1569, %1562 : vector<1x32xi1>, vector<1x32xf32>
    %1571 = vector.extract_strided_slice %1570 {offsets = [0, 22], sizes = [1, 1], strides = [1, 1]} : vector<1x32xf32> to vector<1x1xf32>
    %1572 = vector.extract_strided_slice %1394 {offsets = [22, 0], sizes = [1, 32], strides = [1, 1]} : vector<32x32xf32> to vector<1x32xf32>
    %1573 = vector.broadcast %1571 : vector<1x1xf32> to vector<1x32xf32>
    %1574 = arith.mulf %1573, %1572 : vector<1x32xf32>
    %cst_410 = arith.constant 0.000000e+00 : f32
    %1575 = vector.broadcast %cst_410 : f32 to vector<1x32xf32>
    %1576 = arith.cmpf ogt, %1574, %1575 : vector<1x32xf32>
    %cst_411 = arith.constant 0.000000e+00 : f32
    %1577 = vector.broadcast %cst_411 : f32 to vector<1x32xf32>
    %1578 = arith.select %1576, %1577, %1570 : vector<1x32xi1>, vector<1x32xf32>
    %1579 = vector.extract_strided_slice %1578 {offsets = [0, 23], sizes = [1, 1], strides = [1, 1]} : vector<1x32xf32> to vector<1x1xf32>
    %1580 = vector.extract_strided_slice %1394 {offsets = [23, 0], sizes = [1, 32], strides = [1, 1]} : vector<32x32xf32> to vector<1x32xf32>
    %1581 = vector.broadcast %1579 : vector<1x1xf32> to vector<1x32xf32>
    %1582 = arith.mulf %1581, %1580 : vector<1x32xf32>
    %cst_412 = arith.constant 0.000000e+00 : f32
    %1583 = vector.broadcast %cst_412 : f32 to vector<1x32xf32>
    %1584 = arith.cmpf ogt, %1582, %1583 : vector<1x32xf32>
    %cst_413 = arith.constant 0.000000e+00 : f32
    %1585 = vector.broadcast %cst_413 : f32 to vector<1x32xf32>
    %1586 = arith.select %1584, %1585, %1578 : vector<1x32xi1>, vector<1x32xf32>
    %1587 = vector.extract_strided_slice %1586 {offsets = [0, 24], sizes = [1, 1], strides = [1, 1]} : vector<1x32xf32> to vector<1x1xf32>
    %1588 = vector.extract_strided_slice %1394 {offsets = [24, 0], sizes = [1, 32], strides = [1, 1]} : vector<32x32xf32> to vector<1x32xf32>
    %1589 = vector.broadcast %1587 : vector<1x1xf32> to vector<1x32xf32>
    %1590 = arith.mulf %1589, %1588 : vector<1x32xf32>
    %cst_414 = arith.constant 0.000000e+00 : f32
    %1591 = vector.broadcast %cst_414 : f32 to vector<1x32xf32>
    %1592 = arith.cmpf ogt, %1590, %1591 : vector<1x32xf32>
    %cst_415 = arith.constant 0.000000e+00 : f32
    %1593 = vector.broadcast %cst_415 : f32 to vector<1x32xf32>
    %1594 = arith.select %1592, %1593, %1586 : vector<1x32xi1>, vector<1x32xf32>
    %1595 = vector.extract_strided_slice %1594 {offsets = [0, 25], sizes = [1, 1], strides = [1, 1]} : vector<1x32xf32> to vector<1x1xf32>
    %1596 = vector.extract_strided_slice %1394 {offsets = [25, 0], sizes = [1, 32], strides = [1, 1]} : vector<32x32xf32> to vector<1x32xf32>
    %1597 = vector.broadcast %1595 : vector<1x1xf32> to vector<1x32xf32>
    %1598 = arith.mulf %1597, %1596 : vector<1x32xf32>
    %cst_416 = arith.constant 0.000000e+00 : f32
    %1599 = vector.broadcast %cst_416 : f32 to vector<1x32xf32>
    %1600 = arith.cmpf ogt, %1598, %1599 : vector<1x32xf32>
    %cst_417 = arith.constant 0.000000e+00 : f32
    %1601 = vector.broadcast %cst_417 : f32 to vector<1x32xf32>
    %1602 = arith.select %1600, %1601, %1594 : vector<1x32xi1>, vector<1x32xf32>
    %1603 = vector.extract_strided_slice %1602 {offsets = [0, 26], sizes = [1, 1], strides = [1, 1]} : vector<1x32xf32> to vector<1x1xf32>
    %1604 = vector.extract_strided_slice %1394 {offsets = [26, 0], sizes = [1, 32], strides = [1, 1]} : vector<32x32xf32> to vector<1x32xf32>
    %1605 = vector.broadcast %1603 : vector<1x1xf32> to vector<1x32xf32>
    %1606 = arith.mulf %1605, %1604 : vector<1x32xf32>
    %cst_418 = arith.constant 0.000000e+00 : f32
    %1607 = vector.broadcast %cst_418 : f32 to vector<1x32xf32>
    %1608 = arith.cmpf ogt, %1606, %1607 : vector<1x32xf32>
    %cst_419 = arith.constant 0.000000e+00 : f32
    %1609 = vector.broadcast %cst_419 : f32 to vector<1x32xf32>
    %1610 = arith.select %1608, %1609, %1602 : vector<1x32xi1>, vector<1x32xf32>
    %1611 = vector.extract_strided_slice %1610 {offsets = [0, 27], sizes = [1, 1], strides = [1, 1]} : vector<1x32xf32> to vector<1x1xf32>
    %1612 = vector.extract_strided_slice %1394 {offsets = [27, 0], sizes = [1, 32], strides = [1, 1]} : vector<32x32xf32> to vector<1x32xf32>
    %1613 = vector.broadcast %1611 : vector<1x1xf32> to vector<1x32xf32>
    %1614 = arith.mulf %1613, %1612 : vector<1x32xf32>
    %cst_420 = arith.constant 0.000000e+00 : f32
    %1615 = vector.broadcast %cst_420 : f32 to vector<1x32xf32>
    %1616 = arith.cmpf ogt, %1614, %1615 : vector<1x32xf32>
    %cst_421 = arith.constant 0.000000e+00 : f32
    %1617 = vector.broadcast %cst_421 : f32 to vector<1x32xf32>
    %1618 = arith.select %1616, %1617, %1610 : vector<1x32xi1>, vector<1x32xf32>
    %1619 = vector.extract_strided_slice %1618 {offsets = [0, 28], sizes = [1, 1], strides = [1, 1]} : vector<1x32xf32> to vector<1x1xf32>
    %1620 = vector.extract_strided_slice %1394 {offsets = [28, 0], sizes = [1, 32], strides = [1, 1]} : vector<32x32xf32> to vector<1x32xf32>
    %1621 = vector.broadcast %1619 : vector<1x1xf32> to vector<1x32xf32>
    %1622 = arith.mulf %1621, %1620 : vector<1x32xf32>
    %cst_422 = arith.constant 0.000000e+00 : f32
    %1623 = vector.broadcast %cst_422 : f32 to vector<1x32xf32>
    %1624 = arith.cmpf ogt, %1622, %1623 : vector<1x32xf32>
    %cst_423 = arith.constant 0.000000e+00 : f32
    %1625 = vector.broadcast %cst_423 : f32 to vector<1x32xf32>
    %1626 = arith.select %1624, %1625, %1618 : vector<1x32xi1>, vector<1x32xf32>
    %1627 = vector.extract_strided_slice %1626 {offsets = [0, 29], sizes = [1, 1], strides = [1, 1]} : vector<1x32xf32> to vector<1x1xf32>
    %1628 = vector.extract_strided_slice %1394 {offsets = [29, 0], sizes = [1, 32], strides = [1, 1]} : vector<32x32xf32> to vector<1x32xf32>
    %1629 = vector.broadcast %1627 : vector<1x1xf32> to vector<1x32xf32>
    %1630 = arith.mulf %1629, %1628 : vector<1x32xf32>
    %cst_424 = arith.constant 0.000000e+00 : f32
    %1631 = vector.broadcast %cst_424 : f32 to vector<1x32xf32>
    %1632 = arith.cmpf ogt, %1630, %1631 : vector<1x32xf32>
    %cst_425 = arith.constant 0.000000e+00 : f32
    %1633 = vector.broadcast %cst_425 : f32 to vector<1x32xf32>
    %1634 = arith.select %1632, %1633, %1626 : vector<1x32xi1>, vector<1x32xf32>
    %1635 = vector.extract_strided_slice %1634 {offsets = [0, 30], sizes = [1, 1], strides = [1, 1]} : vector<1x32xf32> to vector<1x1xf32>
    %1636 = vector.extract_strided_slice %1394 {offsets = [30, 0], sizes = [1, 32], strides = [1, 1]} : vector<32x32xf32> to vector<1x32xf32>
    %1637 = vector.broadcast %1635 : vector<1x1xf32> to vector<1x32xf32>
    %1638 = arith.mulf %1637, %1636 : vector<1x32xf32>
    %cst_426 = arith.constant 0.000000e+00 : f32
    %1639 = vector.broadcast %cst_426 : f32 to vector<1x32xf32>
    %1640 = arith.cmpf ogt, %1638, %1639 : vector<1x32xf32>
    %cst_427 = arith.constant 0.000000e+00 : f32
    %1641 = vector.broadcast %cst_427 : f32 to vector<1x32xf32>
    %1642 = arith.select %1640, %1641, %1634 : vector<1x32xi1>, vector<1x32xf32>
    %1643 = vector.extract_strided_slice %1642 {offsets = [0, 31], sizes = [1, 1], strides = [1, 1]} : vector<1x32xf32> to vector<1x1xf32>
    %1644 = vector.extract_strided_slice %1394 {offsets = [31, 0], sizes = [1, 32], strides = [1, 1]} : vector<32x32xf32> to vector<1x32xf32>
    %1645 = vector.broadcast %1643 : vector<1x1xf32> to vector<1x32xf32>
    %1646 = arith.mulf %1645, %1644 : vector<1x32xf32>
    %cst_428 = arith.constant 0.000000e+00 : f32
    %1647 = vector.broadcast %cst_428 : f32 to vector<1x32xf32>
    %1648 = arith.cmpf ogt, %1646, %1647 : vector<1x32xf32>
    %cst_429 = arith.constant 0.000000e+00 : f32
    %1649 = vector.broadcast %cst_429 : f32 to vector<1x32xf32>
    %1650 = arith.select %1648, %1649, %1642 : vector<1x32xi1>, vector<1x32xf32>
    %1651 = vector.shape_cast %1650 : vector<1x32xf32> to vector<1x32xf32>
    %1652 = vector.broadcast %1651 : vector<1x32xf32> to vector<8x32xf32>
    %c160_430 = arith.constant 160 : index
    %c0_431 = arith.constant 0 : index
    %1653 = vector.load %arg4[%c160_430, %c0_431] : memref<256x256xf32, #tpu.memory_space<vmem>>, vector<32x256xf32>
    %cst_432 = arith.constant dense<0.000000e+00> : vector<8x256xf32>
    %1654 = tpu.matmul %1652, %1653, %cst_432 {dimension_numbers = #tpu.dot_dimension_numbers<[1], [0], [0], [1], [0, 0, 1, 1], [], []>} : vector<8x32xf32>, vector<32x256xf32>, vector<8x256xf32> -> vector<8x256xf32>
    %1655 = vector.extract_strided_slice %1654 {offsets = [0, 0], sizes = [1, 256], strides = [1, 1]} : vector<8x256xf32> to vector<1x256xf32>
    %cst_433 = arith.constant 0.000000e+00 : f32
    %1656 = vector.broadcast %cst_433 : f32 to vector<1x256xf32>
    %1657 = arith.cmpf ogt, %1655, %1656 : vector<1x256xf32>
    %cst_434 = arith.constant 0.000000e+00 : f32
    %1658 = vector.broadcast %cst_434 : f32 to vector<1x256xf32>
    %1659 = arith.select %1657, %1658, %1392 : vector<1x256xi1>, vector<1x256xf32>
    %1660 = vector.extract_strided_slice %1659 {offsets = [0, 192], sizes = [1, 32], strides = [1, 1]} : vector<1x256xf32> to vector<1x32xf32>
    %c192 = arith.constant 192 : index
    %c192_435 = arith.constant 192 : index
    %1661 = vector.load %arg4[%c192, %c192_435] : memref<256x256xf32, #tpu.memory_space<vmem>>, vector<32x32xf32>
    %1662 = vector.extract_strided_slice %1660 {offsets = [0, 0], sizes = [1, 1], strides = [1, 1]} : vector<1x32xf32> to vector<1x1xf32>
    %1663 = vector.extract_strided_slice %1661 {offsets = [0, 0], sizes = [1, 32], strides = [1, 1]} : vector<32x32xf32> to vector<1x32xf32>
    %1664 = vector.broadcast %1662 : vector<1x1xf32> to vector<1x32xf32>
    %1665 = arith.mulf %1664, %1663 : vector<1x32xf32>
    %cst_436 = arith.constant 0.000000e+00 : f32
    %1666 = vector.broadcast %cst_436 : f32 to vector<1x32xf32>
    %1667 = arith.cmpf ogt, %1665, %1666 : vector<1x32xf32>
    %cst_437 = arith.constant 0.000000e+00 : f32
    %1668 = vector.broadcast %cst_437 : f32 to vector<1x32xf32>
    %1669 = arith.select %1667, %1668, %1660 : vector<1x32xi1>, vector<1x32xf32>
    %1670 = vector.extract_strided_slice %1669 {offsets = [0, 1], sizes = [1, 1], strides = [1, 1]} : vector<1x32xf32> to vector<1x1xf32>
    %1671 = vector.extract_strided_slice %1661 {offsets = [1, 0], sizes = [1, 32], strides = [1, 1]} : vector<32x32xf32> to vector<1x32xf32>
    %1672 = vector.broadcast %1670 : vector<1x1xf32> to vector<1x32xf32>
    %1673 = arith.mulf %1672, %1671 : vector<1x32xf32>
    %cst_438 = arith.constant 0.000000e+00 : f32
    %1674 = vector.broadcast %cst_438 : f32 to vector<1x32xf32>
    %1675 = arith.cmpf ogt, %1673, %1674 : vector<1x32xf32>
    %cst_439 = arith.constant 0.000000e+00 : f32
    %1676 = vector.broadcast %cst_439 : f32 to vector<1x32xf32>
    %1677 = arith.select %1675, %1676, %1669 : vector<1x32xi1>, vector<1x32xf32>
    %1678 = vector.extract_strided_slice %1677 {offsets = [0, 2], sizes = [1, 1], strides = [1, 1]} : vector<1x32xf32> to vector<1x1xf32>
    %1679 = vector.extract_strided_slice %1661 {offsets = [2, 0], sizes = [1, 32], strides = [1, 1]} : vector<32x32xf32> to vector<1x32xf32>
    %1680 = vector.broadcast %1678 : vector<1x1xf32> to vector<1x32xf32>
    %1681 = arith.mulf %1680, %1679 : vector<1x32xf32>
    %cst_440 = arith.constant 0.000000e+00 : f32
    %1682 = vector.broadcast %cst_440 : f32 to vector<1x32xf32>
    %1683 = arith.cmpf ogt, %1681, %1682 : vector<1x32xf32>
    %cst_441 = arith.constant 0.000000e+00 : f32
    %1684 = vector.broadcast %cst_441 : f32 to vector<1x32xf32>
    %1685 = arith.select %1683, %1684, %1677 : vector<1x32xi1>, vector<1x32xf32>
    %1686 = vector.extract_strided_slice %1685 {offsets = [0, 3], sizes = [1, 1], strides = [1, 1]} : vector<1x32xf32> to vector<1x1xf32>
    %1687 = vector.extract_strided_slice %1661 {offsets = [3, 0], sizes = [1, 32], strides = [1, 1]} : vector<32x32xf32> to vector<1x32xf32>
    %1688 = vector.broadcast %1686 : vector<1x1xf32> to vector<1x32xf32>
    %1689 = arith.mulf %1688, %1687 : vector<1x32xf32>
    %cst_442 = arith.constant 0.000000e+00 : f32
    %1690 = vector.broadcast %cst_442 : f32 to vector<1x32xf32>
    %1691 = arith.cmpf ogt, %1689, %1690 : vector<1x32xf32>
    %cst_443 = arith.constant 0.000000e+00 : f32
    %1692 = vector.broadcast %cst_443 : f32 to vector<1x32xf32>
    %1693 = arith.select %1691, %1692, %1685 : vector<1x32xi1>, vector<1x32xf32>
    %1694 = vector.extract_strided_slice %1693 {offsets = [0, 4], sizes = [1, 1], strides = [1, 1]} : vector<1x32xf32> to vector<1x1xf32>
    %1695 = vector.extract_strided_slice %1661 {offsets = [4, 0], sizes = [1, 32], strides = [1, 1]} : vector<32x32xf32> to vector<1x32xf32>
    %1696 = vector.broadcast %1694 : vector<1x1xf32> to vector<1x32xf32>
    %1697 = arith.mulf %1696, %1695 : vector<1x32xf32>
    %cst_444 = arith.constant 0.000000e+00 : f32
    %1698 = vector.broadcast %cst_444 : f32 to vector<1x32xf32>
    %1699 = arith.cmpf ogt, %1697, %1698 : vector<1x32xf32>
    %cst_445 = arith.constant 0.000000e+00 : f32
    %1700 = vector.broadcast %cst_445 : f32 to vector<1x32xf32>
    %1701 = arith.select %1699, %1700, %1693 : vector<1x32xi1>, vector<1x32xf32>
    %1702 = vector.extract_strided_slice %1701 {offsets = [0, 5], sizes = [1, 1], strides = [1, 1]} : vector<1x32xf32> to vector<1x1xf32>
    %1703 = vector.extract_strided_slice %1661 {offsets = [5, 0], sizes = [1, 32], strides = [1, 1]} : vector<32x32xf32> to vector<1x32xf32>
    %1704 = vector.broadcast %1702 : vector<1x1xf32> to vector<1x32xf32>
    %1705 = arith.mulf %1704, %1703 : vector<1x32xf32>
    %cst_446 = arith.constant 0.000000e+00 : f32
    %1706 = vector.broadcast %cst_446 : f32 to vector<1x32xf32>
    %1707 = arith.cmpf ogt, %1705, %1706 : vector<1x32xf32>
    %cst_447 = arith.constant 0.000000e+00 : f32
    %1708 = vector.broadcast %cst_447 : f32 to vector<1x32xf32>
    %1709 = arith.select %1707, %1708, %1701 : vector<1x32xi1>, vector<1x32xf32>
    %1710 = vector.extract_strided_slice %1709 {offsets = [0, 6], sizes = [1, 1], strides = [1, 1]} : vector<1x32xf32> to vector<1x1xf32>
    %1711 = vector.extract_strided_slice %1661 {offsets = [6, 0], sizes = [1, 32], strides = [1, 1]} : vector<32x32xf32> to vector<1x32xf32>
    %1712 = vector.broadcast %1710 : vector<1x1xf32> to vector<1x32xf32>
    %1713 = arith.mulf %1712, %1711 : vector<1x32xf32>
    %cst_448 = arith.constant 0.000000e+00 : f32
    %1714 = vector.broadcast %cst_448 : f32 to vector<1x32xf32>
    %1715 = arith.cmpf ogt, %1713, %1714 : vector<1x32xf32>
    %cst_449 = arith.constant 0.000000e+00 : f32
    %1716 = vector.broadcast %cst_449 : f32 to vector<1x32xf32>
    %1717 = arith.select %1715, %1716, %1709 : vector<1x32xi1>, vector<1x32xf32>
    %1718 = vector.extract_strided_slice %1717 {offsets = [0, 7], sizes = [1, 1], strides = [1, 1]} : vector<1x32xf32> to vector<1x1xf32>
    %1719 = vector.extract_strided_slice %1661 {offsets = [7, 0], sizes = [1, 32], strides = [1, 1]} : vector<32x32xf32> to vector<1x32xf32>
    %1720 = vector.broadcast %1718 : vector<1x1xf32> to vector<1x32xf32>
    %1721 = arith.mulf %1720, %1719 : vector<1x32xf32>
    %cst_450 = arith.constant 0.000000e+00 : f32
    %1722 = vector.broadcast %cst_450 : f32 to vector<1x32xf32>
    %1723 = arith.cmpf ogt, %1721, %1722 : vector<1x32xf32>
    %cst_451 = arith.constant 0.000000e+00 : f32
    %1724 = vector.broadcast %cst_451 : f32 to vector<1x32xf32>
    %1725 = arith.select %1723, %1724, %1717 : vector<1x32xi1>, vector<1x32xf32>
    %1726 = vector.extract_strided_slice %1725 {offsets = [0, 8], sizes = [1, 1], strides = [1, 1]} : vector<1x32xf32> to vector<1x1xf32>
    %1727 = vector.extract_strided_slice %1661 {offsets = [8, 0], sizes = [1, 32], strides = [1, 1]} : vector<32x32xf32> to vector<1x32xf32>
    %1728 = vector.broadcast %1726 : vector<1x1xf32> to vector<1x32xf32>
    %1729 = arith.mulf %1728, %1727 : vector<1x32xf32>
    %cst_452 = arith.constant 0.000000e+00 : f32
    %1730 = vector.broadcast %cst_452 : f32 to vector<1x32xf32>
    %1731 = arith.cmpf ogt, %1729, %1730 : vector<1x32xf32>
    %cst_453 = arith.constant 0.000000e+00 : f32
    %1732 = vector.broadcast %cst_453 : f32 to vector<1x32xf32>
    %1733 = arith.select %1731, %1732, %1725 : vector<1x32xi1>, vector<1x32xf32>
    %1734 = vector.extract_strided_slice %1733 {offsets = [0, 9], sizes = [1, 1], strides = [1, 1]} : vector<1x32xf32> to vector<1x1xf32>
    %1735 = vector.extract_strided_slice %1661 {offsets = [9, 0], sizes = [1, 32], strides = [1, 1]} : vector<32x32xf32> to vector<1x32xf32>
    %1736 = vector.broadcast %1734 : vector<1x1xf32> to vector<1x32xf32>
    %1737 = arith.mulf %1736, %1735 : vector<1x32xf32>
    %cst_454 = arith.constant 0.000000e+00 : f32
    %1738 = vector.broadcast %cst_454 : f32 to vector<1x32xf32>
    %1739 = arith.cmpf ogt, %1737, %1738 : vector<1x32xf32>
    %cst_455 = arith.constant 0.000000e+00 : f32
    %1740 = vector.broadcast %cst_455 : f32 to vector<1x32xf32>
    %1741 = arith.select %1739, %1740, %1733 : vector<1x32xi1>, vector<1x32xf32>
    %1742 = vector.extract_strided_slice %1741 {offsets = [0, 10], sizes = [1, 1], strides = [1, 1]} : vector<1x32xf32> to vector<1x1xf32>
    %1743 = vector.extract_strided_slice %1661 {offsets = [10, 0], sizes = [1, 32], strides = [1, 1]} : vector<32x32xf32> to vector<1x32xf32>
    %1744 = vector.broadcast %1742 : vector<1x1xf32> to vector<1x32xf32>
    %1745 = arith.mulf %1744, %1743 : vector<1x32xf32>
    %cst_456 = arith.constant 0.000000e+00 : f32
    %1746 = vector.broadcast %cst_456 : f32 to vector<1x32xf32>
    %1747 = arith.cmpf ogt, %1745, %1746 : vector<1x32xf32>
    %cst_457 = arith.constant 0.000000e+00 : f32
    %1748 = vector.broadcast %cst_457 : f32 to vector<1x32xf32>
    %1749 = arith.select %1747, %1748, %1741 : vector<1x32xi1>, vector<1x32xf32>
    %1750 = vector.extract_strided_slice %1749 {offsets = [0, 11], sizes = [1, 1], strides = [1, 1]} : vector<1x32xf32> to vector<1x1xf32>
    %1751 = vector.extract_strided_slice %1661 {offsets = [11, 0], sizes = [1, 32], strides = [1, 1]} : vector<32x32xf32> to vector<1x32xf32>
    %1752 = vector.broadcast %1750 : vector<1x1xf32> to vector<1x32xf32>
    %1753 = arith.mulf %1752, %1751 : vector<1x32xf32>
    %cst_458 = arith.constant 0.000000e+00 : f32
    %1754 = vector.broadcast %cst_458 : f32 to vector<1x32xf32>
    %1755 = arith.cmpf ogt, %1753, %1754 : vector<1x32xf32>
    %cst_459 = arith.constant 0.000000e+00 : f32
    %1756 = vector.broadcast %cst_459 : f32 to vector<1x32xf32>
    %1757 = arith.select %1755, %1756, %1749 : vector<1x32xi1>, vector<1x32xf32>
    %1758 = vector.extract_strided_slice %1757 {offsets = [0, 12], sizes = [1, 1], strides = [1, 1]} : vector<1x32xf32> to vector<1x1xf32>
    %1759 = vector.extract_strided_slice %1661 {offsets = [12, 0], sizes = [1, 32], strides = [1, 1]} : vector<32x32xf32> to vector<1x32xf32>
    %1760 = vector.broadcast %1758 : vector<1x1xf32> to vector<1x32xf32>
    %1761 = arith.mulf %1760, %1759 : vector<1x32xf32>
    %cst_460 = arith.constant 0.000000e+00 : f32
    %1762 = vector.broadcast %cst_460 : f32 to vector<1x32xf32>
    %1763 = arith.cmpf ogt, %1761, %1762 : vector<1x32xf32>
    %cst_461 = arith.constant 0.000000e+00 : f32
    %1764 = vector.broadcast %cst_461 : f32 to vector<1x32xf32>
    %1765 = arith.select %1763, %1764, %1757 : vector<1x32xi1>, vector<1x32xf32>
    %1766 = vector.extract_strided_slice %1765 {offsets = [0, 13], sizes = [1, 1], strides = [1, 1]} : vector<1x32xf32> to vector<1x1xf32>
    %1767 = vector.extract_strided_slice %1661 {offsets = [13, 0], sizes = [1, 32], strides = [1, 1]} : vector<32x32xf32> to vector<1x32xf32>
    %1768 = vector.broadcast %1766 : vector<1x1xf32> to vector<1x32xf32>
    %1769 = arith.mulf %1768, %1767 : vector<1x32xf32>
    %cst_462 = arith.constant 0.000000e+00 : f32
    %1770 = vector.broadcast %cst_462 : f32 to vector<1x32xf32>
    %1771 = arith.cmpf ogt, %1769, %1770 : vector<1x32xf32>
    %cst_463 = arith.constant 0.000000e+00 : f32
    %1772 = vector.broadcast %cst_463 : f32 to vector<1x32xf32>
    %1773 = arith.select %1771, %1772, %1765 : vector<1x32xi1>, vector<1x32xf32>
    %1774 = vector.extract_strided_slice %1773 {offsets = [0, 14], sizes = [1, 1], strides = [1, 1]} : vector<1x32xf32> to vector<1x1xf32>
    %1775 = vector.extract_strided_slice %1661 {offsets = [14, 0], sizes = [1, 32], strides = [1, 1]} : vector<32x32xf32> to vector<1x32xf32>
    %1776 = vector.broadcast %1774 : vector<1x1xf32> to vector<1x32xf32>
    %1777 = arith.mulf %1776, %1775 : vector<1x32xf32>
    %cst_464 = arith.constant 0.000000e+00 : f32
    %1778 = vector.broadcast %cst_464 : f32 to vector<1x32xf32>
    %1779 = arith.cmpf ogt, %1777, %1778 : vector<1x32xf32>
    %cst_465 = arith.constant 0.000000e+00 : f32
    %1780 = vector.broadcast %cst_465 : f32 to vector<1x32xf32>
    %1781 = arith.select %1779, %1780, %1773 : vector<1x32xi1>, vector<1x32xf32>
    %1782 = vector.extract_strided_slice %1781 {offsets = [0, 15], sizes = [1, 1], strides = [1, 1]} : vector<1x32xf32> to vector<1x1xf32>
    %1783 = vector.extract_strided_slice %1661 {offsets = [15, 0], sizes = [1, 32], strides = [1, 1]} : vector<32x32xf32> to vector<1x32xf32>
    %1784 = vector.broadcast %1782 : vector<1x1xf32> to vector<1x32xf32>
    %1785 = arith.mulf %1784, %1783 : vector<1x32xf32>
    %cst_466 = arith.constant 0.000000e+00 : f32
    %1786 = vector.broadcast %cst_466 : f32 to vector<1x32xf32>
    %1787 = arith.cmpf ogt, %1785, %1786 : vector<1x32xf32>
    %cst_467 = arith.constant 0.000000e+00 : f32
    %1788 = vector.broadcast %cst_467 : f32 to vector<1x32xf32>
    %1789 = arith.select %1787, %1788, %1781 : vector<1x32xi1>, vector<1x32xf32>
    %1790 = vector.extract_strided_slice %1789 {offsets = [0, 16], sizes = [1, 1], strides = [1, 1]} : vector<1x32xf32> to vector<1x1xf32>
    %1791 = vector.extract_strided_slice %1661 {offsets = [16, 0], sizes = [1, 32], strides = [1, 1]} : vector<32x32xf32> to vector<1x32xf32>
    %1792 = vector.broadcast %1790 : vector<1x1xf32> to vector<1x32xf32>
    %1793 = arith.mulf %1792, %1791 : vector<1x32xf32>
    %cst_468 = arith.constant 0.000000e+00 : f32
    %1794 = vector.broadcast %cst_468 : f32 to vector<1x32xf32>
    %1795 = arith.cmpf ogt, %1793, %1794 : vector<1x32xf32>
    %cst_469 = arith.constant 0.000000e+00 : f32
    %1796 = vector.broadcast %cst_469 : f32 to vector<1x32xf32>
    %1797 = arith.select %1795, %1796, %1789 : vector<1x32xi1>, vector<1x32xf32>
    %1798 = vector.extract_strided_slice %1797 {offsets = [0, 17], sizes = [1, 1], strides = [1, 1]} : vector<1x32xf32> to vector<1x1xf32>
    %1799 = vector.extract_strided_slice %1661 {offsets = [17, 0], sizes = [1, 32], strides = [1, 1]} : vector<32x32xf32> to vector<1x32xf32>
    %1800 = vector.broadcast %1798 : vector<1x1xf32> to vector<1x32xf32>
    %1801 = arith.mulf %1800, %1799 : vector<1x32xf32>
    %cst_470 = arith.constant 0.000000e+00 : f32
    %1802 = vector.broadcast %cst_470 : f32 to vector<1x32xf32>
    %1803 = arith.cmpf ogt, %1801, %1802 : vector<1x32xf32>
    %cst_471 = arith.constant 0.000000e+00 : f32
    %1804 = vector.broadcast %cst_471 : f32 to vector<1x32xf32>
    %1805 = arith.select %1803, %1804, %1797 : vector<1x32xi1>, vector<1x32xf32>
    %1806 = vector.extract_strided_slice %1805 {offsets = [0, 18], sizes = [1, 1], strides = [1, 1]} : vector<1x32xf32> to vector<1x1xf32>
    %1807 = vector.extract_strided_slice %1661 {offsets = [18, 0], sizes = [1, 32], strides = [1, 1]} : vector<32x32xf32> to vector<1x32xf32>
    %1808 = vector.broadcast %1806 : vector<1x1xf32> to vector<1x32xf32>
    %1809 = arith.mulf %1808, %1807 : vector<1x32xf32>
    %cst_472 = arith.constant 0.000000e+00 : f32
    %1810 = vector.broadcast %cst_472 : f32 to vector<1x32xf32>
    %1811 = arith.cmpf ogt, %1809, %1810 : vector<1x32xf32>
    %cst_473 = arith.constant 0.000000e+00 : f32
    %1812 = vector.broadcast %cst_473 : f32 to vector<1x32xf32>
    %1813 = arith.select %1811, %1812, %1805 : vector<1x32xi1>, vector<1x32xf32>
    %1814 = vector.extract_strided_slice %1813 {offsets = [0, 19], sizes = [1, 1], strides = [1, 1]} : vector<1x32xf32> to vector<1x1xf32>
    %1815 = vector.extract_strided_slice %1661 {offsets = [19, 0], sizes = [1, 32], strides = [1, 1]} : vector<32x32xf32> to vector<1x32xf32>
    %1816 = vector.broadcast %1814 : vector<1x1xf32> to vector<1x32xf32>
    %1817 = arith.mulf %1816, %1815 : vector<1x32xf32>
    %cst_474 = arith.constant 0.000000e+00 : f32
    %1818 = vector.broadcast %cst_474 : f32 to vector<1x32xf32>
    %1819 = arith.cmpf ogt, %1817, %1818 : vector<1x32xf32>
    %cst_475 = arith.constant 0.000000e+00 : f32
    %1820 = vector.broadcast %cst_475 : f32 to vector<1x32xf32>
    %1821 = arith.select %1819, %1820, %1813 : vector<1x32xi1>, vector<1x32xf32>
    %1822 = vector.extract_strided_slice %1821 {offsets = [0, 20], sizes = [1, 1], strides = [1, 1]} : vector<1x32xf32> to vector<1x1xf32>
    %1823 = vector.extract_strided_slice %1661 {offsets = [20, 0], sizes = [1, 32], strides = [1, 1]} : vector<32x32xf32> to vector<1x32xf32>
    %1824 = vector.broadcast %1822 : vector<1x1xf32> to vector<1x32xf32>
    %1825 = arith.mulf %1824, %1823 : vector<1x32xf32>
    %cst_476 = arith.constant 0.000000e+00 : f32
    %1826 = vector.broadcast %cst_476 : f32 to vector<1x32xf32>
    %1827 = arith.cmpf ogt, %1825, %1826 : vector<1x32xf32>
    %cst_477 = arith.constant 0.000000e+00 : f32
    %1828 = vector.broadcast %cst_477 : f32 to vector<1x32xf32>
    %1829 = arith.select %1827, %1828, %1821 : vector<1x32xi1>, vector<1x32xf32>
    %1830 = vector.extract_strided_slice %1829 {offsets = [0, 21], sizes = [1, 1], strides = [1, 1]} : vector<1x32xf32> to vector<1x1xf32>
    %1831 = vector.extract_strided_slice %1661 {offsets = [21, 0], sizes = [1, 32], strides = [1, 1]} : vector<32x32xf32> to vector<1x32xf32>
    %1832 = vector.broadcast %1830 : vector<1x1xf32> to vector<1x32xf32>
    %1833 = arith.mulf %1832, %1831 : vector<1x32xf32>
    %cst_478 = arith.constant 0.000000e+00 : f32
    %1834 = vector.broadcast %cst_478 : f32 to vector<1x32xf32>
    %1835 = arith.cmpf ogt, %1833, %1834 : vector<1x32xf32>
    %cst_479 = arith.constant 0.000000e+00 : f32
    %1836 = vector.broadcast %cst_479 : f32 to vector<1x32xf32>
    %1837 = arith.select %1835, %1836, %1829 : vector<1x32xi1>, vector<1x32xf32>
    %1838 = vector.extract_strided_slice %1837 {offsets = [0, 22], sizes = [1, 1], strides = [1, 1]} : vector<1x32xf32> to vector<1x1xf32>
    %1839 = vector.extract_strided_slice %1661 {offsets = [22, 0], sizes = [1, 32], strides = [1, 1]} : vector<32x32xf32> to vector<1x32xf32>
    %1840 = vector.broadcast %1838 : vector<1x1xf32> to vector<1x32xf32>
    %1841 = arith.mulf %1840, %1839 : vector<1x32xf32>
    %cst_480 = arith.constant 0.000000e+00 : f32
    %1842 = vector.broadcast %cst_480 : f32 to vector<1x32xf32>
    %1843 = arith.cmpf ogt, %1841, %1842 : vector<1x32xf32>
    %cst_481 = arith.constant 0.000000e+00 : f32
    %1844 = vector.broadcast %cst_481 : f32 to vector<1x32xf32>
    %1845 = arith.select %1843, %1844, %1837 : vector<1x32xi1>, vector<1x32xf32>
    %1846 = vector.extract_strided_slice %1845 {offsets = [0, 23], sizes = [1, 1], strides = [1, 1]} : vector<1x32xf32> to vector<1x1xf32>
    %1847 = vector.extract_strided_slice %1661 {offsets = [23, 0], sizes = [1, 32], strides = [1, 1]} : vector<32x32xf32> to vector<1x32xf32>
    %1848 = vector.broadcast %1846 : vector<1x1xf32> to vector<1x32xf32>
    %1849 = arith.mulf %1848, %1847 : vector<1x32xf32>
    %cst_482 = arith.constant 0.000000e+00 : f32
    %1850 = vector.broadcast %cst_482 : f32 to vector<1x32xf32>
    %1851 = arith.cmpf ogt, %1849, %1850 : vector<1x32xf32>
    %cst_483 = arith.constant 0.000000e+00 : f32
    %1852 = vector.broadcast %cst_483 : f32 to vector<1x32xf32>
    %1853 = arith.select %1851, %1852, %1845 : vector<1x32xi1>, vector<1x32xf32>
    %1854 = vector.extract_strided_slice %1853 {offsets = [0, 24], sizes = [1, 1], strides = [1, 1]} : vector<1x32xf32> to vector<1x1xf32>
    %1855 = vector.extract_strided_slice %1661 {offsets = [24, 0], sizes = [1, 32], strides = [1, 1]} : vector<32x32xf32> to vector<1x32xf32>
    %1856 = vector.broadcast %1854 : vector<1x1xf32> to vector<1x32xf32>
    %1857 = arith.mulf %1856, %1855 : vector<1x32xf32>
    %cst_484 = arith.constant 0.000000e+00 : f32
    %1858 = vector.broadcast %cst_484 : f32 to vector<1x32xf32>
    %1859 = arith.cmpf ogt, %1857, %1858 : vector<1x32xf32>
    %cst_485 = arith.constant 0.000000e+00 : f32
    %1860 = vector.broadcast %cst_485 : f32 to vector<1x32xf32>
    %1861 = arith.select %1859, %1860, %1853 : vector<1x32xi1>, vector<1x32xf32>
    %1862 = vector.extract_strided_slice %1861 {offsets = [0, 25], sizes = [1, 1], strides = [1, 1]} : vector<1x32xf32> to vector<1x1xf32>
    %1863 = vector.extract_strided_slice %1661 {offsets = [25, 0], sizes = [1, 32], strides = [1, 1]} : vector<32x32xf32> to vector<1x32xf32>
    %1864 = vector.broadcast %1862 : vector<1x1xf32> to vector<1x32xf32>
    %1865 = arith.mulf %1864, %1863 : vector<1x32xf32>
    %cst_486 = arith.constant 0.000000e+00 : f32
    %1866 = vector.broadcast %cst_486 : f32 to vector<1x32xf32>
    %1867 = arith.cmpf ogt, %1865, %1866 : vector<1x32xf32>
    %cst_487 = arith.constant 0.000000e+00 : f32
    %1868 = vector.broadcast %cst_487 : f32 to vector<1x32xf32>
    %1869 = arith.select %1867, %1868, %1861 : vector<1x32xi1>, vector<1x32xf32>
    %1870 = vector.extract_strided_slice %1869 {offsets = [0, 26], sizes = [1, 1], strides = [1, 1]} : vector<1x32xf32> to vector<1x1xf32>
    %1871 = vector.extract_strided_slice %1661 {offsets = [26, 0], sizes = [1, 32], strides = [1, 1]} : vector<32x32xf32> to vector<1x32xf32>
    %1872 = vector.broadcast %1870 : vector<1x1xf32> to vector<1x32xf32>
    %1873 = arith.mulf %1872, %1871 : vector<1x32xf32>
    %cst_488 = arith.constant 0.000000e+00 : f32
    %1874 = vector.broadcast %cst_488 : f32 to vector<1x32xf32>
    %1875 = arith.cmpf ogt, %1873, %1874 : vector<1x32xf32>
    %cst_489 = arith.constant 0.000000e+00 : f32
    %1876 = vector.broadcast %cst_489 : f32 to vector<1x32xf32>
    %1877 = arith.select %1875, %1876, %1869 : vector<1x32xi1>, vector<1x32xf32>
    %1878 = vector.extract_strided_slice %1877 {offsets = [0, 27], sizes = [1, 1], strides = [1, 1]} : vector<1x32xf32> to vector<1x1xf32>
    %1879 = vector.extract_strided_slice %1661 {offsets = [27, 0], sizes = [1, 32], strides = [1, 1]} : vector<32x32xf32> to vector<1x32xf32>
    %1880 = vector.broadcast %1878 : vector<1x1xf32> to vector<1x32xf32>
    %1881 = arith.mulf %1880, %1879 : vector<1x32xf32>
    %cst_490 = arith.constant 0.000000e+00 : f32
    %1882 = vector.broadcast %cst_490 : f32 to vector<1x32xf32>
    %1883 = arith.cmpf ogt, %1881, %1882 : vector<1x32xf32>
    %cst_491 = arith.constant 0.000000e+00 : f32
    %1884 = vector.broadcast %cst_491 : f32 to vector<1x32xf32>
    %1885 = arith.select %1883, %1884, %1877 : vector<1x32xi1>, vector<1x32xf32>
    %1886 = vector.extract_strided_slice %1885 {offsets = [0, 28], sizes = [1, 1], strides = [1, 1]} : vector<1x32xf32> to vector<1x1xf32>
    %1887 = vector.extract_strided_slice %1661 {offsets = [28, 0], sizes = [1, 32], strides = [1, 1]} : vector<32x32xf32> to vector<1x32xf32>
    %1888 = vector.broadcast %1886 : vector<1x1xf32> to vector<1x32xf32>
    %1889 = arith.mulf %1888, %1887 : vector<1x32xf32>
    %cst_492 = arith.constant 0.000000e+00 : f32
    %1890 = vector.broadcast %cst_492 : f32 to vector<1x32xf32>
    %1891 = arith.cmpf ogt, %1889, %1890 : vector<1x32xf32>
    %cst_493 = arith.constant 0.000000e+00 : f32
    %1892 = vector.broadcast %cst_493 : f32 to vector<1x32xf32>
    %1893 = arith.select %1891, %1892, %1885 : vector<1x32xi1>, vector<1x32xf32>
    %1894 = vector.extract_strided_slice %1893 {offsets = [0, 29], sizes = [1, 1], strides = [1, 1]} : vector<1x32xf32> to vector<1x1xf32>
    %1895 = vector.extract_strided_slice %1661 {offsets = [29, 0], sizes = [1, 32], strides = [1, 1]} : vector<32x32xf32> to vector<1x32xf32>
    %1896 = vector.broadcast %1894 : vector<1x1xf32> to vector<1x32xf32>
    %1897 = arith.mulf %1896, %1895 : vector<1x32xf32>
    %cst_494 = arith.constant 0.000000e+00 : f32
    %1898 = vector.broadcast %cst_494 : f32 to vector<1x32xf32>
    %1899 = arith.cmpf ogt, %1897, %1898 : vector<1x32xf32>
    %cst_495 = arith.constant 0.000000e+00 : f32
    %1900 = vector.broadcast %cst_495 : f32 to vector<1x32xf32>
    %1901 = arith.select %1899, %1900, %1893 : vector<1x32xi1>, vector<1x32xf32>
    %1902 = vector.extract_strided_slice %1901 {offsets = [0, 30], sizes = [1, 1], strides = [1, 1]} : vector<1x32xf32> to vector<1x1xf32>
    %1903 = vector.extract_strided_slice %1661 {offsets = [30, 0], sizes = [1, 32], strides = [1, 1]} : vector<32x32xf32> to vector<1x32xf32>
    %1904 = vector.broadcast %1902 : vector<1x1xf32> to vector<1x32xf32>
    %1905 = arith.mulf %1904, %1903 : vector<1x32xf32>
    %cst_496 = arith.constant 0.000000e+00 : f32
    %1906 = vector.broadcast %cst_496 : f32 to vector<1x32xf32>
    %1907 = arith.cmpf ogt, %1905, %1906 : vector<1x32xf32>
    %cst_497 = arith.constant 0.000000e+00 : f32
    %1908 = vector.broadcast %cst_497 : f32 to vector<1x32xf32>
    %1909 = arith.select %1907, %1908, %1901 : vector<1x32xi1>, vector<1x32xf32>
    %1910 = vector.extract_strided_slice %1909 {offsets = [0, 31], sizes = [1, 1], strides = [1, 1]} : vector<1x32xf32> to vector<1x1xf32>
    %1911 = vector.extract_strided_slice %1661 {offsets = [31, 0], sizes = [1, 32], strides = [1, 1]} : vector<32x32xf32> to vector<1x32xf32>
    %1912 = vector.broadcast %1910 : vector<1x1xf32> to vector<1x32xf32>
    %1913 = arith.mulf %1912, %1911 : vector<1x32xf32>
    %cst_498 = arith.constant 0.000000e+00 : f32
    %1914 = vector.broadcast %cst_498 : f32 to vector<1x32xf32>
    %1915 = arith.cmpf ogt, %1913, %1914 : vector<1x32xf32>
    %cst_499 = arith.constant 0.000000e+00 : f32
    %1916 = vector.broadcast %cst_499 : f32 to vector<1x32xf32>
    %1917 = arith.select %1915, %1916, %1909 : vector<1x32xi1>, vector<1x32xf32>
    %1918 = vector.shape_cast %1917 : vector<1x32xf32> to vector<1x32xf32>
    %1919 = vector.broadcast %1918 : vector<1x32xf32> to vector<8x32xf32>
    %c192_500 = arith.constant 192 : index
    %c0_501 = arith.constant 0 : index
    %1920 = vector.load %arg4[%c192_500, %c0_501] : memref<256x256xf32, #tpu.memory_space<vmem>>, vector<32x256xf32>
    %cst_502 = arith.constant dense<0.000000e+00> : vector<8x256xf32>
    %1921 = tpu.matmul %1919, %1920, %cst_502 {dimension_numbers = #tpu.dot_dimension_numbers<[1], [0], [0], [1], [0, 0, 1, 1], [], []>} : vector<8x32xf32>, vector<32x256xf32>, vector<8x256xf32> -> vector<8x256xf32>
    %1922 = vector.extract_strided_slice %1921 {offsets = [0, 0], sizes = [1, 256], strides = [1, 1]} : vector<8x256xf32> to vector<1x256xf32>
    %cst_503 = arith.constant 0.000000e+00 : f32
    %1923 = vector.broadcast %cst_503 : f32 to vector<1x256xf32>
    %1924 = arith.cmpf ogt, %1922, %1923 : vector<1x256xf32>
    %cst_504 = arith.constant 0.000000e+00 : f32
    %1925 = vector.broadcast %cst_504 : f32 to vector<1x256xf32>
    %1926 = arith.select %1924, %1925, %1659 : vector<1x256xi1>, vector<1x256xf32>
    %1927 = arith.fptosi %1926 : vector<1x256xf32> to vector<1x256xi32>
    %c0_505 = arith.constant 0 : index
    %c0_506 = arith.constant 0 : index
    %c0_507 = arith.constant 0 : index
    %1928 = vector.load %arg3[%c0_505, %c0_506, %c0_507] : memref<1x1x256xi32, #tpu.memory_space<vmem>>, vector<1x1x256xi32>
    %1929 = vector.shape_cast %1928 : vector<1x1x256xi32> to vector<1x256xi32>
    %1930 = vector.shape_cast %1927 : vector<1x256xi32> to vector<1x1x256xi32>
    tpu.vector_store %arg3[%c0_505, %c0_506, %c0_507], %1930 {strides = array<i32>} : memref<1x1x256xi32, #tpu.memory_space<vmem>>, vector<1x1x256xi32>,
    return
  }
  func.func @transform_0(%arg0: i32) -> (i32, i32, i32) {
    %c0_i32 = arith.constant 0 : i32
    %c0_i32_0 = arith.constant 0 : i32
    %c0_i32_1 = arith.constant 0 : i32
    return %arg0, %c0_i32, %c0_i32_0 : i32, i32, i32
  }
  func.func @transform_1(%arg0: i32) -> (i32, i32, i32) {
    %c0_i32 = arith.constant 0 : i32
    %c0_i32_0 = arith.constant 0 : i32
    %c0_i32_1 = arith.constant 0 : i32
    return %arg0, %c0_i32, %c0_i32_0 : i32, i32, i32
  }
  func.func @transform_2(%arg0: i32) -> (i32, i32, i32) {
    %c0_i32 = arith.constant 0 : i32
    %c0_i32_0 = arith.constant 0 : i32
    %c0_i32_1 = arith.constant 0 : i32
    return %arg0, %c0_i32, %c0_i32_0 : i32, i32, i32
  }
}

</mosaic_0001>

<llo_original>
// kernel: single_label_nms.2
$region0: #{single_label_nms.2}
  #allocation0 [shape = 'u32[]', space=smem, size = 0x4, offset = 0x4, fixed_abs, tag = 'smem constant byte address 0x4 - core index']
  #allocation1 [shape = 'u32[144,128]{1,0:T(1,128)}', space=vmem, size = 0x12000, scoped, tag = 'internal scratch']
  %s0 = inlined_call_operand.vmem [shape: f32[2,256,8], index: 0, kind: input, shape index: {}]
  %s1 = inlined_call_operand.vmem [shape: f32[2,1,256], index: 1, kind: output, shape index: {}]
  %s2 = sld [smem:[#allocation0]]
  $region37: #{single_label_nms.2} parent=0
    _
  %s4 = ssub.s32 1, %s2
  %s5 = scalar_select 0, %s4, %s2
  loop: start=0, step=1, limit=4
  $region2: #{single_label_nms.2} parent=0 // loop_pre_header
    _
  $region3: #{single_label_nms.2} parent=0 // loop_header
    %s7 = sphi 0, %s11
    %p8 = scmp.ge.s32.totalorder %s7, 4
    %s14 = sphi 0, %s26
    %s15 = sphi 0, %s22
    %s16 = sphi 0, %s14
    %s17 = sphi 0, %s15
    %s18 = sphi 0, %s16
    %s19 = sphi 0, %s17
    %s31 = sphi 0, %s33
    %s34 = sphi 0, %s31
    %s35 = sphi 0, %s34
    %s51 = sphi 0, %s35
    %s59 = sphi 0, %s61
    %s62 = sphi 0, %s59
    %s63 = sphi 0, %s62
    %s79 = sphi 0, %s63
  $region4: #{single_label_nms.2} parent=0 // loop_header_branch
    %10 = sbr.rel (%p8) target = $region8
  $region5: #{single_label_nms.2} parent=0 // loop_body
    %s12 = ssub.s32 %s7, 1
    %s13 = ssub.s32 %s7, 2
    %s20 = sadd.s32 1, %s15
    %p21 = scmp.ge.s32.totalorder %s20, 1
    %s22 = scalar_select %p21, 0, %s20
    %s23 = sadd.s32 1, %s14
    %s24 = scalar_select %p21, %s23, %s14
    %p25 = scmp.ge.s32.totalorder %s24, 2
    %s26 = scalar_select %p25, 0, %s24
    %s27 = ssub.s32 %s14, %s26
    %s28 = ssub.s32 %s15, %s22
    %s29 = sor.u32 %s27, %s28
    %p30 = scmp.eq.s32.totalorder %s29, 0
    %s32 = sadd.s32 %s31, 1
    %s33 = scalar_select %p30, %s31, %s32
    %p36 = pneg %p30
    %p37 = scmp.eq.s32.totalorder %s7, 1
    %p38 = por %p36, %p37
    %p39 = scmp.ne.s32.totalorder %s31, %s34
    %p40 = scmp.eq.s32.totalorder %s7, 0
    %p41 = por %p39, %p40
    %p42 = scmp.ne.s32.totalorder %s31, %s34
    %p43 = scmp.eq.s32.totalorder %s12, 1
    %p44 = por %p42, %p43
    %p45 = scmp.ne.s32.totalorder %s34, %s35
    %p46 = scmp.eq.s32.totalorder %s12, 0
    %p47 = por %p45, %p46
    %p48 = scmp.ne.s32.totalorder %s34, %s35
    %p49 = scmp.eq.s32.totalorder %s13, 1
    %p50 = por %p48, %p49
    %p52 = scmp.ne.s32.totalorder %s35, %s51
    %p53 = scmp.eq.s32.totalorder %s13, 0
    %p54 = por %p52, %p53
    %s55 = ssub.s32 %s14, %s26
    %s56 = ssub.s32 %s15, %s22
    %s57 = sor.u32 %s55, %s56
    %p58 = scmp.eq.s32.totalorder %s57, 0
    %s60 = sadd.s32 %s59, 1
    %s61 = scalar_select %p58, %s59, %s60
    %p64 = pneg %p58
    %p65 = scmp.eq.s32.totalorder %s7, 1
    %p66 = por %p64, %p65
    %p67 = scmp.ne.s32.totalorder %s59, %s62
    %p68 = scmp.eq.s32.totalorder %s7, 0
    %p69 = por %p67, %p68
    %p70 = scmp.ne.s32.totalorder %s59, %s62
    %p71 = scmp.eq.s32.totalorder %s12, 1
    %p72 = por %p70, %p71
    %p73 = scmp.ne.s32.totalorder %s62, %s63
    %p74 = scmp.eq.s32.totalorder %s12, 0
    %p75 = por %p73, %p74
    %p76 = scmp.ne.s32.totalorder %s62, %s63
    %p77 = scmp.eq.s32.totalorder %s13, 1
    %p78 = por %p76, %p77
    %p80 = scmp.ne.s32.totalorder %s63, %s79
    %p81 = scmp.eq.s32.totalorder %s13, 0
    %p82 = por %p80, %p81
    %p83 = scmp.le.s32.totalorder 1, %s7
    %p84 = scmp.lt.s32.totalorder %s7, 3
    %p85 = pnand %p83, %p84
    %p86 = pneg %p85
    // Predicated region
    $region9: #{single_label_nms.2} parent=5 // pred_check
      _
    $region10: #{single_label_nms.2} parent=5 // pred_check_branch
      %88 = sbr.rel (%p85) target = $region12
    $region11: #{single_label_nms.2} parent=5 // pred_region
      %s89 = ssub.s32 %s7, 1
    $region12: #{single_label_nms.2} parent=5 // pred_fallthru
      _
    %p90 = scmp.lt.s32.totalorder %s7, 2
    // Predicated region
    $region13: #{single_label_nms.2} parent=5 // pred_check
      %p91 = pneg %p90
    $region14: #{single_label_nms.2} parent=5 // pred_check_branch
      %93 = sbr.rel (%p91) target = $region16
    $region15: #{single_label_nms.2} parent=5 // pred_region
      // Predicated region
      $region17: #{single_label_nms.2} parent=15 // pred_check
        %p94 = pneg %p41
      $region18: #{single_label_nms.2} parent=15 // pred_check_branch
        %96 = sbr.rel (%p94) target = $region20
      $region19: #{single_label_nms.2} parent=15 // pred_region
        %s97 = smul.u32 32, %s15
        %p98 = scmp.lt.s32.totalorder %s14, 1
        %s99 = scalar_select %p98, %s14, 1
        %p100 = scmp.lt.s32.totalorder %s97, 31
        %s101 = scalar_select %p100, %s97, 31
        %s102 = smul.addr %s99, 32
        %s103 = sadd.s32 %s101, %s102
        %s104 = smul.addr %s103, 8
        %s105 = scalar_lea.vmem %s0, %s104
        %s106 = smul.u32 32, %s15
      $region20: #{single_label_nms.2} parent=15 // pred_fallthru
        _
    $region16: #{single_label_nms.2} parent=5 // pred_fallthru
      _
    %p107 = scmp.le.s32.totalorder 1, %s7
    %p108 = scmp.lt.s32.totalorder %s7, 3
    %p109 = pnand %p107, %p108
    %p110 = pneg %p109
    // Predicated region
    $region21: #{single_label_nms.2} parent=5 // pred_check
      _
    $region22: #{single_label_nms.2} parent=5 // pred_check_branch
      %112 = sbr.rel (%p109) target = $region24
    $region23: #{single_label_nms.2} parent=5 // pred_region
      %s113 = ssub.s32 %s7, 1
      %s114 = smul.u32 32, %s17
      %p115 = scmp.lt.s32.totalorder %s16, 1
      %s116 = scalar_select %p115, %s16, 1
      %p117 = scmp.lt.s32.totalorder %s114, 31
      %s118 = scalar_select %p117, %s114, 31
      %s119 = smul.addr %s116, 32
      %s120 = sadd.s32 %s118, %s119
      %s121 = smul.addr %s120, 8
      %s122 = scalar_lea.vmem %s0, %s121
      %p123 = pneg %p47
      %p124 = pneg %p44
      %p125 = pneg %p75
      %p126 = pneg %p72
      %s127 = smul.u32 2, %s17
      %p128 = scmp.lt.s32.totalorder %s16, 1
      %s129 = scalar_select %p128, %s16, 1
      %p130 = scmp.lt.s32.totalorder %s127, 1
      %s131 = scalar_select %p130, %s127, 1
      %s132 = smul.addr %s129, 2
      %s133 = sadd.s32 %s131, %s132
      %s134 = scalar_lea.vmem %s1, %s133
      %s135 = smul.u32 32, %s17
      %p136 = scmp.lt.s32.totalorder %s16, 1
      %s137 = scalar_select %p136, %s16, 1
      %p138 = scmp.lt.s32.totalorder %s135, 31
      %s139 = scalar_select %p138, %s135, 31
      %s140 = smul.addr %s137, 32
      %s141 = sadd.s32 %s139, %s140
      %s142 = smul.addr %s141, 8
      %s143 = scalar_lea.vmem %s0, %s142
      %s144 = smul.u32 32, %s17
      %s145 = smul.u32 2, %s17
      %p146 = scmp.lt.s32.totalorder %s16, 1
      %s147 = scalar_select %p146, %s16, 1
      %p148 = scmp.lt.s32.totalorder %s145, 1
      %s149 = scalar_select %p148, %s145, 1
      %s150 = smul.addr %s147, 2
      %s151 = sadd.s32 %s149, %s150
      %s152 = scalar_lea.vmem %s1, %s151
      %s153 = smul.u32 2, %s17
      %v154 = vld [vmem:[%s143] sm:$0xff]
      %v155 = vld [vmem:[%s143 + $0x8] sm:$0xff]
      %v156 = vld [vmem:[%s143 + $0x10] sm:$0xff]
      %v157 = vld [vmem:[%s143 + $0x18] sm:$0xff]
      %v158 = vld [vmem:[%s143 + $0x20] sm:$0xff]
      %v159 = vld [vmem:[%s143 + $0x28] sm:$0xff]
      %v160 = vld [vmem:[%s143 + $0x30] sm:$0xff]
      %v161 = vld [vmem:[%s143 + $0x38] sm:$0xff]
      %v162 = vld [vmem:[%s143 + $0x40] sm:$0xff]
      %v163 = vld [vmem:[%s143 + $0x48] sm:$0xff]
      %v164 = vld [vmem:[%s143 + $0x50] sm:$0xff]
      %v165 = vld [vmem:[%s143 + $0x58] sm:$0xff]
      %v166 = vld [vmem:[%s143 + $0x60] sm:$0xff]
      %v167 = vld [vmem:[%s143 + $0x68] sm:$0xff]
      %v168 = vld [vmem:[%s143 + $0x70] sm:$0xff]
      %v169 = vld [vmem:[%s143 + $0x78] sm:$0xff]
      %170 = vxpose.xlu0.b32.start [1/16] %v154, 128
      %171 = vxpose.xlu0.b32.cont [2/16] %v155, 128
      %172 = vxpose.xlu0.b32.cont [3/16] %v156, 128
      %173 = vxpose.xlu0.b32.cont [4/16] %v157, 128
      %174 = vxpose.xlu0.b32.cont [5/16] %v158, 128
      %175 = vxpose.xlu0.b32.cont [6/16] %v159, 128
      %176 = vxpose.xlu0.b32.cont [7/16] %v160, 128
      %177 = vxpose.xlu0.b32.cont [8/16] %v161, 128
      %178 = vxpose.xlu0.b32.cont [9/16] %v162, 128
      %179 = vxpose.xlu0.b32.cont [10/16] %v163, 128
      %180 = vxpose.xlu0.b32.cont [11/16] %v164, 128
      %181 = vxpose.xlu0.b32.cont [12/16] %v165, 128
      %182 = vxpose.xlu0.b32.cont [13/16] %v166, 128
      %183 = vxpose.xlu0.b32.cont [14/16] %v167, 128
      %184 = vxpose.xlu0.b32.cont [15/16] %v168, 128
      %185 = vxpose.xlu0.b32.end [16/16] %v169, 128
      %v186 = vpop.trf.xlu0
      %v187 = vpop.trf.xlu0
      %v188 = vpop.trf.xlu0
      %v189 = vpop.trf.xlu0
      %v190 = vpop.trf.xlu0
      %v191 = vpop.trf.xlu0
      %v192 = vpop.trf.xlu0
      %v193 = vpop.trf.xlu0
      %v194 = vpop.trf.xlu0
      %v195 = vpop.trf.xlu0
      %v196 = vpop.trf.xlu0
      %v197 = vpop.trf.xlu0
      %v198 = vpop.trf.xlu0
      %v199 = vpop.trf.xlu0
      %v200 = vpop.trf.xlu0
      %v201 = vpop.trf.xlu0
      %v202 = vrot.slane %v186, 4
      %v203 = vmax.f32 %v186, %v202
      %v204 = vrot.slane %v203, 2
      %v205 = vmax.f32 %v203, %v204
      %v206 = vrot.slane %v205, 1
      %v207 = vmax.f32 %v205, %v206
      %v208 = vlaneseq
      %vm209 = vcmp.ge.s32.totalorder %v208, 0
      %vm210 = vcmp.lt.s32.totalorder %v208, 128
      %vm211 = vmand %vm209, %vm210
      %212 = vst.msk [vmem:[%s152] sm:$0x1] %vm211, %v207
      %v213 = vld [vmem:[%s143 + $0x80] sm:$0xff]
      %v214 = vld [vmem:[%s143 + $0x88] sm:$0xff]
      %v215 = vld [vmem:[%s143 + $0x90] sm:$0xff]
      %v216 = vld [vmem:[%s143 + $0x98] sm:$0xff]
      %v217 = vld [vmem:[%s143 + $0xa0] sm:$0xff]
      %v218 = vld [vmem:[%s143 + $0xa8] sm:$0xff]
      %v219 = vld [vmem:[%s143 + $0xb0] sm:$0xff]
      %v220 = vld [vmem:[%s143 + $0xb8] sm:$0xff]
      %v221 = vld [vmem:[%s143 + $0xc0] sm:$0xff]
      %v222 = vld [vmem:[%s143 + $0xc8] sm:$0xff]
      %v223 = vld [vmem:[%s143 + $0xd0] sm:$0xff]
      %v224 = vld [vmem:[%s143 + $0xd8] sm:$0xff]
      %v225 = vld [vmem:[%s143 + $0xe0] sm:$0xff]
      %v226 = vld [vmem:[%s143 + $0xe8] sm:$0xff]
      %v227 = vld [vmem:[%s143 + $0xf0] sm:$0xff]
      %v228 = vld [vmem:[%s143 + $0xf8] sm:$0xff]
      %229 = vxpose.xlu0.b32.start [1/16] %v213, 128
      %230 = vxpose.xlu0.b32.cont [2/16] %v214, 128
      %231 = vxpose.xlu0.b32.cont [3/16] %v215, 128
      %232 = vxpose.xlu0.b32.cont [4/16] %v216, 128
      %233 = vxpose.xlu0.b32.cont [5/16] %v217, 128
      %234 = vxpose.xlu0.b32.cont [6/16] %v218, 128
      %235 = vxpose.xlu0.b32.cont [7/16] %v219, 128
      %236 = vxpose.xlu0.b32.cont [8/16] %v220, 128
      %237 = vxpose.xlu0.b32.cont [9/16] %v221, 128
      %238 = vxpose.xlu0.b32.cont [10/16] %v222, 128
      %239 = vxpose.xlu0.b32.cont [11/16] %v223, 128
      %240 = vxpose.xlu0.b32.cont [12/16] %v224, 128
      %241 = vxpose.xlu0.b32.cont [13/16] %v225, 128
      %242 = vxpose.xlu0.b32.cont [14/16] %v226, 128
      %243 = vxpose.xlu0.b32.cont [15/16] %v227, 128
      %244 = vxpose.xlu0.b32.end [16/16] %v228, 128
      %v245 = vpop.trf.xlu0
      %v246 = vpop.trf.xlu0
      %v247 = vpop.trf.xlu0
      %v248 = vpop.trf.xlu0
      %v249 = vpop.trf.xlu0
      %v250 = vpop.trf.xlu0
      %v251 = vpop.trf.xlu0
      %v252 = vpop.trf.xlu0
      %v253 = vpop.trf.xlu0
      %v254 = vpop.trf.xlu0
      %v255 = vpop.trf.xlu0
      %v256 = vpop.trf.xlu0
      %v257 = vpop.trf.xlu0
      %v258 = vpop.trf.xlu0
      %v259 = vpop.trf.xlu0
      %v260 = vpop.trf.xlu0
      %v261 = vrot.slane %v245, 4
      %v262 = vmax.f32 %v245, %v261
      %v263 = vrot.slane %v262, 2
      %v264 = vmax.f32 %v262, %v263
      %v265 = vrot.slane %v264, 1
      %v266 = vmax.f32 %v264, %v265
      %267 = vst.msk [vmem:[%s152 + $0x1] sm:$0x1] %vm211, %v266
      %s268 = smul.u32 2, %s17
      %p269 = scmp.lt.s32.totalorder %s16, 1
      %s270 = scalar_select %p269, %s16, 1
      %p271 = scmp.lt.s32.totalorder %s268, 1
      %s272 = scalar_select %p271, %s268, 1
      %s273 = smul.addr %s270, 2
      %s274 = sadd.s32 %s272, %s273
      %s275 = scalar_lea.vmem %s1, %s274
      // Predicated region
      $region25: #{single_label_nms.2} parent=23 // pred_check
        %p276 = pneg %p72
      $region26: #{single_label_nms.2} parent=23 // pred_check_branch
        %278 = sbr.rel (%p276) target = $region28
      $region27: #{single_label_nms.2} parent=23 // pred_region
        %s279 = smul.u32 2, %s17
      $region28: #{single_label_nms.2} parent=23 // pred_fallthru
        _
    $region24: #{single_label_nms.2} parent=5 // pred_fallthru
      _
    %p280 = scmp.le.s32.totalorder 2, %s7
    // Predicated region
    $region29: #{single_label_nms.2} parent=5 // pred_check
      %p281 = pneg %p280
    $region30: #{single_label_nms.2} parent=5 // pred_check_branch
      %283 = sbr.rel (%p281) target = $region32
    $region31: #{single_label_nms.2} parent=5 // pred_region
      %s284 = ssub.s32 %s7, 2
      // Predicated region
      $region33: #{single_label_nms.2} parent=31 // pred_check
        %p285 = pneg %p78
      $region34: #{single_label_nms.2} parent=31 // pred_check_branch
        %287 = sbr.rel (%p285) target = $region36
      $region35: #{single_label_nms.2} parent=31 // pred_region
        %s288 = smul.u32 2, %s19
        %p289 = scmp.lt.s32.totalorder %s18, 1
        %s290 = scalar_select %p289, %s18, 1
        %p291 = scmp.lt.s32.totalorder %s288, 1
        %s292 = scalar_select %p291, %s288, 1
        %s293 = smul.addr %s290, 2
        %s294 = sadd.s32 %s292, %s293
        %s295 = scalar_lea.vmem %s1, %s294
      $region36: #{single_label_nms.2} parent=31 // pred_fallthru
        _
    $region32: #{single_label_nms.2} parent=5 // pred_fallthru
      _
  $region6: #{single_label_nms.2} parent=0 // loop_footer
    %s11 = sadd.s32 1, %s7
  $region7: #{single_label_nms.2} parent=0 // loop_footer_branch
    %6 = sbr.rel target = $region3
  $region8: #{single_label_nms.2} parent=0 // loop_exit
    _

// kernel: single_label_nms.3
$region0: #{single_label_nms.3}
  #allocation0 [shape = 'u32[]', space=smem, size = 0x4, offset = 0x4, fixed_abs, tag = 'smem constant byte address 0x4 - core index']
  #allocation1 [shape = 'u32[144,128]{1,0:T(1,128)}', space=vmem, size = 0x12000, scoped, tag = 'internal scratch']
  #allocation2 [shape = 'f32[256,256]{1,0:T(8,128)}', space=vmem, size = 0x40000, scoped, tag = 'scratch operand']
  %s0 = inlined_call_operand.vmem [shape: f32[2,4,256], index: 0, kind: input, shape index: {}]
  %s1 = inlined_call_operand.vmem [shape: f32[2,1,256], index: 1, kind: input, shape index: {}]
  %s2 = inlined_call_operand.vmem [shape: s32[2,1,256], index: 2, kind: output, shape index: {}]
  %s3 = sld [smem:[#allocation0]]
  $region41: #{single_label_nms.3} parent=0
    _
  %s5 = ssub.s32 1, %s3
  %s6 = scalar_select 0, %s5, %s3
  loop: start=0, step=1, limit=4
  $region2: #{single_label_nms.3} parent=0 // loop_pre_header
    _
  $region3: #{single_label_nms.3} parent=0 // loop_header
    %s8 = sphi 0, %s12
    %p9 = scmp.ge.s32.totalorder %s8, 4
    %s18 = sphi 0, %s20
    %s21 = sphi 0, %s18
    %s22 = sphi 0, %s21
    %s38 = sphi 0, %s22
    %s44 = sphi 0, %s46
    %s47 = sphi 0, %s44
    %s48 = sphi 0, %s47
    %s64 = sphi 0, %s48
    %s70 = sphi 0, %s72
    %s73 = sphi 0, %s70
    %s74 = sphi 0, %s73
    %s90 = sphi 0, %s74
  $region4: #{single_label_nms.3} parent=0 // loop_header_branch
    %11 = sbr.rel (%p9) target = $region8
  $region5: #{single_label_nms.3} parent=0 // loop_body
    %s13 = ssub.s32 %s8, 1
    %s14 = ssub.s32 %s8, 2
    %s15 = sadd.s32 %s8, 1
    %s16 = ssub.s32 %s8, %s15
    %p17 = scmp.eq.s32.totalorder %s16, 0
    %s19 = sadd.s32 %s18, 1
    %s20 = scalar_select %p17, %s18, %s19
    %p23 = pneg %p17
    %p24 = scmp.eq.s32.totalorder %s8, 1
    %p25 = por %p23, %p24
    %p26 = scmp.ne.s32.totalorder %s18, %s21
    %p27 = scmp.eq.s32.totalorder %s8, 0
    %p28 = por %p26, %p27
    %p29 = scmp.ne.s32.totalorder %s18, %s21
    %p30 = scmp.eq.s32.totalorder %s13, 1
    %p31 = por %p29, %p30
    %p32 = scmp.ne.s32.totalorder %s21, %s22
    %p33 = scmp.eq.s32.totalorder %s13, 0
    %p34 = por %p32, %p33
    %p35 = scmp.ne.s32.totalorder %s21, %s22
    %p36 = scmp.eq.s32.totalorder %s14, 1
    %p37 = por %p35, %p36
    %p39 = scmp.ne.s32.totalorder %s22, %s38
    %p40 = scmp.eq.s32.totalorder %s14, 0
    %p41 = por %p39, %p40
    %s42 = ssub.s32 %s8, %s15
    %p43 = scmp.eq.s32.totalorder %s42, 0
    %s45 = sadd.s32 %s44, 1
    %s46 = scalar_select %p43, %s44, %s45
    %p49 = pneg %p43
    %p50 = scmp.eq.s32.totalorder %s8, 1
    %p51 = por %p49, %p50
    %p52 = scmp.ne.s32.totalorder %s44, %s47
    %p53 = scmp.eq.s32.totalorder %s8, 0
    %p54 = por %p52, %p53
    %p55 = scmp.ne.s32.totalorder %s44, %s47
    %p56 = scmp.eq.s32.totalorder %s13, 1
    %p57 = por %p55, %p56
    %p58 = scmp.ne.s32.totalorder %s47, %s48
    %p59 = scmp.eq.s32.totalorder %s13, 0
    %p60 = por %p58, %p59
    %p61 = scmp.ne.s32.totalorder %s47, %s48
    %p62 = scmp.eq.s32.totalorder %s14, 1
    %p63 = por %p61, %p62
    %p65 = scmp.ne.s32.totalorder %s48, %s64
    %p66 = scmp.eq.s32.totalorder %s14, 0
    %p67 = por %p65, %p66
    %s68 = ssub.s32 %s8, %s15
    %p69 = scmp.eq.s32.totalorder %s68, 0
    %s71 = sadd.s32 %s70, 1
    %s72 = scalar_select %p69, %s70, %s71
    %p75 = pneg %p69
    %p76 = scmp.eq.s32.totalorder %s8, 1
    %p77 = por %p75, %p76
    %p78 = scmp.ne.s32.totalorder %s70, %s73
    %p79 = scmp.eq.s32.totalorder %s8, 0
    %p80 = por %p78, %p79
    %p81 = scmp.ne.s32.totalorder %s70, %s73
    %p82 = scmp.eq.s32.totalorder %s13, 1
    %p83 = por %p81, %p82
    %p84 = scmp.ne.s32.totalorder %s73, %s74
    %p85 = scmp.eq.s32.totalorder %s13, 0
    %p86 = por %p84, %p85
    %p87 = scmp.ne.s32.totalorder %s73, %s74
    %p88 = scmp.eq.s32.totalorder %s14, 1
    %p89 = por %p87, %p88
    %p91 = scmp.ne.s32.totalorder %s74, %s90
    %p92 = scmp.eq.s32.totalorder %s14, 0
    %p93 = por %p91, %p92
    %p94 = scmp.le.s32.totalorder 1, %s8
    %p95 = scmp.lt.s32.totalorder %s8, 3
    %p96 = pnand %p94, %p95
    %p97 = pneg %p96
    // Predicated region
    $region9: #{single_label_nms.3} parent=5 // pred_check
      _
    $region10: #{single_label_nms.3} parent=5 // pred_check_branch
      %99 = sbr.rel (%p96) target = $region12
    $region11: #{single_label_nms.3} parent=5 // pred_region
      %s100 = ssub.s32 %s8, 1
    $region12: #{single_label_nms.3} parent=5 // pred_fallthru
      _
    %p101 = scmp.lt.s32.totalorder %s8, 2
    // Predicated region
    $region13: #{single_label_nms.3} parent=5 // pred_check
      %p102 = pneg %p101
    $region14: #{single_label_nms.3} parent=5 // pred_check_branch
      %104 = sbr.rel (%p102) target = $region16
    $region15: #{single_label_nms.3} parent=5 // pred_region
      // Predicated region
      $region17: #{single_label_nms.3} parent=15 // pred_check
        %p105 = pneg %p28
      $region18: #{single_label_nms.3} parent=15 // pred_check_branch
        %107 = sbr.rel (%p105) target = $region20
      $region19: #{single_label_nms.3} parent=15 // pred_region
        %p108 = scmp.lt.s32.totalorder %s8, 1
        %s109 = scalar_select %p108, %s8, 1
        %s110 = smul.addr %s109, 2
        %s111 = smul.addr %s110, 4
        %s112 = scalar_lea.vmem %s0, %s111
      $region20: #{single_label_nms.3} parent=15 // pred_fallthru
        _
      // Predicated region
      $region21: #{single_label_nms.3} parent=15 // pred_check
        %p113 = pneg %p54
      $region22: #{single_label_nms.3} parent=15 // pred_check_branch
        %115 = sbr.rel (%p113) target = $region24
      $region23: #{single_label_nms.3} parent=15 // pred_region
        %p116 = scmp.lt.s32.totalorder %s8, 1
        %s117 = scalar_select %p116, %s8, 1
        %s118 = smul.addr %s117, 2
        %s119 = scalar_lea.vmem %s1, %s118
      $region24: #{single_label_nms.3} parent=15 // pred_fallthru
        _
    $region16: #{single_label_nms.3} parent=5 // pred_fallthru
      _
    %p120 = scmp.le.s32.totalorder 1, %s8
    %p121 = scmp.lt.s32.totalorder %s8, 3
    %p122 = pnand %p120, %p121
    %p123 = pneg %p122
    // Predicated region
    $region25: #{single_label_nms.3} parent=5 // pred_check
      _
    $region26: #{single_label_nms.3} parent=5 // pred_check_branch
      %125 = sbr.rel (%p122) target = $region28
    $region27: #{single_label_nms.3} parent=5 // pred_region
      %s126 = ssub.s32 %s8, 1
      %p127 = scmp.lt.s32.totalorder %s13, 1
      %s128 = scalar_select %p127, %s13, 1
      %s129 = smul.addr %s128, 2
      %s130 = smul.addr %s129, 4
      %s131 = scalar_lea.vmem %s0, %s130
      %p132 = pneg %p34
      %p133 = pneg %p31
      %p134 = scmp.lt.s32.totalorder %s13, 1
      %s135 = scalar_select %p134, %s13, 1
      %s136 = smul.addr %s135, 2
      %s137 = scalar_lea.vmem %s1, %s136
      %p138 = pneg %p60
      %p139 = pneg %p57
      %p140 = pneg %p86
      %p141 = pneg %p83
      %p142 = scmp.lt.s32.totalorder %s13, 1
      %s143 = scalar_select %p142, %s13, 1
      %s144 = smul.addr %s143, 2
      %s145 = scalar_lea.vmem %s2, %s144
      %p146 = scmp.lt.s32.totalorder %s13, 1
      %s147 = scalar_select %p146, %s13, 1
      %s148 = smul.addr %s147, 2
      %s149 = smul.addr %s148, 4
      %s150 = scalar_lea.vmem %s0, %s149
      %p151 = scmp.lt.s32.totalorder %s13, 1
      %s152 = scalar_select %p151, %s13, 1
      %s153 = smul.addr %s152, 2
      %s154 = scalar_lea.vmem %s1, %s153
      %p155 = scmp.lt.s32.totalorder %s13, 1
      %s156 = scalar_select %p155, %s13, 1
      %s157 = smul.addr %s156, 2
      %s158 = scalar_lea.vmem %s2, %s157
      %v159 = vld [vmem:[%s150] sm:$0xff]
      %v161 = vcombine.high %v159, %v159
      %163 = vxpose.xlu0.b32.start [1/16] %v159, 128
      %164 = vxpose.xlu0.b32.cont [2/16] 0.0, 128
      %165 = vxpose.xlu0.b32.cont [3/16] 0.0, 128
      %166 = vxpose.xlu0.b32.cont [4/16] 0.0, 128
      %167 = vxpose.xlu0.b32.cont [5/16] 0.0, 128
      %168 = vxpose.xlu0.b32.cont [6/16] 0.0, 128
      %169 = vxpose.xlu0.b32.cont [7/16] 0.0, 128
      %170 = vxpose.xlu0.b32.cont [8/16] 0.0, 128
      %171 = vxpose.xlu0.b32.cont [9/16] 0.0, 128
      %172 = vxpose.xlu0.b32.cont [10/16] 0.0, 128
      %173 = vxpose.xlu0.b32.cont [11/16] 0.0, 128
      %174 = vxpose.xlu0.b32.cont [12/16] 0.0, 128
      %175 = vxpose.xlu0.b32.cont [13/16] 0.0, 128
      %176 = vxpose.xlu0.b32.cont [14/16] 0.0, 128
      %177 = vxpose.xlu0.b32.cont [15/16] 0.0, 128
      %178 = vxpose.xlu0.b32.end [16/16] 0.0, 128
      %v179 = vpop.trf.xlu0
      %v180 = vpop.trf.xlu0
      %v181 = vpop.trf.xlu0
      %v182 = vpop.trf.xlu0
      %v183 = vpop.trf.xlu0
      %v184 = vpop.trf.xlu0
      %v185 = vpop.trf.xlu0
      %v186 = vpop.trf.xlu0
      %v187 = vpop.trf.xlu0
      %v188 = vpop.trf.xlu0
      %v189 = vpop.trf.xlu0
      %v190 = vpop.trf.xlu0
      %v191 = vpop.trf.xlu0
      %v192 = vpop.trf.xlu0
      %v193 = vpop.trf.xlu0
      %v194 = vpop.trf.xlu0
      %195 = vxpose.xlu0.b32.start [1/16] %v161, 128
      %196 = vxpose.xlu0.b32.cont [2/16] 0.0, 128
      %197 = vxpose.xlu0.b32.cont [3/16] 0.0, 128
      %198 = vxpose.xlu0.b32.cont [4/16] 0.0, 128
      %199 = vxpose.xlu0.b32.cont [5/16] 0.0, 128
      %200 = vxpose.xlu0.b32.cont [6/16] 0.0, 128
      %201 = vxpose.xlu0.b32.cont [7/16] 0.0, 128
      %202 = vxpose.xlu0.b32.cont [8/16] 0.0, 128
      %203 = vxpose.xlu0.b32.cont [9/16] 0.0, 128
      %204 = vxpose.xlu0.b32.cont [10/16] 0.0, 128
      %205 = vxpose.xlu0.b32.cont [11/16] 0.0, 128
      %206 = vxpose.xlu0.b32.cont [12/16] 0.0, 128
      %207 = vxpose.xlu0.b32.cont [13/16] 0.0, 128
      %208 = vxpose.xlu0.b32.cont [14/16] 0.0, 128
      %209 = vxpose.xlu0.b32.cont [15/16] 0.0, 128
      %210 = vxpose.xlu0.b32.end [16/16] 0.0, 128
      %v211 = vpop.trf.xlu0
      %v212 = vpop.trf.xlu0
      %v213 = vpop.trf.xlu0
      %v214 = vpop.trf.xlu0
      %v215 = vpop.trf.xlu0
      %v216 = vpop.trf.xlu0
      %v217 = vpop.trf.xlu0
      %v218 = vpop.trf.xlu0
      %v219 = vpop.trf.xlu0
      %v220 = vpop.trf.xlu0
      %v221 = vpop.trf.xlu0
      %v222 = vpop.trf.xlu0
      %v223 = vpop.trf.xlu0
      %v224 = vpop.trf.xlu0
      %v225 = vpop.trf.xlu0
      %v226 = vpop.trf.xlu0
      %228 = vset.pattern.permute.xlu0 2
      %229 = vperm.xlu0 %228, %v179
      %v230 = vpop.permute.xlu0 %229
      %233 = vset.pattern.permute.xlu0 2
      %234 = vperm.xlu0 %233, %v180
      %v235 = vpop.permute.xlu0 %234
      %238 = vset.pattern.permute.xlu0 2
      %239 = vperm.xlu0 %238, %v181
      %v240 = vpop.permute.xlu0 %239
      %243 = vset.pattern.permute.xlu0 2
      %244 = vperm.xlu0 %243, %v182
      %v245 = vpop.permute.xlu0 %244
      %248 = vset.pattern.permute.xlu0 2
      %249 = vperm.xlu0 %248, %v183
      %v250 = vpop.permute.xlu0 %249
      %253 = vset.pattern.permute.xlu0 2
      %254 = vperm.xlu0 %253, %v184
      %v255 = vpop.permute.xlu0 %254
      %258 = vset.pattern.permute.xlu0 2
      %259 = vperm.xlu0 %258, %v185
      %v260 = vpop.permute.xlu0 %259
      %263 = vset.pattern.permute.xlu0 2
      %264 = vperm.xlu0 %263, %v186
      %v265 = vpop.permute.xlu0 %264
      %268 = vset.pattern.permute.xlu0 2
      %269 = vperm.xlu0 %268, %v187
      %v270 = vpop.permute.xlu0 %269
      %273 = vset.pattern.permute.xlu0 2
      %274 = vperm.xlu0 %273, %v188
      %v275 = vpop.permute.xlu0 %274
      %278 = vset.pattern.permute.xlu0 2
      %279 = vperm.xlu0 %278, %v189
      %v280 = vpop.permute.xlu0 %279
      %283 = vset.pattern.permute.xlu0 2
      %284 = vperm.xlu0 %283, %v190
      %v285 = vpop.permute.xlu0 %284
      %288 = vset.pattern.permute.xlu0 2
      %289 = vperm.xlu0 %288, %v191
      %v290 = vpop.permute.xlu0 %289
      %293 = vset.pattern.permute.xlu0 2
      %294 = vperm.xlu0 %293, %v192
      %v295 = vpop.permute.xlu0 %294
      %298 = vset.pattern.permute.xlu0 2
      %299 = vperm.xlu0 %298, %v193
      %v300 = vpop.permute.xlu0 %299
      %303 = vset.pattern.permute.xlu0 2
      %304 = vperm.xlu0 %303, %v194
      %v305 = vpop.permute.xlu0 %304
      %308 = vset.pattern.permute.xlu0 2
      %309 = vperm.xlu0 %308, %v211
      %v310 = vpop.permute.xlu0 %309
      %313 = vset.pattern.permute.xlu0 2
      %314 = vperm.xlu0 %313, %v212
      %v315 = vpop.permute.xlu0 %314
      %318 = vset.pattern.permute.xlu0 2
      %319 = vperm.xlu0 %318, %v213
      %v320 = vpop.permute.xlu0 %319
      %323 = vset.pattern.permute.xlu0 2
      %324 = vperm.xlu0 %323, %v214
      %v325 = vpop.permute.xlu0 %324
      %328 = vset.pattern.permute.xlu0 2
      %329 = vperm.xlu0 %328, %v215
      %v330 = vpop.permute.xlu0 %329
      %333 = vset.pattern.permute.xlu0 2
      %334 = vperm.xlu0 %333, %v216
      %v335 = vpop.permute.xlu0 %334
      %338 = vset.pattern.permute.xlu0 2
      %339 = vperm.xlu0 %338, %v217
      %v340 = vpop.permute.xlu0 %339
      %343 = vset.pattern.permute.xlu0 2
      %344 = vperm.xlu0 %343, %v218
      %v345 = vpop.permute.xlu0 %344
      %348 = vset.pattern.permute.xlu0 2
      %349 = vperm.xlu0 %348, %v219
      %v350 = vpop.permute.xlu0 %349
      %353 = vset.pattern.permute.xlu0 2
      %354 = vperm.xlu0 %353, %v220
      %v355 = vpop.permute.xlu0 %354
      %358 = vset.pattern.permute.xlu0 2
      %359 = vperm.xlu0 %358, %v221
      %v360 = vpop.permute.xlu0 %359
      %363 = vset.pattern.permute.xlu0 2
      %364 = vperm.xlu0 %363, %v222
      %v365 = vpop.permute.xlu0 %364
      %368 = vset.pattern.permute.xlu0 2
      %369 = vperm.xlu0 %368, %v223
      %v370 = vpop.permute.xlu0 %369
      %373 = vset.pattern.permute.xlu0 2
      %374 = vperm.xlu0 %373, %v224
      %v375 = vpop.permute.xlu0 %374
      %378 = vset.pattern.permute.xlu0 2
      %379 = vperm.xlu0 %378, %v225
      %v380 = vpop.permute.xlu0 %379
      %383 = vset.pattern.permute.xlu0 2
      %384 = vperm.xlu0 %383, %v226
      %v385 = vpop.permute.xlu0 %384
      %v387 = vlaneseq
      %v388 = vshrl.u32 %v387, 7
      %v389 = vsub.s32 2, %v388
      %v390 = vrot.slane %v159, %v389
      %v391 = vlaneseq
      %v392 = vshrl.u32 %v391, 7
      %v393 = vsub.s32 6, %v392
      %v394 = vrot.slane %v159, %v393
      %v397 = vlaneseq
      %v398 = vshrl.u32 %v397, 7
      %v399 = vsub.s32 2, %v398
      %v400 = vrot.slane %v390, %v399
      %v401 = vlaneseq
      %v402 = vshrl.u32 %v401, 7
      %v403 = vsub.s32 2, %v402
      %v404 = vrot.slane %v394, %v403
      %v405 = vmin.f32 %v230, %v400
      %v406 = vmin.f32 %v230, %v404
      %v407 = vmin.f32 %v235, %v400
      %v408 = vmin.f32 %v235, %v404
      %v409 = vmin.f32 %v240, %v400
      %v410 = vmin.f32 %v240, %v404
      %v411 = vmin.f32 %v245, %v400
      %v412 = vmin.f32 %v245, %v404
      %v413 = vmin.f32 %v250, %v400
      %v414 = vmin.f32 %v250, %v404
      %v415 = vmin.f32 %v255, %v400
      %v416 = vmin.f32 %v255, %v404
      %v417 = vmin.f32 %v260, %v400
      %v418 = vmin.f32 %v260, %v404
      %v419 = vmin.f32 %v265, %v400
      %v420 = vmin.f32 %v265, %v404
      %v421 = vmin.f32 %v270, %v400
      %v422 = vmin.f32 %v270, %v404
      %v423 = vmin.f32 %v275, %v400
      %v424 = vmin.f32 %v275, %v404
      %v425 = vmin.f32 %v280, %v400
      %v426 = vmin.f32 %v280, %v404
      %v427 = vmin.f32 %v285, %v400
      %v428 = vmin.f32 %v285, %v404
      %v429 = vmin.f32 %v290, %v400
      %v430 = vmin.f32 %v290, %v404
      %v431 = vmin.f32 %v295, %v400
      %v432 = vmin.f32 %v295, %v404
      %v433 = vmin.f32 %v300, %v400
      %v434 = vmin.f32 %v300, %v404
      %v435 = vmin.f32 %v305, %v400
      %v436 = vmin.f32 %v305, %v404
      %v437 = vmin.f32 %v310, %v400
      %v438 = vmin.f32 %v310, %v404
      %v439 = vmin.f32 %v315, %v400
      %v440 = vmin.f32 %v315, %v404
      %v441 = vmin.f32 %v320, %v400
      %v442 = vmin.f32 %v320, %v404
      %v443 = vmin.f32 %v325, %v400
      %v444 = vmin.f32 %v325, %v404
      %v445 = vmin.f32 %v330, %v400
      %v446 = vmin.f32 %v330, %v404
      %v447 = vmin.f32 %v335, %v400
      %v448 = vmin.f32 %v335, %v404
      %v449 = vmin.f32 %v340, %v400
      %v450 = vmin.f32 %v340, %v404
      %v451 = vmin.f32 %v345, %v400
      %v452 = vmin.f32 %v345, %v404
      %v453 = vmin.f32 %v350, %v400
      %v454 = vmin.f32 %v350, %v404
      %v455 = vmin.f32 %v355, %v400
      %v456 = vmin.f32 %v355, %v404
      %v457 = vmin.f32 %v360, %v400
      %v458 = vmin.f32 %v360, %v404
      %v459 = vmin.f32 %v365, %v400
      %v460 = vmin.f32 %v365, %v404
      %v461 = vmin.f32 %v370, %v400
      %v462 = vmin.f32 %v370, %v404
      %v463 = vmin.f32 %v375, %v400
      %v464 = vmin.f32 %v375, %v404
      %v465 = vmin.f32 %v380, %v400
      %v466 = vmin.f32 %v380, %v404
      %v467 = vmin.f32 %v385, %v400
      %v468 = vmin.f32 %v385, %v404
      %469 = vset.pattern.permute.xlu0 0
      %470 = vperm.xlu0 %469, %v179
      %v471 = vpop.permute.xlu0 %470
      %473 = vset.pattern.permute.xlu0 0
      %474 = vperm.xlu0 %473, %v180
      %v475 = vpop.permute.xlu0 %474
      %477 = vset.pattern.permute.xlu0 0
      %478 = vperm.xlu0 %477, %v181
      %v479 = vpop.permute.xlu0 %478
      %481 = vset.pattern.permute.xlu0 0
      %482 = vperm.xlu0 %481, %v182
      %v483 = vpop.permute.xlu0 %482
      %485 = vset.pattern.permute.xlu0 0
      %486 = vperm.xlu0 %485, %v183
      %v487 = vpop.permute.xlu0 %486
      %489 = vset.pattern.permute.xlu0 0
      %490 = vperm.xlu0 %489, %v184
      %v491 = vpop.permute.xlu0 %490
      %493 = vset.pattern.permute.xlu0 0
      %494 = vperm.xlu0 %493, %v185
      %v495 = vpop.permute.xlu0 %494
      %497 = vset.pattern.permute.xlu0 0
      %498 = vperm.xlu0 %497, %v186
      %v499 = vpop.permute.xlu0 %498
      %501 = vset.pattern.permute.xlu0 0
      %502 = vperm.xlu0 %501, %v187
      %v503 = vpop.permute.xlu0 %502
      %505 = vset.pattern.permute.xlu0 0
      %506 = vperm.xlu0 %505, %v188
      %v507 = vpop.permute.xlu0 %506
      %509 = vset.pattern.permute.xlu0 0
      %510 = vperm.xlu0 %509, %v189
      %v511 = vpop.permute.xlu0 %510
      %513 = vset.pattern.permute.xlu0 0
      %514 = vperm.xlu0 %513, %v190
      %v515 = vpop.permute.xlu0 %514
      %517 = vset.pattern.permute.xlu0 0
      %518 = vperm.xlu0 %517, %v191
      %v519 = vpop.permute.xlu0 %518
      %521 = vset.pattern.permute.xlu0 0
      %522 = vperm.xlu0 %521, %v192
      %v523 = vpop.permute.xlu0 %522
      %525 = vset.pattern.permute.xlu0 0
      %526 = vperm.xlu0 %525, %v193
      %v527 = vpop.permute.xlu0 %526
      %529 = vset.pattern.permute.xlu0 0
      %530 = vperm.xlu0 %529, %v194
      %v531 = vpop.permute.xlu0 %530
      %533 = vset.pattern.permute.xlu0 0
      %534 = vperm.xlu0 %533, %v211
      %v535 = vpop.permute.xlu0 %534
      %537 = vset.pattern.permute.xlu0 0
      %538 = vperm.xlu0 %537, %v212
      %v539 = vpop.permute.xlu0 %538
      %541 = vset.pattern.permute.xlu0 0
      %542 = vperm.xlu0 %541, %v213
      %v543 = vpop.permute.xlu0 %542
      %545 = vset.pattern.permute.xlu0 0
      %546 = vperm.xlu0 %545, %v214
      %v547 = vpop.permute.xlu0 %546
      %549 = vset.pattern.permute.xlu0 0
      %550 = vperm.xlu0 %549, %v215
      %v551 = vpop.permute.xlu0 %550
      %553 = vset.pattern.permute.xlu0 0
      %554 = vperm.xlu0 %553, %v216
      %v555 = vpop.permute.xlu0 %554
      %557 = vset.pattern.permute.xlu0 0
      %558 = vperm.xlu0 %557, %v217
      %v559 = vpop.permute.xlu0 %558
      %561 = vset.pattern.permute.xlu0 0
      %562 = vperm.xlu0 %561, %v218
      %v563 = vpop.permute.xlu0 %562
      %565 = vset.pattern.permute.xlu0 0
      %566 = vperm.xlu0 %565, %v219
      %v567 = vpop.permute.xlu0 %566
      %569 = vset.pattern.permute.xlu0 0
      %570 = vperm.xlu0 %569, %v220
      %v571 = vpop.permute.xlu0 %570
      %573 = vset.pattern.permute.xlu0 0
      %574 = vperm.xlu0 %573, %v221
      %v575 = vpop.permute.xlu0 %574
      %577 = vset.pattern.permute.xlu0 0
      %578 = vperm.xlu0 %577, %v222
      %v579 = vpop.permute.xlu0 %578
      %581 = vset.pattern.permute.xlu0 0
      %582 = vperm.xlu0 %581, %v223
      %v583 = vpop.permute.xlu0 %582
      %585 = vset.pattern.permute.xlu0 0
      %586 = vperm.xlu0 %585, %v224
      %v587 = vpop.permute.xlu0 %586
      %589 = vset.pattern.permute.xlu0 0
      %590 = vperm.xlu0 %589, %v225
      %v591 = vpop.permute.xlu0 %590
      %593 = vset.pattern.permute.xlu0 0
      %594 = vperm.xlu0 %593, %v226
      %v595 = vpop.permute.xlu0 %594
      %v597 = vlaneseq
      %v598 = vshrl.u32 %v597, 7
      %v599 = vsub.s32 0, %v598
      %v600 = vrot.slane %v159, %v599
      %v601 = vlaneseq
      %v602 = vshrl.u32 %v601, 7
      %v603 = vsub.s32 4, %v602
      %v604 = vrot.slane %v159, %v603
      %v607 = vlaneseq
      %v608 = vshrl.u32 %v607, 7
      %v609 = vsub.s32 0, %v608
      %v610 = vrot.slane %v600, %v609
      %v611 = vlaneseq
      %v612 = vshrl.u32 %v611, 7
      %v613 = vsub.s32 0, %v612
      %v614 = vrot.slane %v604, %v613
      %v615 = vmax.f32 %v471, %v610
      %v616 = vmax.f32 %v471, %v614
      %v617 = vmax.f32 %v475, %v610
      %v618 = vmax.f32 %v475, %v614
      %v619 = vmax.f32 %v479, %v610
      %v620 = vmax.f32 %v479, %v614
      %v621 = vmax.f32 %v483, %v610
      %v622 = vmax.f32 %v483, %v614
      %v623 = vmax.f32 %v487, %v610
      %v624 = vmax.f32 %v487, %v614
      %v625 = vmax.f32 %v491, %v610
      %v626 = vmax.f32 %v491, %v614
      %v627 = vmax.f32 %v495, %v610
      %v628 = vmax.f32 %v495, %v614
      %v629 = vmax.f32 %v499, %v610
      %v630 = vmax.f32 %v499, %v614
      %v631 = vmax.f32 %v503, %v610
      %v632 = vmax.f32 %v503, %v614
      %v633 = vmax.f32 %v507, %v610
      %v634 = vmax.f32 %v507, %v614
      %v635 = vmax.f32 %v511, %v610
      %v636 = vmax.f32 %v511, %v614
      %v637 = vmax.f32 %v515, %v610
      %v638 = vmax.f32 %v515, %v614
      %v639 = vmax.f32 %v519, %v610
      %v640 = vmax.f32 %v519, %v614
      %v641 = vmax.f32 %v523, %v610
      %v642 = vmax.f32 %v523, %v614
      %v643 = vmax.f32 %v527, %v610
      %v644 = vmax.f32 %v527, %v614
      %v645 = vmax.f32 %v531, %v610
      %v646 = vmax.f32 %v531, %v614
      %v647 = vmax.f32 %v535, %v610
      %v648 = vmax.f32 %v535, %v614
      %v649 = vmax.f32 %v539, %v610
      %v650 = vmax.f32 %v539, %v614
      %v651 = vmax.f32 %v543, %v610
      %v652 = vmax.f32 %v543, %v614
      %v653 = vmax.f32 %v547, %v610
      %v654 = vmax.f32 %v547, %v614
      %v655 = vmax.f32 %v551, %v610
      %v656 = vmax.f32 %v551, %v614
      %v657 = vmax.f32 %v555, %v610
      %v658 = vmax.f32 %v555, %v614
      %v659 = vmax.f32 %v559, %v610
      %v660 = vmax.f32 %v559, %v614
      %v661 = vmax.f32 %v563, %v610
      %v662 = vmax.f32 %v563, %v614
      %v663 = vmax.f32 %v567, %v610
      %v664 = vmax.f32 %v567, %v614
      %v665 = vmax.f32 %v571, %v610
      %v666 = vmax.f32 %v571, %v614
      %v667 = vmax.f32 %v575, %v610
      %v668 = vmax.f32 %v575, %v614
      %v669 = vmax.f32 %v579, %v610
      %v670 = vmax.f32 %v579, %v614
      %v671 = vmax.f32 %v583, %v610
      %v672 = vmax.f32 %v583, %v614
      %v673 = vmax.f32 %v587, %v610
      %v674 = vmax.f32 %v587, %v614
      %v675 = vmax.f32 %v591, %v610
      %v676 = vmax.f32 %v591, %v614
      %v677 = vmax.f32 %v595, %v610
      %v678 = vmax.f32 %v595, %v614
      %v679 = vsub.f32 %v405, %v615
      %v680 = vsub.f32 %v406, %v616
      %v681 = vsub.f32 %v407, %v617
      %v682 = vsub.f32 %v408, %v618
      %v683 = vsub.f32 %v409, %v619
      %v684 = vsub.f32 %v410, %v620
      %v685 = vsub.f32 %v411, %v621
      %v686 = vsub.f32 %v412, %v622
      %v687 = vsub.f32 %v413, %v623
      %v688 = vsub.f32 %v414, %v624
      %v689 = vsub.f32 %v415, %v625
      %v690 = vsub.f32 %v416, %v626
      %v691 = vsub.f32 %v417, %v627
      %v692 = vsub.f32 %v418, %v628
      %v693 = vsub.f32 %v419, %v629
      %v694 = vsub.f32 %v420, %v630
      %v695 = vsub.f32 %v421, %v631
      %v696 = vsub.f32 %v422, %v632
      %v697 = vsub.f32 %v423, %v633
      %v698 = vsub.f32 %v424, %v634
      %v699 = vsub.f32 %v425, %v635
      %v700 = vsub.f32 %v426, %v636
      %v701 = vsub.f32 %v427, %v637
      %v702 = vsub.f32 %v428, %v638
      %v703 = vsub.f32 %v429, %v639
      %v704 = vsub.f32 %v430, %v640
      %v705 = vsub.f32 %v431, %v641
      %v706 = vsub.f32 %v432, %v642
      %v707 = vsub.f32 %v433, %v643
      %v708 = vsub.f32 %v434, %v644
      %v709 = vsub.f32 %v435, %v645
      %v710 = vsub.f32 %v436, %v646
      %v711 = vsub.f32 %v437, %v647
      %v712 = vsub.f32 %v438, %v648
      %v713 = vsub.f32 %v439, %v649
      %v714 = vsub.f32 %v440, %v650
      %v715 = vsub.f32 %v441, %v651
      %v716 = vsub.f32 %v442, %v652
      %v717 = vsub.f32 %v443, %v653
      %v718 = vsub.f32 %v444, %v654
      %v719 = vsub.f32 %v445, %v655
      %v720 = vsub.f32 %v446, %v656
      %v721 = vsub.f32 %v447, %v657
      %v722 = vsub.f32 %v448, %v658
      %v723 = vsub.f32 %v449, %v659
      %v724 = vsub.f32 %v450, %v660
      %v725 = vsub.f32 %v451, %v661
      %v726 = vsub.f32 %v452, %v662
      %v727 = vsub.f32 %v453, %v663
      %v728 = vsub.f32 %v454, %v664
      %v729 = vsub.f32 %v455, %v665
      %v730 = vsub.f32 %v456, %v666
      %v731 = vsub.f32 %v457, %v667
      %v732 = vsub.f32 %v458, %v668
      %v733 = vsub.f32 %v459, %v669
      %v734 = vsub.f32 %v460, %v670
      %v735 = vsub.f32 %v461, %v671
      %v736 = vsub.f32 %v462, %v672
      %v737 = vsub.f32 %v463, %v673
      %v738 = vsub.f32 %v464, %v674
      %v739 = vsub.f32 %v465, %v675
      %v740 = vsub.f32 %v466, %v676
      %v741 = vsub.f32 %v467, %v677
      %v742 = vsub.f32 %v468, %v678
      %v743 = vmax.f32 %v679, 0.0
      %v744 = vmax.f32 %v680, 0.0
      %v745 = vmax.f32 %v681, 0.0
      %v746 = vmax.f32 %v682, 0.0
      %v747 = vmax.f32 %v683, 0.0
      %v748 = vmax.f32 %v684, 0.0
      %v749 = vmax.f32 %v685, 0.0
      %v750 = vmax.f32 %v686, 0.0
      %v751 = vmax.f32 %v687, 0.0
      %v752 = vmax.f32 %v688, 0.0
      %v753 = vmax.f32 %v689, 0.0
      %v754 = vmax.f32 %v690, 0.0
      %v755 = vmax.f32 %v691, 0.0
      %v756 = vmax.f32 %v692, 0.0
      %v757 = vmax.f32 %v693, 0.0
      %v758 = vmax.f32 %v694, 0.0
      %v759 = vmax.f32 %v695, 0.0
      %v760 = vmax.f32 %v696, 0.0
      %v761 = vmax.f32 %v697, 0.0
      %v762 = vmax.f32 %v698, 0.0
      %v763 = vmax.f32 %v699, 0.0
      %v764 = vmax.f32 %v700, 0.0
      %v765 = vmax.f32 %v701, 0.0
      %v766 = vmax.f32 %v702, 0.0
      %v767 = vmax.f32 %v703, 0.0
      %v768 = vmax.f32 %v704, 0.0
      %v769 = vmax.f32 %v705, 0.0
      %v770 = vmax.f32 %v706, 0.0
      %v771 = vmax.f32 %v707, 0.0
      %v772 = vmax.f32 %v708, 0.0
      %v773 = vmax.f32 %v709, 0.0
      %v774 = vmax.f32 %v710, 0.0
      %v775 = vmax.f32 %v711, 0.0
      %v776 = vmax.f32 %v712, 0.0
      %v777 = vmax.f32 %v713, 0.0
      %v778 = vmax.f32 %v714, 0.0
      %v779 = vmax.f32 %v715, 0.0
      %v780 = vmax.f32 %v716, 0.0
      %v781 = vmax.f32 %v717, 0.0
      %v782 = vmax.f32 %v718, 0.0
      %v783 = vmax.f32 %v719, 0.0
      %v784 = vmax.f32 %v720, 0.0
      %v785 = vmax.f32 %v721, 0.0
      %v786 = vmax.f32 %v722, 0.0
      %v787 = vmax.f32 %v723, 0.0
      %v788 = vmax.f32 %v724, 0.0
      %v789 = vmax.f32 %v725, 0.0
      %v790 = vmax.f32 %v726, 0.0
      %v791 = vmax.f32 %v727, 0.0
      %v792 = vmax.f32 %v728, 0.0
      %v793 = vmax.f32 %v729, 0.0
      %v794 = vmax.f32 %v730, 0.0
      %v795 = vmax.f32 %v731, 0.0
      %v796 = vmax.f32 %v732, 0.0
      %v797 = vmax.f32 %v733, 0.0
      %v798 = vmax.f32 %v734, 0.0
      %v799 = vmax.f32 %v735, 0.0
      %v800 = vmax.f32 %v736, 0.0
      %v801 = vmax.f32 %v737, 0.0
      %v802 = vmax.f32 %v738, 0.0
      %v803 = vmax.f32 %v739, 0.0
      %v804 = vmax.f32 %v740, 0.0
      %v805 = vmax.f32 %v741, 0.0
      %v806 = vmax.f32 %v742, 0.0
      %807 = vset.pattern.permute.xlu0 3
      %808 = vperm.xlu0 %807, %v179
      %v809 = vpop.permute.xlu0 %808
      %811 = vset.pattern.permute.xlu0 3
      %812 = vperm.xlu0 %811, %v180
      %v813 = vpop.permute.xlu0 %812
      %815 = vset.pattern.permute.xlu0 3
      %816 = vperm.xlu0 %815, %v181
      %v817 = vpop.permute.xlu0 %816
      %819 = vset.pattern.permute.xlu0 3
      %820 = vperm.xlu0 %819, %v182
      %v821 = vpop.permute.xlu0 %820
      %823 = vset.pattern.permute.xlu0 3
      %824 = vperm.xlu0 %823, %v183
      %v825 = vpop.permute.xlu0 %824
      %827 = vset.pattern.permute.xlu0 3
      %828 = vperm.xlu0 %827, %v184
      %v829 = vpop.permute.xlu0 %828
      %831 = vset.pattern.permute.xlu0 3
      %832 = vperm.xlu0 %831, %v185
      %v833 = vpop.permute.xlu0 %832
      %835 = vset.pattern.permute.xlu0 3
      %836 = vperm.xlu0 %835, %v186
      %v837 = vpop.permute.xlu0 %836
      %839 = vset.pattern.permute.xlu0 3
      %840 = vperm.xlu0 %839, %v187
      %v841 = vpop.permute.xlu0 %840
      %843 = vset.pattern.permute.xlu0 3
      %844 = vperm.xlu0 %843, %v188
      %v845 = vpop.permute.xlu0 %844
      %847 = vset.pattern.permute.xlu0 3
      %848 = vperm.xlu0 %847, %v189
      %v849 = vpop.permute.xlu0 %848
      %851 = vset.pattern.permute.xlu0 3
      %852 = vperm.xlu0 %851, %v190
      %v853 = vpop.permute.xlu0 %852
      %855 = vset.pattern.permute.xlu0 3
      %856 = vperm.xlu0 %855, %v191
      %v857 = vpop.permute.xlu0 %856
      %859 = vset.pattern.permute.xlu0 3
      %860 = vperm.xlu0 %859, %v192
      %v861 = vpop.permute.xlu0 %860
      %863 = vset.pattern.permute.xlu0 3
      %864 = vperm.xlu0 %863, %v193
      %v865 = vpop.permute.xlu0 %864
      %867 = vset.pattern.permute.xlu0 3
      %868 = vperm.xlu0 %867, %v194
      %v869 = vpop.permute.xlu0 %868
      %871 = vset.pattern.permute.xlu0 3
      %872 = vperm.xlu0 %871, %v211
      %v873 = vpop.permute.xlu0 %872
      %875 = vset.pattern.permute.xlu0 3
      %876 = vperm.xlu0 %875, %v212
      %v877 = vpop.permute.xlu0 %876
      %879 = vset.pattern.permute.xlu0 3
      %880 = vperm.xlu0 %879, %v213
      %v881 = vpop.permute.xlu0 %880
      %883 = vset.pattern.permute.xlu0 3
      %884 = vperm.xlu0 %883, %v214
      %v885 = vpop.permute.xlu0 %884
      %887 = vset.pattern.permute.xlu0 3
      %888 = vperm.xlu0 %887, %v215
      %v889 = vpop.permute.xlu0 %888
      %891 = vset.pattern.permute.xlu0 3
      %892 = vperm.xlu0 %891, %v216
      %v893 = vpop.permute.xlu0 %892
      %895 = vset.pattern.permute.xlu0 3
      %896 = vperm.xlu0 %895, %v217
      %v897 = vpop.permute.xlu0 %896
      %899 = vset.pattern.permute.xlu0 3
      %900 = vperm.xlu0 %899, %v218
      %v901 = vpop.permute.xlu0 %900
      %903 = vset.pattern.permute.xlu0 3
      %904 = vperm.xlu0 %903, %v219
      %v905 = vpop.permute.xlu0 %904
      %907 = vset.pattern.permute.xlu0 3
      %908 = vperm.xlu0 %907, %v220
      %v909 = vpop.permute.xlu0 %908
      %911 = vset.pattern.permute.xlu0 3
      %912 = vperm.xlu0 %911, %v221
      %v913 = vpop.permute.xlu0 %912
      %915 = vset.pattern.permute.xlu0 3
      %916 = vperm.xlu0 %915, %v222
      %v917 = vpop.permute.xlu0 %916
      %919 = vset.pattern.permute.xlu0 3
      %920 = vperm.xlu0 %919, %v223
      %v921 = vpop.permute.xlu0 %920
      %923 = vset.pattern.permute.xlu0 3
      %924 = vperm.xlu0 %923, %v224
      %v925 = vpop.permute.xlu0 %924
      %927 = vset.pattern.permute.xlu0 3
      %928 = vperm.xlu0 %927, %v225
      %v929 = vpop.permute.xlu0 %928
      %931 = vset.pattern.permute.xlu0 3
      %932 = vperm.xlu0 %931, %v226
      %v933 = vpop.permute.xlu0 %932
      %v935 = vlaneseq
      %v936 = vshrl.u32 %v935, 7
      %v937 = vsub.s32 3, %v936
      %v938 = vrot.slane %v159, %v937
      %v939 = vlaneseq
      %v940 = vshrl.u32 %v939, 7
      %v941 = vsub.s32 7, %v940
      %v942 = vrot.slane %v159, %v941
      %v945 = vlaneseq
      %v946 = vshrl.u32 %v945, 7
      %v947 = vsub.s32 3, %v946
      %v948 = vrot.slane %v938, %v947
      %v949 = vlaneseq
      %v950 = vshrl.u32 %v949, 7
      %v951 = vsub.s32 3, %v950
      %v952 = vrot.slane %v942, %v951
      %v953 = vmin.f32 %v809, %v948
      %v954 = vmin.f32 %v809, %v952
      %v955 = vmin.f32 %v813, %v948
      %v956 = vmin.f32 %v813, %v952
      %v957 = vmin.f32 %v817, %v948
      %v958 = vmin.f32 %v817, %v952
      %v959 = vmin.f32 %v821, %v948
      %v960 = vmin.f32 %v821, %v952
      %v961 = vmin.f32 %v825, %v948
      %v962 = vmin.f32 %v825, %v952
      %v963 = vmin.f32 %v829, %v948
      %v964 = vmin.f32 %v829, %v952
      %v965 = vmin.f32 %v833, %v948
      %v966 = vmin.f32 %v833, %v952
      %v967 = vmin.f32 %v837, %v948
      %v968 = vmin.f32 %v837, %v952
      %v969 = vmin.f32 %v841, %v948
      %v970 = vmin.f32 %v841, %v952
      %v971 = vmin.f32 %v845, %v948
      %v972 = vmin.f32 %v845, %v952
      %v973 = vmin.f32 %v849, %v948
      %v974 = vmin.f32 %v849, %v952
      %v975 = vmin.f32 %v853, %v948
      %v976 = vmin.f32 %v853, %v952
      %v977 = vmin.f32 %v857, %v948
      %v978 = vmin.f32 %v857, %v952
      %v979 = vmin.f32 %v861, %v948
      %v980 = vmin.f32 %v861, %v952
      %v981 = vmin.f32 %v865, %v948
      %v982 = vmin.f32 %v865, %v952
      %v983 = vmin.f32 %v869, %v948
      %v984 = vmin.f32 %v869, %v952
      %v985 = vmin.f32 %v873, %v948
      %v986 = vmin.f32 %v873, %v952
      %v987 = vmin.f32 %v877, %v948
      %v988 = vmin.f32 %v877, %v952
      %v989 = vmin.f32 %v881, %v948
      %v990 = vmin.f32 %v881, %v952
      %v991 = vmin.f32 %v885, %v948
      %v992 = vmin.f32 %v885, %v952
      %v993 = vmin.f32 %v889, %v948
      %v994 = vmin.f32 %v889, %v952
      %v995 = vmin.f32 %v893, %v948
      %v996 = vmin.f32 %v893, %v952
      %v997 = vmin.f32 %v897, %v948
      %v998 = vmin.f32 %v897, %v952
      %v999 = vmin.f32 %v901, %v948
      %v1000 = vmin.f32 %v901, %v952
      %v1001 = vmin.f32 %v905, %v948
      %v1002 = vmin.f32 %v905, %v952
      %v1003 = vmin.f32 %v909, %v948
      %v1004 = vmin.f32 %v909, %v952
      %v1005 = vmin.f32 %v913, %v948
      %v1006 = vmin.f32 %v913, %v952
      %v1007 = vmin.f32 %v917, %v948
      %v1008 = vmin.f32 %v917, %v952
      %v1009 = vmin.f32 %v921, %v948
      %v1010 = vmin.f32 %v921, %v952
      %v1011 = vmin.f32 %v925, %v948
      %v1012 = vmin.f32 %v925, %v952
      %v1013 = vmin.f32 %v929, %v948
      %v1014 = vmin.f32 %v929, %v952
      %v1015 = vmin.f32 %v933, %v948
      %v1016 = vmin.f32 %v933, %v952
      %1017 = vset.pattern.permute.xlu0 1
      %1018 = vperm.xlu0 %1017, %v179
      %v1019 = vpop.permute.xlu0 %1018
      %1021 = vset.pattern.permute.xlu0 1
      %1022 = vperm.xlu0 %1021, %v180
      %v1023 = vpop.permute.xlu0 %1022
      %1025 = vset.pattern.permute.xlu0 1
      %1026 = vperm.xlu0 %1025, %v181
      %v1027 = vpop.permute.xlu0 %1026
      %1029 = vset.pattern.permute.xlu0 1
      %1030 = vperm.xlu0 %1029, %v182
      %v1031 = vpop.permute.xlu0 %1030
      %1033 = vset.pattern.permute.xlu0 1
      %1034 = vperm.xlu0 %1033, %v183
      %v1035 = vpop.permute.xlu0 %1034
      %1037 = vset.pattern.permute.xlu0 1
      %1038 = vperm.xlu0 %1037, %v184
      %v1039 = vpop.permute.xlu0 %1038
      %1041 = vset.pattern.permute.xlu0 1
      %1042 = vperm.xlu0 %1041, %v185
      %v1043 = vpop.permute.xlu0 %1042
      %1045 = vset.pattern.permute.xlu0 1
      %1046 = vperm.xlu0 %1045, %v186
      %v1047 = vpop.permute.xlu0 %1046
      %1049 = vset.pattern.permute.xlu0 1
      %1050 = vperm.xlu0 %1049, %v187
      %v1051 = vpop.permute.xlu0 %1050
      %1053 = vset.pattern.permute.xlu0 1
      %1054 = vperm.xlu0 %1053, %v188
      %v1055 = vpop.permute.xlu0 %1054
      %1057 = vset.pattern.permute.xlu0 1
      %1058 = vperm.xlu0 %1057, %v189
      %v1059 = vpop.permute.xlu0 %1058
      %1061 = vset.pattern.permute.xlu0 1
      %1062 = vperm.xlu0 %1061, %v190
      %v1063 = vpop.permute.xlu0 %1062
      %1065 = vset.pattern.permute.xlu0 1
      %1066 = vperm.xlu0 %1065, %v191
      %v1067 = vpop.permute.xlu0 %1066
      %1069 = vset.pattern.permute.xlu0 1
      %1070 = vperm.xlu0 %1069, %v192
      %v1071 = vpop.permute.xlu0 %1070
      %1073 = vset.pattern.permute.xlu0 1
      %1074 = vperm.xlu0 %1073, %v193
      %v1075 = vpop.permute.xlu0 %1074
      %1077 = vset.pattern.permute.xlu0 1
      %1078 = vperm.xlu0 %1077, %v194
      %v1079 = vpop.permute.xlu0 %1078
      %1081 = vset.pattern.permute.xlu0 1
      %1082 = vperm.xlu0 %1081, %v211
      %v1083 = vpop.permute.xlu0 %1082
      %1085 = vset.pattern.permute.xlu0 1
      %1086 = vperm.xlu0 %1085, %v212
      %v1087 = vpop.permute.xlu0 %1086
      %1089 = vset.pattern.permute.xlu0 1
      %1090 = vperm.xlu0 %1089, %v213
      %v1091 = vpop.permute.xlu0 %1090
      %1093 = vset.pattern.permute.xlu0 1
      %1094 = vperm.xlu0 %1093, %v214
      %v1095 = vpop.permute.xlu0 %1094
      %1097 = vset.pattern.permute.xlu0 1
      %1098 = vperm.xlu0 %1097, %v215
      %v1099 = vpop.permute.xlu0 %1098
      %1101 = vset.pattern.permute.xlu0 1
      %1102 = vperm.xlu0 %1101, %v216
      %v1103 = vpop.permute.xlu0 %1102
      %1105 = vset.pattern.permute.xlu0 1
      %1106 = vperm.xlu0 %1105, %v217
      %v1107 = vpop.permute.xlu0 %1106
      %1109 = vset.pattern.permute.xlu0 1
      %1110 = vperm.xlu0 %1109, %v218
      %v1111 = vpop.permute.xlu0 %1110
      %1113 = vset.pattern.permute.xlu0 1
      %1114 = vperm.xlu0 %1113, %v219
      %v1115 = vpop.permute.xlu0 %1114
      %1117 = vset.pattern.permute.xlu0 1
      %1118 = vperm.xlu0 %1117, %v220
      %v1119 = vpop.permute.xlu0 %1118
      %1121 = vset.pattern.permute.xlu0 1
      %1122 = vperm.xlu0 %1121, %v221
      %v1123 = vpop.permute.xlu0 %1122
      %1125 = vset.pattern.permute.xlu0 1
      %1126 = vperm.xlu0 %1125, %v222
      %v1127 = vpop.permute.xlu0 %1126
      %1129 = vset.pattern.permute.xlu0 1
      %1130 = vperm.xlu0 %1129, %v223
      %v1131 = vpop.permute.xlu0 %1130
      %1133 = vset.pattern.permute.xlu0 1
      %1134 = vperm.xlu0 %1133, %v224
      %v1135 = vpop.permute.xlu0 %1134
      %1137 = vset.pattern.permute.xlu0 1
      %1138 = vperm.xlu0 %1137, %v225
      %v1139 = vpop.permute.xlu0 %1138
      %1141 = vset.pattern.permute.xlu0 1
      %1142 = vperm.xlu0 %1141, %v226
      %v1143 = vpop.permute.xlu0 %1142
      %v1145 = vlaneseq
      %v1146 = vshrl.u32 %v1145, 7
      %v1147 = vsub.s32 1, %v1146
      %v1148 = vrot.slane %v159, %v1147
      %v1149 = vlaneseq
      %v1150 = vshrl.u32 %v1149, 7
      %v1151 = vsub.s32 5, %v1150
      %v1152 = vrot.slane %v159, %v1151
      %v1155 = vlaneseq
      %v1156 = vshrl.u32 %v1155, 7
      %v1157 = vsub.s32 1, %v1156
      %v1158 = vrot.slane %v1148, %v1157
      %v1159 = vlaneseq
      %v1160 = vshrl.u32 %v1159, 7
      %v1161 = vsub.s32 1, %v1160
      %v1162 = vrot.slane %v1152, %v1161
      %v1163 = vmax.f32 %v1019, %v1158
      %v1164 = vmax.f32 %v1019, %v1162
      %v1165 = vmax.f32 %v1023, %v1158
      %v1166 = vmax.f32 %v1023, %v1162
      %v1167 = vmax.f32 %v1027, %v1158
      %v1168 = vmax.f32 %v1027, %v1162
      %v1169 = vmax.f32 %v1031, %v1158
      %v1170 = vmax.f32 %v1031, %v1162
      %v1171 = vmax.f32 %v1035, %v1158
      %v1172 = vmax.f32 %v1035, %v1162
      %v1173 = vmax.f32 %v1039, %v1158
      %v1174 = vmax.f32 %v1039, %v1162
      %v1175 = vmax.f32 %v1043, %v1158
      %v1176 = vmax.f32 %v1043, %v1162
      %v1177 = vmax.f32 %v1047, %v1158
      %v1178 = vmax.f32 %v1047, %v1162
      %v1179 = vmax.f32 %v1051, %v1158
      %v1180 = vmax.f32 %v1051, %v1162
      %v1181 = vmax.f32 %v1055, %v1158
      %v1182 = vmax.f32 %v1055, %v1162
      %v1183 = vmax.f32 %v1059, %v1158
      %v1184 = vmax.f32 %v1059, %v1162
      %v1185 = vmax.f32 %v1063, %v1158
      %v1186 = vmax.f32 %v1063, %v1162
      %v1187 = vmax.f32 %v1067, %v1158
      %v1188 = vmax.f32 %v1067, %v1162
      %v1189 = vmax.f32 %v1071, %v1158
      %v1190 = vmax.f32 %v1071, %v1162
      %v1191 = vmax.f32 %v1075, %v1158
      %v1192 = vmax.f32 %v1075, %v1162
      %v1193 = vmax.f32 %v1079, %v1158
      %v1194 = vmax.f32 %v1079, %v1162
      %v1195 = vmax.f32 %v1083, %v1158
      %v1196 = vmax.f32 %v1083, %v1162
      %v1197 = vmax.f32 %v1087, %v1158
      %v1198 = vmax.f32 %v1087, %v1162
      %v1199 = vmax.f32 %v1091, %v1158
      %v1200 = vmax.f32 %v1091, %v1162
      %v1201 = vmax.f32 %v1095, %v1158
      %v1202 = vmax.f32 %v1095, %v1162
      %v1203 = vmax.f32 %v1099, %v1158
      %v1204 = vmax.f32 %v1099, %v1162
      %v1205 = vmax.f32 %v1103, %v1158
      %v1206 = vmax.f32 %v1103, %v1162
      %v1207 = vmax.f32 %v1107, %v1158
      %v1208 = vmax.f32 %v1107, %v1162
      %v1209 = vmax.f32 %v1111, %v1158
      %v1210 = vmax.f32 %v1111, %v1162
      %v1211 = vmax.f32 %v1115, %v1158
      %v1212 = vmax.f32 %v1115, %v1162
      %v1213 = vmax.f32 %v1119, %v1158
      %v1214 = vmax.f32 %v1119, %v1162
      %v1215 = vmax.f32 %v1123, %v1158
      %v1216 = vmax.f32 %v1123, %v1162
      %v1217 = vmax.f32 %v1127, %v1158
      %v1218 = vmax.f32 %v1127, %v1162
      %v1219 = vmax.f32 %v1131, %v1158
      %v1220 = vmax.f32 %v1131, %v1162
      %v1221 = vmax.f32 %v1135, %v1158
      %v1222 = vmax.f32 %v1135, %v1162
      %v1223 = vmax.f32 %v1139, %v1158
      %v1224 = vmax.f32 %v1139, %v1162
      %v1225 = vmax.f32 %v1143, %v1158
      %v1226 = vmax.f32 %v1143, %v1162
      %v1227 = vsub.f32 %v953, %v1163
      %v1228 = vsub.f32 %v954, %v1164
      %v1229 = vsub.f32 %v955, %v1165
      %v1230 = vsub.f32 %v956, %v1166
      %v1231 = vsub.f32 %v957, %v1167
      %v1232 = vsub.f32 %v958, %v1168
      %v1233 = vsub.f32 %v959, %v1169
      %v1234 = vsub.f32 %v960, %v1170
      %v1235 = vsub.f32 %v961, %v1171
      %v1236 = vsub.f32 %v962, %v1172
      %v1237 = vsub.f32 %v963, %v1173
      %v1238 = vsub.f32 %v964, %v1174
      %v1239 = vsub.f32 %v965, %v1175
      %v1240 = vsub.f32 %v966, %v1176
      %v1241 = vsub.f32 %v967, %v1177
      %v1242 = vsub.f32 %v968, %v1178
      %v1243 = vsub.f32 %v969, %v1179
      %v1244 = vsub.f32 %v970, %v1180
      %v1245 = vsub.f32 %v971, %v1181
      %v1246 = vsub.f32 %v972, %v1182
      %v1247 = vsub.f32 %v973, %v1183
      %v1248 = vsub.f32 %v974, %v1184
      %v1249 = vsub.f32 %v975, %v1185
      %v1250 = vsub.f32 %v976, %v1186
      %v1251 = vsub.f32 %v977, %v1187
      %v1252 = vsub.f32 %v978, %v1188
      %v1253 = vsub.f32 %v979, %v1189
      %v1254 = vsub.f32 %v980, %v1190
      %v1255 = vsub.f32 %v981, %v1191
      %v1256 = vsub.f32 %v982, %v1192
      %v1257 = vsub.f32 %v983, %v1193
      %v1258 = vsub.f32 %v984, %v1194
      %v1259 = vsub.f32 %v985, %v1195
      %v1260 = vsub.f32 %v986, %v1196
      %v1261 = vsub.f32 %v987, %v1197
      %v1262 = vsub.f32 %v988, %v1198
      %v1263 = vsub.f32 %v989, %v1199
      %v1264 = vsub.f32 %v990, %v1200
      %v1265 = vsub.f32 %v991, %v1201
      %v1266 = vsub.f32 %v992, %v1202
      %v1267 = vsub.f32 %v993, %v1203
      %v1268 = vsub.f32 %v994, %v1204
      %v1269 = vsub.f32 %v995, %v1205
      %v1270 = vsub.f32 %v996, %v1206
      %v1271 = vsub.f32 %v997, %v1207
      %v1272 = vsub.f32 %v998, %v1208
      %v1273 = vsub.f32 %v999, %v1209
      %v1274 = vsub.f32 %v1000, %v1210
      %v1275 = vsub.f32 %v1001, %v1211
      %v1276 = vsub.f32 %v1002, %v1212
      %v1277 = vsub.f32 %v1003, %v1213
      %v1278 = vsub.f32 %v1004, %v1214
      %v1279 = vsub.f32 %v1005, %v1215
      %v1280 = vsub.f32 %v1006, %v1216
      %v1281 = vsub.f32 %v1007, %v1217
      %v1282 = vsub.f32 %v1008, %v1218
      %v1283 = vsub.f32 %v1009, %v1219
      %v1284 = vsub.f32 %v1010, %v1220
      %v1285 = vsub.f32 %v1011, %v1221
      %v1286 = vsub.f32 %v1012, %v1222
      %v1287 = vsub.f32 %v1013, %v1223
      %v1288 = vsub.f32 %v1014, %v1224
      %v1289 = vsub.f32 %v1015, %v1225
      %v1290 = vsub.f32 %v1016, %v1226
      %v1291 = vmax.f32 %v1227, 0.0
      %v1292 = vmax.f32 %v1228, 0.0
      %v1293 = vmax.f32 %v1229, 0.0
      %v1294 = vmax.f32 %v1230, 0.0
      %v1295 = vmax.f32 %v1231, 0.0
      %v1296 = vmax.f32 %v1232, 0.0
      %v1297 = vmax.f32 %v1233, 0.0
      %v1298 = vmax.f32 %v1234, 0.0
      %v1299 = vmax.f32 %v1235, 0.0
      %v1300 = vmax.f32 %v1236, 0.0
      %v1301 = vmax.f32 %v1237, 0.0
      %v1302 = vmax.f32 %v1238, 0.0
      %v1303 = vmax.f32 %v1239, 0.0
      %v1304 = vmax.f32 %v1240, 0.0
      %v1305 = vmax.f32 %v1241, 0.0
      %v1306 = vmax.f32 %v1242, 0.0
      %v1307 = vmax.f32 %v1243, 0.0
      %v1308 = vmax.f32 %v1244, 0.0
      %v1309 = vmax.f32 %v1245, 0.0
      %v1310 = vmax.f32 %v1246, 0.0
      %v1311 = vmax.f32 %v1247, 0.0
      %v1312 = vmax.f32 %v1248, 0.0
      %v1313 = vmax.f32 %v1249, 0.0
      %v1314 = vmax.f32 %v1250, 0.0
      %v1315 = vmax.f32 %v1251, 0.0
      %v1316 = vmax.f32 %v1252, 0.0
      %v1317 = vmax.f32 %v1253, 0.0
      %v1318 = vmax.f32 %v1254, 0.0
      %v1319 = vmax.f32 %v1255, 0.0
      %v1320 = vmax.f32 %v1256, 0.0
      %v1321 = vmax.f32 %v1257, 0.0
      %v1322 = vmax.f32 %v1258, 0.0
      %v1323 = vmax.f32 %v1259, 0.0
      %v1324 = vmax.f32 %v1260, 0.0
      %v1325 = vmax.f32 %v1261, 0.0
      %v1326 = vmax.f32 %v1262, 0.0
      %v1327 = vmax.f32 %v1263, 0.0
      %v1328 = vmax.f32 %v1264, 0.0
      %v1329 = vmax.f32 %v1265, 0.0
      %v1330 = vmax.f32 %v1266, 0.0
      %v1331 = vmax.f32 %v1267, 0.0
      %v1332 = vmax.f32 %v1268, 0.0
      %v1333 = vmax.f32 %v1269, 0.0
      %v1334 = vmax.f32 %v1270, 0.0
      %v1335 = vmax.f32 %v1271, 0.0
      %v1336 = vmax.f32 %v1272, 0.0
      %v1337 = vmax.f32 %v1273, 0.0
      %v1338 = vmax.f32 %v1274, 0.0
      %v1339 = vmax.f32 %v1275, 0.0
      %v1340 = vmax.f32 %v1276, 0.0
      %v1341 = vmax.f32 %v1277, 0.0
      %v1342 = vmax.f32 %v1278, 0.0
      %v1343 = vmax.f32 %v1279, 0.0
      %v1344 = vmax.f32 %v1280, 0.0
      %v1345 = vmax.f32 %v1281, 0.0
      %v1346 = vmax.f32 %v1282, 0.0
      %v1347 = vmax.f32 %v1283, 0.0
      %v1348 = vmax.f32 %v1284, 0.0
      %v1349 = vmax.f32 %v1285, 0.0
      %v1350 = vmax.f32 %v1286, 0.0
      %v1351 = vmax.f32 %v1287, 0.0
      %v1352 = vmax.f32 %v1288, 0.0
      %v1353 = vmax.f32 %v1289, 0.0
      %v1354 = vmax.f32 %v1290, 0.0
      %v1355 = vmul.f32 %v743, %v1291
      %v1356 = vmul.f32 %v744, %v1292
      %v1357 = vmul.f32 %v745, %v1293
      %v1358 = vmul.f32 %v746, %v1294
      %v1359 = vmul.f32 %v747, %v1295
      %v1360 = vmul.f32 %v748, %v1296
      %v1361 = vmul.f32 %v749, %v1297
      %v1362 = vmul.f32 %v750, %v1298
      %v1363 = vmul.f32 %v751, %v1299
      %v1364 = vmul.f32 %v752, %v1300
      %v1365 = vmul.f32 %v753, %v1301
      %v1366 = vmul.f32 %v754, %v1302
      %v1367 = vmul.f32 %v755, %v1303
      %v1368 = vmul.f32 %v756, %v1304
      %v1369 = vmul.f32 %v757, %v1305
      %v1370 = vmul.f32 %v758, %v1306
      %v1371 = vmul.f32 %v759, %v1307
      %v1372 = vmul.f32 %v760, %v1308
      %v1373 = vmul.f32 %v761, %v1309
      %v1374 = vmul.f32 %v762, %v1310
      %v1375 = vmul.f32 %v763, %v1311
      %v1376 = vmul.f32 %v764, %v1312
      %v1377 = vmul.f32 %v765, %v1313
      %v1378 = vmul.f32 %v766, %v1314
      %v1379 = vmul.f32 %v767, %v1315
      %v1380 = vmul.f32 %v768, %v1316
      %v1381 = vmul.f32 %v769, %v1317
      %v1382 = vmul.f32 %v770, %v1318
      %v1383 = vmul.f32 %v771, %v1319
      %v1384 = vmul.f32 %v772, %v1320
      %v1385 = vmul.f32 %v773, %v1321
      %v1386 = vmul.f32 %v774, %v1322
      %v1387 = vmul.f32 %v775, %v1323
      %v1388 = vmul.f32 %v776, %v1324
      %v1389 = vmul.f32 %v777, %v1325
      %v1390 = vmul.f32 %v778, %v1326
      %v1391 = vmul.f32 %v779, %v1327
      %v1392 = vmul.f32 %v780, %v1328
      %v1393 = vmul.f32 %v781, %v1329
      %v1394 = vmul.f32 %v782, %v1330
      %v1395 = vmul.f32 %v783, %v1331
      %v1396 = vmul.f32 %v784, %v1332
      %v1397 = vmul.f32 %v785, %v1333
      %v1398 = vmul.f32 %v786, %v1334
      %v1399 = vmul.f32 %v787, %v1335
      %v1400 = vmul.f32 %v788, %v1336
      %v1401 = vmul.f32 %v789, %v1337
      %v1402 = vmul.f32 %v790, %v1338
      %v1403 = vmul.f32 %v791, %v1339
      %v1404 = vmul.f32 %v792, %v1340
      %v1405 = vmul.f32 %v793, %v1341
      %v1406 = vmul.f32 %v794, %v1342
      %v1407 = vmul.f32 %v795, %v1343
      %v1408 = vmul.f32 %v796, %v1344
      %v1409 = vmul.f32 %v797, %v1345
      %v1410 = vmul.f32 %v798, %v1346
      %v1411 = vmul.f32 %v799, %v1347
      %v1412 = vmul.f32 %v800, %v1348
      %v1413 = vmul.f32 %v801, %v1349
      %v1414 = vmul.f32 %v802, %v1350
      %v1415 = vmul.f32 %v803, %v1351
      %v1416 = vmul.f32 %v804, %v1352
      %v1417 = vmul.f32 %v805, %v1353
      %v1418 = vmul.f32 %v806, %v1354
      %1419 = vrot.lane.b32.xlu0 %v179, 2
      %v1420 = vpop.permute.xlu0 %1419
      %1421 = vrot.lane.b32.xlu0 %v180, 2
      %v1422 = vpop.permute.xlu0 %1421
      %1423 = vrot.lane.b32.xlu0 %v181, 2
      %v1424 = vpop.permute.xlu0 %1423
      %1425 = vrot.lane.b32.xlu0 %v182, 2
      %v1426 = vpop.permute.xlu0 %1425
      %1427 = vrot.lane.b32.xlu0 %v183, 2
      %v1428 = vpop.permute.xlu0 %1427
      %1429 = vrot.lane.b32.xlu0 %v184, 2
      %v1430 = vpop.permute.xlu0 %1429
      %1431 = vrot.lane.b32.xlu0 %v185, 2
      %v1432 = vpop.permute.xlu0 %1431
      %1433 = vrot.lane.b32.xlu0 %v186, 2
      %v1434 = vpop.permute.xlu0 %1433
      %1435 = vrot.lane.b32.xlu0 %v187, 2
      %v1436 = vpop.permute.xlu0 %1435
      %1437 = vrot.lane.b32.xlu0 %v188, 2
      %v1438 = vpop.permute.xlu0 %1437
      %1439 = vrot.lane.b32.xlu0 %v189, 2
      %v1440 = vpop.permute.xlu0 %1439
      %1441 = vrot.lane.b32.xlu0 %v190, 2
      %v1442 = vpop.permute.xlu0 %1441
      %1443 = vrot.lane.b32.xlu0 %v191, 2
      %v1444 = vpop.permute.xlu0 %1443
      %1445 = vrot.lane.b32.xlu0 %v192, 2
      %v1446 = vpop.permute.xlu0 %1445
      %1447 = vrot.lane.b32.xlu0 %v193, 2
      %v1448 = vpop.permute.xlu0 %1447
      %1449 = vrot.lane.b32.xlu0 %v194, 2
      %v1450 = vpop.permute.xlu0 %1449
      %1451 = vrot.lane.b32.xlu0 %v211, 2
      %v1452 = vpop.permute.xlu0 %1451
      %1453 = vrot.lane.b32.xlu0 %v212, 2
      %v1454 = vpop.permute.xlu0 %1453
      %1455 = vrot.lane.b32.xlu0 %v213, 2
      %v1456 = vpop.permute.xlu0 %1455
      %1457 = vrot.lane.b32.xlu0 %v214, 2
      %v1458 = vpop.permute.xlu0 %1457
      %1459 = vrot.lane.b32.xlu0 %v215, 2
      %v1460 = vpop.permute.xlu0 %1459
      %1461 = vrot.lane.b32.xlu0 %v216, 2
      %v1462 = vpop.permute.xlu0 %1461
      %1463 = vrot.lane.b32.xlu0 %v217, 2
      %v1464 = vpop.permute.xlu0 %1463
      %1465 = vrot.lane.b32.xlu0 %v218, 2
      %v1466 = vpop.permute.xlu0 %1465
      %1467 = vrot.lane.b32.xlu0 %v219, 2
      %v1468 = vpop.permute.xlu0 %1467
      %1469 = vrot.lane.b32.xlu0 %v220, 2
      %v1470 = vpop.permute.xlu0 %1469
      %1471 = vrot.lane.b32.xlu0 %v221, 2
      %v1472 = vpop.permute.xlu0 %1471
      %1473 = vrot.lane.b32.xlu0 %v222, 2
      %v1474 = vpop.permute.xlu0 %1473
      %1475 = vrot.lane.b32.xlu0 %v223, 2
      %v1476 = vpop.permute.xlu0 %1475
      %1477 = vrot.lane.b32.xlu0 %v224, 2
      %v1478 = vpop.permute.xlu0 %1477
      %1479 = vrot.lane.b32.xlu0 %v225, 2
      %v1480 = vpop.permute.xlu0 %1479
      %1481 = vrot.lane.b32.xlu0 %v226, 2
      %v1482 = vpop.permute.xlu0 %1481
      %v1515 = vsub.f32 %v179, %v1420
      %v1516 = vsub.f32 %v180, %v1422
      %v1517 = vsub.f32 %v181, %v1424
      %v1518 = vsub.f32 %v182, %v1426
      %v1519 = vsub.f32 %v183, %v1428
      %v1520 = vsub.f32 %v184, %v1430
      %v1521 = vsub.f32 %v185, %v1432
      %v1522 = vsub.f32 %v186, %v1434
      %v1523 = vsub.f32 %v187, %v1436
      %v1524 = vsub.f32 %v188, %v1438
      %v1525 = vsub.f32 %v189, %v1440
      %v1526 = vsub.f32 %v190, %v1442
      %v1527 = vsub.f32 %v191, %v1444
      %v1528 = vsub.f32 %v192, %v1446
      %v1529 = vsub.f32 %v193, %v1448
      %v1530 = vsub.f32 %v194, %v1450
      %v1531 = vsub.f32 %v211, %v1452
      %v1532 = vsub.f32 %v212, %v1454
      %v1533 = vsub.f32 %v213, %v1456
      %v1534 = vsub.f32 %v214, %v1458
      %v1535 = vsub.f32 %v215, %v1460
      %v1536 = vsub.f32 %v216, %v1462
      %v1537 = vsub.f32 %v217, %v1464
      %v1538 = vsub.f32 %v218, %v1466
      %v1539 = vsub.f32 %v219, %v1468
      %v1540 = vsub.f32 %v220, %v1470
      %v1541 = vsub.f32 %v221, %v1472
      %v1542 = vsub.f32 %v222, %v1474
      %v1543 = vsub.f32 %v223, %v1476
      %v1544 = vsub.f32 %v224, %v1478
      %v1545 = vsub.f32 %v225, %v1480
      %v1546 = vsub.f32 %v226, %v1482
      %1579 = vrot.lane.b32.xlu0 %v1515, 127
      %v1580 = vpop.permute.xlu0 %1579
      %1581 = vrot.lane.b32.xlu0 %v1516, 127
      %v1582 = vpop.permute.xlu0 %1581
      %1583 = vrot.lane.b32.xlu0 %v1517, 127
      %v1584 = vpop.permute.xlu0 %1583
      %1585 = vrot.lane.b32.xlu0 %v1518, 127
      %v1586 = vpop.permute.xlu0 %1585
      %1587 = vrot.lane.b32.xlu0 %v1519, 127
      %v1588 = vpop.permute.xlu0 %1587
      %1589 = vrot.lane.b32.xlu0 %v1520, 127
      %v1590 = vpop.permute.xlu0 %1589
      %1591 = vrot.lane.b32.xlu0 %v1521, 127
      %v1592 = vpop.permute.xlu0 %1591
      %1593 = vrot.lane.b32.xlu0 %v1522, 127
      %v1594 = vpop.permute.xlu0 %1593
      %1595 = vrot.lane.b32.xlu0 %v1523, 127
      %v1596 = vpop.permute.xlu0 %1595
      %1597 = vrot.lane.b32.xlu0 %v1524, 127
      %v1598 = vpop.permute.xlu0 %1597
      %1599 = vrot.lane.b32.xlu0 %v1525, 127
      %v1600 = vpop.permute.xlu0 %1599
      %1601 = vrot.lane.b32.xlu0 %v1526, 127
      %v1602 = vpop.permute.xlu0 %1601
      %1603 = vrot.lane.b32.xlu0 %v1527, 127
      %v1604 = vpop.permute.xlu0 %1603
      %1605 = vrot.lane.b32.xlu0 %v1528, 127
      %v1606 = vpop.permute.xlu0 %1605
      %1607 = vrot.lane.b32.xlu0 %v1529, 127
      %v1608 = vpop.permute.xlu0 %1607
      %1609 = vrot.lane.b32.xlu0 %v1530, 127
      %v1610 = vpop.permute.xlu0 %1609
      %1611 = vrot.lane.b32.xlu0 %v1531, 127
      %v1612 = vpop.permute.xlu0 %1611
      %1613 = vrot.lane.b32.xlu0 %v1532, 127
      %v1614 = vpop.permute.xlu0 %1613
      %1615 = vrot.lane.b32.xlu0 %v1533, 127
      %v1616 = vpop.permute.xlu0 %1615
      %1617 = vrot.lane.b32.xlu0 %v1534, 127
      %v1618 = vpop.permute.xlu0 %1617
      %1619 = vrot.lane.b32.xlu0 %v1535, 127
      %v1620 = vpop.permute.xlu0 %1619
      %1621 = vrot.lane.b32.xlu0 %v1536, 127
      %v1622 = vpop.permute.xlu0 %1621
      %1623 = vrot.lane.b32.xlu0 %v1537, 127
      %v1624 = vpop.permute.xlu0 %1623
      %1625 = vrot.lane.b32.xlu0 %v1538, 127
      %v1626 = vpop.permute.xlu0 %1625
      %1627 = vrot.lane.b32.xlu0 %v1539, 127
      %v1628 = vpop.permute.xlu0 %1627
      %1629 = vrot.lane.b32.xlu0 %v1540, 127
      %v1630 = vpop.permute.xlu0 %1629
      %1631 = vrot.lane.b32.xlu0 %v1541, 127
      %v1632 = vpop.permute.xlu0 %1631
      %1633 = vrot.lane.b32.xlu0 %v1542, 127
      %v1634 = vpop.permute.xlu0 %1633
      %1635 = vrot.lane.b32.xlu0 %v1543, 127
      %v1636 = vpop.permute.xlu0 %1635
      %1637 = vrot.lane.b32.xlu0 %v1544, 127
      %v1638 = vpop.permute.xlu0 %1637
      %1639 = vrot.lane.b32.xlu0 %v1545, 127
      %v1640 = vpop.permute.xlu0 %1639
      %1641 = vrot.lane.b32.xlu0 %v1546, 127
      %v1642 = vpop.permute.xlu0 %1641
      %v1675 = vmul.f32 %v1515, %v1580
      %v1676 = vmul.f32 %v1516, %v1582
      %v1677 = vmul.f32 %v1517, %v1584
      %v1678 = vmul.f32 %v1518, %v1586
      %v1679 = vmul.f32 %v1519, %v1588
      %v1680 = vmul.f32 %v1520, %v1590
      %v1681 = vmul.f32 %v1521, %v1592
      %v1682 = vmul.f32 %v1522, %v1594
      %v1683 = vmul.f32 %v1523, %v1596
      %v1684 = vmul.f32 %v1524, %v1598
      %v1685 = vmul.f32 %v1525, %v1600
      %v1686 = vmul.f32 %v1526, %v1602
      %v1687 = vmul.f32 %v1527, %v1604
      %v1688 = vmul.f32 %v1528, %v1606
      %v1689 = vmul.f32 %v1529, %v1608
      %v1690 = vmul.f32 %v1530, %v1610
      %v1691 = vmul.f32 %v1531, %v1612
      %v1692 = vmul.f32 %v1532, %v1614
      %v1693 = vmul.f32 %v1533, %v1616
      %v1694 = vmul.f32 %v1534, %v1618
      %v1695 = vmul.f32 %v1535, %v1620
      %v1696 = vmul.f32 %v1536, %v1622
      %v1697 = vmul.f32 %v1537, %v1624
      %v1698 = vmul.f32 %v1538, %v1626
      %v1699 = vmul.f32 %v1539, %v1628
      %v1700 = vmul.f32 %v1540, %v1630
      %v1701 = vmul.f32 %v1541, %v1632
      %v1702 = vmul.f32 %v1542, %v1634
      %v1703 = vmul.f32 %v1543, %v1636
      %v1704 = vmul.f32 %v1544, %v1638
      %v1705 = vmul.f32 %v1545, %v1640
      %v1706 = vmul.f32 %v1546, %v1642
      %v1707 = vrot.slane %v159, 6
      %v1709 = vsub.f32 %v159, %v1707
      %v1711 = vrot.slane %v1709, 5
      %v1712 = vrot.slane %v1711, 4
      %v1714 = vmul.f32 %v1709, %v1712
      %1716 = vset.pattern.permute.xlu0 2
      %1717 = vperm.xlu0 %1716, %v1675
      %v1718 = vpop.permute.xlu0 %1717
      %1721 = vset.pattern.permute.xlu0 2
      %1722 = vperm.xlu0 %1721, %v1676
      %v1723 = vpop.permute.xlu0 %1722
      %1726 = vset.pattern.permute.xlu0 2
      %1727 = vperm.xlu0 %1726, %v1677
      %v1728 = vpop.permute.xlu0 %1727
      %1731 = vset.pattern.permute.xlu0 2
      %1732 = vperm.xlu0 %1731, %v1678
      %v1733 = vpop.permute.xlu0 %1732
      %1736 = vset.pattern.permute.xlu0 2
      %1737 = vperm.xlu0 %1736, %v1679
      %v1738 = vpop.permute.xlu0 %1737
      %1741 = vset.pattern.permute.xlu0 2
      %1742 = vperm.xlu0 %1741, %v1680
      %v1743 = vpop.permute.xlu0 %1742
      %1746 = vset.pattern.permute.xlu0 2
      %1747 = vperm.xlu0 %1746, %v1681
      %v1748 = vpop.permute.xlu0 %1747
      %1751 = vset.pattern.permute.xlu0 2
      %1752 = vperm.xlu0 %1751, %v1682
      %v1753 = vpop.permute.xlu0 %1752
      %1756 = vset.pattern.permute.xlu0 2
      %1757 = vperm.xlu0 %1756, %v1683
      %v1758 = vpop.permute.xlu0 %1757
      %1761 = vset.pattern.permute.xlu0 2
      %1762 = vperm.xlu0 %1761, %v1684
      %v1763 = vpop.permute.xlu0 %1762
      %1766 = vset.pattern.permute.xlu0 2
      %1767 = vperm.xlu0 %1766, %v1685
      %v1768 = vpop.permute.xlu0 %1767
      %1771 = vset.pattern.permute.xlu0 2
      %1772 = vperm.xlu0 %1771, %v1686
      %v1773 = vpop.permute.xlu0 %1772
      %1776 = vset.pattern.permute.xlu0 2
      %1777 = vperm.xlu0 %1776, %v1687
      %v1778 = vpop.permute.xlu0 %1777
      %1781 = vset.pattern.permute.xlu0 2
      %1782 = vperm.xlu0 %1781, %v1688
      %v1783 = vpop.permute.xlu0 %1782
      %1786 = vset.pattern.permute.xlu0 2
      %1787 = vperm.xlu0 %1786, %v1689
      %v1788 = vpop.permute.xlu0 %1787
      %1791 = vset.pattern.permute.xlu0 2
      %1792 = vperm.xlu0 %1791, %v1690
      %v1793 = vpop.permute.xlu0 %1792
      %1796 = vset.pattern.permute.xlu0 2
      %1797 = vperm.xlu0 %1796, %v1691
      %v1798 = vpop.permute.xlu0 %1797
      %1801 = vset.pattern.permute.xlu0 2
      %1802 = vperm.xlu0 %1801, %v1692
      %v1803 = vpop.permute.xlu0 %1802
      %1806 = vset.pattern.permute.xlu0 2
      %1807 = vperm.xlu0 %1806, %v1693
      %v1808 = vpop.permute.xlu0 %1807
      %1811 = vset.pattern.permute.xlu0 2
      %1812 = vperm.xlu0 %1811, %v1694
      %v1813 = vpop.permute.xlu0 %1812
      %1816 = vset.pattern.permute.xlu0 2
      %1817 = vperm.xlu0 %1816, %v1695
      %v1818 = vpop.permute.xlu0 %1817
      %1821 = vset.pattern.permute.xlu0 2
      %1822 = vperm.xlu0 %1821, %v1696
      %v1823 = vpop.permute.xlu0 %1822
      %1826 = vset.pattern.permute.xlu0 2
      %1827 = vperm.xlu0 %1826, %v1697
      %v1828 = vpop.permute.xlu0 %1827
      %1831 = vset.pattern.permute.xlu0 2
      %1832 = vperm.xlu0 %1831, %v1698
      %v1833 = vpop.permute.xlu0 %1832
      %1836 = vset.pattern.permute.xlu0 2
      %1837 = vperm.xlu0 %1836, %v1699
      %v1838 = vpop.permute.xlu0 %1837
      %1841 = vset.pattern.permute.xlu0 2
      %1842 = vperm.xlu0 %1841, %v1700
      %v1843 = vpop.permute.xlu0 %1842
      %1846 = vset.pattern.permute.xlu0 2
      %1847 = vperm.xlu0 %1846, %v1701
      %v1848 = vpop.permute.xlu0 %1847
      %1851 = vset.pattern.permute.xlu0 2
      %1852 = vperm.xlu0 %1851, %v1702
      %v1853 = vpop.permute.xlu0 %1852
      %1856 = vset.pattern.permute.xlu0 2
      %1857 = vperm.xlu0 %1856, %v1703
      %v1858 = vpop.permute.xlu0 %1857
      %1861 = vset.pattern.permute.xlu0 2
      %1862 = vperm.xlu0 %1861, %v1704
      %v1863 = vpop.permute.xlu0 %1862
      %1866 = vset.pattern.permute.xlu0 2
      %1867 = vperm.xlu0 %1866, %v1705
      %v1868 = vpop.permute.xlu0 %1867
      %1871 = vset.pattern.permute.xlu0 2
      %1872 = vperm.xlu0 %1871, %v1706
      %v1873 = vpop.permute.xlu0 %1872
      %v1876 = vlaneseq
      %v1877 = vshrl.u32 %v1876, 7
      %v1878 = vsub.s32 2, %v1877
      %v1879 = vrot.slane %v1714, %v1878
      %v1880 = vlaneseq
      %v1881 = vshrl.u32 %v1880, 7
      %v1882 = vsub.s32 6, %v1881
      %v1883 = vrot.slane %v1714, %v1882
      %v1886 = vlaneseq
      %v1887 = vshrl.u32 %v1886, 7
      %v1888 = vsub.s32 2, %v1887
      %v1889 = vrot.slane %v1879, %v1888
      %v1890 = vlaneseq
      %v1891 = vshrl.u32 %v1890, 7
      %v1892 = vsub.s32 2, %v1891
      %v1893 = vrot.slane %v1883, %v1892
      %v1894 = vadd.f32 %v1718, %v1889
      %v1895 = vadd.f32 %v1718, %v1893
      %v1896 = vadd.f32 %v1723, %v1889
      %v1897 = vadd.f32 %v1723, %v1893
      %v1898 = vadd.f32 %v1728, %v1889
      %v1899 = vadd.f32 %v1728, %v1893
      %v1900 = vadd.f32 %v1733, %v1889
      %v1901 = vadd.f32 %v1733, %v1893
      %v1902 = vadd.f32 %v1738, %v1889
      %v1903 = vadd.f32 %v1738, %v1893
      %v1904 = vadd.f32 %v1743, %v1889
      %v1905 = vadd.f32 %v1743, %v1893
      %v1906 = vadd.f32 %v1748, %v1889
      %v1907 = vadd.f32 %v1748, %v1893
      %v1908 = vadd.f32 %v1753, %v1889
      %v1909 = vadd.f32 %v1753, %v1893
      %v1910 = vadd.f32 %v1758, %v1889
      %v1911 = vadd.f32 %v1758, %v1893
      %v1912 = vadd.f32 %v1763, %v1889
      %v1913 = vadd.f32 %v1763, %v1893
      %v1914 = vadd.f32 %v1768, %v1889
      %v1915 = vadd.f32 %v1768, %v1893
      %v1916 = vadd.f32 %v1773, %v1889
      %v1917 = vadd.f32 %v1773, %v1893
      %v1918 = vadd.f32 %v1778, %v1889
      %v1919 = vadd.f32 %v1778, %v1893
      %v1920 = vadd.f32 %v1783, %v1889
      %v1921 = vadd.f32 %v1783, %v1893
      %v1922 = vadd.f32 %v1788, %v1889
      %v1923 = vadd.f32 %v1788, %v1893
      %v1924 = vadd.f32 %v1793, %v1889
      %v1925 = vadd.f32 %v1793, %v1893
      %v1926 = vadd.f32 %v1798, %v1889
      %v1927 = vadd.f32 %v1798, %v1893
      %v1928 = vadd.f32 %v1803, %v1889
      %v1929 = vadd.f32 %v1803, %v1893
      %v1930 = vadd.f32 %v1808, %v1889
      %v1931 = vadd.f32 %v1808, %v1893
      %v1932 = vadd.f32 %v1813, %v1889
      %v1933 = vadd.f32 %v1813, %v1893
      %v1934 = vadd.f32 %v1818, %v1889
      %v1935 = vadd.f32 %v1818, %v1893
      %v1936 = vadd.f32 %v1823, %v1889
      %v1937 = vadd.f32 %v1823, %v1893
      %v1938 = vadd.f32 %v1828, %v1889
      %v1939 = vadd.f32 %v1828, %v1893
      %v1940 = vadd.f32 %v1833, %v1889
      %v1941 = vadd.f32 %v1833, %v1893
      %v1942 = vadd.f32 %v1838, %v1889
      %v1943 = vadd.f32 %v1838, %v1893
      %v1944 = vadd.f32 %v1843, %v1889
      %v1945 = vadd.f32 %v1843, %v1893
      %v1946 = vadd.f32 %v1848, %v1889
      %v1947 = vadd.f32 %v1848, %v1893
      %v1948 = vadd.f32 %v1853, %v1889
      %v1949 = vadd.f32 %v1853, %v1893
      %v1950 = vadd.f32 %v1858, %v1889
      %v1951 = vadd.f32 %v1858, %v1893
      %v1952 = vadd.f32 %v1863, %v1889
      %v1953 = vadd.f32 %v1863, %v1893
      %v1954 = vadd.f32 %v1868, %v1889
      %v1955 = vadd.f32 %v1868, %v1893
      %v1956 = vadd.f32 %v1873, %v1889
      %v1957 = vadd.f32 %v1873, %v1893
      %v1958 = vsub.f32 %v1894, %v1355
      %v1959 = vsub.f32 %v1895, %v1356
      %v1960 = vsub.f32 %v1896, %v1357
      %v1961 = vsub.f32 %v1897, %v1358
      %v1962 = vsub.f32 %v1898, %v1359
      %v1963 = vsub.f32 %v1899, %v1360
      %v1964 = vsub.f32 %v1900, %v1361
      %v1965 = vsub.f32 %v1901, %v1362
      %v1966 = vsub.f32 %v1902, %v1363
      %v1967 = vsub.f32 %v1903, %v1364
      %v1968 = vsub.f32 %v1904, %v1365
      %v1969 = vsub.f32 %v1905, %v1366
      %v1970 = vsub.f32 %v1906, %v1367
      %v1971 = vsub.f32 %v1907, %v1368
      %v1972 = vsub.f32 %v1908, %v1369
      %v1973 = vsub.f32 %v1909, %v1370
      %v1974 = vsub.f32 %v1910, %v1371
      %v1975 = vsub.f32 %v1911, %v1372
      %v1976 = vsub.f32 %v1912, %v1373
      %v1977 = vsub.f32 %v1913, %v1374
      %v1978 = vsub.f32 %v1914, %v1375
      %v1979 = vsub.f32 %v1915, %v1376
      %v1980 = vsub.f32 %v1916, %v1377
      %v1981 = vsub.f32 %v1917, %v1378
      %v1982 = vsub.f32 %v1918, %v1379
      %v1983 = vsub.f32 %v1919, %v1380
      %v1984 = vsub.f32 %v1920, %v1381
      %v1985 = vsub.f32 %v1921, %v1382
      %v1986 = vsub.f32 %v1922, %v1383
      %v1987 = vsub.f32 %v1923, %v1384
      %v1988 = vsub.f32 %v1924, %v1385
      %v1989 = vsub.f32 %v1925, %v1386
      %v1990 = vsub.f32 %v1926, %v1387
      %v1991 = vsub.f32 %v1927, %v1388
      %v1992 = vsub.f32 %v1928, %v1389
      %v1993 = vsub.f32 %v1929, %v1390
      %v1994 = vsub.f32 %v1930, %v1391
      %v1995 = vsub.f32 %v1931, %v1392
      %v1996 = vsub.f32 %v1932, %v1393
      %v1997 = vsub.f32 %v1933, %v1394
      %v1998 = vsub.f32 %v1934, %v1395
      %v1999 = vsub.f32 %v1935, %v1396
      %v2000 = vsub.f32 %v1936, %v1397
      %v2001 = vsub.f32 %v1937, %v1398
      %v2002 = vsub.f32 %v1938, %v1399
      %v2003 = vsub.f32 %v1939, %v1400
      %v2004 = vsub.f32 %v1940, %v1401
      %v2005 = vsub.f32 %v1941, %v1402
      %v2006 = vsub.f32 %v1942, %v1403
      %v2007 = vsub.f32 %v1943, %v1404
      %v2008 = vsub.f32 %v1944, %v1405
      %v2009 = vsub.f32 %v1945, %v1406
      %v2010 = vsub.f32 %v1946, %v1407
      %v2011 = vsub.f32 %v1947, %v1408
      %v2012 = vsub.f32 %v1948, %v1409
      %v2013 = vsub.f32 %v1949, %v1410
      %v2014 = vsub.f32 %v1950, %v1411
      %v2015 = vsub.f32 %v1951, %v1412
      %v2016 = vsub.f32 %v1952, %v1413
      %v2017 = vsub.f32 %v1953, %v1414
      %v2018 = vsub.f32 %v1954, %v1415
      %v2019 = vsub.f32 %v1955, %v1416
      %v2020 = vsub.f32 %v1956, %v1417
      %v2021 = vsub.f32 %v1957, %v1418
      %v2022 = vlaneseq
      %v2023 = vshrl.u32 %v2022, 7
      %v2024 = vadd.s32 %v2023, 8
      %v2025 = vadd.s32 %v2023, 16
      %v2026 = vadd.s32 %v2023, 24
      %v2027 = vadd.s32 %v2023, 32
      %v2028 = vadd.s32 %v2023, 40
      %v2029 = vadd.s32 %v2023, 48
      %v2030 = vadd.s32 %v2023, 56
      %v2031 = vadd.s32 %v2023, 64
      %v2032 = vadd.s32 %v2023, 72
      %v2033 = vadd.s32 %v2023, 80
      %v2034 = vadd.s32 %v2023, 88
      %v2035 = vadd.s32 %v2023, 96
      %v2036 = vadd.s32 %v2023, 104
      %v2037 = vadd.s32 %v2023, 112
      %v2038 = vadd.s32 %v2023, 120
      %v2039 = vadd.s32 %v2023, 128
      %v2040 = vadd.s32 %v2023, 136
      %v2041 = vadd.s32 %v2023, 144
      %v2042 = vadd.s32 %v2023, 152
      %v2043 = vadd.s32 %v2023, 160
      %v2044 = vadd.s32 %v2023, 168
      %v2045 = vadd.s32 %v2023, 176
      %v2046 = vadd.s32 %v2023, 184
      %v2047 = vadd.s32 %v2023, 192
      %v2048 = vadd.s32 %v2023, 200
      %v2049 = vadd.s32 %v2023, 208
      %v2050 = vadd.s32 %v2023, 216
      %v2051 = vadd.s32 %v2023, 224
      %v2052 = vadd.s32 %v2023, 232
      %v2053 = vadd.s32 %v2023, 240
      %v2054 = vadd.s32 %v2023, 248
      %v2055 = vlaneseq
      %v2056 = vand.u32 %v2055, 127
      %v2057 = vadd.s32 %v2056, 128
      %v2058 = vmul.f32 %v1958, 0.45
      %v2059 = vmul.f32 %v1959, 0.45
      %v2060 = vmul.f32 %v1960, 0.45
      %v2061 = vmul.f32 %v1961, 0.45
      %v2062 = vmul.f32 %v1962, 0.45
      %v2063 = vmul.f32 %v1963, 0.45
      %v2064 = vmul.f32 %v1964, 0.45
      %v2065 = vmul.f32 %v1965, 0.45
      %v2066 = vmul.f32 %v1966, 0.45
      %v2067 = vmul.f32 %v1967, 0.45
      %v2068 = vmul.f32 %v1968, 0.45
      %v2069 = vmul.f32 %v1969, 0.45
      %v2070 = vmul.f32 %v1970, 0.45
      %v2071 = vmul.f32 %v1971, 0.45
      %v2072 = vmul.f32 %v1972, 0.45
      %v2073 = vmul.f32 %v1973, 0.45
      %v2074 = vmul.f32 %v1974, 0.45
      %v2075 = vmul.f32 %v1975, 0.45
      %v2076 = vmul.f32 %v1976, 0.45
      %v2077 = vmul.f32 %v1977, 0.45
      %v2078 = vmul.f32 %v1978, 0.45
      %v2079 = vmul.f32 %v1979, 0.45
      %v2080 = vmul.f32 %v1980, 0.45
      %v2081 = vmul.f32 %v1981, 0.45
      %v2082 = vmul.f32 %v1982, 0.45
      %v2083 = vmul.f32 %v1983, 0.45
      %v2084 = vmul.f32 %v1984, 0.45
      %v2085 = vmul.f32 %v1985, 0.45
      %v2086 = vmul.f32 %v1986, 0.45
      %v2087 = vmul.f32 %v1987, 0.45
      %v2088 = vmul.f32 %v1988, 0.45
      %v2089 = vmul.f32 %v1989, 0.45
      %v2090 = vmul.f32 %v1990, 0.45
      %v2091 = vmul.f32 %v1991, 0.45
      %v2092 = vmul.f32 %v1992, 0.45
      %v2093 = vmul.f32 %v1993, 0.45
      %v2094 = vmul.f32 %v1994, 0.45
      %v2095 = vmul.f32 %v1995, 0.45
      %v2096 = vmul.f32 %v1996, 0.45
      %v2097 = vmul.f32 %v1997, 0.45
      %v2098 = vmul.f32 %v1998, 0.45
      %v2099 = vmul.f32 %v1999, 0.45
      %v2100 = vmul.f32 %v2000, 0.45
      %v2101 = vmul.f32 %v2001, 0.45
      %v2102 = vmul.f32 %v2002, 0.45
      %v2103 = vmul.f32 %v2003, 0.45
      %v2104 = vmul.f32 %v2004, 0.45
      %v2105 = vmul.f32 %v2005, 0.45
      %v2106 = vmul.f32 %v2006, 0.45
      %v2107 = vmul.f32 %v2007, 0.45
      %v2108 = vmul.f32 %v2008, 0.45
      %v2109 = vmul.f32 %v2009, 0.45
      %v2110 = vmul.f32 %v2010, 0.45
      %v2111 = vmul.f32 %v2011, 0.45
      %v2112 = vmul.f32 %v2012, 0.45
      %v2113 = vmul.f32 %v2013, 0.45
      %v2114 = vmul.f32 %v2014, 0.45
      %v2115 = vmul.f32 %v2015, 0.45
      %v2116 = vmul.f32 %v2016, 0.45
      %v2117 = vmul.f32 %v2017, 0.45
      %v2118 = vmul.f32 %v2018, 0.45
      %v2119 = vmul.f32 %v2019, 0.45
      %v2120 = vmul.f32 %v2020, 0.45
      %v2121 = vmul.f32 %v2021, 0.45
      %vm2122 = vcmp.gt.f32.partialorder %v1355, %v2058
      %vm2123 = vcmp.gt.f32.partialorder %v1356, %v2059
      %vm2124 = vcmp.gt.f32.partialorder %v1357, %v2060
      %vm2125 = vcmp.gt.f32.partialorder %v1358, %v2061
      %vm2126 = vcmp.gt.f32.partialorder %v1359, %v2062
      %vm2127 = vcmp.gt.f32.partialorder %v1360, %v2063
      %vm2128 = vcmp.gt.f32.partialorder %v1361, %v2064
      %vm2129 = vcmp.gt.f32.partialorder %v1362, %v2065
      %vm2130 = vcmp.gt.f32.partialorder %v1363, %v2066
      %vm2131 = vcmp.gt.f32.partialorder %v1364, %v2067
      %vm2132 = vcmp.gt.f32.partialorder %v1365, %v2068
      %vm2133 = vcmp.gt.f32.partialorder %v1366, %v2069
      %vm2134 = vcmp.gt.f32.partialorder %v1367, %v2070
      %vm2135 = vcmp.gt.f32.partialorder %v1368, %v2071
      %vm2136 = vcmp.gt.f32.partialorder %v1369, %v2072
      %vm2137 = vcmp.gt.f32.partialorder %v1370, %v2073
      %vm2138 = vcmp.gt.f32.partialorder %v1371, %v2074
      %vm2139 = vcmp.gt.f32.partialorder %v1372, %v2075
      %vm2140 = vcmp.gt.f32.partialorder %v1373, %v2076
      %vm2141 = vcmp.gt.f32.partialorder %v1374, %v2077
      %vm2142 = vcmp.gt.f32.partialorder %v1375, %v2078
      %vm2143 = vcmp.gt.f32.partialorder %v1376, %v2079
      %vm2144 = vcmp.gt.f32.partialorder %v1377, %v2080
      %vm2145 = vcmp.gt.f32.partialorder %v1378, %v2081
      %vm2146 = vcmp.gt.f32.partialorder %v1379, %v2082
      %vm2147 = vcmp.gt.f32.partialorder %v1380, %v2083
      %vm2148 = vcmp.gt.f32.partialorder %v1381, %v2084
      %vm2149 = vcmp.gt.f32.partialorder %v1382, %v2085
      %vm2150 = vcmp.gt.f32.partialorder %v1383, %v2086
      %vm2151 = vcmp.gt.f32.partialorder %v1384, %v2087
      %vm2152 = vcmp.gt.f32.partialorder %v1385, %v2088
      %vm2153 = vcmp.gt.f32.partialorder %v1386, %v2089
      %vm2154 = vcmp.gt.f32.partialorder %v1387, %v2090
      %vm2155 = vcmp.gt.f32.partialorder %v1388, %v2091
      %vm2156 = vcmp.gt.f32.partialorder %v1389, %v2092
      %vm2157 = vcmp.gt.f32.partialorder %v1390, %v2093
      %vm2158 = vcmp.gt.f32.partialorder %v1391, %v2094
      %vm2159 = vcmp.gt.f32.partialorder %v1392, %v2095
      %vm2160 = vcmp.gt.f32.partialorder %v1393, %v2096
      %vm2161 = vcmp.gt.f32.partialorder %v1394, %v2097
      %vm2162 = vcmp.gt.f32.partialorder %v1395, %v2098
      %vm2163 = vcmp.gt.f32.partialorder %v1396, %v2099
      %vm2164 = vcmp.gt.f32.partialorder %v1397, %v2100
      %vm2165 = vcmp.gt.f32.partialorder %v1398, %v2101
      %vm2166 = vcmp.gt.f32.partialorder %v1399, %v2102
      %vm2167 = vcmp.gt.f32.partialorder %v1400, %v2103
      %vm2168 = vcmp.gt.f32.partialorder %v1401, %v2104
      %vm2169 = vcmp.gt.f32.partialorder %v1402, %v2105
      %vm2170 = vcmp.gt.f32.partialorder %v1403, %v2106
      %vm2171 = vcmp.gt.f32.partialorder %v1404, %v2107
      %vm2172 = vcmp.gt.f32.partialorder %v1405, %v2108
      %vm2173 = vcmp.gt.f32.partialorder %v1406, %v2109
      %vm2174 = vcmp.gt.f32.partialorder %v1407, %v2110
      %vm2175 = vcmp.gt.f32.partialorder %v1408, %v2111
      %vm2176 = vcmp.gt.f32.partialorder %v1409, %v2112
      %vm2177 = vcmp.gt.f32.partialorder %v1410, %v2113
      %vm2178 = vcmp.gt.f32.partialorder %v1411, %v2114
      %vm2179 = vcmp.gt.f32.partialorder %v1412, %v2115
      %vm2180 = vcmp.gt.f32.partialorder %v1413, %v2116
      %vm2181 = vcmp.gt.f32.partialorder %v1414, %v2117
      %vm2182 = vcmp.gt.f32.partialorder %v1415, %v2118
      %vm2183 = vcmp.gt.f32.partialorder %v1416, %v2119
      %vm2184 = vcmp.gt.f32.partialorder %v1417, %v2120
      %vm2185 = vcmp.gt.f32.partialorder %v1418, %v2121
      %vm2186 = vcmp.gt.s32.totalorder %v2056, %v2023
      %vm2187 = vcmp.gt.s32.totalorder %v2057, %v2023
      %vm2188 = vcmp.gt.s32.totalorder %v2056, %v2024
      %vm2189 = vcmp.gt.s32.totalorder %v2057, %v2024
      %vm2190 = vcmp.gt.s32.totalorder %v2056, %v2025
      %vm2191 = vcmp.gt.s32.totalorder %v2057, %v2025
      %vm2192 = vcmp.gt.s32.totalorder %v2056, %v2026
      %vm2193 = vcmp.gt.s32.totalorder %v2057, %v2026
      %vm2194 = vcmp.gt.s32.totalorder %v2056, %v2027
      %vm2195 = vcmp.gt.s32.totalorder %v2057, %v2027
      %vm2196 = vcmp.gt.s32.totalorder %v2056, %v2028
      %vm2197 = vcmp.gt.s32.totalorder %v2057, %v2028
      %vm2198 = vcmp.gt.s32.totalorder %v2056, %v2029
      %vm2199 = vcmp.gt.s32.totalorder %v2057, %v2029
      %vm2200 = vcmp.gt.s32.totalorder %v2056, %v2030
      %vm2201 = vcmp.gt.s32.totalorder %v2057, %v2030
      %vm2202 = vcmp.gt.s32.totalorder %v2056, %v2031
      %vm2203 = vcmp.gt.s32.totalorder %v2057, %v2031
      %vm2204 = vcmp.gt.s32.totalorder %v2056, %v2032
      %vm2205 = vcmp.gt.s32.totalorder %v2057, %v2032
      %vm2206 = vcmp.gt.s32.totalorder %v2056, %v2033
      %vm2207 = vcmp.gt.s32.totalorder %v2057, %v2033
      %vm2208 = vcmp.gt.s32.totalorder %v2056, %v2034
      %vm2209 = vcmp.gt.s32.totalorder %v2057, %v2034
      %vm2210 = vcmp.gt.s32.totalorder %v2056, %v2035
      %vm2211 = vcmp.gt.s32.totalorder %v2057, %v2035
      %vm2212 = vcmp.gt.s32.totalorder %v2056, %v2036
      %vm2213 = vcmp.gt.s32.totalorder %v2057, %v2036
      %vm2214 = vcmp.gt.s32.totalorder %v2056, %v2037
      %vm2215 = vcmp.gt.s32.totalorder %v2057, %v2037
      %vm2216 = vcmp.gt.s32.totalorder %v2056, %v2038
      %vm2217 = vcmp.gt.s32.totalorder %v2057, %v2038
      %vm2218 = vcmp.gt.s32.totalorder %v2056, %v2039
      %vm2219 = vcmp.gt.s32.totalorder %v2057, %v2039
      %vm2220 = vcmp.gt.s32.totalorder %v2056, %v2040
      %vm2221 = vcmp.gt.s32.totalorder %v2057, %v2040
      %vm2222 = vcmp.gt.s32.totalorder %v2056, %v2041
      %vm2223 = vcmp.gt.s32.totalorder %v2057, %v2041
      %vm2224 = vcmp.gt.s32.totalorder %v2056, %v2042
      %vm2225 = vcmp.gt.s32.totalorder %v2057, %v2042
      %vm2226 = vcmp.gt.s32.totalorder %v2056, %v2043
      %vm2227 = vcmp.gt.s32.totalorder %v2057, %v2043
      %vm2228 = vcmp.gt.s32.totalorder %v2056, %v2044
      %vm2229 = vcmp.gt.s32.totalorder %v2057, %v2044
      %vm2230 = vcmp.gt.s32.totalorder %v2056, %v2045
      %vm2231 = vcmp.gt.s32.totalorder %v2057, %v2045
      %vm2232 = vcmp.gt.s32.totalorder %v2056, %v2046
      %vm2233 = vcmp.gt.s32.totalorder %v2057, %v2046
      %vm2234 = vcmp.gt.s32.totalorder %v2056, %v2047
      %vm2235 = vcmp.gt.s32.totalorder %v2057, %v2047
      %vm2236 = vcmp.gt.s32.totalorder %v2056, %v2048
      %vm2237 = vcmp.gt.s32.totalorder %v2057, %v2048
      %vm2238 = vcmp.gt.s32.totalorder %v2056, %v2049
      %vm2239 = vcmp.gt.s32.totalorder %v2057, %v2049
      %vm2240 = vcmp.gt.s32.totalorder %v2056, %v2050
      %vm2241 = vcmp.gt.s32.totalorder %v2057, %v2050
      %vm2242 = vcmp.gt.s32.totalorder %v2056, %v2051
      %vm2243 = vcmp.gt.s32.totalorder %v2057, %v2051
      %vm2244 = vcmp.gt.s32.totalorder %v2056, %v2052
      %vm2245 = vcmp.gt.s32.totalorder %v2057, %v2052
      %vm2246 = vcmp.gt.s32.totalorder %v2056, %v2053
      %vm2247 = vcmp.gt.s32.totalorder %v2057, %v2053
      %vm2248 = vcmp.gt.s32.totalorder %v2056, %v2054
      %vm2249 = vcmp.gt.s32.totalorder %v2057, %v2054
      %vm2250 = vmand %vm2122, %vm2186
      %vm2251 = vmand %vm2123, %vm2187
      %vm2252 = vmand %vm2124, %vm2188
      %vm2253 = vmand %vm2125, %vm2189
      %vm2254 = vmand %vm2126, %vm2190
      %vm2255 = vmand %vm2127, %vm2191
      %vm2256 = vmand %vm2128, %vm2192
      %vm2257 = vmand %vm2129, %vm2193
      %vm2258 = vmand %vm2130, %vm2194
      %vm2259 = vmand %vm2131, %vm2195
      %vm2260 = vmand %vm2132, %vm2196
      %vm2261 = vmand %vm2133, %vm2197
      %vm2262 = vmand %vm2134, %vm2198
      %vm2263 = vmand %vm2135, %vm2199
      %vm2264 = vmand %vm2136, %vm2200
      %vm2265 = vmand %vm2137, %vm2201
      %vm2266 = vmand %vm2138, %vm2202
      %vm2267 = vmand %vm2139, %vm2203
      %vm2268 = vmand %vm2140, %vm2204
      %vm2269 = vmand %vm2141, %vm2205
      %vm2270 = vmand %vm2142, %vm2206
      %vm2271 = vmand %vm2143, %vm2207
      %vm2272 = vmand %vm2144, %vm2208
      %vm2273 = vmand %vm2145, %vm2209
      %vm2274 = vmand %vm2146, %vm2210
      %vm2275 = vmand %vm2147, %vm2211
      %vm2276 = vmand %vm2148, %vm2212
      %vm2277 = vmand %vm2149, %vm2213
      %vm2278 = vmand %vm2150, %vm2214
      %vm2279 = vmand %vm2151, %vm2215
      %vm2280 = vmand %vm2152, %vm2216
      %vm2281 = vmand %vm2153, %vm2217
      %vm2282 = vmand %vm2154, %vm2218
      %vm2283 = vmand %vm2155, %vm2219
      %vm2284 = vmand %vm2156, %vm2220
      %vm2285 = vmand %vm2157, %vm2221
      %vm2286 = vmand %vm2158, %vm2222
      %vm2287 = vmand %vm2159, %vm2223
      %vm2288 = vmand %vm2160, %vm2224
      %vm2289 = vmand %vm2161, %vm2225
      %vm2290 = vmand %vm2162, %vm2226
      %vm2291 = vmand %vm2163, %vm2227
      %vm2292 = vmand %vm2164, %vm2228
      %vm2293 = vmand %vm2165, %vm2229
      %vm2294 = vmand %vm2166, %vm2230
      %vm2295 = vmand %vm2167, %vm2231
      %vm2296 = vmand %vm2168, %vm2232
      %vm2297 = vmand %vm2169, %vm2233
      %vm2298 = vmand %vm2170, %vm2234
      %vm2299 = vmand %vm2171, %vm2235
      %vm2300 = vmand %vm2172, %vm2236
      %vm2301 = vmand %vm2173, %vm2237
      %vm2302 = vmand %vm2174, %vm2238
      %vm2303 = vmand %vm2175, %vm2239
      %vm2304 = vmand %vm2176, %vm2240
      %vm2305 = vmand %vm2177, %vm2241
      %vm2306 = vmand %vm2178, %vm2242
      %vm2307 = vmand %vm2179, %vm2243
      %vm2308 = vmand %vm2180, %vm2244
      %vm2309 = vmand %vm2181, %vm2245
      %vm2310 = vmand %vm2182, %vm2246
      %vm2311 = vmand %vm2183, %vm2247
      %vm2312 = vmand %vm2184, %vm2248
      %vm2313 = vmand %vm2185, %vm2249
      %v2314 = vsel %vm2250, 1.0, 0.0
      %v2315 = vsel %vm2251, 1.0, 0.0
      %v2316 = vsel %vm2252, 1.0, 0.0
      %v2317 = vsel %vm2253, 1.0, 0.0
      %v2318 = vsel %vm2254, 1.0, 0.0
      %v2319 = vsel %vm2255, 1.0, 0.0
      %v2320 = vsel %vm2256, 1.0, 0.0
      %v2321 = vsel %vm2257, 1.0, 0.0
      %v2322 = vsel %vm2258, 1.0, 0.0
      %v2323 = vsel %vm2259, 1.0, 0.0
      %v2324 = vsel %vm2260, 1.0, 0.0
      %v2325 = vsel %vm2261, 1.0, 0.0
      %v2326 = vsel %vm2262, 1.0, 0.0
      %v2327 = vsel %vm2263, 1.0, 0.0
      %v2328 = vsel %vm2264, 1.0, 0.0
      %v2329 = vsel %vm2265, 1.0, 0.0
      %v2330 = vsel %vm2266, 1.0, 0.0
      %v2331 = vsel %vm2267, 1.0, 0.0
      %v2332 = vsel %vm2268, 1.0, 0.0
      %v2333 = vsel %vm2269, 1.0, 0.0
      %v2334 = vsel %vm2270, 1.0, 0.0
      %v2335 = vsel %vm2271, 1.0, 0.0
      %v2336 = vsel %vm2272, 1.0, 0.0
      %v2337 = vsel %vm2273, 1.0, 0.0
      %v2338 = vsel %vm2274, 1.0, 0.0
      %v2339 = vsel %vm2275, 1.0, 0.0
      %v2340 = vsel %vm2276, 1.0, 0.0
      %v2341 = vsel %vm2277, 1.0, 0.0
      %v2342 = vsel %vm2278, 1.0, 0.0
      %v2343 = vsel %vm2279, 1.0, 0.0
      %v2344 = vsel %vm2280, 1.0, 0.0
      %v2345 = vsel %vm2281, 1.0, 0.0
      %v2346 = vsel %vm2282, 1.0, 0.0
      %v2347 = vsel %vm2283, 1.0, 0.0
      %v2348 = vsel %vm2284, 1.0, 0.0
      %v2349 = vsel %vm2285, 1.0, 0.0
      %v2350 = vsel %vm2286, 1.0, 0.0
      %v2351 = vsel %vm2287, 1.0, 0.0
      %v2352 = vsel %vm2288, 1.0, 0.0
      %v2353 = vsel %vm2289, 1.0, 0.0
      %v2354 = vsel %vm2290, 1.0, 0.0
      %v2355 = vsel %vm2291, 1.0, 0.0
      %v2356 = vsel %vm2292, 1.0, 0.0
      %v2357 = vsel %vm2293, 1.0, 0.0
      %v2358 = vsel %vm2294, 1.0, 0.0
      %v2359 = vsel %vm2295, 1.0, 0.0
      %v2360 = vsel %vm2296, 1.0, 0.0
      %v2361 = vsel %vm2297, 1.0, 0.0
      %v2362 = vsel %vm2298, 1.0, 0.0
      %v2363 = vsel %vm2299, 1.0, 0.0
      %v2364 = vsel %vm2300, 1.0, 0.0
      %v2365 = vsel %vm2301, 1.0, 0.0
      %v2366 = vsel %vm2302, 1.0, 0.0
      %v2367 = vsel %vm2303, 1.0, 0.0
      %v2368 = vsel %vm2304, 1.0, 0.0
      %v2369 = vsel %vm2305, 1.0, 0.0
      %v2370 = vsel %vm2306, 1.0, 0.0
      %v2371 = vsel %vm2307, 1.0, 0.0
      %v2372 = vsel %vm2308, 1.0, 0.0
      %v2373 = vsel %vm2309, 1.0, 0.0
      %v2374 = vsel %vm2310, 1.0, 0.0
      %v2375 = vsel %vm2311, 1.0, 0.0
      %v2376 = vsel %vm2312, 1.0, 0.0
      %v2377 = vsel %vm2313, 1.0, 0.0
      %2378 = vst [vmem:[#allocation2] sm:$0xff] %v2314
      %2379 = vst [vmem:[#allocation2 + $0x8] sm:$0xff] %v2315
      %2380 = vst [vmem:[#allocation2 + $0x10] sm:$0xff] %v2316
      %2381 = vst [vmem:[#allocation2 + $0x18] sm:$0xff] %v2317
      %2382 = vst [vmem:[#allocation2 + $0x20] sm:$0xff] %v2318
      %2383 = vst [vmem:[#allocation2 + $0x28] sm:$0xff] %v2319
      %2384 = vst [vmem:[#allocation2 + $0x30] sm:$0xff] %v2320
      %2385 = vst [vmem:[#allocation2 + $0x38] sm:$0xff] %v2321
      %2386 = vst [vmem:[#allocation2 + $0x40] sm:$0xff] %v2322
      %2387 = vst [vmem:[#allocation2 + $0x48] sm:$0xff] %v2323
      %2388 = vst [vmem:[#allocation2 + $0x50] sm:$0xff] %v2324
      %2389 = vst [vmem:[#allocation2 + $0x58] sm:$0xff] %v2325
      %2390 = vst [vmem:[#allocation2 + $0x60] sm:$0xff] %v2326
      %2391 = vst [vmem:[#allocation2 + $0x68] sm:$0xff] %v2327
      %2392 = vst [vmem:[#allocation2 + $0x70] sm:$0xff] %v2328
      %2393 = vst [vmem:[#allocation2 + $0x78] sm:$0xff] %v2329
      %2394 = vst [vmem:[#allocation2 + $0x80] sm:$0xff] %v2330
      %2395 = vst [vmem:[#allocation2 + $0x88] sm:$0xff] %v2331
      %2396 = vst [vmem:[#allocation2 + $0x90] sm:$0xff] %v2332
      %2397 = vst [vmem:[#allocation2 + $0x98] sm:$0xff] %v2333
      %2398 = vst [vmem:[#allocation2 + $0xa0] sm:$0xff] %v2334
      %2399 = vst [vmem:[#allocation2 + $0xa8] sm:$0xff] %v2335
      %2400 = vst [vmem:[#allocation2 + $0xb0] sm:$0xff] %v2336
      %2401 = vst [vmem:[#allocation2 + $0xb8] sm:$0xff] %v2337
      %2402 = vst [vmem:[#allocation2 + $0xc0] sm:$0xff] %v2338
      %2403 = vst [vmem:[#allocation2 + $0xc8] sm:$0xff] %v2339
      %2404 = vst [vmem:[#allocation2 + $0xd0] sm:$0xff] %v2340
      %2405 = vst [vmem:[#allocation2 + $0xd8] sm:$0xff] %v2341
      %2406 = vst [vmem:[#allocation2 + $0xe0] sm:$0xff] %v2342
      %2407 = vst [vmem:[#allocation2 + $0xe8] sm:$0xff] %v2343
      %2408 = vst [vmem:[#allocation2 + $0xf0] sm:$0xff] %v2344
      %2409 = vst [vmem:[#allocation2 + $0xf8] sm:$0xff] %v2345
      %2410 = vst [vmem:[#allocation2 + $0x100] sm:$0xff] %v2346
      %2411 = vst [vmem:[#allocation2 + $0x108] sm:$0xff] %v2347
      %2412 = vst [vmem:[#allocation2 + $0x110] sm:$0xff] %v2348
      %2413 = vst [vmem:[#allocation2 + $0x118] sm:$0xff] %v2349
      %2414 = vst [vmem:[#allocation2 + $0x120] sm:$0xff] %v2350
      %2415 = vst [vmem:[#allocation2 + $0x128] sm:$0xff] %v2351
      %2416 = vst [vmem:[#allocation2 + $0x130] sm:$0xff] %v2352
      %2417 = vst [vmem:[#allocation2 + $0x138] sm:$0xff] %v2353
      %2418 = vst [vmem:[#allocation2 + $0x140] sm:$0xff] %v2354
      %2419 = vst [vmem:[#allocation2 + $0x148] sm:$0xff] %v2355
      %2420 = vst [vmem:[#allocation2 + $0x150] sm:$0xff] %v2356
      %2421 = vst [vmem:[#allocation2 + $0x158] sm:$0xff] %v2357
      %2422 = vst [vmem:[#allocation2 + $0x160] sm:$0xff] %v2358
      %2423 = vst [vmem:[#allocation2 + $0x168] sm:$0xff] %v2359
      %2424 = vst [vmem:[#allocation2 + $0x170] sm:$0xff] %v2360
      %2425 = vst [vmem:[#allocation2 + $0x178] sm:$0xff] %v2361
      %2426 = vst [vmem:[#allocation2 + $0x180] sm:$0xff] %v2362
      %2427 = vst [vmem:[#allocation2 + $0x188] sm:$0xff] %v2363
      %2428 = vst [vmem:[#allocation2 + $0x190] sm:$0xff] %v2364
      %2429 = vst [vmem:[#allocation2 + $0x198] sm:$0xff] %v2365
      %2430 = vst [vmem:[#allocation2 + $0x1a0] sm:$0xff] %v2366
      %2431 = vst [vmem:[#allocation2 + $0x1a8] sm:$0xff] %v2367
      %2432 = vst [vmem:[#allocation2 + $0x1b0] sm:$0xff] %v2368
      %2433 = vst [vmem:[#allocation2 + $0x1b8] sm:$0xff] %v2369
      %2434 = vst [vmem:[#allocation2 + $0x1c0] sm:$0xff] %v2370
      %2435 = vst [vmem:[#allocation2 + $0x1c8] sm:$0xff] %v2371
      %2436 = vst [vmem:[#allocation2 + $0x1d0] sm:$0xff] %v2372
      %2437 = vst [vmem:[#allocation2 + $0x1d8] sm:$0xff] %v2373
      %2438 = vst [vmem:[#allocation2 + $0x1e0] sm:$0xff] %v2374
      %2439 = vst [vmem:[#allocation2 + $0x1e8] sm:$0xff] %v2375
      %2440 = vst [vmem:[#allocation2 + $0x1f0] sm:$0xff] %v2376
      %2441 = vst [vmem:[#allocation2 + $0x1f8] sm:$0xff] %v2377
      %v2442 = vld [vmem:[%s154] sm:$0x3]
      %vm2443 = vcmp.gt.f32.partialorder %v2442, 0.01
      %v2444 = vsel %vm2443, 1.0, 0.0
      %v2445 = vld [vmem:[#allocation2] sm:$0xff]
      %v2446 = vld [vmem:[#allocation2 + $0x10] sm:$0xff]
      %v2447 = vld [vmem:[#allocation2 + $0x20] sm:$0xff]
      %v2448 = vld [vmem:[#allocation2 + $0x30] sm:$0xff]
      %2450 = vset.pattern.permute.xlu0 0
      %2451 = vperm.xlu0 %2450, %v2444
      %v2452 = vpop.permute.xlu0 %2451
      %v2454 = vlaneseq
      %v2455 = vshrl.u32 %v2454, 7
      %v2456 = vsub.s32 0, %v2455
      %v2457 = vrot.slane %v2452, %v2456
      %v2458 = vmul.f32 %v2457, %v2445
      %vm2459 = vcmp.gt.f32.partialorder %v2458, 0.0
      %v2460 = vsel %vm2459, 0.0, %v2444
      %2462 = vset.pattern.permute.xlu0 1
      %2463 = vperm.xlu0 %2462, %v2460
      %v2464 = vpop.permute.xlu0 %2463
      %v2467 = vrot.slane %v2445, 1
      %v2469 = vmul.f32 %v2464, %v2467
      %vm2470 = vcmp.gt.f32.partialorder %v2469, 0.0
      %v2471 = vsel %vm2470, 0.0, %v2460
      %2473 = vset.pattern.permute.xlu0 2
      %2474 = vperm.xlu0 %2473, %v2471
      %v2475 = vpop.permute.xlu0 %2474
      %v2477 = vrot.slane %v2445, 2
      %v2479 = vmul.f32 %v2475, %v2477
      %vm2480 = vcmp.gt.f32.partialorder %v2479, 0.0
      %v2481 = vsel %vm2480, 0.0, %v2471
      %2483 = vset.pattern.permute.xlu0 3
      %2484 = vperm.xlu0 %2483, %v2481
      %v2485 = vpop.permute.xlu0 %2484
      %v2487 = vrot.slane %v2445, 3
      %v2489 = vmul.f32 %v2485, %v2487
      %vm2490 = vcmp.gt.f32.partialorder %v2489, 0.0
      %v2491 = vsel %vm2490, 0.0, %v2481
      %2493 = vset.pattern.permute.xlu0 4
      %2494 = vperm.xlu0 %2493, %v2491
      %v2495 = vpop.permute.xlu0 %2494
      %v2497 = vrot.slane %v2445, 4
      %v2499 = vmul.f32 %v2495, %v2497
      %vm2500 = vcmp.gt.f32.partialorder %v2499, 0.0
      %v2501 = vsel %vm2500, 0.0, %v2491
      %2503 = vset.pattern.permute.xlu0 5
      %2504 = vperm.xlu0 %2503, %v2501
      %v2505 = vpop.permute.xlu0 %2504
      %v2507 = vrot.slane %v2445, 5
      %v2509 = vmul.f32 %v2505, %v2507
      %vm2510 = vcmp.gt.f32.partialorder %v2509, 0.0
      %v2511 = vsel %vm2510, 0.0, %v2501
      %2513 = vset.pattern.permute.xlu0 6
      %2514 = vperm.xlu0 %2513, %v2511
      %v2515 = vpop.permute.xlu0 %2514
      %v2517 = vrot.slane %v2445, 6
      %v2519 = vmul.f32 %v2515, %v2517
      %vm2520 = vcmp.gt.f32.partialorder %v2519, 0.0
      %v2521 = vsel %vm2520, 0.0, %v2511
      %2523 = vset.pattern.permute.xlu0 7
      %2524 = vperm.xlu0 %2523, %v2521
      %v2525 = vpop.permute.xlu0 %2524
      %v2527 = vrot.slane %v2445, 7
      %v2529 = vmul.f32 %v2525, %v2527
      %vm2530 = vcmp.gt.f32.partialorder %v2529, 0.0
      %v2531 = vsel %vm2530, 0.0, %v2521
      %2533 = vset.pattern.permute.xlu0 8
      %2534 = vperm.xlu0 %2533, %v2531
      %v2535 = vpop.permute.xlu0 %2534
      %v2537 = vmul.f32 %v2535, %v2446
      %vm2538 = vcmp.gt.f32.partialorder %v2537, 0.0
      %v2539 = vsel %vm2538, 0.0, %v2531
      %2541 = vset.pattern.permute.xlu0 9
      %2542 = vperm.xlu0 %2541, %v2539
      %v2543 = vpop.permute.xlu0 %2542
      %v2546 = vrot.slane %v2446, 1
      %v2548 = vmul.f32 %v2543, %v2546
      %vm2549 = vcmp.gt.f32.partialorder %v2548, 0.0
      %v2550 = vsel %vm2549, 0.0, %v2539
      %2552 = vset.pattern.permute.xlu0 10
      %2553 = vperm.xlu0 %2552, %v2550
      %v2554 = vpop.permute.xlu0 %2553
      %v2556 = vrot.slane %v2446, 2
      %v2558 = vmul.f32 %v2554, %v2556
      %vm2559 = vcmp.gt.f32.partialorder %v2558, 0.0
      %v2560 = vsel %vm2559, 0.0, %v2550
      %2562 = vset.pattern.permute.xlu0 11
      %2563 = vperm.xlu0 %2562, %v2560
      %v2564 = vpop.permute.xlu0 %2563
      %v2566 = vrot.slane %v2446, 3
      %v2568 = vmul.f32 %v2564, %v2566
      %vm2569 = vcmp.gt.f32.partialorder %v2568, 0.0
      %v2570 = vsel %vm2569, 0.0, %v2560
      %2572 = vset.pattern.permute.xlu0 12
      %2573 = vperm.xlu0 %2572, %v2570
      %v2574 = vpop.permute.xlu0 %2573
      %v2576 = vrot.slane %v2446, 4
      %v2578 = vmul.f32 %v2574, %v2576
      %vm2579 = vcmp.gt.f32.partialorder %v2578, 0.0
      %v2580 = vsel %vm2579, 0.0, %v2570
      %2582 = vset.pattern.permute.xlu0 13
      %2583 = vperm.xlu0 %2582, %v2580
      %v2584 = vpop.permute.xlu0 %2583
      %v2586 = vrot.slane %v2446, 5
      %v2588 = vmul.f32 %v2584, %v2586
      %vm2589 = vcmp.gt.f32.partialorder %v2588, 0.0
      %v2590 = vsel %vm2589, 0.0, %v2580
      %2592 = vset.pattern.permute.xlu0 14
      %2593 = vperm.xlu0 %2592, %v2590
      %v2594 = vpop.permute.xlu0 %2593
      %v2596 = vrot.slane %v2446, 6
      %v2598 = vmul.f32 %v2594, %v2596
      %vm2599 = vcmp.gt.f32.partialorder %v2598, 0.0
      %v2600 = vsel %vm2599, 0.0, %v2590
      %2602 = vset.pattern.permute.xlu0 15
      %2603 = vperm.xlu0 %2602, %v2600
      %v2604 = vpop.permute.xlu0 %2603
      %v2606 = vrot.slane %v2446, 7
      %v2608 = vmul.f32 %v2604, %v2606
      %vm2609 = vcmp.gt.f32.partialorder %v2608, 0.0
      %v2610 = vsel %vm2609, 0.0, %v2600
      %2612 = vset.pattern.permute.xlu0 16
      %2613 = vperm.xlu0 %2612, %v2610
      %v2614 = vpop.permute.xlu0 %2613
      %v2616 = vmul.f32 %v2614, %v2447
      %vm2617 = vcmp.gt.f32.partialorder %v2616, 0.0
      %v2618 = vsel %vm2617, 0.0, %v2610
      %2620 = vset.pattern.permute.xlu0 17
      %2621 = vperm.xlu0 %2620, %v2618
      %v2622 = vpop.permute.xlu0 %2621
      %v2625 = vrot.slane %v2447, 1
      %v2627 = vmul.f32 %v2622, %v2625
      %vm2628 = vcmp.gt.f32.partialorder %v2627, 0.0
      %v2629 = vsel %vm2628, 0.0, %v2618
      %2631 = vset.pattern.permute.xlu0 18
      %2632 = vperm.xlu0 %2631, %v2629
      %v2633 = vpop.permute.xlu0 %2632
      %v2635 = vrot.slane %v2447, 2
      %v2637 = vmul.f32 %v2633, %v2635
      %vm2638 = vcmp.gt.f32.partialorder %v2637, 0.0
      %v2639 = vsel %vm2638, 0.0, %v2629
      %2641 = vset.pattern.permute.xlu0 19
      %2642 = vperm.xlu0 %2641, %v2639
      %v2643 = vpop.permute.xlu0 %2642
      %v2645 = vrot.slane %v2447, 3
      %v2647 = vmul.f32 %v2643, %v2645
      %vm2648 = vcmp.gt.f32.partialorder %v2647, 0.0
      %v2649 = vsel %vm2648, 0.0, %v2639
      %2651 = vset.pattern.permute.xlu0 20
      %2652 = vperm.xlu0 %2651, %v2649
      %v2653 = vpop.permute.xlu0 %2652
      %v2655 = vrot.slane %v2447, 4
      %v2657 = vmul.f32 %v2653, %v2655
      %vm2658 = vcmp.gt.f32.partialorder %v2657, 0.0
      %v2659 = vsel %vm2658, 0.0, %v2649
      %2661 = vset.pattern.permute.xlu0 21
      %2662 = vperm.xlu0 %2661, %v2659
      %v2663 = vpop.permute.xlu0 %2662
      %v2665 = vrot.slane %v2447, 5
      %v2667 = vmul.f32 %v2663, %v2665
      %vm2668 = vcmp.gt.f32.partialorder %v2667, 0.0
      %v2669 = vsel %vm2668, 0.0, %v2659
      %2671 = vset.pattern.permute.xlu0 22
      %2672 = vperm.xlu0 %2671, %v2669
      %v2673 = vpop.permute.xlu0 %2672
      %v2675 = vrot.slane %v2447, 6
      %v2677 = vmul.f32 %v2673, %v2675
      %vm2678 = vcmp.gt.f32.partialorder %v2677, 0.0
      %v2679 = vsel %vm2678, 0.0, %v2669
      %2681 = vset.pattern.permute.xlu0 23
      %2682 = vperm.xlu0 %2681, %v2679
      %v2683 = vpop.permute.xlu0 %2682
      %v2685 = vrot.slane %v2447, 7
      %v2687 = vmul.f32 %v2683, %v2685
      %vm2688 = vcmp.gt.f32.partialorder %v2687, 0.0
      %v2689 = vsel %vm2688, 0.0, %v2679
      %2691 = vset.pattern.permute.xlu0 24
      %2692 = vperm.xlu0 %2691, %v2689
      %v2693 = vpop.permute.xlu0 %2692
      %v2695 = vmul.f32 %v2693, %v2448
      %vm2696 = vcmp.gt.f32.partialorder %v2695, 0.0
      %v2697 = vsel %vm2696, 0.0, %v2689
      %2699 = vset.pattern.permute.xlu0 25
      %2700 = vperm.xlu0 %2699, %v2697
      %v2701 = vpop.permute.xlu0 %2700
      %v2704 = vrot.slane %v2448, 1
      %v2706 = vmul.f32 %v2701, %v2704
      %vm2707 = vcmp.gt.f32.partialorder %v2706, 0.0
      %v2708 = vsel %vm2707, 0.0, %v2697
      %2710 = vset.pattern.permute.xlu0 26
      %2711 = vperm.xlu0 %2710, %v2708
      %v2712 = vpop.permute.xlu0 %2711
      %v2714 = vrot.slane %v2448, 2
      %v2716 = vmul.f32 %v2712, %v2714
      %vm2717 = vcmp.gt.f32.partialorder %v2716, 0.0
      %v2718 = vsel %vm2717, 0.0, %v2708
      %2720 = vset.pattern.permute.xlu0 27
      %2721 = vperm.xlu0 %2720, %v2718
      %v2722 = vpop.permute.xlu0 %2721
      %v2724 = vrot.slane %v2448, 3
      %v2726 = vmul.f32 %v2722, %v2724
      %vm2727 = vcmp.gt.f32.partialorder %v2726, 0.0
      %v2728 = vsel %vm2727, 0.0, %v2718
      %2730 = vset.pattern.permute.xlu0 28
      %2731 = vperm.xlu0 %2730, %v2728
      %v2732 = vpop.permute.xlu0 %2731
      %v2734 = vrot.slane %v2448, 4
      %v2736 = vmul.f32 %v2732, %v2734
      %vm2737 = vcmp.gt.f32.partialorder %v2736, 0.0
      %v2738 = vsel %vm2737, 0.0, %v2728
      %2740 = vset.pattern.permute.xlu0 29
      %2741 = vperm.xlu0 %2740, %v2738
      %v2742 = vpop.permute.xlu0 %2741
      %v2744 = vrot.slane %v2448, 5
      %v2746 = vmul.f32 %v2742, %v2744
      %vm2747 = vcmp.gt.f32.partialorder %v2746, 0.0
      %v2748 = vsel %vm2747, 0.0, %v2738
      %2750 = vset.pattern.permute.xlu0 30
      %2751 = vperm.xlu0 %2750, %v2748
      %v2752 = vpop.permute.xlu0 %2751
      %v2754 = vrot.slane %v2448, 6
      %v2756 = vmul.f32 %v2752, %v2754
      %vm2757 = vcmp.gt.f32.partialorder %v2756, 0.0
      %v2758 = vsel %vm2757, 0.0, %v2748
      %2760 = vset.pattern.permute.xlu0 31
      %2761 = vperm.xlu0 %2760, %v2758
      %v2762 = vpop.permute.xlu0 %2761
      %v2764 = vrot.slane %v2448, 7
      %v2766 = vmul.f32 %v2762, %v2764
      %vm2767 = vcmp.gt.f32.partialorder %v2766, 0.0
      %v2768 = vsel %vm2767, 0.0, %v2758
      %v2769 = vlaneseq
      %v2770 = vshrl.u32 %v2769, 7
      %v2771 = vsub.s32 0, %v2770
      %v2772 = vrot.slane %v2768, %v2771
      %v2773 = vld [vmem:[#allocation2] sm:$0xff]
      %v2774 = vld [vmem:[#allocation2 + $0x8] sm:$0xff]
      %v2775 = vld [vmem:[#allocation2 + $0x10] sm:$0xff]
      %v2776 = vld [vmem:[#allocation2 + $0x18] sm:$0xff]
      %v2777 = vld [vmem:[#allocation2 + $0x20] sm:$0xff]
      %v2778 = vld [vmem:[#allocation2 + $0x28] sm:$0xff]
      %v2779 = vld [vmem:[#allocation2 + $0x30] sm:$0xff]
      %v2780 = vld [vmem:[#allocation2 + $0x38] sm:$0xff]
      %vm2781 = vcmask 261120
      %v2783 = vsel %vm2781, %v2772, 0
      %2785 = vmatprep.subr.mxu0 %v2774
      %2786 = vmatpush1.msra.mxu0 %v2773
      %2787 = vmatprep.subr.mxu0 %v2776
      %2788 = vmatpush1.msra.mxu0 %v2775
      %2789 = vmatprep.subr.mxu0 %v2778
      %2790 = vmatpush1.msra.mxu0 %v2777
      %2791 = vmatprep.subr.mxu0 %v2780
      %2792 = vmatpush1.msra.mxu0 %v2779
      %2793 = vmatprep.subr.mxu0 0.0
      %2794 = vmatpush1.msra.mxu0 0.0
      %2795 = vmatprep.subr.mxu0 0.0
      %2796 = vmatpush1.msra.mxu0 0.0
      %2797 = vmatprep.subr.mxu0 0.0
      %2798 = vmatpush1.msra.mxu0 0.0
      %2799 = vmatprep.subr.mxu0 0.0
      %2800 = vmatpush1.msra.mxu0 0.0
      %2801 = vmatprep.subr.mxu0 0.0
      %2802 = vmatpush1.msra.mxu0 0.0
      %2803 = vmatprep.subr.mxu0 0.0
      %2804 = vmatpush1.msra.mxu0 0.0
      %2805 = vmatprep.subr.mxu0 0.0
      %2806 = vmatpush1.msra.mxu0 0.0
      %2807 = vmatprep.subr.mxu0 0.0
      %2808 = vmatpush1.msra.mxu0 0.0
      %2809 = vmatprep.subr.mxu0 0.0
      %2810 = vmatpush1.msra.mxu0 0.0
      %2811 = vmatprep.subr.mxu0 0.0
      %2812 = vmatpush1.msra.mxu0 0.0
      %2813 = vmatprep.subr.mxu0 0.0
      %2814 = vmatpush1.msra.mxu0 0.0
      %2815 = vmatprep.subr.mxu0 0.0
      %2816 = vmatpush1.msra.mxu0 0.0
      %2817 = vmatprep.subr.mxu0 0.0
      %2818 = vmatpush1.msra.mxu0 0.0
      %2819 = vmatprep.subr.mxu0 0.0
      %2820 = vmatpush1.msra.mxu0 0.0
      %2821 = vmatprep.subr.mxu0 0.0
      %2822 = vmatpush1.msra.mxu0 0.0
      %2823 = vmatprep.subr.mxu0 0.0
      %2824 = vmatpush1.msra.mxu0 0.0
      %2825 = vmatprep.subr.mxu0 0.0
      %2826 = vmatpush1.msra.mxu0 0.0
      %2827 = vmatprep.subr.mxu0 0.0
      %2828 = vmatpush1.msra.mxu0 0.0
      %2829 = vmatprep.subr.mxu0 0.0
      %2830 = vmatpush1.msra.mxu0 0.0
      %2831 = vmatprep.subr.mxu0 0.0
      %2832 = vmatpush1.msra.mxu0 0.0
      %2833 = vmatprep.subr.mxu0 0.0
      %2834 = vmatpush1.msra.mxu0 0.0
      %2835 = vmatprep.subr.mxu0 0.0
      %2836 = vmatpush1.msra.mxu0 0.0
      %2837 = vmatprep.subr.mxu0 0.0
      %2838 = vmatpush1.msra.mxu0 0.0
      %2839 = vmatprep.subr.mxu0 0.0
      %2840 = vmatpush1.msra.mxu0 0.0
      %2841 = vmatprep.subr.mxu0 0.0
      %2842 = vmatpush1.msra.mxu0 0.0
      %2843 = vmatprep.subr.mxu0 0.0
      %2844 = vmatpush1.msra.mxu0 0.0
      %2845 = vmatprep.subr.mxu0 0.0
      %2846 = vmatpush1.msra.mxu0 0.0
      %2847 = vmatprep.subr.mxu0 0.0
      %2848 = vmatpush1.msra.mxu0 0.0
      %2849 = vmatprep.mubr.f32.mxu0 0.0
      %2850 = vmatmul.mubr.f32.gmra.mrb[0].mxu0 %v2783
      %v2851 = vpop.f32.mrb[0].mxu0
      %v2852 = vadd.f32 0.0, %v2851
      %v2853 = vpop.f32.mrb[0].mxu0
      %v2854 = vadd.f32 0.0, %v2853
      %2855 = vdwg.mxu0
      %vm2856 = vcmp.gt.f32.partialorder %v2852, 0.0
      %vm2857 = vcmp.gt.f32.partialorder %v2854, 0.0
      %v2858 = vlaneseq
      %v2859 = vshrl.u32 %v2858, 7
      %v2860 = vsub.s32 0, %v2859
      %v2861 = vrot.slane %v2444, %v2860
      %v2862 = vlaneseq
      %v2863 = vshrl.u32 %v2862, 7
      %v2864 = vsub.s32 1, %v2863
      %v2865 = vrot.slane %v2444, %v2864
      %v2868 = vsel %vm2856, 0.0, %v2861
      %v2869 = vsel %vm2857, 0.0, %v2865
      %v2870 = vld [vmem:[#allocation2 + $0x40] sm:$0xff]
      %v2871 = vld [vmem:[#allocation2 + $0x50] sm:$0xff]
      %v2872 = vld [vmem:[#allocation2 + $0x60] sm:$0xff]
      %v2873 = vld [vmem:[#allocation2 + $0x70] sm:$0xff]
      %2875 = vset.pattern.permute.xlu0 32
      %2876 = vperm.xlu0 %2875, %v2868
      %v2877 = vpop.permute.xlu0 %2876
      %v2879 = vmul.f32 %v2877, %v2870
      %vm2880 = vcmp.gt.f32.partialorder %v2879, 0.0
      %v2881 = vsel %vm2880, 0.0, %v2868
      %2883 = vset.pattern.permute.xlu0 33
      %2884 = vperm.xlu0 %2883, %v2881
      %v2885 = vpop.permute.xlu0 %2884
      %v2888 = vrot.slane %v2870, 1
      %2889 = vrot.lane.b32.xlu0 %v2888, 96
      %v2890 = vpop.permute.xlu0 %2889
      %v2892 = vmul.f32 %v2885, %v2890
      %vm2893 = vcmp.gt.f32.partialorder %v2892, 0.0
      %2894 = vrot.lane.b32.xlu0 %v2881, 96
      %v2895 = vpop.permute.xlu0 %2894
      %v2897 = vsel %vm2893, 0.0, %v2895
      %2899 = vset.pattern.permute.xlu0 2
      %2900 = vperm.xlu0 %2899, %v2897
      %v2901 = vpop.permute.xlu0 %2900
      %v2903 = vrot.slane %v2870, 2
      %2904 = vrot.lane.b32.xlu0 %v2903, 96
      %v2905 = vpop.permute.xlu0 %2904
      %v2907 = vmul.f32 %v2901, %v2905
      %vm2908 = vcmp.gt.f32.partialorder %v2907, 0.0
      %v2909 = vsel %vm2908, 0.0, %v2897
      %2911 = vset.pattern.permute.xlu0 3
      %2912 = vperm.xlu0 %2911, %v2909
      %v2913 = vpop.permute.xlu0 %2912
      %v2915 = vrot.slane %v2870, 3
      %2916 = vrot.lane.b32.xlu0 %v2915, 96
      %v2917 = vpop.permute.xlu0 %2916
      %v2919 = vmul.f32 %v2913, %v2917
      %vm2920 = vcmp.gt.f32.partialorder %v2919, 0.0
      %v2921 = vsel %vm2920, 0.0, %v2909
      %2923 = vset.pattern.permute.xlu0 4
      %2924 = vperm.xlu0 %2923, %v2921
      %v2925 = vpop.permute.xlu0 %2924
      %v2927 = vrot.slane %v2870, 4
      %2928 = vrot.lane.b32.xlu0 %v2927, 96
      %v2929 = vpop.permute.xlu0 %2928
      %v2931 = vmul.f32 %v2925, %v2929
      %vm2932 = vcmp.gt.f32.partialorder %v2931, 0.0
      %v2933 = vsel %vm2932, 0.0, %v2921
      %2935 = vset.pattern.permute.xlu0 5
      %2936 = vperm.xlu0 %2935, %v2933
      %v2937 = vpop.permute.xlu0 %2936
      %v2939 = vrot.slane %v2870, 5
      %2940 = vrot.lane.b32.xlu0 %v2939, 96
      %v2941 = vpop.permute.xlu0 %2940
      %v2943 = vmul.f32 %v2937, %v2941
      %vm2944 = vcmp.gt.f32.partialorder %v2943, 0.0
      %v2945 = vsel %vm2944, 0.0, %v2933
      %2947 = vset.pattern.permute.xlu0 6
      %2948 = vperm.xlu0 %2947, %v2945
      %v2949 = vpop.permute.xlu0 %2948
      %v2951 = vrot.slane %v2870, 6
      %2952 = vrot.lane.b32.xlu0 %v2951, 96
      %v2953 = vpop.permute.xlu0 %2952
      %v2955 = vmul.f32 %v2949, %v2953
      %vm2956 = vcmp.gt.f32.partialorder %v2955, 0.0
      %v2957 = vsel %vm2956, 0.0, %v2945
      %2959 = vset.pattern.permute.xlu0 7
      %2960 = vperm.xlu0 %2959, %v2957
      %v2961 = vpop.permute.xlu0 %2960
      %v2963 = vrot.slane %v2870, 7
      %2964 = vrot.lane.b32.xlu0 %v2963, 96
      %v2965 = vpop.permute.xlu0 %2964
      %v2967 = vmul.f32 %v2961, %v2965
      %vm2968 = vcmp.gt.f32.partialorder %v2967, 0.0
      %v2969 = vsel %vm2968, 0.0, %v2957
      %2971 = vset.pattern.permute.xlu0 8
      %2972 = vperm.xlu0 %2971, %v2969
      %v2973 = vpop.permute.xlu0 %2972
      %v2975 = vmul.f32 %v2973, %v2871
      %vm2976 = vcmp.gt.f32.partialorder %v2975, 0.0
      %2977 = vrot.lane.b32.xlu0 %v2969, 32
      %v2978 = vpop.permute.xlu0 %2977
      %v2980 = vsel %vm2976, 0.0, %v2978
      %2982 = vset.pattern.permute.xlu0 41
      %2983 = vperm.xlu0 %2982, %v2980
      %v2984 = vpop.permute.xlu0 %2983
      %v2987 = vrot.slane %v2871, 1
      %2988 = vrot.lane.b32.xlu0 %v2987, 96
      %v2989 = vpop.permute.xlu0 %2988
      %v2991 = vmul.f32 %v2984, %v2989
      %vm2992 = vcmp.gt.f32.partialorder %v2991, 0.0
      %2993 = vrot.lane.b32.xlu0 %v2980, 96
      %v2994 = vpop.permute.xlu0 %2993
      %v2996 = vsel %vm2992, 0.0, %v2994
      %2998 = vset.pattern.permute.xlu0 10
      %2999 = vperm.xlu0 %2998, %v2996
      %v3000 = vpop.permute.xlu0 %2999
      %v3002 = vrot.slane %v2871, 2
      %3003 = vrot.lane.b32.xlu0 %v3002, 96
      %v3004 = vpop.permute.xlu0 %3003
      %v3006 = vmul.f32 %v3000, %v3004
      %vm3007 = vcmp.gt.f32.partialorder %v3006, 0.0
      %v3008 = vsel %vm3007, 0.0, %v2996
      %3010 = vset.pattern.permute.xlu0 11
      %3011 = vperm.xlu0 %3010, %v3008
      %v3012 = vpop.permute.xlu0 %3011
      %v3014 = vrot.slane %v2871, 3
      %3015 = vrot.lane.b32.xlu0 %v3014, 96
      %v3016 = vpop.permute.xlu0 %3015
      %v3018 = vmul.f32 %v3012, %v3016
      %vm3019 = vcmp.gt.f32.partialorder %v3018, 0.0
      %v3020 = vsel %vm3019, 0.0, %v3008
      %3022 = vset.pattern.permute.xlu0 12
      %3023 = vperm.xlu0 %3022, %v3020
      %v3024 = vpop.permute.xlu0 %3023
      %v3026 = vrot.slane %v2871, 4
      %3027 = vrot.lane.b32.xlu0 %v3026, 96
      %v3028 = vpop.permute.xlu0 %3027
      %v3030 = vmul.f32 %v3024, %v3028
      %vm3031 = vcmp.gt.f32.partialorder %v3030, 0.0
      %v3032 = vsel %vm3031, 0.0, %v3020
      %3034 = vset.pattern.permute.xlu0 13
      %3035 = vperm.xlu0 %3034, %v3032
      %v3036 = vpop.permute.xlu0 %3035
      %v3038 = vrot.slane %v2871, 5
      %3039 = vrot.lane.b32.xlu0 %v3038, 96
      %v3040 = vpop.permute.xlu0 %3039
      %v3042 = vmul.f32 %v3036, %v3040
      %vm3043 = vcmp.gt.f32.partialorder %v3042, 0.0
      %v3044 = vsel %vm3043, 0.0, %v3032
      %3046 = vset.pattern.permute.xlu0 14
      %3047 = vperm.xlu0 %3046, %v3044
      %v3048 = vpop.permute.xlu0 %3047
      %v3050 = vrot.slane %v2871, 6
      %3051 = vrot.lane.b32.xlu0 %v3050, 96
      %v3052 = vpop.permute.xlu0 %3051
      %v3054 = vmul.f32 %v3048, %v3052
      %vm3055 = vcmp.gt.f32.partialorder %v3054, 0.0
      %v3056 = vsel %vm3055, 0.0, %v3044
      %3058 = vset.pattern.permute.xlu0 15
      %3059 = vperm.xlu0 %3058, %v3056
      %v3060 = vpop.permute.xlu0 %3059
      %v3062 = vrot.slane %v2871, 7
      %3063 = vrot.lane.b32.xlu0 %v3062, 96
      %v3064 = vpop.permute.xlu0 %3063
      %v3066 = vmul.f32 %v3060, %v3064
      %vm3067 = vcmp.gt.f32.partialorder %v3066, 0.0
      %v3068 = vsel %vm3067, 0.0, %v3056
      %3070 = vset.pattern.permute.xlu0 16
      %3071 = vperm.xlu0 %3070, %v3068
      %v3072 = vpop.permute.xlu0 %3071
      %v3074 = vmul.f32 %v3072, %v2872
      %vm3075 = vcmp.gt.f32.partialorder %v3074, 0.0
      %3076 = vrot.lane.b32.xlu0 %v3068, 32
      %v3077 = vpop.permute.xlu0 %3076
      %v3079 = vsel %vm3075, 0.0, %v3077
      %3081 = vset.pattern.permute.xlu0 49
      %3082 = vperm.xlu0 %3081, %v3079
      %v3083 = vpop.permute.xlu0 %3082
      %v3086 = vrot.slane %v2872, 1
      %3087 = vrot.lane.b32.xlu0 %v3086, 96
      %v3088 = vpop.permute.xlu0 %3087
      %v3090 = vmul.f32 %v3083, %v3088
      %vm3091 = vcmp.gt.f32.partialorder %v3090, 0.0
      %3092 = vrot.lane.b32.xlu0 %v3079, 96
      %v3093 = vpop.permute.xlu0 %3092
      %v3095 = vsel %vm3091, 0.0, %v3093
      %3097 = vset.pattern.permute.xlu0 18
      %3098 = vperm.xlu0 %3097, %v3095
      %v3099 = vpop.permute.xlu0 %3098
      %v3101 = vrot.slane %v2872, 2
      %3102 = vrot.lane.b32.xlu0 %v3101, 96
      %v3103 = vpop.permute.xlu0 %3102
      %v3105 = vmul.f32 %v3099, %v3103
      %vm3106 = vcmp.gt.f32.partialorder %v3105, 0.0
      %v3107 = vsel %vm3106, 0.0, %v3095
      %3109 = vset.pattern.permute.xlu0 19
      %3110 = vperm.xlu0 %3109, %v3107
      %v3111 = vpop.permute.xlu0 %3110
      %v3113 = vrot.slane %v2872, 3
      %3114 = vrot.lane.b32.xlu0 %v3113, 96
      %v3115 = vpop.permute.xlu0 %3114
      %v3117 = vmul.f32 %v3111, %v3115
      %vm3118 = vcmp.gt.f32.partialorder %v3117, 0.0
      %v3119 = vsel %vm3118, 0.0, %v3107
      %3121 = vset.pattern.permute.xlu0 20
      %3122 = vperm.xlu0 %3121, %v3119
      %v3123 = vpop.permute.xlu0 %3122
      %v3125 = vrot.slane %v2872, 4
      %3126 = vrot.lane.b32.xlu0 %v3125, 96
      %v3127 = vpop.permute.xlu0 %3126
      %v3129 = vmul.f32 %v3123, %v3127
      %vm3130 = vcmp.gt.f32.partialorder %v3129, 0.0
      %v3131 = vsel %vm3130, 0.0, %v3119
      %3133 = vset.pattern.permute.xlu0 21
      %3134 = vperm.xlu0 %3133, %v3131
      %v3135 = vpop.permute.xlu0 %3134
      %v3137 = vrot.slane %v2872, 5
      %3138 = vrot.lane.b32.xlu0 %v3137, 96
      %v3139 = vpop.permute.xlu0 %3138
      %v3141 = vmul.f32 %v3135, %v3139
      %vm3142 = vcmp.gt.f32.partialorder %v3141, 0.0
      %v3143 = vsel %vm3142, 0.0, %v3131
      %3145 = vset.pattern.permute.xlu0 22
      %3146 = vperm.xlu0 %3145, %v3143
      %v3147 = vpop.permute.xlu0 %3146
      %v3149 = vrot.slane %v2872, 6
      %3150 = vrot.lane.b32.xlu0 %v3149, 96
      %v3151 = vpop.permute.xlu0 %3150
      %v3153 = vmul.f32 %v3147, %v3151
      %vm3154 = vcmp.gt.f32.partialorder %v3153, 0.0
      %v3155 = vsel %vm3154, 0.0, %v3143
      %3157 = vset.pattern.permute.xlu0 23
      %3158 = vperm.xlu0 %3157, %v3155
      %v3159 = vpop.permute.xlu0 %3158
      %v3161 = vrot.slane %v2872, 7
      %3162 = vrot.lane.b32.xlu0 %v3161, 96
      %v3163 = vpop.permute.xlu0 %3162
      %v3165 = vmul.f32 %v3159, %v3163
      %vm3166 = vcmp.gt.f32.partialorder %v3165, 0.0
      %v3167 = vsel %vm3166, 0.0, %v3155
      %3169 = vset.pattern.permute.xlu0 24
      %3170 = vperm.xlu0 %3169, %v3167
      %v3171 = vpop.permute.xlu0 %3170
      %v3173 = vmul.f32 %v3171, %v2873
      %vm3174 = vcmp.gt.f32.partialorder %v3173, 0.0
      %3175 = vrot.lane.b32.xlu0 %v3167, 32
      %v3176 = vpop.permute.xlu0 %3175
      %v3178 = vsel %vm3174, 0.0, %v3176
      %3180 = vset.pattern.permute.xlu0 57
      %3181 = vperm.xlu0 %3180, %v3178
      %v3182 = vpop.permute.xlu0 %3181
      %v3185 = vrot.slane %v2873, 1
      %3186 = vrot.lane.b32.xlu0 %v3185, 96
      %v3187 = vpop.permute.xlu0 %3186
      %v3189 = vmul.f32 %v3182, %v3187
      %vm3190 = vcmp.gt.f32.partialorder %v3189, 0.0
      %3191 = vrot.lane.b32.xlu0 %v3178, 96
      %v3192 = vpop.permute.xlu0 %3191
      %v3194 = vsel %vm3190, 0.0, %v3192
      %3196 = vset.pattern.permute.xlu0 26
      %3197 = vperm.xlu0 %3196, %v3194
      %v3198 = vpop.permute.xlu0 %3197
      %v3200 = vrot.slane %v2873, 2
      %3201 = vrot.lane.b32.xlu0 %v3200, 96
      %v3202 = vpop.permute.xlu0 %3201
      %v3204 = vmul.f32 %v3198, %v3202
      %vm3205 = vcmp.gt.f32.partialorder %v3204, 0.0
      %v3206 = vsel %vm3205, 0.0, %v3194
      %3208 = vset.pattern.permute.xlu0 27
      %3209 = vperm.xlu0 %3208, %v3206
      %v3210 = vpop.permute.xlu0 %3209
      %v3212 = vrot.slane %v2873, 3
      %3213 = vrot.lane.b32.xlu0 %v3212, 96
      %v3214 = vpop.permute.xlu0 %3213
      %v3216 = vmul.f32 %v3210, %v3214
      %vm3217 = vcmp.gt.f32.partialorder %v3216, 0.0
      %v3218 = vsel %vm3217, 0.0, %v3206
      %3220 = vset.pattern.permute.xlu0 28
      %3221 = vperm.xlu0 %3220, %v3218
      %v3222 = vpop.permute.xlu0 %3221
      %v3224 = vrot.slane %v2873, 4
      %3225 = vrot.lane.b32.xlu0 %v3224, 96
      %v3226 = vpop.permute.xlu0 %3225
      %v3228 = vmul.f32 %v3222, %v3226
      %vm3229 = vcmp.gt.f32.partialorder %v3228, 0.0
      %v3230 = vsel %vm3229, 0.0, %v3218
      %3232 = vset.pattern.permute.xlu0 29
      %3233 = vperm.xlu0 %3232, %v3230
      %v3234 = vpop.permute.xlu0 %3233
      %v3236 = vrot.slane %v2873, 5
      %3237 = vrot.lane.b32.xlu0 %v3236, 96
      %v3238 = vpop.permute.xlu0 %3237
      %v3240 = vmul.f32 %v3234, %v3238
      %vm3241 = vcmp.gt.f32.partialorder %v3240, 0.0
      %v3242 = vsel %vm3241, 0.0, %v3230
      %3244 = vset.pattern.permute.xlu0 30
      %3245 = vperm.xlu0 %3244, %v3242
      %v3246 = vpop.permute.xlu0 %3245
      %v3248 = vrot.slane %v2873, 6
      %3249 = vrot.lane.b32.xlu0 %v3248, 96
      %v3250 = vpop.permute.xlu0 %3249
      %v3252 = vmul.f32 %v3246, %v3250
      %vm3253 = vcmp.gt.f32.partialorder %v3252, 0.0
      %v3254 = vsel %vm3253, 0.0, %v3242
      %3256 = vset.pattern.permute.xlu0 31
      %3257 = vperm.xlu0 %3256, %v3254
      %v3258 = vpop.permute.xlu0 %3257
      %v3260 = vrot.slane %v2873, 7
      %3261 = vrot.lane.b32.xlu0 %v3260, 96
      %v3262 = vpop.permute.xlu0 %3261
      %v3264 = vmul.f32 %v3258, %v3262
      %vm3265 = vcmp.gt.f32.partialorder %v3264, 0.0
      %v3266 = vsel %vm3265, 0.0, %v3254
      %v3267 = vlaneseq
      %v3268 = vshrl.u32 %v3267, 7
      %v3269 = vsub.s32 0, %v3268
      %v3270 = vrot.slane %v3266, %v3269
      %v3271 = vld [vmem:[#allocation2 + $0x40] sm:$0xff]
      %v3272 = vld [vmem:[#allocation2 + $0x48] sm:$0xff]
      %v3273 = vld [vmem:[#allocation2 + $0x50] sm:$0xff]
      %v3274 = vld [vmem:[#allocation2 + $0x58] sm:$0xff]
      %v3275 = vld [vmem:[#allocation2 + $0x60] sm:$0xff]
      %v3276 = vld [vmem:[#allocation2 + $0x68] sm:$0xff]
      %v3277 = vld [vmem:[#allocation2 + $0x70] sm:$0xff]
      %v3278 = vld [vmem:[#allocation2 + $0x78] sm:$0xff]
      %v3280 = vsel %vm2781, %v3270, 0
      %3282 = vmatprep.subr.mxu0 %v3272
      %3283 = vmatpush1.msra.mxu0 %v3271
      %3284 = vmatprep.subr.mxu0 %v3274
      %3285 = vmatpush1.msra.mxu0 %v3273
      %3286 = vmatprep.subr.mxu0 %v3276
      %3287 = vmatpush1.msra.mxu0 %v3275
      %3288 = vmatprep.subr.mxu0 %v3278
      %3289 = vmatpush1.msra.mxu0 %v3277
      %3290 = vmatprep.subr.mxu0 0.0
      %3291 = vmatpush1.msra.mxu0 0.0
      %3292 = vmatprep.subr.mxu0 0.0
      %3293 = vmatpush1.msra.mxu0 0.0
      %3294 = vmatprep.subr.mxu0 0.0
      %3295 = vmatpush1.msra.mxu0 0.0
      %3296 = vmatprep.subr.mxu0 0.0
      %3297 = vmatpush1.msra.mxu0 0.0
      %3298 = vmatprep.subr.mxu0 0.0
      %3299 = vmatpush1.msra.mxu0 0.0
      %3300 = vmatprep.subr.mxu0 0.0
      %3301 = vmatpush1.msra.mxu0 0.0
      %3302 = vmatprep.subr.mxu0 0.0
      %3303 = vmatpush1.msra.mxu0 0.0
      %3304 = vmatprep.subr.mxu0 0.0
      %3305 = vmatpush1.msra.mxu0 0.0
      %3306 = vmatprep.subr.mxu0 0.0
      %3307 = vmatpush1.msra.mxu0 0.0
      %3308 = vmatprep.subr.mxu0 0.0
      %3309 = vmatpush1.msra.mxu0 0.0
      %3310 = vmatprep.subr.mxu0 0.0
      %3311 = vmatpush1.msra.mxu0 0.0
      %3312 = vmatprep.subr.mxu0 0.0
      %3313 = vmatpush1.msra.mxu0 0.0
      %3314 = vmatprep.subr.mxu0 0.0
      %3315 = vmatpush1.msra.mxu0 0.0
      %3316 = vmatprep.subr.mxu0 0.0
      %3317 = vmatpush1.msra.mxu0 0.0
      %3318 = vmatprep.subr.mxu0 0.0
      %3319 = vmatpush1.msra.mxu0 0.0
      %3320 = vmatprep.subr.mxu0 0.0
      %3321 = vmatpush1.msra.mxu0 0.0
      %3322 = vmatprep.subr.mxu0 0.0
      %3323 = vmatpush1.msra.mxu0 0.0
      %3324 = vmatprep.subr.mxu0 0.0
      %3325 = vmatpush1.msra.mxu0 0.0
      %3326 = vmatprep.subr.mxu0 0.0
      %3327 = vmatpush1.msra.mxu0 0.0
      %3328 = vmatprep.subr.mxu0 0.0
      %3329 = vmatpush1.msra.mxu0 0.0
      %3330 = vmatprep.subr.mxu0 0.0
      %3331 = vmatpush1.msra.mxu0 0.0
      %3332 = vmatprep.subr.mxu0 0.0
      %3333 = vmatpush1.msra.mxu0 0.0
      %3334 = vmatprep.subr.mxu0 0.0
      %3335 = vmatpush1.msra.mxu0 0.0
      %3336 = vmatprep.subr.mxu0 0.0
      %3337 = vmatpush1.msra.mxu0 0.0
      %3338 = vmatprep.subr.mxu0 0.0
      %3339 = vmatpush1.msra.mxu0 0.0
      %3340 = vmatprep.subr.mxu0 0.0
      %3341 = vmatpush1.msra.mxu0 0.0
      %3342 = vmatprep.subr.mxu0 0.0
      %3343 = vmatpush1.msra.mxu0 0.0
      %3344 = vmatprep.subr.mxu0 0.0
      %3345 = vmatpush1.msra.mxu0 0.0
      %3346 = vmatprep.mubr.f32.mxu0 0.0
      %3347 = vmatmul.mubr.f32.gmra.mrb[0].mxu0 %v3280
      %v3348 = vpop.f32.mrb[0].mxu0
      %v3349 = vadd.f32 0.0, %v3348
      %v3350 = vpop.f32.mrb[0].mxu0
      %v3351 = vadd.f32 0.0, %v3350
      %3352 = vdwg.mxu0
      %vm3353 = vcmp.gt.f32.partialorder %v3349, 0.0
      %vm3354 = vcmp.gt.f32.partialorder %v3351, 0.0
      %v3355 = vsel %vm3353, 0.0, %v2868
      %v3356 = vsel %vm3354, 0.0, %v2869
      %v3357 = vld [vmem:[#allocation2 + $0x80] sm:$0xff]
      %v3358 = vld [vmem:[#allocation2 + $0x90] sm:$0xff]
      %v3359 = vld [vmem:[#allocation2 + $0xa0] sm:$0xff]
      %v3360 = vld [vmem:[#allocation2 + $0xb0] sm:$0xff]
      %3362 = vset.pattern.permute.xlu0 64
      %3363 = vperm.xlu0 %3362, %v3355
      %v3364 = vpop.permute.xlu0 %3363
      %v3366 = vmul.f32 %v3364, %v3357
      %vm3367 = vcmp.gt.f32.partialorder %v3366, 0.0
      %v3368 = vsel %vm3367, 0.0, %v3355
      %3370 = vset.pattern.permute.xlu0 65
      %3371 = vperm.xlu0 %3370, %v3368
      %v3372 = vpop.permute.xlu0 %3371
      %v3375 = vrot.slane %v3357, 1
      %3376 = vrot.lane.b32.xlu0 %v3375, 64
      %v3377 = vpop.permute.xlu0 %3376
      %v3379 = vmul.f32 %v3372, %v3377
      %vm3380 = vcmp.gt.f32.partialorder %v3379, 0.0
      %3381 = vrot.lane.b32.xlu0 %v3368, 64
      %v3382 = vpop.permute.xlu0 %3381
      %v3384 = vsel %vm3380, 0.0, %v3382
      %3386 = vset.pattern.permute.xlu0 2
      %3387 = vperm.xlu0 %3386, %v3384
      %v3388 = vpop.permute.xlu0 %3387
      %v3390 = vrot.slane %v3357, 2
      %3391 = vrot.lane.b32.xlu0 %v3390, 64
      %v3392 = vpop.permute.xlu0 %3391
      %v3394 = vmul.f32 %v3388, %v3392
      %vm3395 = vcmp.gt.f32.partialorder %v3394, 0.0
      %v3396 = vsel %vm3395, 0.0, %v3384
      %3398 = vset.pattern.permute.xlu0 3
      %3399 = vperm.xlu0 %3398, %v3396
      %v3400 = vpop.permute.xlu0 %3399
      %v3402 = vrot.slane %v3357, 3
      %3403 = vrot.lane.b32.xlu0 %v3402, 64
      %v3404 = vpop.permute.xlu0 %3403
      %v3406 = vmul.f32 %v3400, %v3404
      %vm3407 = vcmp.gt.f32.partialorder %v3406, 0.0
      %v3408 = vsel %vm3407, 0.0, %v3396
      %3410 = vset.pattern.permute.xlu0 4
      %3411 = vperm.xlu0 %3410, %v3408
      %v3412 = vpop.permute.xlu0 %3411
      %v3414 = vrot.slane %v3357, 4
      %3415 = vrot.lane.b32.xlu0 %v3414, 64
      %v3416 = vpop.permute.xlu0 %3415
      %v3418 = vmul.f32 %v3412, %v3416
      %vm3419 = vcmp.gt.f32.partialorder %v3418, 0.0
      %v3420 = vsel %vm3419, 0.0, %v3408
      %3422 = vset.pattern.permute.xlu0 5
      %3423 = vperm.xlu0 %3422, %v3420
      %v3424 = vpop.permute.xlu0 %3423
      %v3426 = vrot.slane %v3357, 5
      %3427 = vrot.lane.b32.xlu0 %v3426, 64
      %v3428 = vpop.permute.xlu0 %3427
      %v3430 = vmul.f32 %v3424, %v3428
      %vm3431 = vcmp.gt.f32.partialorder %v3430, 0.0
      %v3432 = vsel %vm3431, 0.0, %v3420
      %3434 = vset.pattern.permute.xlu0 6
      %3435 = vperm.xlu0 %3434, %v3432
      %v3436 = vpop.permute.xlu0 %3435
      %v3438 = vrot.slane %v3357, 6
      %3439 = vrot.lane.b32.xlu0 %v3438, 64
      %v3440 = vpop.permute.xlu0 %3439
      %v3442 = vmul.f32 %v3436, %v3440
      %vm3443 = vcmp.gt.f32.partialorder %v3442, 0.0
      %v3444 = vsel %vm3443, 0.0, %v3432
      %3446 = vset.pattern.permute.xlu0 7
      %3447 = vperm.xlu0 %3446, %v3444
      %v3448 = vpop.permute.xlu0 %3447
      %v3450 = vrot.slane %v3357, 7
      %3451 = vrot.lane.b32.xlu0 %v3450, 64
      %v3452 = vpop.permute.xlu0 %3451
      %v3454 = vmul.f32 %v3448, %v3452
      %vm3455 = vcmp.gt.f32.partialorder %v3454, 0.0
      %v3456 = vsel %vm3455, 0.0, %v3444
      %3458 = vset.pattern.permute.xlu0 8
      %3459 = vperm.xlu0 %3458, %v3456
      %v3460 = vpop.permute.xlu0 %3459
      %v3462 = vmul.f32 %v3460, %v3358
      %vm3463 = vcmp.gt.f32.partialorder %v3462, 0.0
      %3464 = vrot.lane.b32.xlu0 %v3456, 64
      %v3465 = vpop.permute.xlu0 %3464
      %v3467 = vsel %vm3463, 0.0, %v3465
      %3469 = vset.pattern.permute.xlu0 73
      %3470 = vperm.xlu0 %3469, %v3467
      %v3471 = vpop.permute.xlu0 %3470
      %v3474 = vrot.slane %v3358, 1
      %3475 = vrot.lane.b32.xlu0 %v3474, 64
      %v3476 = vpop.permute.xlu0 %3475
      %v3478 = vmul.f32 %v3471, %v3476
      %vm3479 = vcmp.gt.f32.partialorder %v3478, 0.0
      %3480 = vrot.lane.b32.xlu0 %v3467, 64
      %v3481 = vpop.permute.xlu0 %3480
      %v3483 = vsel %vm3479, 0.0, %v3481
      %3485 = vset.pattern.permute.xlu0 10
      %3486 = vperm.xlu0 %3485, %v3483
      %v3487 = vpop.permute.xlu0 %3486
      %v3489 = vrot.slane %v3358, 2
      %3490 = vrot.lane.b32.xlu0 %v3489, 64
      %v3491 = vpop.permute.xlu0 %3490
      %v3493 = vmul.f32 %v3487, %v3491
      %vm3494 = vcmp.gt.f32.partialorder %v3493, 0.0
      %v3495 = vsel %vm3494, 0.0, %v3483
      %3497 = vset.pattern.permute.xlu0 11
      %3498 = vperm.xlu0 %3497, %v3495
      %v3499 = vpop.permute.xlu0 %3498
      %v3501 = vrot.slane %v3358, 3
      %3502 = vrot.lane.b32.xlu0 %v3501, 64
      %v3503 = vpop.permute.xlu0 %3502
      %v3505 = vmul.f32 %v3499, %v3503
      %vm3506 = vcmp.gt.f32.partialorder %v3505, 0.0
      %v3507 = vsel %vm3506, 0.0, %v3495
      %3509 = vset.pattern.permute.xlu0 12
      %3510 = vperm.xlu0 %3509, %v3507
      %v3511 = vpop.permute.xlu0 %3510
      %v3513 = vrot.slane %v3358, 4
      %3514 = vrot.lane.b32.xlu0 %v3513, 64
      %v3515 = vpop.permute.xlu0 %3514
      %v3517 = vmul.f32 %v3511, %v3515
      %vm3518 = vcmp.gt.f32.partialorder %v3517, 0.0
      %v3519 = vsel %vm3518, 0.0, %v3507
      %3521 = vset.pattern.permute.xlu0 13
      %3522 = vperm.xlu0 %3521, %v3519
      %v3523 = vpop.permute.xlu0 %3522
      %v3525 = vrot.slane %v3358, 5
      %3526 = vrot.lane.b32.xlu0 %v3525, 64
      %v3527 = vpop.permute.xlu0 %3526
      %v3529 = vmul.f32 %v3523, %v3527
      %vm3530 = vcmp.gt.f32.partialorder %v3529, 0.0
      %v3531 = vsel %vm3530, 0.0, %v3519
      %3533 = vset.pattern.permute.xlu0 14
      %3534 = vperm.xlu0 %3533, %v3531
      %v3535 = vpop.permute.xlu0 %3534
      %v3537 = vrot.slane %v3358, 6
      %3538 = vrot.lane.b32.xlu0 %v3537, 64
      %v3539 = vpop.permute.xlu0 %3538
      %v3541 = vmul.f32 %v3535, %v3539
      %vm3542 = vcmp.gt.f32.partialorder %v3541, 0.0
      %v3543 = vsel %vm3542, 0.0, %v3531
      %3545 = vset.pattern.permute.xlu0 15
      %3546 = vperm.xlu0 %3545, %v3543
      %v3547 = vpop.permute.xlu0 %3546
      %v3549 = vrot.slane %v3358, 7
      %3550 = vrot.lane.b32.xlu0 %v3549, 64
      %v3551 = vpop.permute.xlu0 %3550
      %v3553 = vmul.f32 %v3547, %v3551
      %vm3554 = vcmp.gt.f32.partialorder %v3553, 0.0
      %v3555 = vsel %vm3554, 0.0, %v3543
      %3557 = vset.pattern.permute.xlu0 16
      %3558 = vperm.xlu0 %3557, %v3555
      %v3559 = vpop.permute.xlu0 %3558
      %v3561 = vmul.f32 %v3559, %v3359
      %vm3562 = vcmp.gt.f32.partialorder %v3561, 0.0
      %3563 = vrot.lane.b32.xlu0 %v3555, 64
      %v3564 = vpop.permute.xlu0 %3563
      %v3566 = vsel %vm3562, 0.0, %v3564
      %3568 = vset.pattern.permute.xlu0 81
      %3569 = vperm.xlu0 %3568, %v3566
      %v3570 = vpop.permute.xlu0 %3569
      %v3573 = vrot.slane %v3359, 1
      %3574 = vrot.lane.b32.xlu0 %v3573, 64
      %v3575 = vpop.permute.xlu0 %3574
      %v3577 = vmul.f32 %v3570, %v3575
      %vm3578 = vcmp.gt.f32.partialorder %v3577, 0.0
      %3579 = vrot.lane.b32.xlu0 %v3566, 64
      %v3580 = vpop.permute.xlu0 %3579
      %v3582 = vsel %vm3578, 0.0, %v3580
      %3584 = vset.pattern.permute.xlu0 18
      %3585 = vperm.xlu0 %3584, %v3582
      %v3586 = vpop.permute.xlu0 %3585
      %v3588 = vrot.slane %v3359, 2
      %3589 = vrot.lane.b32.xlu0 %v3588, 64
      %v3590 = vpop.permute.xlu0 %3589
      %v3592 = vmul.f32 %v3586, %v3590
      %vm3593 = vcmp.gt.f32.partialorder %v3592, 0.0
      %v3594 = vsel %vm3593, 0.0, %v3582
      %3596 = vset.pattern.permute.xlu0 19
      %3597 = vperm.xlu0 %3596, %v3594
      %v3598 = vpop.permute.xlu0 %3597
      %v3600 = vrot.slane %v3359, 3
      %3601 = vrot.lane.b32.xlu0 %v3600, 64
      %v3602 = vpop.permute.xlu0 %3601
      %v3604 = vmul.f32 %v3598, %v3602
      %vm3605 = vcmp.gt.f32.partialorder %v3604, 0.0
      %v3606 = vsel %vm3605, 0.0, %v3594
      %3608 = vset.pattern.permute.xlu0 20
      %3609 = vperm.xlu0 %3608, %v3606
      %v3610 = vpop.permute.xlu0 %3609
      %v3612 = vrot.slane %v3359, 4
      %3613 = vrot.lane.b32.xlu0 %v3612, 64
      %v3614 = vpop.permute.xlu0 %3613
      %v3616 = vmul.f32 %v3610, %v3614
      %vm3617 = vcmp.gt.f32.partialorder %v3616, 0.0
      %v3618 = vsel %vm3617, 0.0, %v3606
      %3620 = vset.pattern.permute.xlu0 21
      %3621 = vperm.xlu0 %3620, %v3618
      %v3622 = vpop.permute.xlu0 %3621
      %v3624 = vrot.slane %v3359, 5
      %3625 = vrot.lane.b32.xlu0 %v3624, 64
      %v3626 = vpop.permute.xlu0 %3625
      %v3628 = vmul.f32 %v3622, %v3626
      %vm3629 = vcmp.gt.f32.partialorder %v3628, 0.0
      %v3630 = vsel %vm3629, 0.0, %v3618
      %3632 = vset.pattern.permute.xlu0 22
      %3633 = vperm.xlu0 %3632, %v3630
      %v3634 = vpop.permute.xlu0 %3633
      %v3636 = vrot.slane %v3359, 6
      %3637 = vrot.lane.b32.xlu0 %v3636, 64
      %v3638 = vpop.permute.xlu0 %3637
      %v3640 = vmul.f32 %v3634, %v3638
      %vm3641 = vcmp.gt.f32.partialorder %v3640, 0.0
      %v3642 = vsel %vm3641, 0.0, %v3630
      %3644 = vset.pattern.permute.xlu0 23
      %3645 = vperm.xlu0 %3644, %v3642
      %v3646 = vpop.permute.xlu0 %3645
      %v3648 = vrot.slane %v3359, 7
      %3649 = vrot.lane.b32.xlu0 %v3648, 64
      %v3650 = vpop.permute.xlu0 %3649
      %v3652 = vmul.f32 %v3646, %v3650
      %vm3653 = vcmp.gt.f32.partialorder %v3652, 0.0
      %v3654 = vsel %vm3653, 0.0, %v3642
      %3656 = vset.pattern.permute.xlu0 24
      %3657 = vperm.xlu0 %3656, %v3654
      %v3658 = vpop.permute.xlu0 %3657
      %v3660 = vmul.f32 %v3658, %v3360
      %vm3661 = vcmp.gt.f32.partialorder %v3660, 0.0
      %3662 = vrot.lane.b32.xlu0 %v3654, 64
      %v3663 = vpop.permute.xlu0 %3662
      %v3665 = vsel %vm3661, 0.0, %v3663
      %3667 = vset.pattern.permute.xlu0 89
      %3668 = vperm.xlu0 %3667, %v3665
      %v3669 = vpop.permute.xlu0 %3668
      %v3672 = vrot.slane %v3360, 1
      %3673 = vrot.lane.b32.xlu0 %v3672, 64
      %v3674 = vpop.permute.xlu0 %3673
      %v3676 = vmul.f32 %v3669, %v3674
      %vm3677 = vcmp.gt.f32.partialorder %v3676, 0.0
      %3678 = vrot.lane.b32.xlu0 %v3665, 64
      %v3679 = vpop.permute.xlu0 %3678
      %v3681 = vsel %vm3677, 0.0, %v3679
      %3683 = vset.pattern.permute.xlu0 26
      %3684 = vperm.xlu0 %3683, %v3681
      %v3685 = vpop.permute.xlu0 %3684
      %v3687 = vrot.slane %v3360, 2
      %3688 = vrot.lane.b32.xlu0 %v3687, 64
      %v3689 = vpop.permute.xlu0 %3688
      %v3691 = vmul.f32 %v3685, %v3689
      %vm3692 = vcmp.gt.f32.partialorder %v3691, 0.0
      %v3693 = vsel %vm3692, 0.0, %v3681
      %3695 = vset.pattern.permute.xlu0 27
      %3696 = vperm.xlu0 %3695, %v3693
      %v3697 = vpop.permute.xlu0 %3696
      %v3699 = vrot.slane %v3360, 3
      %3700 = vrot.lane.b32.xlu0 %v3699, 64
      %v3701 = vpop.permute.xlu0 %3700
      %v3703 = vmul.f32 %v3697, %v3701
      %vm3704 = vcmp.gt.f32.partialorder %v3703, 0.0
      %v3705 = vsel %vm3704, 0.0, %v3693
      %3707 = vset.pattern.permute.xlu0 28
      %3708 = vperm.xlu0 %3707, %v3705
      %v3709 = vpop.permute.xlu0 %3708
      %v3711 = vrot.slane %v3360, 4
      %3712 = vrot.lane.b32.xlu0 %v3711, 64
      %v3713 = vpop.permute.xlu0 %3712
      %v3715 = vmul.f32 %v3709, %v3713
      %vm3716 = vcmp.gt.f32.partialorder %v3715, 0.0
      %v3717 = vsel %vm3716, 0.0, %v3705
      %3719 = vset.pattern.permute.xlu0 29
      %3720 = vperm.xlu0 %3719, %v3717
      %v3721 = vpop.permute.xlu0 %3720
      %v3723 = vrot.slane %v3360, 5
      %3724 = vrot.lane.b32.xlu0 %v3723, 64
      %v3725 = vpop.permute.xlu0 %3724
      %v3727 = vmul.f32 %v3721, %v3725
      %vm3728 = vcmp.gt.f32.partialorder %v3727, 0.0
      %v3729 = vsel %vm3728, 0.0, %v3717
      %3731 = vset.pattern.permute.xlu0 30
      %3732 = vperm.xlu0 %3731, %v3729
      %v3733 = vpop.permute.xlu0 %3732
      %v3735 = vrot.slane %v3360, 6
      %3736 = vrot.lane.b32.xlu0 %v3735, 64
      %v3737 = vpop.permute.xlu0 %3736
      %v3739 = vmul.f32 %v3733, %v3737
      %vm3740 = vcmp.gt.f32.partialorder %v3739, 0.0
      %v3741 = vsel %vm3740, 0.0, %v3729
      %3743 = vset.pattern.permute.xlu0 31
      %3744 = vperm.xlu0 %3743, %v3741
      %v3745 = vpop.permute.xlu0 %3744
      %v3747 = vrot.slane %v3360, 7
      %3748 = vrot.lane.b32.xlu0 %v3747, 64
      %v3749 = vpop.permute.xlu0 %3748
      %v3751 = vmul.f32 %v3745, %v3749
      %vm3752 = vcmp.gt.f32.partialorder %v3751, 0.0
      %v3753 = vsel %vm3752, 0.0, %v3741
      %v3754 = vlaneseq
      %v3755 = vshrl.u32 %v3754, 7
      %v3756 = vsub.s32 0, %v3755
      %v3757 = vrot.slane %v3753, %v3756
      %v3758 = vld [vmem:[#allocation2 + $0x80] sm:$0xff]
      %v3759 = vld [vmem:[#allocation2 + $0x88] sm:$0xff]
      %v3760 = vld [vmem:[#allocation2 + $0x90] sm:$0xff]
      %v3761 = vld [vmem:[#allocation2 + $0x98] sm:$0xff]
      %v3762 = vld [vmem:[#allocation2 + $0xa0] sm:$0xff]
      %v3763 = vld [vmem:[#allocation2 + $0xa8] sm:$0xff]
      %v3764 = vld [vmem:[#allocation2 + $0xb0] sm:$0xff]
      %v3765 = vld [vmem:[#allocation2 + $0xb8] sm:$0xff]
      %v3767 = vsel %vm2781, %v3757, 0
      %3769 = vmatprep.subr.mxu0 %v3759
      %3770 = vmatpush1.msra.mxu0 %v3758
      %3771 = vmatprep.subr.mxu0 %v3761
      %3772 = vmatpush1.msra.mxu0 %v3760
      %3773 = vmatprep.subr.mxu0 %v3763
      %3774 = vmatpush1.msra.mxu0 %v3762
      %3775 = vmatprep.subr.mxu0 %v3765
      %3776 = vmatpush1.msra.mxu0 %v3764
      %3777 = vmatprep.subr.mxu0 0.0
      %3778 = vmatpush1.msra.mxu0 0.0
      %3779 = vmatprep.subr.mxu0 0.0
      %3780 = vmatpush1.msra.mxu0 0.0
      %3781 = vmatprep.subr.mxu0 0.0
      %3782 = vmatpush1.msra.mxu0 0.0
      %3783 = vmatprep.subr.mxu0 0.0
      %3784 = vmatpush1.msra.mxu0 0.0
      %3785 = vmatprep.subr.mxu0 0.0
      %3786 = vmatpush1.msra.mxu0 0.0
      %3787 = vmatprep.subr.mxu0 0.0
      %3788 = vmatpush1.msra.mxu0 0.0
      %3789 = vmatprep.subr.mxu0 0.0
      %3790 = vmatpush1.msra.mxu0 0.0
      %3791 = vmatprep.subr.mxu0 0.0
      %3792 = vmatpush1.msra.mxu0 0.0
      %3793 = vmatprep.subr.mxu0 0.0
      %3794 = vmatpush1.msra.mxu0 0.0
      %3795 = vmatprep.subr.mxu0 0.0
      %3796 = vmatpush1.msra.mxu0 0.0
      %3797 = vmatprep.subr.mxu0 0.0
      %3798 = vmatpush1.msra.mxu0 0.0
      %3799 = vmatprep.subr.mxu0 0.0
      %3800 = vmatpush1.msra.mxu0 0.0
      %3801 = vmatprep.subr.mxu0 0.0
      %3802 = vmatpush1.msra.mxu0 0.0
      %3803 = vmatprep.subr.mxu0 0.0
      %3804 = vmatpush1.msra.mxu0 0.0
      %3805 = vmatprep.subr.mxu0 0.0
      %3806 = vmatpush1.msra.mxu0 0.0
      %3807 = vmatprep.subr.mxu0 0.0
      %3808 = vmatpush1.msra.mxu0 0.0
      %3809 = vmatprep.subr.mxu0 0.0
      %3810 = vmatpush1.msra.mxu0 0.0
      %3811 = vmatprep.subr.mxu0 0.0
      %3812 = vmatpush1.msra.mxu0 0.0
      %3813 = vmatprep.subr.mxu0 0.0
      %3814 = vmatpush1.msra.mxu0 0.0
      %3815 = vmatprep.subr.mxu0 0.0
      %3816 = vmatpush1.msra.mxu0 0.0
      %3817 = vmatprep.subr.mxu0 0.0
      %3818 = vmatpush1.msra.mxu0 0.0
      %3819 = vmatprep.subr.mxu0 0.0
      %3820 = vmatpush1.msra.mxu0 0.0
      %3821 = vmatprep.subr.mxu0 0.0
      %3822 = vmatpush1.msra.mxu0 0.0
      %3823 = vmatprep.subr.mxu0 0.0
      %3824 = vmatpush1.msra.mxu0 0.0
      %3825 = vmatprep.subr.mxu0 0.0
      %3826 = vmatpush1.msra.mxu0 0.0
      %3827 = vmatprep.subr.mxu0 0.0
      %3828 = vmatpush1.msra.mxu0 0.0
      %3829 = vmatprep.subr.mxu0 0.0
      %3830 = vmatpush1.msra.mxu0 0.0
      %3831 = vmatprep.subr.mxu0 0.0
      %3832 = vmatpush1.msra.mxu0 0.0
      %3833 = vmatprep.mubr.f32.mxu0 0.0
      %3834 = vmatmul.mubr.f32.gmra.mrb[0].mxu0 %v3767
      %v3835 = vpop.f32.mrb[0].mxu0
      %v3836 = vadd.f32 0.0, %v3835
      %v3837 = vpop.f32.mrb[0].mxu0
      %v3838 = vadd.f32 0.0, %v3837
      %3839 = vdwg.mxu0
      %vm3840 = vcmp.gt.f32.partialorder %v3836, 0.0
      %vm3841 = vcmp.gt.f32.partialorder %v3838, 0.0
      %v3842 = vsel %vm3840, 0.0, %v3355
      %v3843 = vsel %vm3841, 0.0, %v3356
      %v3844 = vld [vmem:[#allocation2 + $0xc0] sm:$0xff]
      %v3845 = vld [vmem:[#allocation2 + $0xd0] sm:$0xff]
      %v3846 = vld [vmem:[#allocation2 + $0xe0] sm:$0xff]
      %v3847 = vld [vmem:[#allocation2 + $0xf0] sm:$0xff]
      %3849 = vset.pattern.permute.xlu0 96
      %3850 = vperm.xlu0 %3849, %v3842
      %v3851 = vpop.permute.xlu0 %3850
      %v3853 = vmul.f32 %v3851, %v3844
      %vm3854 = vcmp.gt.f32.partialorder %v3853, 0.0
      %v3855 = vsel %vm3854, 0.0, %v3842
      %3857 = vset.pattern.permute.xlu0 97
      %3858 = vperm.xlu0 %3857, %v3855
      %v3859 = vpop.permute.xlu0 %3858
      %v3862 = vrot.slane %v3844, 1
      %3863 = vrot.lane.b32.xlu0 %v3862, 32
      %v3864 = vpop.permute.xlu0 %3863
      %v3866 = vmul.f32 %v3859, %v3864
      %vm3867 = vcmp.gt.f32.partialorder %v3866, 0.0
      %3868 = vrot.lane.b32.xlu0 %v3855, 32
      %v3869 = vpop.permute.xlu0 %3868
      %v3871 = vsel %vm3867, 0.0, %v3869
      %3873 = vset.pattern.permute.xlu0 2
      %3874 = vperm.xlu0 %3873, %v3871
      %v3875 = vpop.permute.xlu0 %3874
      %v3877 = vrot.slane %v3844, 2
      %3878 = vrot.lane.b32.xlu0 %v3877, 32
      %v3879 = vpop.permute.xlu0 %3878
      %v3881 = vmul.f32 %v3875, %v3879
      %vm3882 = vcmp.gt.f32.partialorder %v3881, 0.0
      %v3883 = vsel %vm3882, 0.0, %v3871
      %3885 = vset.pattern.permute.xlu0 3
      %3886 = vperm.xlu0 %3885, %v3883
      %v3887 = vpop.permute.xlu0 %3886
      %v3889 = vrot.slane %v3844, 3
      %3890 = vrot.lane.b32.xlu0 %v3889, 32
      %v3891 = vpop.permute.xlu0 %3890
      %v3893 = vmul.f32 %v3887, %v3891
      %vm3894 = vcmp.gt.f32.partialorder %v3893, 0.0
      %v3895 = vsel %vm3894, 0.0, %v3883
      %3897 = vset.pattern.permute.xlu0 4
      %3898 = vperm.xlu0 %3897, %v3895
      %v3899 = vpop.permute.xlu0 %3898
      %v3901 = vrot.slane %v3844, 4
      %3902 = vrot.lane.b32.xlu0 %v3901, 32
      %v3903 = vpop.permute.xlu0 %3902
      %v3905 = vmul.f32 %v3899, %v3903
      %vm3906 = vcmp.gt.f32.partialorder %v3905, 0.0
      %v3907 = vsel %vm3906, 0.0, %v3895
      %3909 = vset.pattern.permute.xlu0 5
      %3910 = vperm.xlu0 %3909, %v3907
      %v3911 = vpop.permute.xlu0 %3910
      %v3913 = vrot.slane %v3844, 5
      %3914 = vrot.lane.b32.xlu0 %v3913, 32
      %v3915 = vpop.permute.xlu0 %3914
      %v3917 = vmul.f32 %v3911, %v3915
      %vm3918 = vcmp.gt.f32.partialorder %v3917, 0.0
      %v3919 = vsel %vm3918, 0.0, %v3907
      %3921 = vset.pattern.permute.xlu0 6
      %3922 = vperm.xlu0 %3921, %v3919
      %v3923 = vpop.permute.xlu0 %3922
      %v3925 = vrot.slane %v3844, 6
      %3926 = vrot.lane.b32.xlu0 %v3925, 32
      %v3927 = vpop.permute.xlu0 %3926
      %v3929 = vmul.f32 %v3923, %v3927
      %vm3930 = vcmp.gt.f32.partialorder %v3929, 0.0
      %v3931 = vsel %vm3930, 0.0, %v3919
      %3933 = vset.pattern.permute.xlu0 7
      %3934 = vperm.xlu0 %3933, %v3931
      %v3935 = vpop.permute.xlu0 %3934
      %v3937 = vrot.slane %v3844, 7
      %3938 = vrot.lane.b32.xlu0 %v3937, 32
      %v3939 = vpop.permute.xlu0 %3938
      %v3941 = vmul.f32 %v3935, %v3939
      %vm3942 = vcmp.gt.f32.partialorder %v3941, 0.0
      %v3943 = vsel %vm3942, 0.0, %v3931
      %3945 = vset.pattern.permute.xlu0 8
      %3946 = vperm.xlu0 %3945, %v3943
      %v3947 = vpop.permute.xlu0 %3946
      %v3949 = vmul.f32 %v3947, %v3845
      %vm3950 = vcmp.gt.f32.partialorder %v3949, 0.0
      %3951 = vrot.lane.b32.xlu0 %v3943, 96
      %v3952 = vpop.permute.xlu0 %3951
      %v3954 = vsel %vm3950, 0.0, %v3952
      %3956 = vset.pattern.permute.xlu0 105
      %3957 = vperm.xlu0 %3956, %v3954
      %v3958 = vpop.permute.xlu0 %3957
      %v3961 = vrot.slane %v3845, 1
      %3962 = vrot.lane.b32.xlu0 %v3961, 32
      %v3963 = vpop.permute.xlu0 %3962
      %v3965 = vmul.f32 %v3958, %v3963
      %vm3966 = vcmp.gt.f32.partialorder %v3965, 0.0
      %3967 = vrot.lane.b32.xlu0 %v3954, 32
      %v3968 = vpop.permute.xlu0 %3967
      %v3970 = vsel %vm3966, 0.0, %v3968
      %3972 = vset.pattern.permute.xlu0 10
      %3973 = vperm.xlu0 %3972, %v3970
      %v3974 = vpop.permute.xlu0 %3973
      %v3976 = vrot.slane %v3845, 2
      %3977 = vrot.lane.b32.xlu0 %v3976, 32
      %v3978 = vpop.permute.xlu0 %3977
      %v3980 = vmul.f32 %v3974, %v3978
      %vm3981 = vcmp.gt.f32.partialorder %v3980, 0.0
      %v3982 = vsel %vm3981, 0.0, %v3970
      %3984 = vset.pattern.permute.xlu0 11
      %3985 = vperm.xlu0 %3984, %v3982
      %v3986 = vpop.permute.xlu0 %3985
      %v3988 = vrot.slane %v3845, 3
      %3989 = vrot.lane.b32.xlu0 %v3988, 32
      %v3990 = vpop.permute.xlu0 %3989
      %v3992 = vmul.f32 %v3986, %v3990
      %vm3993 = vcmp.gt.f32.partialorder %v3992, 0.0
      %v3994 = vsel %vm3993, 0.0, %v3982
      %3996 = vset.pattern.permute.xlu0 12
      %3997 = vperm.xlu0 %3996, %v3994
      %v3998 = vpop.permute.xlu0 %3997
      %v4000 = vrot.slane %v3845, 4
      %4001 = vrot.lane.b32.xlu0 %v4000, 32
      %v4002 = vpop.permute.xlu0 %4001
      %v4004 = vmul.f32 %v3998, %v4002
      %vm4005 = vcmp.gt.f32.partialorder %v4004, 0.0
      %v4006 = vsel %vm4005, 0.0, %v3994
      %4008 = vset.pattern.permute.xlu0 13
      %4009 = vperm.xlu0 %4008, %v4006
      %v4010 = vpop.permute.xlu0 %4009
      %v4012 = vrot.slane %v3845, 5
      %4013 = vrot.lane.b32.xlu0 %v4012, 32
      %v4014 = vpop.permute.xlu0 %4013
      %v4016 = vmul.f32 %v4010, %v4014
      %vm4017 = vcmp.gt.f32.partialorder %v4016, 0.0
      %v4018 = vsel %vm4017, 0.0, %v4006
      %4020 = vset.pattern.permute.xlu0 14
      %4021 = vperm.xlu0 %4020, %v4018
      %v4022 = vpop.permute.xlu0 %4021
      %v4024 = vrot.slane %v3845, 6
      %4025 = vrot.lane.b32.xlu0 %v4024, 32
      %v4026 = vpop.permute.xlu0 %4025
      %v4028 = vmul.f32 %v4022, %v4026
      %vm4029 = vcmp.gt.f32.partialorder %v4028, 0.0
      %v4030 = vsel %vm4029, 0.0, %v4018
      %4032 = vset.pattern.permute.xlu0 15
      %4033 = vperm.xlu0 %4032, %v4030
      %v4034 = vpop.permute.xlu0 %4033
      %v4036 = vrot.slane %v3845, 7
      %4037 = vrot.lane.b32.xlu0 %v4036, 32
      %v4038 = vpop.permute.xlu0 %4037
      %v4040 = vmul.f32 %v4034, %v4038
      %vm4041 = vcmp.gt.f32.partialorder %v4040, 0.0
      %v4042 = vsel %vm4041, 0.0, %v4030
      %4044 = vset.pattern.permute.xlu0 16
      %4045 = vperm.xlu0 %4044, %v4042
      %v4046 = vpop.permute.xlu0 %4045
      %v4048 = vmul.f32 %v4046, %v3846
      %vm4049 = vcmp.gt.f32.partialorder %v4048, 0.0
      %4050 = vrot.lane.b32.xlu0 %v4042, 96
      %v4051 = vpop.permute.xlu0 %4050
      %v4053 = vsel %vm4049, 0.0, %v4051
      %4055 = vset.pattern.permute.xlu0 113
      %4056 = vperm.xlu0 %4055, %v4053
      %v4057 = vpop.permute.xlu0 %4056
      %v4060 = vrot.slane %v3846, 1
      %4061 = vrot.lane.b32.xlu0 %v4060, 32
      %v4062 = vpop.permute.xlu0 %4061
      %v4064 = vmul.f32 %v4057, %v4062
      %vm4065 = vcmp.gt.f32.partialorder %v4064, 0.0
      %4066 = vrot.lane.b32.xlu0 %v4053, 32
      %v4067 = vpop.permute.xlu0 %4066
      %v4069 = vsel %vm4065, 0.0, %v4067
      %4071 = vset.pattern.permute.xlu0 18
      %4072 = vperm.xlu0 %4071, %v4069
      %v4073 = vpop.permute.xlu0 %4072
      %v4075 = vrot.slane %v3846, 2
      %4076 = vrot.lane.b32.xlu0 %v4075, 32
      %v4077 = vpop.permute.xlu0 %4076
      %v4079 = vmul.f32 %v4073, %v4077
      %vm4080 = vcmp.gt.f32.partialorder %v4079, 0.0
      %v4081 = vsel %vm4080, 0.0, %v4069
      %4083 = vset.pattern.permute.xlu0 19
      %4084 = vperm.xlu0 %4083, %v4081
      %v4085 = vpop.permute.xlu0 %4084
      %v4087 = vrot.slane %v3846, 3
      %4088 = vrot.lane.b32.xlu0 %v4087, 32
      %v4089 = vpop.permute.xlu0 %4088
      %v4091 = vmul.f32 %v4085, %v4089
      %vm4092 = vcmp.gt.f32.partialorder %v4091, 0.0
      %v4093 = vsel %vm4092, 0.0, %v4081
      %4095 = vset.pattern.permute.xlu0 20
      %4096 = vperm.xlu0 %4095, %v4093
      %v4097 = vpop.permute.xlu0 %4096
      %v4099 = vrot.slane %v3846, 4
      %4100 = vrot.lane.b32.xlu0 %v4099, 32
      %v4101 = vpop.permute.xlu0 %4100
      %v4103 = vmul.f32 %v4097, %v4101
      %vm4104 = vcmp.gt.f32.partialorder %v4103, 0.0
      %v4105 = vsel %vm4104, 0.0, %v4093
      %4107 = vset.pattern.permute.xlu0 21
      %4108 = vperm.xlu0 %4107, %v4105
      %v4109 = vpop.permute.xlu0 %4108
      %v4111 = vrot.slane %v3846, 5
      %4112 = vrot.lane.b32.xlu0 %v4111, 32
      %v4113 = vpop.permute.xlu0 %4112
      %v4115 = vmul.f32 %v4109, %v4113
      %vm4116 = vcmp.gt.f32.partialorder %v4115, 0.0
      %v4117 = vsel %vm4116, 0.0, %v4105
      %4119 = vset.pattern.permute.xlu0 22
      %4120 = vperm.xlu0 %4119, %v4117
      %v4121 = vpop.permute.xlu0 %4120
      %v4123 = vrot.slane %v3846, 6
      %4124 = vrot.lane.b32.xlu0 %v4123, 32
      %v4125 = vpop.permute.xlu0 %4124
      %v4127 = vmul.f32 %v4121, %v4125
      %vm4128 = vcmp.gt.f32.partialorder %v4127, 0.0
      %v4129 = vsel %vm4128, 0.0, %v4117
      %4131 = vset.pattern.permute.xlu0 23
      %4132 = vperm.xlu0 %4131, %v4129
      %v4133 = vpop.permute.xlu0 %4132
      %v4135 = vrot.slane %v3846, 7
      %4136 = vrot.lane.b32.xlu0 %v4135, 32
      %v4137 = vpop.permute.xlu0 %4136
      %v4139 = vmul.f32 %v4133, %v4137
      %vm4140 = vcmp.gt.f32.partialorder %v4139, 0.0
      %v4141 = vsel %vm4140, 0.0, %v4129
      %4143 = vset.pattern.permute.xlu0 24
      %4144 = vperm.xlu0 %4143, %v4141
      %v4145 = vpop.permute.xlu0 %4144
      %v4147 = vmul.f32 %v4145, %v3847
      %vm4148 = vcmp.gt.f32.partialorder %v4147, 0.0
      %4149 = vrot.lane.b32.xlu0 %v4141, 96
      %v4150 = vpop.permute.xlu0 %4149
      %v4152 = vsel %vm4148, 0.0, %v4150
      %4154 = vset.pattern.permute.xlu0 121
      %4155 = vperm.xlu0 %4154, %v4152
      %v4156 = vpop.permute.xlu0 %4155
      %v4159 = vrot.slane %v3847, 1
      %4160 = vrot.lane.b32.xlu0 %v4159, 32
      %v4161 = vpop.permute.xlu0 %4160
      %v4163 = vmul.f32 %v4156, %v4161
      %vm4164 = vcmp.gt.f32.partialorder %v4163, 0.0
      %4165 = vrot.lane.b32.xlu0 %v4152, 32
      %v4166 = vpop.permute.xlu0 %4165
      %v4168 = vsel %vm4164, 0.0, %v4166
      %4170 = vset.pattern.permute.xlu0 26
      %4171 = vperm.xlu0 %4170, %v4168
      %v4172 = vpop.permute.xlu0 %4171
      %v4174 = vrot.slane %v3847, 2
      %4175 = vrot.lane.b32.xlu0 %v4174, 32
      %v4176 = vpop.permute.xlu0 %4175
      %v4178 = vmul.f32 %v4172, %v4176
      %vm4179 = vcmp.gt.f32.partialorder %v4178, 0.0
      %v4180 = vsel %vm4179, 0.0, %v4168
      %4182 = vset.pattern.permute.xlu0 27
      %4183 = vperm.xlu0 %4182, %v4180
      %v4184 = vpop.permute.xlu0 %4183
      %v4186 = vrot.slane %v3847, 3
      %4187 = vrot.lane.b32.xlu0 %v4186, 32
      %v4188 = vpop.permute.xlu0 %4187
      %v4190 = vmul.f32 %v4184, %v4188
      %vm4191 = vcmp.gt.f32.partialorder %v4190, 0.0
      %v4192 = vsel %vm4191, 0.0, %v4180
      %4194 = vset.pattern.permute.xlu0 28
      %4195 = vperm.xlu0 %4194, %v4192
      %v4196 = vpop.permute.xlu0 %4195
      %v4198 = vrot.slane %v3847, 4
      %4199 = vrot.lane.b32.xlu0 %v4198, 32
      %v4200 = vpop.permute.xlu0 %4199
      %v4202 = vmul.f32 %v4196, %v4200
      %vm4203 = vcmp.gt.f32.partialorder %v4202, 0.0
      %v4204 = vsel %vm4203, 0.0, %v4192
      %4206 = vset.pattern.permute.xlu0 29
      %4207 = vperm.xlu0 %4206, %v4204
      %v4208 = vpop.permute.xlu0 %4207
      %v4210 = vrot.slane %v3847, 5
      %4211 = vrot.lane.b32.xlu0 %v4210, 32
      %v4212 = vpop.permute.xlu0 %4211
      %v4214 = vmul.f32 %v4208, %v4212
      %vm4215 = vcmp.gt.f32.partialorder %v4214, 0.0
      %v4216 = vsel %vm4215, 0.0, %v4204
      %4218 = vset.pattern.permute.xlu0 30
      %4219 = vperm.xlu0 %4218, %v4216
      %v4220 = vpop.permute.xlu0 %4219
      %v4222 = vrot.slane %v3847, 6
      %4223 = vrot.lane.b32.xlu0 %v4222, 32
      %v4224 = vpop.permute.xlu0 %4223
      %v4226 = vmul.f32 %v4220, %v4224
      %vm4227 = vcmp.gt.f32.partialorder %v4226, 0.0
      %v4228 = vsel %vm4227, 0.0, %v4216
      %4230 = vset.pattern.permute.xlu0 31
      %4231 = vperm.xlu0 %4230, %v4228
      %v4232 = vpop.permute.xlu0 %4231
      %v4234 = vrot.slane %v3847, 7
      %4235 = vrot.lane.b32.xlu0 %v4234, 32
      %v4236 = vpop.permute.xlu0 %4235
      %v4238 = vmul.f32 %v4232, %v4236
      %vm4239 = vcmp.gt.f32.partialorder %v4238, 0.0
      %v4240 = vsel %vm4239, 0.0, %v4228
      %v4241 = vlaneseq
      %v4242 = vshrl.u32 %v4241, 7
      %v4243 = vsub.s32 0, %v4242
      %v4244 = vrot.slane %v4240, %v4243
      %v4245 = vld [vmem:[#allocation2 + $0xc0] sm:$0xff]
      %v4246 = vld [vmem:[#allocation2 + $0xc8] sm:$0xff]
      %v4247 = vld [vmem:[#allocation2 + $0xd0] sm:$0xff]
      %v4248 = vld [vmem:[#allocation2 + $0xd8] sm:$0xff]
      %v4249 = vld [vmem:[#allocation2 + $0xe0] sm:$0xff]
      %v4250 = vld [vmem:[#allocation2 + $0xe8] sm:$0xff]
      %v4251 = vld [vmem:[#allocation2 + $0xf0] sm:$0xff]
      %v4252 = vld [vmem:[#allocation2 + $0xf8] sm:$0xff]
      %v4254 = vsel %vm2781, %v4244, 0
      %4256 = vmatprep.subr.mxu0 %v4246
      %4257 = vmatpush1.msra.mxu0 %v4245
      %4258 = vmatprep.subr.mxu0 %v4248
      %4259 = vmatpush1.msra.mxu0 %v4247
      %4260 = vmatprep.subr.mxu0 %v4250
      %4261 = vmatpush1.msra.mxu0 %v4249
      %4262 = vmatprep.subr.mxu0 %v4252
      %4263 = vmatpush1.msra.mxu0 %v4251
      %4264 = vmatprep.subr.mxu0 0.0
      %4265 = vmatpush1.msra.mxu0 0.0
      %4266 = vmatprep.subr.mxu0 0.0
      %4267 = vmatpush1.msra.mxu0 0.0
      %4268 = vmatprep.subr.mxu0 0.0
      %4269 = vmatpush1.msra.mxu0 0.0
      %4270 = vmatprep.subr.mxu0 0.0
      %4271 = vmatpush1.msra.mxu0 0.0
      %4272 = vmatprep.subr.mxu0 0.0
      %4273 = vmatpush1.msra.mxu0 0.0
      %4274 = vmatprep.subr.mxu0 0.0
      %4275 = vmatpush1.msra.mxu0 0.0
      %4276 = vmatprep.subr.mxu0 0.0
      %4277 = vmatpush1.msra.mxu0 0.0
      %4278 = vmatprep.subr.mxu0 0.0
      %4279 = vmatpush1.msra.mxu0 0.0
      %4280 = vmatprep.subr.mxu0 0.0
      %4281 = vmatpush1.msra.mxu0 0.0
      %4282 = vmatprep.subr.mxu0 0.0
      %4283 = vmatpush1.msra.mxu0 0.0
      %4284 = vmatprep.subr.mxu0 0.0
      %4285 = vmatpush1.msra.mxu0 0.0
      %4286 = vmatprep.subr.mxu0 0.0
      %4287 = vmatpush1.msra.mxu0 0.0
      %4288 = vmatprep.subr.mxu0 0.0
      %4289 = vmatpush1.msra.mxu0 0.0
      %4290 = vmatprep.subr.mxu0 0.0
      %4291 = vmatpush1.msra.mxu0 0.0
      %4292 = vmatprep.subr.mxu0 0.0
      %4293 = vmatpush1.msra.mxu0 0.0
      %4294 = vmatprep.subr.mxu0 0.0
      %4295 = vmatpush1.msra.mxu0 0.0
      %4296 = vmatprep.subr.mxu0 0.0
      %4297 = vmatpush1.msra.mxu0 0.0
      %4298 = vmatprep.subr.mxu0 0.0
      %4299 = vmatpush1.msra.mxu0 0.0
      %4300 = vmatprep.subr.mxu0 0.0
      %4301 = vmatpush1.msra.mxu0 0.0
      %4302 = vmatprep.subr.mxu0 0.0
      %4303 = vmatpush1.msra.mxu0 0.0
      %4304 = vmatprep.subr.mxu0 0.0
      %4305 = vmatpush1.msra.mxu0 0.0
      %4306 = vmatprep.subr.mxu0 0.0
      %4307 = vmatpush1.msra.mxu0 0.0
      %4308 = vmatprep.subr.mxu0 0.0
      %4309 = vmatpush1.msra.mxu0 0.0
      %4310 = vmatprep.subr.mxu0 0.0
      %4311 = vmatpush1.msra.mxu0 0.0
      %4312 = vmatprep.subr.mxu0 0.0
      %4313 = vmatpush1.msra.mxu0 0.0
      %4314 = vmatprep.subr.mxu0 0.0
      %4315 = vmatpush1.msra.mxu0 0.0
      %4316 = vmatprep.subr.mxu0 0.0
      %4317 = vmatpush1.msra.mxu0 0.0
      %4318 = vmatprep.subr.mxu0 0.0
      %4319 = vmatpush1.msra.mxu0 0.0
      %4320 = vmatprep.mubr.f32.mxu0 0.0
      %4321 = vmatmul.mubr.f32.gmra.mrb[0].mxu0 %v4254
      %v4322 = vpop.f32.mrb[0].mxu0
      %v4323 = vadd.f32 0.0, %v4322
      %v4324 = vpop.f32.mrb[0].mxu0
      %v4325 = vadd.f32 0.0, %v4324
      %4326 = vdwg.mxu0
      %vm4327 = vcmp.gt.f32.partialorder %v4323, 0.0
      %vm4328 = vcmp.gt.f32.partialorder %v4325, 0.0
      %v4329 = vsel %vm4327, 0.0, %v3842
      %v4330 = vsel %vm4328, 0.0, %v3843
      %v4331 = vld [vmem:[#allocation2 + $0x108] sm:$0xff]
      %v4332 = vld [vmem:[#allocation2 + $0x118] sm:$0xff]
      %v4333 = vld [vmem:[#allocation2 + $0x128] sm:$0xff]
      %v4334 = vld [vmem:[#allocation2 + $0x138] sm:$0xff]
      %4336 = vset.pattern.permute.xlu0 0
      %4337 = vperm.xlu0 %4336, %v4330
      %v4338 = vpop.permute.xlu0 %4337
      %v4340 = vmul.f32 %v4338, %v4331
      %vm4341 = vcmp.gt.f32.partialorder %v4340, 0.0
      %v4342 = vsel %vm4341, 0.0, %v4330
      %4344 = vset.pattern.permute.xlu0 1
      %4345 = vperm.xlu0 %4344, %v4342
      %v4346 = vpop.permute.xlu0 %4345
      %v4349 = vrot.slane %v4331, 1
      %v4351 = vmul.f32 %v4346, %v4349
      %vm4352 = vcmp.gt.f32.partialorder %v4351, 0.0
      %v4353 = vsel %vm4352, 0.0, %v4342
      %4355 = vset.pattern.permute.xlu0 2
      %4356 = vperm.xlu0 %4355, %v4353
      %v4357 = vpop.permute.xlu0 %4356
      %v4359 = vrot.slane %v4331, 2
      %v4361 = vmul.f32 %v4357, %v4359
      %vm4362 = vcmp.gt.f32.partialorder %v4361, 0.0
      %v4363 = vsel %vm4362, 0.0, %v4353
      %4365 = vset.pattern.permute.xlu0 3
      %4366 = vperm.xlu0 %4365, %v4363
      %v4367 = vpop.permute.xlu0 %4366
      %v4369 = vrot.slane %v4331, 3
      %v4371 = vmul.f32 %v4367, %v4369
      %vm4372 = vcmp.gt.f32.partialorder %v4371, 0.0
      %v4373 = vsel %vm4372, 0.0, %v4363
      %4375 = vset.pattern.permute.xlu0 4
      %4376 = vperm.xlu0 %4375, %v4373
      %v4377 = vpop.permute.xlu0 %4376
      %v4379 = vrot.slane %v4331, 4
      %v4381 = vmul.f32 %v4377, %v4379
      %vm4382 = vcmp.gt.f32.partialorder %v4381, 0.0
      %v4383 = vsel %vm4382, 0.0, %v4373
      %4385 = vset.pattern.permute.xlu0 5
      %4386 = vperm.xlu0 %4385, %v4383
      %v4387 = vpop.permute.xlu0 %4386
      %v4389 = vrot.slane %v4331, 5
      %v4391 = vmul.f32 %v4387, %v4389
      %vm4392 = vcmp.gt.f32.partialorder %v4391, 0.0
      %v4393 = vsel %vm4392, 0.0, %v4383
      %4395 = vset.pattern.permute.xlu0 6
      %4396 = vperm.xlu0 %4395, %v4393
      %v4397 = vpop.permute.xlu0 %4396
      %v4399 = vrot.slane %v4331, 6
      %v4401 = vmul.f32 %v4397, %v4399
      %vm4402 = vcmp.gt.f32.partialorder %v4401, 0.0
      %v4403 = vsel %vm4402, 0.0, %v4393
      %4405 = vset.pattern.permute.xlu0 7
      %4406 = vperm.xlu0 %4405, %v4403
      %v4407 = vpop.permute.xlu0 %4406
      %v4409 = vrot.slane %v4331, 7
      %v4411 = vmul.f32 %v4407, %v4409
      %vm4412 = vcmp.gt.f32.partialorder %v4411, 0.0
      %v4413 = vsel %vm4412, 0.0, %v4403
      %4415 = vset.pattern.permute.xlu0 8
      %4416 = vperm.xlu0 %4415, %v4413
      %v4417 = vpop.permute.xlu0 %4416
      %v4419 = vmul.f32 %v4417, %v4332
      %vm4420 = vcmp.gt.f32.partialorder %v4419, 0.0
      %v4421 = vsel %vm4420, 0.0, %v4413
      %4423 = vset.pattern.permute.xlu0 9
      %4424 = vperm.xlu0 %4423, %v4421
      %v4425 = vpop.permute.xlu0 %4424
      %v4428 = vrot.slane %v4332, 1
      %v4430 = vmul.f32 %v4425, %v4428
      %vm4431 = vcmp.gt.f32.partialorder %v4430, 0.0
      %v4432 = vsel %vm4431, 0.0, %v4421
      %4434 = vset.pattern.permute.xlu0 10
      %4435 = vperm.xlu0 %4434, %v4432
      %v4436 = vpop.permute.xlu0 %4435
      %v4438 = vrot.slane %v4332, 2
      %v4440 = vmul.f32 %v4436, %v4438
      %vm4441 = vcmp.gt.f32.partialorder %v4440, 0.0
      %v4442 = vsel %vm4441, 0.0, %v4432
      %4444 = vset.pattern.permute.xlu0 11
      %4445 = vperm.xlu0 %4444, %v4442
      %v4446 = vpop.permute.xlu0 %4445
      %v4448 = vrot.slane %v4332, 3
      %v4450 = vmul.f32 %v4446, %v4448
      %vm4451 = vcmp.gt.f32.partialorder %v4450, 0.0
      %v4452 = vsel %vm4451, 0.0, %v4442
      %4454 = vset.pattern.permute.xlu0 12
      %4455 = vperm.xlu0 %4454, %v4452
      %v4456 = vpop.permute.xlu0 %4455
      %v4458 = vrot.slane %v4332, 4
      %v4460 = vmul.f32 %v4456, %v4458
      %vm4461 = vcmp.gt.f32.partialorder %v4460, 0.0
      %v4462 = vsel %vm4461, 0.0, %v4452
      %4464 = vset.pattern.permute.xlu0 13
      %4465 = vperm.xlu0 %4464, %v4462
      %v4466 = vpop.permute.xlu0 %4465
      %v4468 = vrot.slane %v4332, 5
      %v4470 = vmul.f32 %v4466, %v4468
      %vm4471 = vcmp.gt.f32.partialorder %v4470, 0.0
      %v4472 = vsel %vm4471, 0.0, %v4462
      %4474 = vset.pattern.permute.xlu0 14
      %4475 = vperm.xlu0 %4474, %v4472
      %v4476 = vpop.permute.xlu0 %4475
      %v4478 = vrot.slane %v4332, 6
      %v4480 = vmul.f32 %v4476, %v4478
      %vm4481 = vcmp.gt.f32.partialorder %v4480, 0.0
      %v4482 = vsel %vm4481, 0.0, %v4472
      %4484 = vset.pattern.permute.xlu0 15
      %4485 = vperm.xlu0 %4484, %v4482
      %v4486 = vpop.permute.xlu0 %4485
      %v4488 = vrot.slane %v4332, 7
      %v4490 = vmul.f32 %v4486, %v4488
      %vm4491 = vcmp.gt.f32.partialorder %v4490, 0.0
      %v4492 = vsel %vm4491, 0.0, %v4482
      %4494 = vset.pattern.permute.xlu0 16
      %4495 = vperm.xlu0 %4494, %v4492
      %v4496 = vpop.permute.xlu0 %4495
      %v4498 = vmul.f32 %v4496, %v4333
      %vm4499 = vcmp.gt.f32.partialorder %v4498, 0.0
      %v4500 = vsel %vm4499, 0.0, %v4492
      %4502 = vset.pattern.permute.xlu0 17
      %4503 = vperm.xlu0 %4502, %v4500
      %v4504 = vpop.permute.xlu0 %4503
      %v4507 = vrot.slane %v4333, 1
      %v4509 = vmul.f32 %v4504, %v4507
      %vm4510 = vcmp.gt.f32.partialorder %v4509, 0.0
      %v4511 = vsel %vm4510, 0.0, %v4500
      %4513 = vset.pattern.permute.xlu0 18
      %4514 = vperm.xlu0 %4513, %v4511
      %v4515 = vpop.permute.xlu0 %4514
      %v4517 = vrot.slane %v4333, 2
      %v4519 = vmul.f32 %v4515, %v4517
      %vm4520 = vcmp.gt.f32.partialorder %v4519, 0.0
      %v4521 = vsel %vm4520, 0.0, %v4511
      %4523 = vset.pattern.permute.xlu0 19
      %4524 = vperm.xlu0 %4523, %v4521
      %v4525 = vpop.permute.xlu0 %4524
      %v4527 = vrot.slane %v4333, 3
      %v4529 = vmul.f32 %v4525, %v4527
      %vm4530 = vcmp.gt.f32.partialorder %v4529, 0.0
      %v4531 = vsel %vm4530, 0.0, %v4521
      %4533 = vset.pattern.permute.xlu0 20
      %4534 = vperm.xlu0 %4533, %v4531
      %v4535 = vpop.permute.xlu0 %4534
      %v4537 = vrot.slane %v4333, 4
      %v4539 = vmul.f32 %v4535, %v4537
      %vm4540 = vcmp.gt.f32.partialorder %v4539, 0.0
      %v4541 = vsel %vm4540, 0.0, %v4531
      %4543 = vset.pattern.permute.xlu0 21
      %4544 = vperm.xlu0 %4543, %v4541
      %v4545 = vpop.permute.xlu0 %4544
      %v4547 = vrot.slane %v4333, 5
      %v4549 = vmul.f32 %v4545, %v4547
      %vm4550 = vcmp.gt.f32.partialorder %v4549, 0.0
      %v4551 = vsel %vm4550, 0.0, %v4541
      %4553 = vset.pattern.permute.xlu0 22
      %4554 = vperm.xlu0 %4553, %v4551
      %v4555 = vpop.permute.xlu0 %4554
      %v4557 = vrot.slane %v4333, 6
      %v4559 = vmul.f32 %v4555, %v4557
      %vm4560 = vcmp.gt.f32.partialorder %v4559, 0.0
      %v4561 = vsel %vm4560, 0.0, %v4551
      %4563 = vset.pattern.permute.xlu0 23
      %4564 = vperm.xlu0 %4563, %v4561
      %v4565 = vpop.permute.xlu0 %4564
      %v4567 = vrot.slane %v4333, 7
      %v4569 = vmul.f32 %v4565, %v4567
      %vm4570 = vcmp.gt.f32.partialorder %v4569, 0.0
      %v4571 = vsel %vm4570, 0.0, %v4561
      %4573 = vset.pattern.permute.xlu0 24
      %4574 = vperm.xlu0 %4573, %v4571
      %v4575 = vpop.permute.xlu0 %4574
      %v4577 = vmul.f32 %v4575, %v4334
      %vm4578 = vcmp.gt.f32.partialorder %v4577, 0.0
      %v4579 = vsel %vm4578, 0.0, %v4571
      %4581 = vset.pattern.permute.xlu0 25
      %4582 = vperm.xlu0 %4581, %v4579
      %v4583 = vpop.permute.xlu0 %4582
      %v4586 = vrot.slane %v4334, 1
      %v4588 = vmul.f32 %v4583, %v4586
      %vm4589 = vcmp.gt.f32.partialorder %v4588, 0.0
      %v4590 = vsel %vm4589, 0.0, %v4579
      %4592 = vset.pattern.permute.xlu0 26
      %4593 = vperm.xlu0 %4592, %v4590
      %v4594 = vpop.permute.xlu0 %4593
      %v4596 = vrot.slane %v4334, 2
      %v4598 = vmul.f32 %v4594, %v4596
      %vm4599 = vcmp.gt.f32.partialorder %v4598, 0.0
      %v4600 = vsel %vm4599, 0.0, %v4590
      %4602 = vset.pattern.permute.xlu0 27
      %4603 = vperm.xlu0 %4602, %v4600
      %v4604 = vpop.permute.xlu0 %4603
      %v4606 = vrot.slane %v4334, 3
      %v4608 = vmul.f32 %v4604, %v4606
      %vm4609 = vcmp.gt.f32.partialorder %v4608, 0.0
      %v4610 = vsel %vm4609, 0.0, %v4600
      %4612 = vset.pattern.permute.xlu0 28
      %4613 = vperm.xlu0 %4612, %v4610
      %v4614 = vpop.permute.xlu0 %4613
      %v4616 = vrot.slane %v4334, 4
      %v4618 = vmul.f32 %v4614, %v4616
      %vm4619 = vcmp.gt.f32.partialorder %v4618, 0.0
      %v4620 = vsel %vm4619, 0.0, %v4610
      %4622 = vset.pattern.permute.xlu0 29
      %4623 = vperm.xlu0 %4622, %v4620
      %v4624 = vpop.permute.xlu0 %4623
      %v4626 = vrot.slane %v4334, 5
      %v4628 = vmul.f32 %v4624, %v4626
      %vm4629 = vcmp.gt.f32.partialorder %v4628, 0.0
      %v4630 = vsel %vm4629, 0.0, %v4620
      %4632 = vset.pattern.permute.xlu0 30
      %4633 = vperm.xlu0 %4632, %v4630
      %v4634 = vpop.permute.xlu0 %4633
      %v4636 = vrot.slane %v4334, 6
      %v4638 = vmul.f32 %v4634, %v4636
      %vm4639 = vcmp.gt.f32.partialorder %v4638, 0.0
      %v4640 = vsel %vm4639, 0.0, %v4630
      %4642 = vset.pattern.permute.xlu0 31
      %4643 = vperm.xlu0 %4642, %v4640
      %v4644 = vpop.permute.xlu0 %4643
      %v4646 = vrot.slane %v4334, 7
      %v4648 = vmul.f32 %v4644, %v4646
      %vm4649 = vcmp.gt.f32.partialorder %v4648, 0.0
      %v4650 = vsel %vm4649, 0.0, %v4640
      %v4651 = vlaneseq
      %v4652 = vshrl.u32 %v4651, 7
      %v4653 = vsub.s32 0, %v4652
      %v4654 = vrot.slane %v4650, %v4653
      %v4655 = vld [vmem:[#allocation2 + $0x100] sm:$0xff]
      %v4656 = vld [vmem:[#allocation2 + $0x110] sm:$0xff]
      %v4657 = vld [vmem:[#allocation2 + $0x120] sm:$0xff]
      %v4658 = vld [vmem:[#allocation2 + $0x130] sm:$0xff]
      %v4660 = vsel %vm2781, %v4654, 0
      %4662 = vmatprep.subr.mxu0 %v4331
      %4663 = vmatpush1.msra.mxu0 %v4655
      %4664 = vmatprep.subr.mxu0 %v4332
      %4665 = vmatpush1.msra.mxu0 %v4656
      %4666 = vmatprep.subr.mxu0 %v4333
      %4667 = vmatpush1.msra.mxu0 %v4657
      %4668 = vmatprep.subr.mxu0 %v4334
      %4669 = vmatpush1.msra.mxu0 %v4658
      %4670 = vmatprep.subr.mxu0 0.0
      %4671 = vmatpush1.msra.mxu0 0.0
      %4672 = vmatprep.subr.mxu0 0.0
      %4673 = vmatpush1.msra.mxu0 0.0
      %4674 = vmatprep.subr.mxu0 0.0
      %4675 = vmatpush1.msra.mxu0 0.0
      %4676 = vmatprep.subr.mxu0 0.0
      %4677 = vmatpush1.msra.mxu0 0.0
      %4678 = vmatprep.subr.mxu0 0.0
      %4679 = vmatpush1.msra.mxu0 0.0
      %4680 = vmatprep.subr.mxu0 0.0
      %4681 = vmatpush1.msra.mxu0 0.0
      %4682 = vmatprep.subr.mxu0 0.0
      %4683 = vmatpush1.msra.mxu0 0.0
      %4684 = vmatprep.subr.mxu0 0.0
      %4685 = vmatpush1.msra.mxu0 0.0
      %4686 = vmatprep.subr.mxu0 0.0
      %4687 = vmatpush1.msra.mxu0 0.0
      %4688 = vmatprep.subr.mxu0 0.0
      %4689 = vmatpush1.msra.mxu0 0.0
      %4690 = vmatprep.subr.mxu0 0.0
      %4691 = vmatpush1.msra.mxu0 0.0
      %4692 = vmatprep.subr.mxu0 0.0
      %4693 = vmatpush1.msra.mxu0 0.0
      %4694 = vmatprep.subr.mxu0 0.0
      %4695 = vmatpush1.msra.mxu0 0.0
      %4696 = vmatprep.subr.mxu0 0.0
      %4697 = vmatpush1.msra.mxu0 0.0
      %4698 = vmatprep.subr.mxu0 0.0
      %4699 = vmatpush1.msra.mxu0 0.0
      %4700 = vmatprep.subr.mxu0 0.0
      %4701 = vmatpush1.msra.mxu0 0.0
      %4702 = vmatprep.subr.mxu0 0.0
      %4703 = vmatpush1.msra.mxu0 0.0
      %4704 = vmatprep.subr.mxu0 0.0
      %4705 = vmatpush1.msra.mxu0 0.0
      %4706 = vmatprep.subr.mxu0 0.0
      %4707 = vmatpush1.msra.mxu0 0.0
      %4708 = vmatprep.subr.mxu0 0.0
      %4709 = vmatpush1.msra.mxu0 0.0
      %4710 = vmatprep.subr.mxu0 0.0
      %4711 = vmatpush1.msra.mxu0 0.0
      %4712 = vmatprep.subr.mxu0 0.0
      %4713 = vmatpush1.msra.mxu0 0.0
      %4714 = vmatprep.subr.mxu0 0.0
      %4715 = vmatpush1.msra.mxu0 0.0
      %4716 = vmatprep.subr.mxu0 0.0
      %4717 = vmatpush1.msra.mxu0 0.0
      %4718 = vmatprep.subr.mxu0 0.0
      %4719 = vmatpush1.msra.mxu0 0.0
      %4720 = vmatprep.subr.mxu0 0.0
      %4721 = vmatpush1.msra.mxu0 0.0
      %4722 = vmatprep.subr.mxu0 0.0
      %4723 = vmatpush1.msra.mxu0 0.0
      %4724 = vmatprep.subr.mxu0 0.0
      %4725 = vmatpush1.msra.mxu0 0.0
      %4726 = vmatprep.mubr.f32.mxu0 0.0
      %4727 = vmatmul.mubr.f32.gmra.mrb[0].mxu0 %v4660
      %v4728 = vpop.f32.mrb[0].mxu0
      %v4729 = vadd.f32 0.0, %v4728
      %v4730 = vpop.f32.mrb[0].mxu0
      %v4731 = vadd.f32 0.0, %v4730
      %4732 = vdwg.mxu0
      %vm4733 = vcmp.gt.f32.partialorder %v4729, 0.0
      %vm4734 = vcmp.gt.f32.partialorder %v4731, 0.0
      %v4735 = vsel %vm4733, 0.0, %v4329
      %v4736 = vsel %vm4734, 0.0, %v4330
      %v4737 = vld [vmem:[#allocation2 + $0x148] sm:$0xff]
      %v4738 = vld [vmem:[#allocation2 + $0x158] sm:$0xff]
      %v4739 = vld [vmem:[#allocation2 + $0x168] sm:$0xff]
      %v4740 = vld [vmem:[#allocation2 + $0x178] sm:$0xff]
      %4742 = vset.pattern.permute.xlu0 32
      %4743 = vperm.xlu0 %4742, %v4736
      %v4744 = vpop.permute.xlu0 %4743
      %v4746 = vmul.f32 %v4744, %v4737
      %vm4747 = vcmp.gt.f32.partialorder %v4746, 0.0
      %v4748 = vsel %vm4747, 0.0, %v4736
      %4750 = vset.pattern.permute.xlu0 33
      %4751 = vperm.xlu0 %4750, %v4748
      %v4752 = vpop.permute.xlu0 %4751
      %v4755 = vrot.slane %v4737, 1
      %4756 = vrot.lane.b32.xlu0 %v4755, 96
      %v4757 = vpop.permute.xlu0 %4756
      %v4759 = vmul.f32 %v4752, %v4757
      %vm4760 = vcmp.gt.f32.partialorder %v4759, 0.0
      %4761 = vrot.lane.b32.xlu0 %v4748, 96
      %v4762 = vpop.permute.xlu0 %4761
      %v4764 = vsel %vm4760, 0.0, %v4762
      %4766 = vset.pattern.permute.xlu0 2
      %4767 = vperm.xlu0 %4766, %v4764
      %v4768 = vpop.permute.xlu0 %4767
      %v4770 = vrot.slane %v4737, 2
      %4771 = vrot.lane.b32.xlu0 %v4770, 96
      %v4772 = vpop.permute.xlu0 %4771
      %v4774 = vmul.f32 %v4768, %v4772
      %vm4775 = vcmp.gt.f32.partialorder %v4774, 0.0
      %v4776 = vsel %vm4775, 0.0, %v4764
      %4778 = vset.pattern.permute.xlu0 3
      %4779 = vperm.xlu0 %4778, %v4776
      %v4780 = vpop.permute.xlu0 %4779
      %v4782 = vrot.slane %v4737, 3
      %4783 = vrot.lane.b32.xlu0 %v4782, 96
      %v4784 = vpop.permute.xlu0 %4783
      %v4786 = vmul.f32 %v4780, %v4784
      %vm4787 = vcmp.gt.f32.partialorder %v4786, 0.0
      %v4788 = vsel %vm4787, 0.0, %v4776
      %4790 = vset.pattern.permute.xlu0 4
      %4791 = vperm.xlu0 %4790, %v4788
      %v4792 = vpop.permute.xlu0 %4791
      %v4794 = vrot.slane %v4737, 4
      %4795 = vrot.lane.b32.xlu0 %v4794, 96
      %v4796 = vpop.permute.xlu0 %4795
      %v4798 = vmul.f32 %v4792, %v4796
      %vm4799 = vcmp.gt.f32.partialorder %v4798, 0.0
      %v4800 = vsel %vm4799, 0.0, %v4788
      %4802 = vset.pattern.permute.xlu0 5
      %4803 = vperm.xlu0 %4802, %v4800
      %v4804 = vpop.permute.xlu0 %4803
      %v4806 = vrot.slane %v4737, 5
      %4807 = vrot.lane.b32.xlu0 %v4806, 96
      %v4808 = vpop.permute.xlu0 %4807
      %v4810 = vmul.f32 %v4804, %v4808
      %vm4811 = vcmp.gt.f32.partialorder %v4810, 0.0
      %v4812 = vsel %vm4811, 0.0, %v4800
      %4814 = vset.pattern.permute.xlu0 6
      %4815 = vperm.xlu0 %4814, %v4812
      %v4816 = vpop.permute.xlu0 %4815
      %v4818 = vrot.slane %v4737, 6
      %4819 = vrot.lane.b32.xlu0 %v4818, 96
      %v4820 = vpop.permute.xlu0 %4819
      %v4822 = vmul.f32 %v4816, %v4820
      %vm4823 = vcmp.gt.f32.partialorder %v4822, 0.0
      %v4824 = vsel %vm4823, 0.0, %v4812
      %4826 = vset.pattern.permute.xlu0 7
      %4827 = vperm.xlu0 %4826, %v4824
      %v4828 = vpop.permute.xlu0 %4827
      %v4830 = vrot.slane %v4737, 7
      %4831 = vrot.lane.b32.xlu0 %v4830, 96
      %v4832 = vpop.permute.xlu0 %4831
      %v4834 = vmul.f32 %v4828, %v4832
      %vm4835 = vcmp.gt.f32.partialorder %v4834, 0.0
      %v4836 = vsel %vm4835, 0.0, %v4824
      %4838 = vset.pattern.permute.xlu0 8
      %4839 = vperm.xlu0 %4838, %v4836
      %v4840 = vpop.permute.xlu0 %4839
      %v4842 = vmul.f32 %v4840, %v4738
      %vm4843 = vcmp.gt.f32.partialorder %v4842, 0.0
      %4844 = vrot.lane.b32.xlu0 %v4836, 32
      %v4845 = vpop.permute.xlu0 %4844
      %v4847 = vsel %vm4843, 0.0, %v4845
      %4849 = vset.pattern.permute.xlu0 41
      %4850 = vperm.xlu0 %4849, %v4847
      %v4851 = vpop.permute.xlu0 %4850
      %v4854 = vrot.slane %v4738, 1
      %4855 = vrot.lane.b32.xlu0 %v4854, 96
      %v4856 = vpop.permute.xlu0 %4855
      %v4858 = vmul.f32 %v4851, %v4856
      %vm4859 = vcmp.gt.f32.partialorder %v4858, 0.0
      %4860 = vrot.lane.b32.xlu0 %v4847, 96
      %v4861 = vpop.permute.xlu0 %4860
      %v4863 = vsel %vm4859, 0.0, %v4861
      %4865 = vset.pattern.permute.xlu0 10
      %4866 = vperm.xlu0 %4865, %v4863
      %v4867 = vpop.permute.xlu0 %4866
      %v4869 = vrot.slane %v4738, 2
      %4870 = vrot.lane.b32.xlu0 %v4869, 96
      %v4871 = vpop.permute.xlu0 %4870
      %v4873 = vmul.f32 %v4867, %v4871
      %vm4874 = vcmp.gt.f32.partialorder %v4873, 0.0
      %v4875 = vsel %vm4874, 0.0, %v4863
      %4877 = vset.pattern.permute.xlu0 11
      %4878 = vperm.xlu0 %4877, %v4875
      %v4879 = vpop.permute.xlu0 %4878
      %v4881 = vrot.slane %v4738, 3
      %4882 = vrot.lane.b32.xlu0 %v4881, 96
      %v4883 = vpop.permute.xlu0 %4882
      %v4885 = vmul.f32 %v4879, %v4883
      %vm4886 = vcmp.gt.f32.partialorder %v4885, 0.0
      %v4887 = vsel %vm4886, 0.0, %v4875
      %4889 = vset.pattern.permute.xlu0 12
      %4890 = vperm.xlu0 %4889, %v4887
      %v4891 = vpop.permute.xlu0 %4890
      %v4893 = vrot.slane %v4738, 4
      %4894 = vrot.lane.b32.xlu0 %v4893, 96
      %v4895 = vpop.permute.xlu0 %4894
      %v4897 = vmul.f32 %v4891, %v4895
      %vm4898 = vcmp.gt.f32.partialorder %v4897, 0.0
      %v4899 = vsel %vm4898, 0.0, %v4887
      %4901 = vset.pattern.permute.xlu0 13
      %4902 = vperm.xlu0 %4901, %v4899
      %v4903 = vpop.permute.xlu0 %4902
      %v4905 = vrot.slane %v4738, 5
      %4906 = vrot.lane.b32.xlu0 %v4905, 96
      %v4907 = vpop.permute.xlu0 %4906
      %v4909 = vmul.f32 %v4903, %v4907
      %vm4910 = vcmp.gt.f32.partialorder %v4909, 0.0
      %v4911 = vsel %vm4910, 0.0, %v4899
      %4913 = vset.pattern.permute.xlu0 14
      %4914 = vperm.xlu0 %4913, %v4911
      %v4915 = vpop.permute.xlu0 %4914
      %v4917 = vrot.slane %v4738, 6
      %4918 = vrot.lane.b32.xlu0 %v4917, 96
      %v4919 = vpop.permute.xlu0 %4918
      %v4921 = vmul.f32 %v4915, %v4919
      %vm4922 = vcmp.gt.f32.partialorder %v4921, 0.0
      %v4923 = vsel %vm4922, 0.0, %v4911
      %4925 = vset.pattern.permute.xlu0 15
      %4926 = vperm.xlu0 %4925, %v4923
      %v4927 = vpop.permute.xlu0 %4926
      %v4929 = vrot.slane %v4738, 7
      %4930 = vrot.lane.b32.xlu0 %v4929, 96
      %v4931 = vpop.permute.xlu0 %4930
      %v4933 = vmul.f32 %v4927, %v4931
      %vm4934 = vcmp.gt.f32.partialorder %v4933, 0.0
      %v4935 = vsel %vm4934, 0.0, %v4923
      %4937 = vset.pattern.permute.xlu0 16
      %4938 = vperm.xlu0 %4937, %v4935
      %v4939 = vpop.permute.xlu0 %4938
      %v4941 = vmul.f32 %v4939, %v4739
      %vm4942 = vcmp.gt.f32.partialorder %v4941, 0.0
      %4943 = vrot.lane.b32.xlu0 %v4935, 32
      %v4944 = vpop.permute.xlu0 %4943
      %v4946 = vsel %vm4942, 0.0, %v4944
      %4948 = vset.pattern.permute.xlu0 49
      %4949 = vperm.xlu0 %4948, %v4946
      %v4950 = vpop.permute.xlu0 %4949
      %v4953 = vrot.slane %v4739, 1
      %4954 = vrot.lane.b32.xlu0 %v4953, 96
      %v4955 = vpop.permute.xlu0 %4954
      %v4957 = vmul.f32 %v4950, %v4955
      %vm4958 = vcmp.gt.f32.partialorder %v4957, 0.0
      %4959 = vrot.lane.b32.xlu0 %v4946, 96
      %v4960 = vpop.permute.xlu0 %4959
      %v4962 = vsel %vm4958, 0.0, %v4960
      %4964 = vset.pattern.permute.xlu0 18
      %4965 = vperm.xlu0 %4964, %v4962
      %v4966 = vpop.permute.xlu0 %4965
      %v4968 = vrot.slane %v4739, 2
      %4969 = vrot.lane.b32.xlu0 %v4968, 96
      %v4970 = vpop.permute.xlu0 %4969
      %v4972 = vmul.f32 %v4966, %v4970
      %vm4973 = vcmp.gt.f32.partialorder %v4972, 0.0
      %v4974 = vsel %vm4973, 0.0, %v4962
      %4976 = vset.pattern.permute.xlu0 19
      %4977 = vperm.xlu0 %4976, %v4974
      %v4978 = vpop.permute.xlu0 %4977
      %v4980 = vrot.slane %v4739, 3
      %4981 = vrot.lane.b32.xlu0 %v4980, 96
      %v4982 = vpop.permute.xlu0 %4981
      %v4984 = vmul.f32 %v4978, %v4982
      %vm4985 = vcmp.gt.f32.partialorder %v4984, 0.0
      %v4986 = vsel %vm4985, 0.0, %v4974
      %4988 = vset.pattern.permute.xlu0 20
      %4989 = vperm.xlu0 %4988, %v4986
      %v4990 = vpop.permute.xlu0 %4989
      %v4992 = vrot.slane %v4739, 4
      %4993 = vrot.lane.b32.xlu0 %v4992, 96
      %v4994 = vpop.permute.xlu0 %4993
      %v4996 = vmul.f32 %v4990, %v4994
      %vm4997 = vcmp.gt.f32.partialorder %v4996, 0.0
      %v4998 = vsel %vm4997, 0.0, %v4986
      %5000 = vset.pattern.permute.xlu0 21
      %5001 = vperm.xlu0 %5000, %v4998
      %v5002 = vpop.permute.xlu0 %5001
      %v5004 = vrot.slane %v4739, 5
      %5005 = vrot.lane.b32.xlu0 %v5004, 96
      %v5006 = vpop.permute.xlu0 %5005
      %v5008 = vmul.f32 %v5002, %v5006
      %vm5009 = vcmp.gt.f32.partialorder %v5008, 0.0
      %v5010 = vsel %vm5009, 0.0, %v4998
      %5012 = vset.pattern.permute.xlu0 22
      %5013 = vperm.xlu0 %5012, %v5010
      %v5014 = vpop.permute.xlu0 %5013
      %v5016 = vrot.slane %v4739, 6
      %5017 = vrot.lane.b32.xlu0 %v5016, 96
      %v5018 = vpop.permute.xlu0 %5017
      %v5020 = vmul.f32 %v5014, %v5018
      %vm5021 = vcmp.gt.f32.partialorder %v5020, 0.0
      %v5022 = vsel %vm5021, 0.0, %v5010
      %5024 = vset.pattern.permute.xlu0 23
      %5025 = vperm.xlu0 %5024, %v5022
      %v5026 = vpop.permute.xlu0 %5025
      %v5028 = vrot.slane %v4739, 7
      %5029 = vrot.lane.b32.xlu0 %v5028, 96
      %v5030 = vpop.permute.xlu0 %5029
      %v5032 = vmul.f32 %v5026, %v5030
      %vm5033 = vcmp.gt.f32.partialorder %v5032, 0.0
      %v5034 = vsel %vm5033, 0.0, %v5022
      %5036 = vset.pattern.permute.xlu0 24
      %5037 = vperm.xlu0 %5036, %v5034
      %v5038 = vpop.permute.xlu0 %5037
      %v5040 = vmul.f32 %v5038, %v4740
      %vm5041 = vcmp.gt.f32.partialorder %v5040, 0.0
      %5042 = vrot.lane.b32.xlu0 %v5034, 32
      %v5043 = vpop.permute.xlu0 %5042
      %v5045 = vsel %vm5041, 0.0, %v5043
      %5047 = vset.pattern.permute.xlu0 57
      %5048 = vperm.xlu0 %5047, %v5045
      %v5049 = vpop.permute.xlu0 %5048
      %v5052 = vrot.slane %v4740, 1
      %5053 = vrot.lane.b32.xlu0 %v5052, 96
      %v5054 = vpop.permute.xlu0 %5053
      %v5056 = vmul.f32 %v5049, %v5054
      %vm5057 = vcmp.gt.f32.partialorder %v5056, 0.0
      %5058 = vrot.lane.b32.xlu0 %v5045, 96
      %v5059 = vpop.permute.xlu0 %5058
      %v5061 = vsel %vm5057, 0.0, %v5059
      %5063 = vset.pattern.permute.xlu0 26
      %5064 = vperm.xlu0 %5063, %v5061
      %v5065 = vpop.permute.xlu0 %5064
      %v5067 = vrot.slane %v4740, 2
      %5068 = vrot.lane.b32.xlu0 %v5067, 96
      %v5069 = vpop.permute.xlu0 %5068
      %v5071 = vmul.f32 %v5065, %v5069
      %vm5072 = vcmp.gt.f32.partialorder %v5071, 0.0
      %v5073 = vsel %vm5072, 0.0, %v5061
      %5075 = vset.pattern.permute.xlu0 27
      %5076 = vperm.xlu0 %5075, %v5073
      %v5077 = vpop.permute.xlu0 %5076
      %v5079 = vrot.slane %v4740, 3
      %5080 = vrot.lane.b32.xlu0 %v5079, 96
      %v5081 = vpop.permute.xlu0 %5080
      %v5083 = vmul.f32 %v5077, %v5081
      %vm5084 = vcmp.gt.f32.partialorder %v5083, 0.0
      %v5085 = vsel %vm5084, 0.0, %v5073
      %5087 = vset.pattern.permute.xlu0 28
      %5088 = vperm.xlu0 %5087, %v5085
      %v5089 = vpop.permute.xlu0 %5088
      %v5091 = vrot.slane %v4740, 4
      %5092 = vrot.lane.b32.xlu0 %v5091, 96
      %v5093 = vpop.permute.xlu0 %5092
      %v5095 = vmul.f32 %v5089, %v5093
      %vm5096 = vcmp.gt.f32.partialorder %v5095, 0.0
      %v5097 = vsel %vm5096, 0.0, %v5085
      %5099 = vset.pattern.permute.xlu0 29
      %5100 = vperm.xlu0 %5099, %v5097
      %v5101 = vpop.permute.xlu0 %5100
      %v5103 = vrot.slane %v4740, 5
      %5104 = vrot.lane.b32.xlu0 %v5103, 96
      %v5105 = vpop.permute.xlu0 %5104
      %v5107 = vmul.f32 %v5101, %v5105
      %vm5108 = vcmp.gt.f32.partialorder %v5107, 0.0
      %v5109 = vsel %vm5108, 0.0, %v5097
      %5111 = vset.pattern.permute.xlu0 30
      %5112 = vperm.xlu0 %5111, %v5109
      %v5113 = vpop.permute.xlu0 %5112
      %v5115 = vrot.slane %v4740, 6
      %5116 = vrot.lane.b32.xlu0 %v5115, 96
      %v5117 = vpop.permute.xlu0 %5116
      %v5119 = vmul.f32 %v5113, %v5117
      %vm5120 = vcmp.gt.f32.partialorder %v5119, 0.0
      %v5121 = vsel %vm5120, 0.0, %v5109
      %5123 = vset.pattern.permute.xlu0 31
      %5124 = vperm.xlu0 %5123, %v5121
      %v5125 = vpop.permute.xlu0 %5124
      %v5127 = vrot.slane %v4740, 7
      %5128 = vrot.lane.b32.xlu0 %v5127, 96
      %v5129 = vpop.permute.xlu0 %5128
      %v5131 = vmul.f32 %v5125, %v5129
      %vm5132 = vcmp.gt.f32.partialorder %v5131, 0.0
      %v5133 = vsel %vm5132, 0.0, %v5121
      %v5134 = vlaneseq
      %v5135 = vshrl.u32 %v5134, 7
      %v5136 = vsub.s32 0, %v5135
      %v5137 = vrot.slane %v5133, %v5136
      %v5138 = vld [vmem:[#allocation2 + $0x140] sm:$0xff]
      %v5139 = vld [vmem:[#allocation2 + $0x150] sm:$0xff]
      %v5140 = vld [vmem:[#allocation2 + $0x160] sm:$0xff]
      %v5141 = vld [vmem:[#allocation2 + $0x170] sm:$0xff]
      %v5143 = vsel %vm2781, %v5137, 0
      %5145 = vmatprep.subr.mxu0 %v4737
      %5146 = vmatpush1.msra.mxu0 %v5138
      %5147 = vmatprep.subr.mxu0 %v4738
      %5148 = vmatpush1.msra.mxu0 %v5139
      %5149 = vmatprep.subr.mxu0 %v4739
      %5150 = vmatpush1.msra.mxu0 %v5140
      %5151 = vmatprep.subr.mxu0 %v4740
      %5152 = vmatpush1.msra.mxu0 %v5141
      %5153 = vmatprep.subr.mxu0 0.0
      %5154 = vmatpush1.msra.mxu0 0.0
      %5155 = vmatprep.subr.mxu0 0.0
      %5156 = vmatpush1.msra.mxu0 0.0
      %5157 = vmatprep.subr.mxu0 0.0
      %5158 = vmatpush1.msra.mxu0 0.0
      %5159 = vmatprep.subr.mxu0 0.0
      %5160 = vmatpush1.msra.mxu0 0.0
      %5161 = vmatprep.subr.mxu0 0.0
      %5162 = vmatpush1.msra.mxu0 0.0
      %5163 = vmatprep.subr.mxu0 0.0
      %5164 = vmatpush1.msra.mxu0 0.0
      %5165 = vmatprep.subr.mxu0 0.0
      %5166 = vmatpush1.msra.mxu0 0.0
      %5167 = vmatprep.subr.mxu0 0.0
      %5168 = vmatpush1.msra.mxu0 0.0
      %5169 = vmatprep.subr.mxu0 0.0
      %5170 = vmatpush1.msra.mxu0 0.0
      %5171 = vmatprep.subr.mxu0 0.0
      %5172 = vmatpush1.msra.mxu0 0.0
      %5173 = vmatprep.subr.mxu0 0.0
      %5174 = vmatpush1.msra.mxu0 0.0
      %5175 = vmatprep.subr.mxu0 0.0
      %5176 = vmatpush1.msra.mxu0 0.0
      %5177 = vmatprep.subr.mxu0 0.0
      %5178 = vmatpush1.msra.mxu0 0.0
      %5179 = vmatprep.subr.mxu0 0.0
      %5180 = vmatpush1.msra.mxu0 0.0
      %5181 = vmatprep.subr.mxu0 0.0
      %5182 = vmatpush1.msra.mxu0 0.0
      %5183 = vmatprep.subr.mxu0 0.0
      %5184 = vmatpush1.msra.mxu0 0.0
      %5185 = vmatprep.subr.mxu0 0.0
      %5186 = vmatpush1.msra.mxu0 0.0
      %5187 = vmatprep.subr.mxu0 0.0
      %5188 = vmatpush1.msra.mxu0 0.0
      %5189 = vmatprep.subr.mxu0 0.0
      %5190 = vmatpush1.msra.mxu0 0.0
      %5191 = vmatprep.subr.mxu0 0.0
      %5192 = vmatpush1.msra.mxu0 0.0
      %5193 = vmatprep.subr.mxu0 0.0
      %5194 = vmatpush1.msra.mxu0 0.0
      %5195 = vmatprep.subr.mxu0 0.0
      %5196 = vmatpush1.msra.mxu0 0.0
      %5197 = vmatprep.subr.mxu0 0.0
      %5198 = vmatpush1.msra.mxu0 0.0
      %5199 = vmatprep.subr.mxu0 0.0
      %5200 = vmatpush1.msra.mxu0 0.0
      %5201 = vmatprep.subr.mxu0 0.0
      %5202 = vmatpush1.msra.mxu0 0.0
      %5203 = vmatprep.subr.mxu0 0.0
      %5204 = vmatpush1.msra.mxu0 0.0
      %5205 = vmatprep.subr.mxu0 0.0
      %5206 = vmatpush1.msra.mxu0 0.0
      %5207 = vmatprep.subr.mxu0 0.0
      %5208 = vmatpush1.msra.mxu0 0.0
      %5209 = vmatprep.mubr.f32.mxu0 0.0
      %5210 = vmatmul.mubr.f32.gmra.mrb[0].mxu0 %v5143
      %v5211 = vpop.f32.mrb[0].mxu0
      %v5212 = vadd.f32 0.0, %v5211
      %v5213 = vpop.f32.mrb[0].mxu0
      %v5214 = vadd.f32 0.0, %v5213
      %5215 = vdwg.mxu0
      %vm5216 = vcmp.gt.f32.partialorder %v5212, 0.0
      %vm5217 = vcmp.gt.f32.partialorder %v5214, 0.0
      %v5218 = vsel %vm5216, 0.0, %v4735
      %v5219 = vsel %vm5217, 0.0, %v4736
      %v5220 = vld [vmem:[#allocation2 + $0x188] sm:$0xff]
      %v5221 = vld [vmem:[#allocation2 + $0x198] sm:$0xff]
      %v5222 = vld [vmem:[#allocation2 + $0x1a8] sm:$0xff]
      %v5223 = vld [vmem:[#allocation2 + $0x1b8] sm:$0xff]
      %5225 = vset.pattern.permute.xlu0 64
      %5226 = vperm.xlu0 %5225, %v5219
      %v5227 = vpop.permute.xlu0 %5226
      %v5229 = vmul.f32 %v5227, %v5220
      %vm5230 = vcmp.gt.f32.partialorder %v5229, 0.0
      %v5231 = vsel %vm5230, 0.0, %v5219
      %5233 = vset.pattern.permute.xlu0 65
      %5234 = vperm.xlu0 %5233, %v5231
      %v5235 = vpop.permute.xlu0 %5234
      %v5238 = vrot.slane %v5220, 1
      %5239 = vrot.lane.b32.xlu0 %v5238, 64
      %v5240 = vpop.permute.xlu0 %5239
      %v5242 = vmul.f32 %v5235, %v5240
      %vm5243 = vcmp.gt.f32.partialorder %v5242, 0.0
      %5244 = vrot.lane.b32.xlu0 %v5231, 64
      %v5245 = vpop.permute.xlu0 %5244
      %v5247 = vsel %vm5243, 0.0, %v5245
      %5249 = vset.pattern.permute.xlu0 2
      %5250 = vperm.xlu0 %5249, %v5247
      %v5251 = vpop.permute.xlu0 %5250
      %v5253 = vrot.slane %v5220, 2
      %5254 = vrot.lane.b32.xlu0 %v5253, 64
      %v5255 = vpop.permute.xlu0 %5254
      %v5257 = vmul.f32 %v5251, %v5255
      %vm5258 = vcmp.gt.f32.partialorder %v5257, 0.0
      %v5259 = vsel %vm5258, 0.0, %v5247
      %5261 = vset.pattern.permute.xlu0 3
      %5262 = vperm.xlu0 %5261, %v5259
      %v5263 = vpop.permute.xlu0 %5262
      %v5265 = vrot.slane %v5220, 3
      %5266 = vrot.lane.b32.xlu0 %v5265, 64
      %v5267 = vpop.permute.xlu0 %5266
      %v5269 = vmul.f32 %v5263, %v5267
      %vm5270 = vcmp.gt.f32.partialorder %v5269, 0.0
      %v5271 = vsel %vm5270, 0.0, %v5259
      %5273 = vset.pattern.permute.xlu0 4
      %5274 = vperm.xlu0 %5273, %v5271
      %v5275 = vpop.permute.xlu0 %5274
      %v5277 = vrot.slane %v5220, 4
      %5278 = vrot.lane.b32.xlu0 %v5277, 64
      %v5279 = vpop.permute.xlu0 %5278
      %v5281 = vmul.f32 %v5275, %v5279
      %vm5282 = vcmp.gt.f32.partialorder %v5281, 0.0
      %v5283 = vsel %vm5282, 0.0, %v5271
      %5285 = vset.pattern.permute.xlu0 5
      %5286 = vperm.xlu0 %5285, %v5283
      %v5287 = vpop.permute.xlu0 %5286
      %v5289 = vrot.slane %v5220, 5
      %5290 = vrot.lane.b32.xlu0 %v5289, 64
      %v5291 = vpop.permute.xlu0 %5290
      %v5293 = vmul.f32 %v5287, %v5291
      %vm5294 = vcmp.gt.f32.partialorder %v5293, 0.0
      %v5295 = vsel %vm5294, 0.0, %v5283
      %5297 = vset.pattern.permute.xlu0 6
      %5298 = vperm.xlu0 %5297, %v5295
      %v5299 = vpop.permute.xlu0 %5298
      %v5301 = vrot.slane %v5220, 6
      %5302 = vrot.lane.b32.xlu0 %v5301, 64
      %v5303 = vpop.permute.xlu0 %5302
      %v5305 = vmul.f32 %v5299, %v5303
      %vm5306 = vcmp.gt.f32.partialorder %v5305, 0.0
      %v5307 = vsel %vm5306, 0.0, %v5295
      %5309 = vset.pattern.permute.xlu0 7
      %5310 = vperm.xlu0 %5309, %v5307
      %v5311 = vpop.permute.xlu0 %5310
      %v5313 = vrot.slane %v5220, 7
      %5314 = vrot.lane.b32.xlu0 %v5313, 64
      %v5315 = vpop.permute.xlu0 %5314
      %v5317 = vmul.f32 %v5311, %v5315
      %vm5318 = vcmp.gt.f32.partialorder %v5317, 0.0
      %v5319 = vsel %vm5318, 0.0, %v5307
      %5321 = vset.pattern.permute.xlu0 8
      %5322 = vperm.xlu0 %5321, %v5319
      %v5323 = vpop.permute.xlu0 %5322
      %v5325 = vmul.f32 %v5323, %v5221
      %vm5326 = vcmp.gt.f32.partialorder %v5325, 0.0
      %5327 = vrot.lane.b32.xlu0 %v5319, 64
      %v5328 = vpop.permute.xlu0 %5327
      %v5330 = vsel %vm5326, 0.0, %v5328
      %5332 = vset.pattern.permute.xlu0 73
      %5333 = vperm.xlu0 %5332, %v5330
      %v5334 = vpop.permute.xlu0 %5333
      %v5337 = vrot.slane %v5221, 1
      %5338 = vrot.lane.b32.xlu0 %v5337, 64
      %v5339 = vpop.permute.xlu0 %5338
      %v5341 = vmul.f32 %v5334, %v5339
      %vm5342 = vcmp.gt.f32.partialorder %v5341, 0.0
      %5343 = vrot.lane.b32.xlu0 %v5330, 64
      %v5344 = vpop.permute.xlu0 %5343
      %v5346 = vsel %vm5342, 0.0, %v5344
      %5348 = vset.pattern.permute.xlu0 10
      %5349 = vperm.xlu0 %5348, %v5346
      %v5350 = vpop.permute.xlu0 %5349
      %v5352 = vrot.slane %v5221, 2
      %5353 = vrot.lane.b32.xlu0 %v5352, 64
      %v5354 = vpop.permute.xlu0 %5353
      %v5356 = vmul.f32 %v5350, %v5354
      %vm5357 = vcmp.gt.f32.partialorder %v5356, 0.0
      %v5358 = vsel %vm5357, 0.0, %v5346
      %5360 = vset.pattern.permute.xlu0 11
      %5361 = vperm.xlu0 %5360, %v5358
      %v5362 = vpop.permute.xlu0 %5361
      %v5364 = vrot.slane %v5221, 3
      %5365 = vrot.lane.b32.xlu0 %v5364, 64
      %v5366 = vpop.permute.xlu0 %5365
      %v5368 = vmul.f32 %v5362, %v5366
      %vm5369 = vcmp.gt.f32.partialorder %v5368, 0.0
      %v5370 = vsel %vm5369, 0.0, %v5358
      %5372 = vset.pattern.permute.xlu0 12
      %5373 = vperm.xlu0 %5372, %v5370
      %v5374 = vpop.permute.xlu0 %5373
      %v5376 = vrot.slane %v5221, 4
      %5377 = vrot.lane.b32.xlu0 %v5376, 64
      %v5378 = vpop.permute.xlu0 %5377
      %v5380 = vmul.f32 %v5374, %v5378
      %vm5381 = vcmp.gt.f32.partialorder %v5380, 0.0
      %v5382 = vsel %vm5381, 0.0, %v5370
      %5384 = vset.pattern.permute.xlu0 13
      %5385 = vperm.xlu0 %5384, %v5382
      %v5386 = vpop.permute.xlu0 %5385
      %v5388 = vrot.slane %v5221, 5
      %5389 = vrot.lane.b32.xlu0 %v5388, 64
      %v5390 = vpop.permute.xlu0 %5389
      %v5392 = vmul.f32 %v5386, %v5390
      %vm5393 = vcmp.gt.f32.partialorder %v5392, 0.0
      %v5394 = vsel %vm5393, 0.0, %v5382
      %5396 = vset.pattern.permute.xlu0 14
      %5397 = vperm.xlu0 %5396, %v5394
      %v5398 = vpop.permute.xlu0 %5397
      %v5400 = vrot.slane %v5221, 6
      %5401 = vrot.lane.b32.xlu0 %v5400, 64
      %v5402 = vpop.permute.xlu0 %5401
      %v5404 = vmul.f32 %v5398, %v5402
      %vm5405 = vcmp.gt.f32.partialorder %v5404, 0.0
      %v5406 = vsel %vm5405, 0.0, %v5394
      %5408 = vset.pattern.permute.xlu0 15
      %5409 = vperm.xlu0 %5408, %v5406
      %v5410 = vpop.permute.xlu0 %5409
      %v5412 = vrot.slane %v5221, 7
      %5413 = vrot.lane.b32.xlu0 %v5412, 64
      %v5414 = vpop.permute.xlu0 %5413
      %v5416 = vmul.f32 %v5410, %v5414
      %vm5417 = vcmp.gt.f32.partialorder %v5416, 0.0
      %v5418 = vsel %vm5417, 0.0, %v5406
      %5420 = vset.pattern.permute.xlu0 16
      %5421 = vperm.xlu0 %5420, %v5418
      %v5422 = vpop.permute.xlu0 %5421
      %v5424 = vmul.f32 %v5422, %v5222
      %vm5425 = vcmp.gt.f32.partialorder %v5424, 0.0
      %5426 = vrot.lane.b32.xlu0 %v5418, 64
      %v5427 = vpop.permute.xlu0 %5426
      %v5429 = vsel %vm5425, 0.0, %v5427
      %5431 = vset.pattern.permute.xlu0 81
      %5432 = vperm.xlu0 %5431, %v5429
      %v5433 = vpop.permute.xlu0 %5432
      %v5436 = vrot.slane %v5222, 1
      %5437 = vrot.lane.b32.xlu0 %v5436, 64
      %v5438 = vpop.permute.xlu0 %5437
      %v5440 = vmul.f32 %v5433, %v5438
      %vm5441 = vcmp.gt.f32.partialorder %v5440, 0.0
      %5442 = vrot.lane.b32.xlu0 %v5429, 64
      %v5443 = vpop.permute.xlu0 %5442
      %v5445 = vsel %vm5441, 0.0, %v5443
      %5447 = vset.pattern.permute.xlu0 18
      %5448 = vperm.xlu0 %5447, %v5445
      %v5449 = vpop.permute.xlu0 %5448
      %v5451 = vrot.slane %v5222, 2
      %5452 = vrot.lane.b32.xlu0 %v5451, 64
      %v5453 = vpop.permute.xlu0 %5452
      %v5455 = vmul.f32 %v5449, %v5453
      %vm5456 = vcmp.gt.f32.partialorder %v5455, 0.0
      %v5457 = vsel %vm5456, 0.0, %v5445
      %5459 = vset.pattern.permute.xlu0 19
      %5460 = vperm.xlu0 %5459, %v5457
      %v5461 = vpop.permute.xlu0 %5460
      %v5463 = vrot.slane %v5222, 3
      %5464 = vrot.lane.b32.xlu0 %v5463, 64
      %v5465 = vpop.permute.xlu0 %5464
      %v5467 = vmul.f32 %v5461, %v5465
      %vm5468 = vcmp.gt.f32.partialorder %v5467, 0.0
      %v5469 = vsel %vm5468, 0.0, %v5457
      %5471 = vset.pattern.permute.xlu0 20
      %5472 = vperm.xlu0 %5471, %v5469
      %v5473 = vpop.permute.xlu0 %5472
      %v5475 = vrot.slane %v5222, 4
      %5476 = vrot.lane.b32.xlu0 %v5475, 64
      %v5477 = vpop.permute.xlu0 %5476
      %v5479 = vmul.f32 %v5473, %v5477
      %vm5480 = vcmp.gt.f32.partialorder %v5479, 0.0
      %v5481 = vsel %vm5480, 0.0, %v5469
      %5483 = vset.pattern.permute.xlu0 21
      %5484 = vperm.xlu0 %5483, %v5481
      %v5485 = vpop.permute.xlu0 %5484
      %v5487 = vrot.slane %v5222, 5
      %5488 = vrot.lane.b32.xlu0 %v5487, 64
      %v5489 = vpop.permute.xlu0 %5488
      %v5491 = vmul.f32 %v5485, %v5489
      %vm5492 = vcmp.gt.f32.partialorder %v5491, 0.0
      %v5493 = vsel %vm5492, 0.0, %v5481
      %5495 = vset.pattern.permute.xlu0 22
      %5496 = vperm.xlu0 %5495, %v5493
      %v5497 = vpop.permute.xlu0 %5496
      %v5499 = vrot.slane %v5222, 6
      %5500 = vrot.lane.b32.xlu0 %v5499, 64
      %v5501 = vpop.permute.xlu0 %5500
      %v5503 = vmul.f32 %v5497, %v5501
      %vm5504 = vcmp.gt.f32.partialorder %v5503, 0.0
      %v5505 = vsel %vm5504, 0.0, %v5493
      %5507 = vset.pattern.permute.xlu0 23
      %5508 = vperm.xlu0 %5507, %v5505
      %v5509 = vpop.permute.xlu0 %5508
      %v5511 = vrot.slane %v5222, 7
      %5512 = vrot.lane.b32.xlu0 %v5511, 64
      %v5513 = vpop.permute.xlu0 %5512
      %v5515 = vmul.f32 %v5509, %v5513
      %vm5516 = vcmp.gt.f32.partialorder %v5515, 0.0
      %v5517 = vsel %vm5516, 0.0, %v5505
      %5519 = vset.pattern.permute.xlu0 24
      %5520 = vperm.xlu0 %5519, %v5517
      %v5521 = vpop.permute.xlu0 %5520
      %v5523 = vmul.f32 %v5521, %v5223
      %vm5524 = vcmp.gt.f32.partialorder %v5523, 0.0
      %5525 = vrot.lane.b32.xlu0 %v5517, 64
      %v5526 = vpop.permute.xlu0 %5525
      %v5528 = vsel %vm5524, 0.0, %v5526
      %5530 = vset.pattern.permute.xlu0 89
      %5531 = vperm.xlu0 %5530, %v5528
      %v5532 = vpop.permute.xlu0 %5531
      %v5535 = vrot.slane %v5223, 1
      %5536 = vrot.lane.b32.xlu0 %v5535, 64
      %v5537 = vpop.permute.xlu0 %5536
      %v5539 = vmul.f32 %v5532, %v5537
      %vm5540 = vcmp.gt.f32.partialorder %v5539, 0.0
      %5541 = vrot.lane.b32.xlu0 %v5528, 64
      %v5542 = vpop.permute.xlu0 %5541
      %v5544 = vsel %vm5540, 0.0, %v5542
      %5546 = vset.pattern.permute.xlu0 26
      %5547 = vperm.xlu0 %5546, %v5544
      %v5548 = vpop.permute.xlu0 %5547
      %v5550 = vrot.slane %v5223, 2
      %5551 = vrot.lane.b32.xlu0 %v5550, 64
      %v5552 = vpop.permute.xlu0 %5551
      %v5554 = vmul.f32 %v5548, %v5552
      %vm5555 = vcmp.gt.f32.partialorder %v5554, 0.0
      %v5556 = vsel %vm5555, 0.0, %v5544
      %5558 = vset.pattern.permute.xlu0 27
      %5559 = vperm.xlu0 %5558, %v5556
      %v5560 = vpop.permute.xlu0 %5559
      %v5562 = vrot.slane %v5223, 3
      %5563 = vrot.lane.b32.xlu0 %v5562, 64
      %v5564 = vpop.permute.xlu0 %5563
      %v5566 = vmul.f32 %v5560, %v5564
      %vm5567 = vcmp.gt.f32.partialorder %v5566, 0.0
      %v5568 = vsel %vm5567, 0.0, %v5556
      %5570 = vset.pattern.permute.xlu0 28
      %5571 = vperm.xlu0 %5570, %v5568
      %v5572 = vpop.permute.xlu0 %5571
      %v5574 = vrot.slane %v5223, 4
      %5575 = vrot.lane.b32.xlu0 %v5574, 64
      %v5576 = vpop.permute.xlu0 %5575
      %v5578 = vmul.f32 %v5572, %v5576
      %vm5579 = vcmp.gt.f32.partialorder %v5578, 0.0
      %v5580 = vsel %vm5579, 0.0, %v5568
      %5582 = vset.pattern.permute.xlu0 29
      %5583 = vperm.xlu0 %5582, %v5580
      %v5584 = vpop.permute.xlu0 %5583
      %v5586 = vrot.slane %v5223, 5
      %5587 = vrot.lane.b32.xlu0 %v5586, 64
      %v5588 = vpop.permute.xlu0 %5587
      %v5590 = vmul.f32 %v5584, %v5588
      %vm5591 = vcmp.gt.f32.partialorder %v5590, 0.0
      %v5592 = vsel %vm5591, 0.0, %v5580
      %5594 = vset.pattern.permute.xlu0 30
      %5595 = vperm.xlu0 %5594, %v5592
      %v5596 = vpop.permute.xlu0 %5595
      %v5598 = vrot.slane %v5223, 6
      %5599 = vrot.lane.b32.xlu0 %v5598, 64
      %v5600 = vpop.permute.xlu0 %5599
      %v5602 = vmul.f32 %v5596, %v5600
      %vm5603 = vcmp.gt.f32.partialorder %v5602, 0.0
      %v5604 = vsel %vm5603, 0.0, %v5592
      %5606 = vset.pattern.permute.xlu0 31
      %5607 = vperm.xlu0 %5606, %v5604
      %v5608 = vpop.permute.xlu0 %5607
      %v5610 = vrot.slane %v5223, 7
      %5611 = vrot.lane.b32.xlu0 %v5610, 64
      %v5612 = vpop.permute.xlu0 %5611
      %v5614 = vmul.f32 %v5608, %v5612
      %vm5615 = vcmp.gt.f32.partialorder %v5614, 0.0
      %v5616 = vsel %vm5615, 0.0, %v5604
      %v5617 = vlaneseq
      %v5618 = vshrl.u32 %v5617, 7
      %v5619 = vsub.s32 0, %v5618
      %v5620 = vrot.slane %v5616, %v5619
      %v5621 = vld [vmem:[#allocation2 + $0x180] sm:$0xff]
      %v5622 = vld [vmem:[#allocation2 + $0x190] sm:$0xff]
      %v5623 = vld [vmem:[#allocation2 + $0x1a0] sm:$0xff]
      %v5624 = vld [vmem:[#allocation2 + $0x1b0] sm:$0xff]
      %v5626 = vsel %vm2781, %v5620, 0
      %5628 = vmatprep.subr.mxu0 %v5220
      %5629 = vmatpush1.msra.mxu0 %v5621
      %5630 = vmatprep.subr.mxu0 %v5221
      %5631 = vmatpush1.msra.mxu0 %v5622
      %5632 = vmatprep.subr.mxu0 %v5222
      %5633 = vmatpush1.msra.mxu0 %v5623
      %5634 = vmatprep.subr.mxu0 %v5223
      %5635 = vmatpush1.msra.mxu0 %v5624
      %5636 = vmatprep.subr.mxu0 0.0
      %5637 = vmatpush1.msra.mxu0 0.0
      %5638 = vmatprep.subr.mxu0 0.0
      %5639 = vmatpush1.msra.mxu0 0.0
      %5640 = vmatprep.subr.mxu0 0.0
      %5641 = vmatpush1.msra.mxu0 0.0
      %5642 = vmatprep.subr.mxu0 0.0
      %5643 = vmatpush1.msra.mxu0 0.0
      %5644 = vmatprep.subr.mxu0 0.0
      %5645 = vmatpush1.msra.mxu0 0.0
      %5646 = vmatprep.subr.mxu0 0.0
      %5647 = vmatpush1.msra.mxu0 0.0
      %5648 = vmatprep.subr.mxu0 0.0
      %5649 = vmatpush1.msra.mxu0 0.0
      %5650 = vmatprep.subr.mxu0 0.0
      %5651 = vmatpush1.msra.mxu0 0.0
      %5652 = vmatprep.subr.mxu0 0.0
      %5653 = vmatpush1.msra.mxu0 0.0
      %5654 = vmatprep.subr.mxu0 0.0
      %5655 = vmatpush1.msra.mxu0 0.0
      %5656 = vmatprep.subr.mxu0 0.0
      %5657 = vmatpush1.msra.mxu0 0.0
      %5658 = vmatprep.subr.mxu0 0.0
      %5659 = vmatpush1.msra.mxu0 0.0
      %5660 = vmatprep.subr.mxu0 0.0
      %5661 = vmatpush1.msra.mxu0 0.0
      %5662 = vmatprep.subr.mxu0 0.0
      %5663 = vmatpush1.msra.mxu0 0.0
      %5664 = vmatprep.subr.mxu0 0.0
      %5665 = vmatpush1.msra.mxu0 0.0
      %5666 = vmatprep.subr.mxu0 0.0
      %5667 = vmatpush1.msra.mxu0 0.0
      %5668 = vmatprep.subr.mxu0 0.0
      %5669 = vmatpush1.msra.mxu0 0.0
      %5670 = vmatprep.subr.mxu0 0.0
      %5671 = vmatpush1.msra.mxu0 0.0
      %5672 = vmatprep.subr.mxu0 0.0
      %5673 = vmatpush1.msra.mxu0 0.0
      %5674 = vmatprep.subr.mxu0 0.0
      %5675 = vmatpush1.msra.mxu0 0.0
      %5676 = vmatprep.subr.mxu0 0.0
      %5677 = vmatpush1.msra.mxu0 0.0
      %5678 = vmatprep.subr.mxu0 0.0
      %5679 = vmatpush1.msra.mxu0 0.0
      %5680 = vmatprep.subr.mxu0 0.0
      %5681 = vmatpush1.msra.mxu0 0.0
      %5682 = vmatprep.subr.mxu0 0.0
      %5683 = vmatpush1.msra.mxu0 0.0
      %5684 = vmatprep.subr.mxu0 0.0
      %5685 = vmatpush1.msra.mxu0 0.0
      %5686 = vmatprep.subr.mxu0 0.0
      %5687 = vmatpush1.msra.mxu0 0.0
      %5688 = vmatprep.subr.mxu0 0.0
      %5689 = vmatpush1.msra.mxu0 0.0
      %5690 = vmatprep.subr.mxu0 0.0
      %5691 = vmatpush1.msra.mxu0 0.0
      %5692 = vmatprep.mubr.f32.mxu0 0.0
      %5693 = vmatmul.mubr.f32.gmra.mrb[0].mxu0 %v5626
      %v5694 = vpop.f32.mrb[0].mxu0
      %v5695 = vadd.f32 0.0, %v5694
      %v5696 = vpop.f32.mrb[0].mxu0
      %v5697 = vadd.f32 0.0, %v5696
      %5698 = vdwg.mxu0
      %vm5699 = vcmp.gt.f32.partialorder %v5695, 0.0
      %vm5700 = vcmp.gt.f32.partialorder %v5697, 0.0
      %v5701 = vsel %vm5699, 0.0, %v5218
      %v5702 = vsel %vm5700, 0.0, %v5219
      %v5703 = vcvt.f32.s32.to.zero.pseudo %v5701
      %v5704 = vcvt.f32.s32.to.zero.pseudo %v5702
      %v5705 = vcombine.low %v5703, %v5704
      %v5707 = vunpack.c.l.s4 1966171168
      %v5708 = vunpack.c.0.s8 %v5707
      %v5709 = vlaneseq
      %v5710 = vshrl.u32 %v5709, 7
      %v5711 = vsub.s32 %v5708, %v5710
      %v5712 = vrot.slane %v5705, %v5711
      %v5714 = vunpack.c.l.s4 1966171168
      %v5715 = vunpack.c.0.s8 %v5714
      %v5716 = vlaneseq
      %v5717 = vshrl.u32 %v5716, 7
      %v5718 = vsub.s32 %v5715, %v5717
      %v5719 = vrot.slane %v5712, %v5718
      %v5720 = vlaneseq
      %vm5721 = vcmp.ge.s32.totalorder %v5720, 0
      %vm5722 = vcmp.lt.s32.totalorder %v5720, 256
      %vm5723 = vmand %vm5721, %vm5722
      %5724 = vst.msk [vmem:[%s158] sm:$0x3] %vm5723, %v5719
      %p5725 = scmp.lt.s32.totalorder %s13, 1
      %s5726 = scalar_select %p5725, %s13, 1
      %s5727 = smul.addr %s5726, 2
      %s5728 = scalar_lea.vmem %s2, %s5727
      // Predicated region
      $region29: #{single_label_nms.3} parent=27 // pred_check
        %p5729 = pneg %p83
      $region30: #{single_label_nms.3} parent=27 // pred_check_branch
        %5731 = sbr.rel (%p5729) target = $region32
      $region31: #{single_label_nms.3} parent=27 // pred_region
        _
      $region32: #{single_label_nms.3} parent=27 // pred_fallthru
        _
    $region28: #{single_label_nms.3} parent=5 // pred_fallthru
      _
    %p5732 = scmp.le.s32.totalorder 2, %s8
    // Predicated region
    $region33: #{single_label_nms.3} parent=5 // pred_check
      %p5733 = pneg %p5732
    $region34: #{single_label_nms.3} parent=5 // pred_check_branch
      %5735 = sbr.rel (%p5733) target = $region36
    $region35: #{single_label_nms.3} parent=5 // pred_region
      %s5736 = ssub.s32 %s8, 2
      // Predicated region
      $region37: #{single_label_nms.3} parent=35 // pred_check
        %p5737 = pneg %p89
      $region38: #{single_label_nms.3} parent=35 // pred_check_branch
        %5739 = sbr.rel (%p5737) target = $region40
      $region39: #{single_label_nms.3} parent=35 // pred_region
        %p5740 = scmp.lt.s32.totalorder %s14, 1
        %s5741 = scalar_select %p5740, %s14, 1
        %s5742 = smul.addr %s5741, 2
        %s5743 = scalar_lea.vmem %s2, %s5742
      $region40: #{single_label_nms.3} parent=35 // pred_fallthru
        _
    $region36: #{single_label_nms.3} parent=5 // pred_fallthru
      _
  $region6: #{single_label_nms.3} parent=0 // loop_footer
    %s12 = sadd.s32 1, %s8
  $region7: #{single_label_nms.3} parent=0 // loop_footer_branch
    %7 = sbr.rel target = $region3
  $region8: #{single_label_nms.3} parent=0 // loop_exit
    _

</llo_original>
